<compile_context>
chip_gen: v7x
topology: tpu7x:2x2x1
jax: 0.10.0
libtpu: 0.0.40
codegen_flags: <defaults>
</compile_context>

<pallas_src>
import math
import functools

import jax
import jax.numpy as jnp
from jax.experimental import pallas as pl
from jax.experimental.pallas import tpu as pltpu


# ---------------------------------------------------------------------------
# Pallas kernel: one grid step == one chunk of `tc` timesteps of ONE LSTM layer.
# gx_ref already contains x_t @ W_ih (bf16); the bias and h @ W_hh are applied here.
# h_n / c_n output refs double as the recurrent state (constant block index =>
# resident in VMEM across the whole grid, DMA'd back to HBM once at the end).
# Gate order in the 4H dim is [i, f, o, g] (permuted offline).
# ---------------------------------------------------------------------------
def _lstm_layer_kernel(gx_ref, b_ref, h0_ref, c0_ref, whh_ref,
                       y_ref, hn_ref, cn_ref, *, seq_len, padded_len, unroll):
    chunk = pl.program_id(0)
    tc_steps = gx_ref.shape[0]          # timesteps in this chunk (static)
    hidden = whh_ref.shape[0]           # H
    needs_mask = padded_len > seq_len   # static Python bool (padding present?)

    # Initialize the resident recurrent state from the provided initial state.
    @pl.when(chunk == 0)
    def _():
        hn_ref[...] = h0_ref[...]
        cn_ref[...] = c0_ref[...]

    # Symbolic VMEM read feeding the MXU each step; the constant-index block is fetched
    # from HBM once (single-buffered) -- no per-chunk VMEM->VMEM copy of W_hh.
    whh = whh_ref[...]                  # (H, 4H) bf16
    bias = b_ref[...]                   # (1, 4H) f32  (b_ih + b_hh, gate-permuted)
    t_base = chunk * tc_steps

    def step(ti, carry):
        h_prev, c_prev = carry          # f32 (B, H)
        # bf16 x bf16 -> f32 accumulate: single-pass MXU matmul.
        gates = (jnp.dot(h_prev.astype(whh.dtype), whh,
                         preferred_element_type=jnp.float32)
                 + gx_ref[ti] + bias)
        # Gate order [i, f, o, g]: one contiguous sigmoid + one tanh.
        ifo = jax.nn.sigmoid(gates[:, :3 * hidden])
        g = jnp.tanh(gates[:, 3 * hidden:])
        i_g = ifo[:, :hidden]
        f_g = ifo[:, hidden:2 * hidden]
        o_g = ifo[:, 2 * hidden:]
        c_new = f_g * c_prev + i_g * g
        h_new = o_g * jnp.tanh(c_new)
        y_ref[ti] = h_new.astype(y_ref.dtype)
        if needs_mask:
            # Padded tail steps must not advance the state (y rows are sliced off later).
            valid = (t_base + ti) < seq_len
            h_new = jnp.where(valid, h_new, h_prev)
            c_new = jnp.where(valid, c_new, c_prev)
        return h_new, c_new

    h_fin, c_fin = jax.lax.fori_loop(
        0, tc_steps, step, (hn_ref[...], cn_ref[...]), unroll=unroll)
    hn_ref[...] = h_fin
    cn_ref[...] = c_fin


def _const_block(shape, single_buffer):
    """BlockSpec for an input whose block never changes across the grid."""
    zeros = (0,) * len(shape)
    if single_buffer:
        # Constant block index: no need for double buffering, halve its VMEM.
        return pl.BlockSpec(shape, lambda c: zeros, pipeline_mode=pl.Buffered(1))
    return pl.BlockSpec(shape, lambda c: zeros)


def _run_layer(gx, bias, h0_l, c0_l, whh, *, seq_len, time_chunk, y_dtype,
               single_buffer_constants, vmem_limit_bytes, unroll=4):
    """Run the sequential recurrence of one LSTM layer over the (padded) sequence."""
    Tp, B, G = gx.shape                 # G = 4H, Tp = padded length
    H = whh.shape[0]
    n_chunks = Tp // time_chunk

    kernel = functools.partial(_lstm_layer_kernel, seq_len=seq_len,
                               padded_len=Tp, unroll=unroll)

    grid_spec = pltpu.PrefetchScalarGridSpec(
        num_scalar_prefetch=0,
        grid=(n_chunks,),
        in_specs=[
            pl.BlockSpec((time_chunk, B, G), lambda c: (c, 0, 0)),   # gx chunk (bf16)
            _const_block((1, G), single_buffer_constants),           # fused bias (f32)
            _const_block((B, H), single_buffer_constants),           # h0 (this layer)
            _const_block((B, H), single_buffer_constants),           # c0 (this layer)
            _const_block((H, G), single_buffer_constants),           # W_hh (bf16)
        ],
        out_specs=[
            pl.BlockSpec((time_chunk, B, H), lambda c: (c, 0, 0)),   # y chunk
            pl.BlockSpec((B, H), lambda c: (0, 0)),                  # h_n (resident state)
            pl.BlockSpec((B, H), lambda c: (0, 0)),                  # c_n (resident state)
        ],
    )

    return pl.pallas_call(
        kernel,
        grid_spec=grid_spec,
        out_shape=(
            jax.ShapeDtypeStruct((Tp, B, H), y_dtype),
            jax.ShapeDtypeStruct((B, H), jnp.float32),
            jax.ShapeDtypeStruct((B, H), jnp.float32),
        ),
        compiler_params=pltpu.CompilerParams(
            dimension_semantics=("arbitrary",),   # serial time recurrence
            vmem_limit_bytes=vmem_limit_bytes,
        ),
    )(gx, bias, h0_l, c0_l, whh)


# ---------------------------------------------------------------------------
# VMEM / chunk planning (static Python, derived from actual block shapes).
# ---------------------------------------------------------------------------
def _vmem_capacity_bytes():
    try:
        return int(pltpu.get_tpu_info().vmem_capacity_bytes)
    except Exception:
        return 64 * 1024 * 1024   # conservative (v7x per-TensorCore)


def _round_up(x, m):
    return ((x + m - 1) // m) * m


def _vmem_estimate_bytes(tc, B, H, single_buffer_constants):
    G = 4 * H
    wbuf = 1 if single_buffer_constants else 2
    whh = H * G * 2 * wbuf                  # bf16 recurrent weights (resident)
    gx = tc * B * G * 2 * 2                 # bf16 gx chunk, double-buffered
    y = tc * B * H * 4 * 2                  # worst-case f32 y chunk, double-buffered
    state = 4 * B * H * 4 * 2               # h0/c0 in + hn/cn out
    bias = G * 4 * wbuf
    return whh + gx + y + state + bias


def _plan(T, B, H, requested_tc, single_buffer_constants):
    cap = _vmem_capacity_bytes()
    # Bigger chunks on the 128 MiB-VMEM parts (v5e/v6e), smaller on 64 MiB (v7x).
    tc = requested_tc if requested_tc is not None else (64 if cap >= (100 << 20) else 16)
    tc = max(1, min(int(tc), _round_up(T, 8)))
    headroom = 8 << 20
    while tc > 8 and _vmem_estimate_bytes(tc, B, H, single_buffer_constants) > cap - headroom:
        tc //= 2
    est = _vmem_estimate_bytes(tc, B, H, single_buffer_constants)
    vmem_limit = int(min(cap - (4 << 20), max(est + headroom, 32 << 20)))
    n_chunks = -(-T // tc)
    Tp = n_chunks * tc
    return tc, Tp, vmem_limit


# ---------------------------------------------------------------------------
# Parameter preparation: gate permutation + transpose + bf16 cast, done ONCE,
# outside the per-call jitted path.
# ---------------------------------------------------------------------------
def _permute_gates(w_rows, H):
    """torch gate order [i, f, g, o] -> kernel order [i, f, o, g] (along the 4H axis)."""
    return jnp.concatenate([w_rows[:2 * H], w_rows[3 * H:4 * H], w_rows[2 * H:3 * H]],
                           axis=0)


def prepare_lstm_params(params, weight_dtype=jnp.bfloat16):
    H = params["weight_hh_l0"].shape[1]

    def tw(name):
        w = jnp.asarray(params[name])                       # (4H, in), torch layout
        return jnp.transpose(_permute_gates(w, H)).astype(weight_dtype)   # (in, 4H)

    def fused_bias(layer):
        b = (jnp.asarray(params[f"bias_ih_l{layer}"])
             + jnp.asarray(params[f"bias_hh_l{layer}"])).astype(jnp.float32)
        return _permute_gates(b, H).reshape(1, 4 * H)

    return {
        "wih_l0": tw("weight_ih_l0"),                       # (I, 4H) bf16
        "whh_l0": tw("weight_hh_l0"),                       # (H, 4H) bf16
        "b_l0": fused_bias(0),                              # (1, 4H) f32
        "wih_l1": tw("weight_ih_l1"),                       # (H, 4H) bf16
        "whh_l1": tw("weight_hh_l1"),                       # (H, 4H) bf16
        "b_l1": fused_bias(1),                              # (1, 4H) f32
    }


# ---------------------------------------------------------------------------
# Forward: matches torch.nn.LSTM(I, H, num_layers=2, dropout=0.0), batch_first=False.
# ---------------------------------------------------------------------------
def plugin_lstm_rnnt_pre(x, prepared_params, init_states=None, *,
                         time_chunk=None, single_buffer_constants=True, unroll=4):
    """x: (T, B, I) float32 -> (y: (T, B, H) f32, (h_n, c_n): each (2, B, H) f32)."""
    T, B, I = x.shape
    p = prepared_params
    H = p["whh_l0"].shape[0]
    L = 2
    wdt = p["whh_l0"].dtype

    if init_states is None:
        h0 = jnp.zeros((L, B, H), jnp.float32)
        c0 = jnp.zeros((L, B, H), jnp.float32)
    else:
        h0, c0 = init_states
        h0 = h0.astype(jnp.float32)
        c0 = c0.astype(jnp.float32)

    tc, Tp, vmem_limit = _plan(T, B, H, time_chunk, single_buffer_constants)
    pad = Tp - T

    # ---- Layer 0: hoisted batched input projection (bf16 stream; bias added in-kernel) --
    gx0 = jnp.dot(x.reshape(T * B, I).astype(wdt), p["wih_l0"],
                  preferred_element_type=jnp.float32)
    gx0 = gx0.astype(wdt).reshape(T, B, 4 * H)
    if pad:
        gx0 = jnp.pad(gx0, ((0, pad), (0, 0), (0, 0)))
    y0, hn0, cn0 = _run_layer(
        gx0, p["b_l0"], h0[0], c0[0], p["whh_l0"],
        seq_len=T, time_chunk=tc, y_dtype=wdt,               # y0 stays bf16
        single_buffer_constants=single_buffer_constants,
        vmem_limit_bytes=vmem_limit, unroll=unroll)

    # ---- Layer 1 (dropout = 0.0 between layers) ----
    # y0 is already bf16; padded tail rows are finite garbage that layer 1 masks out.
    gx1 = jnp.dot(y0.reshape(Tp * B, H), p["wih_l1"],
                  preferred_element_type=jnp.float32)
    gx1 = gx1.astype(wdt).reshape(Tp, B, 4 * H)
    y1, hn1, cn1 = _run_layer(
        gx1, p["b_l1"], h0[1], c0[1], p["whh_l1"],
        seq_len=T, time_chunk=tc, y_dtype=jnp.float32,       # module output stays f32
        single_buffer_constants=single_buffer_constants,
        vmem_limit_bytes=vmem_limit, unroll=unroll)

    y = y1[:T] if pad else y1
    h_n = jnp.stack([hn0, hn1])
    c_n = jnp.stack([cn0, cn1])
    return y, (h_n, c_n)


# ---------------------------------------------------------------------------
# Pure-JAX fp32 reference (mirrors torch.nn.LSTM math, original torch gate order)
# for correctness checking — also validates the offline gate permutation.
# ---------------------------------------------------------------------------
def lstm_reference(x, params, init_states):
    H = params["weight_hh_l0"].shape[1]
    h0, c0 = init_states

    def make_step(wih, whh, b):
        def step(carry, x_t):
            h, c = carry
            gates = (jnp.dot(x_t, wih.T, precision=jax.lax.Precision.HIGHEST)
                     + jnp.dot(h, whh.T, precision=jax.lax.Precision.HIGHEST) + b)
            i = jax.nn.sigmoid(gates[:, 0:H])
            f = jax.nn.sigmoid(gates[:, H:2 * H])
            g = jnp.tanh(gates[:, 2 * H:3 * H])
            o = jax.nn.sigmoid(gates[:, 3 * H:4 * H])
            c_new = f * c + i * g
            h_new = o * jnp.tanh(c_new)
            return (h_new, c_new), h_new
        return step

    step0 = make_step(params["weight_ih_l0"], params["weight_hh_l0"],
                      params["bias_ih_l0"] + params["bias_hh_l0"])
    (h0f, c0f), out0 = jax.lax.scan(step0, (h0[0], c0[0]), x)

    step1 = make_step(params["weight_ih_l1"], params["weight_hh_l1"],
                      params["bias_ih_l1"] + params["bias_hh_l1"])
    (h1f, c1f), out1 = jax.lax.scan(step1, (h0[1], c0[1]), out0)

    return out1, (jnp.stack([h0f, h1f]), jnp.stack([c0f, c1f]))


def init_lstm_params(key, input_size, hidden_size):
    """Deterministic synthetic weights with PyTorch nn.LSTM shapes & init scale."""
    scale = 1.0 / math.sqrt(hidden_size)
    names_shapes = [
        ("weight_ih_l0", (4 * hidden_size, input_size)),
        ("weight_hh_l0", (4 * hidden_size, hidden_size)),
        ("bias_ih_l0", (4 * hidden_size,)),
        ("bias_hh_l0", (4 * hidden_size,)),
        ("weight_ih_l1", (4 * hidden_size, hidden_size)),
        ("weight_hh_l1", (4 * hidden_size, hidden_size)),
        ("bias_ih_l1", (4 * hidden_size,)),
        ("bias_hh_l1", (4 * hidden_size,)),
    ]
    keys = jax.random.split(key, len(names_shapes))
    return {
        name: jax.random.uniform(k, shape, jnp.float32, minval=-scale, maxval=scale)
        for k, (name, shape) in zip(keys, names_shapes)
    }


if __name__ == "__main__":
    # Small, module-consistent shapes (real module: I=240, H=1024, L=2). Keep I=240,
    # use H=256 so the example compiles & runs fast; the kernel is shape-generic.
    # T=11 with time_chunk=4 exercises both multi-chunk state carry AND the padded-tail
    # masking path (Tp=12, one masked step).
    T, B, I, H, L = 11, 2, 240, 256, 2

    key = jax.random.PRNGKey(0)
    k_x, k_p = jax.random.split(key)
    x = jax.random.normal(k_x, (T, B, I), jnp.float32)
    params = init_lstm_params(k_p, I, H)

    h0 = jnp.zeros((L, B, H), jnp.float32)
    c0 = jnp.zeros((L, B, H), jnp.float32)

    prepped = prepare_lstm_params(params)   # one-time gate permute + transpose + bf16 cast

    def make_run(single_buffer):
        return jax.jit(functools.partial(
            plugin_lstm_rnnt_pre, time_chunk=4,
            single_buffer_constants=single_buffer))

    try:
        run = make_run(True)
        y, (h_n, c_n) = run(x, prepped, (h0, c0))
        jax.block_until_ready((y, h_n, c_n))
    except Exception:
        # Fallback for jax builds where pipeline_mode=pl.Buffered(1) is not supported by
        # the Mosaic pipeliner; everything else stays identical.  The correctness asserts
        # below still guard this path, so an unrelated failure cannot be silently masked.
        run = make_run(False)
        y, (h_n, c_n) = run(x, prepped, (h0, c0))
        jax.block_until_ready((y, h_n, c_n))

    # Verify against the fp32 reference. Weights AND the gx/y0 activation streams are
    # bf16 (fp32 accumulate + fp32 state), so the tolerance is loosened accordingly.
    # Re-validate at production T (hundreds of steps) before deployment.
    y_ref, (h_ref, c_ref) = lstm_reference(x, params, (h0, c0))
    assert y.shape == (T, B, H) and h_n.shape == (L, B, H) and c_n.shape == (L, B, H)
    assert jnp.allclose(y, y_ref, atol=7e-2, rtol=7e-2), "y mismatch"
    assert jnp.allclose(h_n, h_ref, atol=7e-2, rtol=7e-2), "h_n mismatch"
    assert jnp.allclose(c_n, c_ref, atol=7e-2, rtol=7e-2), "c_n mismatch"

    print("KERNEL_OK")
</pallas_src>

<mosaic_0001>
module attributes {stable_mosaic.version = 11 : i64} {
  func.func @_lstm_layer_kernel(%arg0: i32, %arg1: memref<4x2x1024xbf16, #tpu.memory_space<vmem>>, %arg2: memref<1x1024xf32, #tpu.memory_space<vmem>>, %arg3: memref<2x256xf32, #tpu.memory_space<vmem>>, %arg4: memref<2x256xf32, #tpu.memory_space<vmem>>, %arg5: memref<256x1024xbf16, #tpu.memory_space<vmem>>, %arg6: memref<4x2x256xbf16, #tpu.memory_space<vmem>>, %arg7: memref<2x256xf32, #tpu.memory_space<vmem>>, %arg8: memref<2x256xf32, #tpu.memory_space<vmem>>) attributes {dimension_semantics = [#tpu.dimension_semantics<arbitrary>], iteration_bounds = array<i64: 3>, scalar_prefetch = 0 : i64, scratch_operands = 0 : i64, tpu.core_type = #tpu.core_type<tc>, window_params = [{transform_indices = @transform_0, window_bounds = array<i64: 4, 2, 1024>}, {pipeline_mode = #tpu.pipeline_mode<synchronous>, transform_indices = @transform_1, window_bounds = array<i64: 1, 1024>}, {pipeline_mode = #tpu.pipeline_mode<synchronous>, transform_indices = @transform_2, window_bounds = array<i64: 2, 256>}, {pipeline_mode = #tpu.pipeline_mode<synchronous>, transform_indices = @transform_3, window_bounds = array<i64: 2, 256>}, {pipeline_mode = #tpu.pipeline_mode<synchronous>, transform_indices = @transform_4, window_bounds = array<i64: 256, 1024>}, {transform_indices = @transform_5, window_bounds = array<i64: 4, 2, 256>}, {pipeline_mode = #tpu.pipeline_mode<synchronous>, transform_indices = @transform_6, window_bounds = array<i64: 2, 256>}, {pipeline_mode = #tpu.pipeline_mode<synchronous>, transform_indices = @transform_7, window_bounds = array<i64: 2, 256>}]} {
    %c0_i32 = arith.constant 0 : i32
    %0 = arith.cmpi eq, %arg0, %c0_i32 : i32
    %1 = arith.extui %0 : i1 to i32
    %c0_i32_0 = arith.constant 0 : i32
    %2 = arith.cmpi ne, %1, %c0_i32_0 : i32
    scf.if %2 {
      %c0_40 = arith.constant 0 : index
      %c0_41 = arith.constant 0 : index
      %146 = vector.load %arg3[%c0_40, %c0_41] : memref<2x256xf32, #tpu.memory_space<vmem>>, vector<2x256xf32>
      %c0_42 = arith.constant 0 : index
      %c0_43 = arith.constant 0 : index
      %147 = vector.load %arg7[%c0_42, %c0_43] : memref<2x256xf32, #tpu.memory_space<vmem>>, vector<2x256xf32>
      tpu.vector_store %arg7[%c0_42, %c0_43], %146 {strides = array<i32>} : memref<2x256xf32, #tpu.memory_space<vmem>>, vector<2x256xf32>,
      %c0_44 = arith.constant 0 : index
      %c0_45 = arith.constant 0 : index
      %148 = vector.load %arg4[%c0_44, %c0_45] : memref<2x256xf32, #tpu.memory_space<vmem>>, vector<2x256xf32>
      %c0_46 = arith.constant 0 : index
      %c0_47 = arith.constant 0 : index
      %149 = vector.load %arg8[%c0_46, %c0_47] : memref<2x256xf32, #tpu.memory_space<vmem>>, vector<2x256xf32>
      tpu.vector_store %arg8[%c0_46, %c0_47], %148 {strides = array<i32>} : memref<2x256xf32, #tpu.memory_space<vmem>>, vector<2x256xf32>,
    } else {
    }
    %c0 = arith.constant 0 : index
    %c0_1 = arith.constant 0 : index
    %3 = vector.load %arg5[%c0, %c0_1] : memref<256x1024xbf16, #tpu.memory_space<vmem>>, vector<256x1024xbf16>
    %c0_2 = arith.constant 0 : index
    %c0_3 = arith.constant 0 : index
    %4 = vector.load %arg2[%c0_2, %c0_3] : memref<1x1024xf32, #tpu.memory_space<vmem>>, vector<1x1024xf32>
    %c4_i32 = arith.constant 4 : i32
    %5 = arith.muli %arg0, %c4_i32 : i32
    %c0_4 = arith.constant 0 : index
    %c0_5 = arith.constant 0 : index
    %6 = vector.load %arg7[%c0_4, %c0_5] : memref<2x256xf32, #tpu.memory_space<vmem>>, vector<2x256xf32>
    %c0_6 = arith.constant 0 : index
    %c0_7 = arith.constant 0 : index
    %7 = vector.load %arg8[%c0_6, %c0_7] : memref<2x256xf32, #tpu.memory_space<vmem>>, vector<2x256xf32>
    %c0_i32_8 = arith.constant 0 : i32
    %8 = arith.truncf %6 : vector<2x256xf32> to vector<2x256xbf16>
    %cst = arith.constant dense<0.000000e+00> : vector<2x1024xf32>
    %9 = tpu.matmul %8, %3, %cst {dimension_numbers = #tpu.dot_dimension_numbers<[1], [0], [0], [1], [0, 0, 1, 1], [], []>} : vector<2x256xbf16>, vector<256x1024xbf16>, vector<2x1024xf32> -> vector<2x1024xf32>
    %10 = arith.index_cast %c0_i32_8 : i32 to index
    %c0_9 = arith.constant 0 : index
    %c0_10 = arith.constant 0 : index
    %11 = vector.load %arg1[%10, %c0_9, %c0_10] : memref<4x2x1024xbf16, #tpu.memory_space<vmem>>, vector<1x2x1024xbf16>
    %12 = vector.shape_cast %11 : vector<1x2x1024xbf16> to vector<2x1024xbf16>
    %13 = arith.extf %12 : vector<2x1024xbf16> to vector<2x1024xf32>
    %14 = arith.addf %9, %13 : vector<2x1024xf32>
    %15 = vector.broadcast %4 : vector<1x1024xf32> to vector<2x1024xf32>
    %16 = arith.addf %14, %15 : vector<2x1024xf32>
    %17 = vector.extract_strided_slice %16 {offsets = [0, 0], sizes = [2, 768], strides = [1, 1]} : vector<2x1024xf32> to vector<2x768xf32>
    %18 = arith.negf %17 : vector<2x768xf32>
    %19 = math.exp %18 : vector<2x768xf32>
    %cst_11 = arith.constant 1.000000e+00 : f32
    %20 = vector.broadcast %cst_11 : f32 to vector<2x768xf32>
    %21 = arith.addf %20, %19 : vector<2x768xf32>
    %22 = arith.divf %20, %21 : vector<2x768xf32>
    %23 = vector.extract_strided_slice %16 {offsets = [0, 768], sizes = [2, 256], strides = [1, 1]} : vector<2x1024xf32> to vector<2x256xf32>
    %24 = math.tanh %23 : vector<2x256xf32>
    %25 = vector.extract_strided_slice %22 {offsets = [0, 0], sizes = [2, 256], strides = [1, 1]} : vector<2x768xf32> to vector<2x256xf32>
    %26 = vector.extract_strided_slice %22 {offsets = [0, 256], sizes = [2, 256], strides = [1, 1]} : vector<2x768xf32> to vector<2x256xf32>
    %27 = vector.extract_strided_slice %22 {offsets = [0, 512], sizes = [2, 256], strides = [1, 1]} : vector<2x768xf32> to vector<2x256xf32>
    %28 = arith.mulf %26, %7 : vector<2x256xf32>
    %29 = arith.mulf %25, %24 : vector<2x256xf32>
    %30 = arith.addf %28, %29 : vector<2x256xf32>
    %31 = math.tanh %30 : vector<2x256xf32>
    %32 = arith.mulf %27, %31 : vector<2x256xf32>
    %33 = arith.truncf %32 : vector<2x256xf32> to vector<2x256xbf16>
    %34 = arith.index_cast %c0_i32_8 : i32 to index
    %c0_12 = arith.constant 0 : index
    %c0_13 = arith.constant 0 : index
    %35 = vector.load %arg6[%34, %c0_12, %c0_13] : memref<4x2x256xbf16, #tpu.memory_space<vmem>>, vector<1x2x256xbf16>
    %36 = vector.shape_cast %35 : vector<1x2x256xbf16> to vector<2x256xbf16>
    %37 = vector.shape_cast %33 : vector<2x256xbf16> to vector<1x2x256xbf16>
    tpu.vector_store %arg6[%34, %c0_12, %c0_13], %37 {strides = array<i32>} : memref<4x2x256xbf16, #tpu.memory_space<vmem>>, vector<1x2x256xbf16>,
    %38 = arith.addi %5, %c0_i32_8 : i32
    %c11_i32 = arith.constant 11 : i32
    %39 = arith.cmpi slt, %38, %c11_i32 : i32
    %40 = arith.select %39, %32, %6 : vector<2x256xf32>
    %41 = arith.select %39, %30, %7 : vector<2x256xf32>
    %c1_i32 = arith.constant 1 : i32
    %42 = arith.truncf %40 : vector<2x256xf32> to vector<2x256xbf16>
    %cst_14 = arith.constant dense<0.000000e+00> : vector<2x1024xf32>
    %43 = tpu.matmul %42, %3, %cst_14 {dimension_numbers = #tpu.dot_dimension_numbers<[1], [0], [0], [1], [0, 0, 1, 1], [], []>} : vector<2x256xbf16>, vector<256x1024xbf16>, vector<2x1024xf32> -> vector<2x1024xf32>
    %44 = arith.index_cast %c1_i32 : i32 to index
    %c0_15 = arith.constant 0 : index
    %c0_16 = arith.constant 0 : index
    %45 = vector.load %arg1[%44, %c0_15, %c0_16] : memref<4x2x1024xbf16, #tpu.memory_space<vmem>>, vector<1x2x1024xbf16>
    %46 = vector.shape_cast %45 : vector<1x2x1024xbf16> to vector<2x1024xbf16>
    %47 = arith.extf %46 : vector<2x1024xbf16> to vector<2x1024xf32>
    %48 = arith.addf %43, %47 : vector<2x1024xf32>
    %49 = vector.broadcast %4 : vector<1x1024xf32> to vector<2x1024xf32>
    %50 = arith.addf %48, %49 : vector<2x1024xf32>
    %51 = vector.extract_strided_slice %50 {offsets = [0, 0], sizes = [2, 768], strides = [1, 1]} : vector<2x1024xf32> to vector<2x768xf32>
    %52 = arith.negf %51 : vector<2x768xf32>
    %53 = math.exp %52 : vector<2x768xf32>
    %cst_17 = arith.constant 1.000000e+00 : f32
    %54 = vector.broadcast %cst_17 : f32 to vector<2x768xf32>
    %55 = arith.addf %54, %53 : vector<2x768xf32>
    %56 = arith.divf %54, %55 : vector<2x768xf32>
    %57 = vector.extract_strided_slice %50 {offsets = [0, 768], sizes = [2, 256], strides = [1, 1]} : vector<2x1024xf32> to vector<2x256xf32>
    %58 = math.tanh %57 : vector<2x256xf32>
    %59 = vector.extract_strided_slice %56 {offsets = [0, 0], sizes = [2, 256], strides = [1, 1]} : vector<2x768xf32> to vector<2x256xf32>
    %60 = vector.extract_strided_slice %56 {offsets = [0, 256], sizes = [2, 256], strides = [1, 1]} : vector<2x768xf32> to vector<2x256xf32>
    %61 = vector.extract_strided_slice %56 {offsets = [0, 512], sizes = [2, 256], strides = [1, 1]} : vector<2x768xf32> to vector<2x256xf32>
    %62 = arith.mulf %60, %41 : vector<2x256xf32>
    %63 = arith.mulf %59, %58 : vector<2x256xf32>
    %64 = arith.addf %62, %63 : vector<2x256xf32>
    %65 = math.tanh %64 : vector<2x256xf32>
    %66 = arith.mulf %61, %65 : vector<2x256xf32>
    %67 = arith.truncf %66 : vector<2x256xf32> to vector<2x256xbf16>
    %68 = arith.index_cast %c1_i32 : i32 to index
    %c0_18 = arith.constant 0 : index
    %c0_19 = arith.constant 0 : index
    %69 = vector.load %arg6[%68, %c0_18, %c0_19] : memref<4x2x256xbf16, #tpu.memory_space<vmem>>, vector<1x2x256xbf16>
    %70 = vector.shape_cast %69 : vector<1x2x256xbf16> to vector<2x256xbf16>
    %71 = vector.shape_cast %67 : vector<2x256xbf16> to vector<1x2x256xbf16>
    tpu.vector_store %arg6[%68, %c0_18, %c0_19], %71 {strides = array<i32>} : memref<4x2x256xbf16, #tpu.memory_space<vmem>>, vector<1x2x256xbf16>,
    %72 = arith.addi %5, %c1_i32 : i32
    %c11_i32_20 = arith.constant 11 : i32
    %73 = arith.cmpi slt, %72, %c11_i32_20 : i32
    %74 = arith.select %73, %66, %40 : vector<2x256xf32>
    %75 = arith.select %73, %64, %41 : vector<2x256xf32>
    %c2_i32 = arith.constant 2 : i32
    %76 = arith.truncf %74 : vector<2x256xf32> to vector<2x256xbf16>
    %cst_21 = arith.constant dense<0.000000e+00> : vector<2x1024xf32>
    %77 = tpu.matmul %76, %3, %cst_21 {dimension_numbers = #tpu.dot_dimension_numbers<[1], [0], [0], [1], [0, 0, 1, 1], [], []>} : vector<2x256xbf16>, vector<256x1024xbf16>, vector<2x1024xf32> -> vector<2x1024xf32>
    %78 = arith.index_cast %c2_i32 : i32 to index
    %c0_22 = arith.constant 0 : index
    %c0_23 = arith.constant 0 : index
    %79 = vector.load %arg1[%78, %c0_22, %c0_23] : memref<4x2x1024xbf16, #tpu.memory_space<vmem>>, vector<1x2x1024xbf16>
    %80 = vector.shape_cast %79 : vector<1x2x1024xbf16> to vector<2x1024xbf16>
    %81 = arith.extf %80 : vector<2x1024xbf16> to vector<2x1024xf32>
    %82 = arith.addf %77, %81 : vector<2x1024xf32>
    %83 = vector.broadcast %4 : vector<1x1024xf32> to vector<2x1024xf32>
    %84 = arith.addf %82, %83 : vector<2x1024xf32>
    %85 = vector.extract_strided_slice %84 {offsets = [0, 0], sizes = [2, 768], strides = [1, 1]} : vector<2x1024xf32> to vector<2x768xf32>
    %86 = arith.negf %85 : vector<2x768xf32>
    %87 = math.exp %86 : vector<2x768xf32>
    %cst_24 = arith.constant 1.000000e+00 : f32
    %88 = vector.broadcast %cst_24 : f32 to vector<2x768xf32>
    %89 = arith.addf %88, %87 : vector<2x768xf32>
    %90 = arith.divf %88, %89 : vector<2x768xf32>
    %91 = vector.extract_strided_slice %84 {offsets = [0, 768], sizes = [2, 256], strides = [1, 1]} : vector<2x1024xf32> to vector<2x256xf32>
    %92 = math.tanh %91 : vector<2x256xf32>
    %93 = vector.extract_strided_slice %90 {offsets = [0, 0], sizes = [2, 256], strides = [1, 1]} : vector<2x768xf32> to vector<2x256xf32>
    %94 = vector.extract_strided_slice %90 {offsets = [0, 256], sizes = [2, 256], strides = [1, 1]} : vector<2x768xf32> to vector<2x256xf32>
    %95 = vector.extract_strided_slice %90 {offsets = [0, 512], sizes = [2, 256], strides = [1, 1]} : vector<2x768xf32> to vector<2x256xf32>
    %96 = arith.mulf %94, %75 : vector<2x256xf32>
    %97 = arith.mulf %93, %92 : vector<2x256xf32>
    %98 = arith.addf %96, %97 : vector<2x256xf32>
    %99 = math.tanh %98 : vector<2x256xf32>
    %100 = arith.mulf %95, %99 : vector<2x256xf32>
    %101 = arith.truncf %100 : vector<2x256xf32> to vector<2x256xbf16>
    %102 = arith.index_cast %c2_i32 : i32 to index
    %c0_25 = arith.constant 0 : index
    %c0_26 = arith.constant 0 : index
    %103 = vector.load %arg6[%102, %c0_25, %c0_26] : memref<4x2x256xbf16, #tpu.memory_space<vmem>>, vector<1x2x256xbf16>
    %104 = vector.shape_cast %103 : vector<1x2x256xbf16> to vector<2x256xbf16>
    %105 = vector.shape_cast %101 : vector<2x256xbf16> to vector<1x2x256xbf16>
    tpu.vector_store %arg6[%102, %c0_25, %c0_26], %105 {strides = array<i32>} : memref<4x2x256xbf16, #tpu.memory_space<vmem>>, vector<1x2x256xbf16>,
    %106 = arith.addi %5, %c2_i32 : i32
    %c11_i32_27 = arith.constant 11 : i32
    %107 = arith.cmpi slt, %106, %c11_i32_27 : i32
    %108 = arith.select %107, %100, %74 : vector<2x256xf32>
    %109 = arith.select %107, %98, %75 : vector<2x256xf32>
    %c3_i32 = arith.constant 3 : i32
    %110 = arith.truncf %108 : vector<2x256xf32> to vector<2x256xbf16>
    %cst_28 = arith.constant dense<0.000000e+00> : vector<2x1024xf32>
    %111 = tpu.matmul %110, %3, %cst_28 {dimension_numbers = #tpu.dot_dimension_numbers<[1], [0], [0], [1], [0, 0, 1, 1], [], []>} : vector<2x256xbf16>, vector<256x1024xbf16>, vector<2x1024xf32> -> vector<2x1024xf32>
    %112 = arith.index_cast %c3_i32 : i32 to index
    %c0_29 = arith.constant 0 : index
    %c0_30 = arith.constant 0 : index
    %113 = vector.load %arg1[%112, %c0_29, %c0_30] : memref<4x2x1024xbf16, #tpu.memory_space<vmem>>, vector<1x2x1024xbf16>
    %114 = vector.shape_cast %113 : vector<1x2x1024xbf16> to vector<2x1024xbf16>
    %115 = arith.extf %114 : vector<2x1024xbf16> to vector<2x1024xf32>
    %116 = arith.addf %111, %115 : vector<2x1024xf32>
    %117 = vector.broadcast %4 : vector<1x1024xf32> to vector<2x1024xf32>
    %118 = arith.addf %116, %117 : vector<2x1024xf32>
    %119 = vector.extract_strided_slice %118 {offsets = [0, 0], sizes = [2, 768], strides = [1, 1]} : vector<2x1024xf32> to vector<2x768xf32>
    %120 = arith.negf %119 : vector<2x768xf32>
    %121 = math.exp %120 : vector<2x768xf32>
    %cst_31 = arith.constant 1.000000e+00 : f32
    %122 = vector.broadcast %cst_31 : f32 to vector<2x768xf32>
    %123 = arith.addf %122, %121 : vector<2x768xf32>
    %124 = arith.divf %122, %123 : vector<2x768xf32>
    %125 = vector.extract_strided_slice %118 {offsets = [0, 768], sizes = [2, 256], strides = [1, 1]} : vector<2x1024xf32> to vector<2x256xf32>
    %126 = math.tanh %125 : vector<2x256xf32>
    %127 = vector.extract_strided_slice %124 {offsets = [0, 0], sizes = [2, 256], strides = [1, 1]} : vector<2x768xf32> to vector<2x256xf32>
    %128 = vector.extract_strided_slice %124 {offsets = [0, 256], sizes = [2, 256], strides = [1, 1]} : vector<2x768xf32> to vector<2x256xf32>
    %129 = vector.extract_strided_slice %124 {offsets = [0, 512], sizes = [2, 256], strides = [1, 1]} : vector<2x768xf32> to vector<2x256xf32>
    %130 = arith.mulf %128, %109 : vector<2x256xf32>
    %131 = arith.mulf %127, %126 : vector<2x256xf32>
    %132 = arith.addf %130, %131 : vector<2x256xf32>
    %133 = math.tanh %132 : vector<2x256xf32>
    %134 = arith.mulf %129, %133 : vector<2x256xf32>
    %135 = arith.truncf %134 : vector<2x256xf32> to vector<2x256xbf16>
    %136 = arith.index_cast %c3_i32 : i32 to index
    %c0_32 = arith.constant 0 : index
    %c0_33 = arith.constant 0 : index
    %137 = vector.load %arg6[%136, %c0_32, %c0_33] : memref<4x2x256xbf16, #tpu.memory_space<vmem>>, vector<1x2x256xbf16>
    %138 = vector.shape_cast %137 : vector<1x2x256xbf16> to vector<2x256xbf16>
    %139 = vector.shape_cast %135 : vector<2x256xbf16> to vector<1x2x256xbf16>
    tpu.vector_store %arg6[%136, %c0_32, %c0_33], %139 {strides = array<i32>} : memref<4x2x256xbf16, #tpu.memory_space<vmem>>, vector<1x2x256xbf16>,
    %140 = arith.addi %5, %c3_i32 : i32
    %c11_i32_34 = arith.constant 11 : i32
    %141 = arith.cmpi slt, %140, %c11_i32_34 : i32
    %142 = arith.select %141, %134, %108 : vector<2x256xf32>
    %143 = arith.select %141, %132, %109 : vector<2x256xf32>
    %c4_i32_35 = arith.constant 4 : i32
    %c0_36 = arith.constant 0 : index
    %c0_37 = arith.constant 0 : index
    %144 = vector.load %arg7[%c0_36, %c0_37] : memref<2x256xf32, #tpu.memory_space<vmem>>, vector<2x256xf32>
    tpu.vector_store %arg7[%c0_36, %c0_37], %142 {strides = array<i32>} : memref<2x256xf32, #tpu.memory_space<vmem>>, vector<2x256xf32>,
    %c0_38 = arith.constant 0 : index
    %c0_39 = arith.constant 0 : index
    %145 = vector.load %arg8[%c0_38, %c0_39] : memref<2x256xf32, #tpu.memory_space<vmem>>, vector<2x256xf32>
    tpu.vector_store %arg8[%c0_38, %c0_39], %143 {strides = array<i32>} : memref<2x256xf32, #tpu.memory_space<vmem>>, vector<2x256xf32>,
    return
  }
  func.func @transform_0(%arg0: i32) -> (i32, i32, i32) {
    %c0_i32 = arith.constant 0 : i32
    %c0_i32_0 = arith.constant 0 : i32
    %c0_i32_1 = arith.constant 0 : i32
    return %arg0, %c0_i32, %c0_i32_0 : i32, i32, i32
  }
  func.func @transform_1(%arg0: i32) -> (i32, i32) {
    %c0_i32 = arith.constant 0 : i32
    %c0_i32_0 = arith.constant 0 : i32
    %c0_i32_1 = arith.constant 0 : i32
    return %c0_i32, %c0_i32_0 : i32, i32
  }
  func.func @transform_2(%arg0: i32) -> (i32, i32) {
    %c0_i32 = arith.constant 0 : i32
    %c0_i32_0 = arith.constant 0 : i32
    %c0_i32_1 = arith.constant 0 : i32
    return %c0_i32, %c0_i32_0 : i32, i32
  }
  func.func @transform_3(%arg0: i32) -> (i32, i32) {
    %c0_i32 = arith.constant 0 : i32
    %c0_i32_0 = arith.constant 0 : i32
    %c0_i32_1 = arith.constant 0 : i32
    return %c0_i32, %c0_i32_0 : i32, i32
  }
  func.func @transform_4(%arg0: i32) -> (i32, i32) {
    %c0_i32 = arith.constant 0 : i32
    %c0_i32_0 = arith.constant 0 : i32
    %c0_i32_1 = arith.constant 0 : i32
    return %c0_i32, %c0_i32_0 : i32, i32
  }
  func.func @transform_5(%arg0: i32) -> (i32, i32, i32) {
    %c0_i32 = arith.constant 0 : i32
    %c0_i32_0 = arith.constant 0 : i32
    %c0_i32_1 = arith.constant 0 : i32
    return %arg0, %c0_i32, %c0_i32_0 : i32, i32, i32
  }
  func.func @transform_6(%arg0: i32) -> (i32, i32) {
    %c0_i32 = arith.constant 0 : i32
    %c0_i32_0 = arith.constant 0 : i32
    %c0_i32_1 = arith.constant 0 : i32
    return %c0_i32, %c0_i32_0 : i32, i32
  }
  func.func @transform_7(%arg0: i32) -> (i32, i32) {
    %c0_i32 = arith.constant 0 : i32
    %c0_i32_0 = arith.constant 0 : i32
    %c0_i32_1 = arith.constant 0 : i32
    return %c0_i32, %c0_i32_0 : i32, i32
  }
}

module attributes {stable_mosaic.version = 11 : i64} {
  func.func @_lstm_layer_kernel(%arg0: i32, %arg1: memref<4x2x1024xbf16, #tpu.memory_space<vmem>>, %arg2: memref<1x1024xf32, #tpu.memory_space<vmem>>, %arg3: memref<2x256xf32, #tpu.memory_space<vmem>>, %arg4: memref<2x256xf32, #tpu.memory_space<vmem>>, %arg5: memref<256x1024xbf16, #tpu.memory_space<vmem>>, %arg6: memref<4x2x256xf32, #tpu.memory_space<vmem>>, %arg7: memref<2x256xf32, #tpu.memory_space<vmem>>, %arg8: memref<2x256xf32, #tpu.memory_space<vmem>>) attributes {dimension_semantics = [#tpu.dimension_semantics<arbitrary>], iteration_bounds = array<i64: 3>, scalar_prefetch = 0 : i64, scratch_operands = 0 : i64, tpu.core_type = #tpu.core_type<tc>, window_params = [{transform_indices = @transform_0, window_bounds = array<i64: 4, 2, 1024>}, {pipeline_mode = #tpu.pipeline_mode<synchronous>, transform_indices = @transform_1, window_bounds = array<i64: 1, 1024>}, {pipeline_mode = #tpu.pipeline_mode<synchronous>, transform_indices = @transform_2, window_bounds = array<i64: 2, 256>}, {pipeline_mode = #tpu.pipeline_mode<synchronous>, transform_indices = @transform_3, window_bounds = array<i64: 2, 256>}, {pipeline_mode = #tpu.pipeline_mode<synchronous>, transform_indices = @transform_4, window_bounds = array<i64: 256, 1024>}, {transform_indices = @transform_5, window_bounds = array<i64: 4, 2, 256>}, {pipeline_mode = #tpu.pipeline_mode<synchronous>, transform_indices = @transform_6, window_bounds = array<i64: 2, 256>}, {pipeline_mode = #tpu.pipeline_mode<synchronous>, transform_indices = @transform_7, window_bounds = array<i64: 2, 256>}]} {
    %c0_i32 = arith.constant 0 : i32
    %0 = arith.cmpi eq, %arg0, %c0_i32 : i32
    %1 = arith.extui %0 : i1 to i32
    %c0_i32_0 = arith.constant 0 : i32
    %2 = arith.cmpi ne, %1, %c0_i32_0 : i32
    scf.if %2 {
      %c0_40 = arith.constant 0 : index
      %c0_41 = arith.constant 0 : index
      %142 = vector.load %arg3[%c0_40, %c0_41] : memref<2x256xf32, #tpu.memory_space<vmem>>, vector<2x256xf32>
      %c0_42 = arith.constant 0 : index
      %c0_43 = arith.constant 0 : index
      %143 = vector.load %arg7[%c0_42, %c0_43] : memref<2x256xf32, #tpu.memory_space<vmem>>, vector<2x256xf32>
      tpu.vector_store %arg7[%c0_42, %c0_43], %142 {strides = array<i32>} : memref<2x256xf32, #tpu.memory_space<vmem>>, vector<2x256xf32>,
      %c0_44 = arith.constant 0 : index
      %c0_45 = arith.constant 0 : index
      %144 = vector.load %arg4[%c0_44, %c0_45] : memref<2x256xf32, #tpu.memory_space<vmem>>, vector<2x256xf32>
      %c0_46 = arith.constant 0 : index
      %c0_47 = arith.constant 0 : index
      %145 = vector.load %arg8[%c0_46, %c0_47] : memref<2x256xf32, #tpu.memory_space<vmem>>, vector<2x256xf32>
      tpu.vector_store %arg8[%c0_46, %c0_47], %144 {strides = array<i32>} : memref<2x256xf32, #tpu.memory_space<vmem>>, vector<2x256xf32>,
    } else {
    }
    %c0 = arith.constant 0 : index
    %c0_1 = arith.constant 0 : index
    %3 = vector.load %arg5[%c0, %c0_1] : memref<256x1024xbf16, #tpu.memory_space<vmem>>, vector<256x1024xbf16>
    %c0_2 = arith.constant 0 : index
    %c0_3 = arith.constant 0 : index
    %4 = vector.load %arg2[%c0_2, %c0_3] : memref<1x1024xf32, #tpu.memory_space<vmem>>, vector<1x1024xf32>
    %c4_i32 = arith.constant 4 : i32
    %5 = arith.muli %arg0, %c4_i32 : i32
    %c0_4 = arith.constant 0 : index
    %c0_5 = arith.constant 0 : index
    %6 = vector.load %arg7[%c0_4, %c0_5] : memref<2x256xf32, #tpu.memory_space<vmem>>, vector<2x256xf32>
    %c0_6 = arith.constant 0 : index
    %c0_7 = arith.constant 0 : index
    %7 = vector.load %arg8[%c0_6, %c0_7] : memref<2x256xf32, #tpu.memory_space<vmem>>, vector<2x256xf32>
    %c0_i32_8 = arith.constant 0 : i32
    %8 = arith.truncf %6 : vector<2x256xf32> to vector<2x256xbf16>
    %cst = arith.constant dense<0.000000e+00> : vector<2x1024xf32>
    %9 = tpu.matmul %8, %3, %cst {dimension_numbers = #tpu.dot_dimension_numbers<[1], [0], [0], [1], [0, 0, 1, 1], [], []>} : vector<2x256xbf16>, vector<256x1024xbf16>, vector<2x1024xf32> -> vector<2x1024xf32>
    %10 = arith.index_cast %c0_i32_8 : i32 to index
    %c0_9 = arith.constant 0 : index
    %c0_10 = arith.constant 0 : index
    %11 = vector.load %arg1[%10, %c0_9, %c0_10] : memref<4x2x1024xbf16, #tpu.memory_space<vmem>>, vector<1x2x1024xbf16>
    %12 = vector.shape_cast %11 : vector<1x2x1024xbf16> to vector<2x1024xbf16>
    %13 = arith.extf %12 : vector<2x1024xbf16> to vector<2x1024xf32>
    %14 = arith.addf %9, %13 : vector<2x1024xf32>
    %15 = vector.broadcast %4 : vector<1x1024xf32> to vector<2x1024xf32>
    %16 = arith.addf %14, %15 : vector<2x1024xf32>
    %17 = vector.extract_strided_slice %16 {offsets = [0, 0], sizes = [2, 768], strides = [1, 1]} : vector<2x1024xf32> to vector<2x768xf32>
    %18 = arith.negf %17 : vector<2x768xf32>
    %19 = math.exp %18 : vector<2x768xf32>
    %cst_11 = arith.constant 1.000000e+00 : f32
    %20 = vector.broadcast %cst_11 : f32 to vector<2x768xf32>
    %21 = arith.addf %20, %19 : vector<2x768xf32>
    %22 = arith.divf %20, %21 : vector<2x768xf32>
    %23 = vector.extract_strided_slice %16 {offsets = [0, 768], sizes = [2, 256], strides = [1, 1]} : vector<2x1024xf32> to vector<2x256xf32>
    %24 = math.tanh %23 : vector<2x256xf32>
    %25 = vector.extract_strided_slice %22 {offsets = [0, 0], sizes = [2, 256], strides = [1, 1]} : vector<2x768xf32> to vector<2x256xf32>
    %26 = vector.extract_strided_slice %22 {offsets = [0, 256], sizes = [2, 256], strides = [1, 1]} : vector<2x768xf32> to vector<2x256xf32>
    %27 = vector.extract_strided_slice %22 {offsets = [0, 512], sizes = [2, 256], strides = [1, 1]} : vector<2x768xf32> to vector<2x256xf32>
    %28 = arith.mulf %26, %7 : vector<2x256xf32>
    %29 = arith.mulf %25, %24 : vector<2x256xf32>
    %30 = arith.addf %28, %29 : vector<2x256xf32>
    %31 = math.tanh %30 : vector<2x256xf32>
    %32 = arith.mulf %27, %31 : vector<2x256xf32>
    %33 = arith.index_cast %c0_i32_8 : i32 to index
    %c0_12 = arith.constant 0 : index
    %c0_13 = arith.constant 0 : index
    %34 = vector.load %arg6[%33, %c0_12, %c0_13] : memref<4x2x256xf32, #tpu.memory_space<vmem>>, vector<1x2x256xf32>
    %35 = vector.shape_cast %34 : vector<1x2x256xf32> to vector<2x256xf32>
    %36 = vector.shape_cast %32 : vector<2x256xf32> to vector<1x2x256xf32>
    tpu.vector_store %arg6[%33, %c0_12, %c0_13], %36 {strides = array<i32>} : memref<4x2x256xf32, #tpu.memory_space<vmem>>, vector<1x2x256xf32>,
    %37 = arith.addi %5, %c0_i32_8 : i32
    %c11_i32 = arith.constant 11 : i32
    %38 = arith.cmpi slt, %37, %c11_i32 : i32
    %39 = arith.select %38, %32, %6 : vector<2x256xf32>
    %40 = arith.select %38, %30, %7 : vector<2x256xf32>
    %c1_i32 = arith.constant 1 : i32
    %41 = arith.truncf %39 : vector<2x256xf32> to vector<2x256xbf16>
    %cst_14 = arith.constant dense<0.000000e+00> : vector<2x1024xf32>
    %42 = tpu.matmul %41, %3, %cst_14 {dimension_numbers = #tpu.dot_dimension_numbers<[1], [0], [0], [1], [0, 0, 1, 1], [], []>} : vector<2x256xbf16>, vector<256x1024xbf16>, vector<2x1024xf32> -> vector<2x1024xf32>
    %43 = arith.index_cast %c1_i32 : i32 to index
    %c0_15 = arith.constant 0 : index
    %c0_16 = arith.constant 0 : index
    %44 = vector.load %arg1[%43, %c0_15, %c0_16] : memref<4x2x1024xbf16, #tpu.memory_space<vmem>>, vector<1x2x1024xbf16>
    %45 = vector.shape_cast %44 : vector<1x2x1024xbf16> to vector<2x1024xbf16>
    %46 = arith.extf %45 : vector<2x1024xbf16> to vector<2x1024xf32>
    %47 = arith.addf %42, %46 : vector<2x1024xf32>
    %48 = vector.broadcast %4 : vector<1x1024xf32> to vector<2x1024xf32>
    %49 = arith.addf %47, %48 : vector<2x1024xf32>
    %50 = vector.extract_strided_slice %49 {offsets = [0, 0], sizes = [2, 768], strides = [1, 1]} : vector<2x1024xf32> to vector<2x768xf32>
    %51 = arith.negf %50 : vector<2x768xf32>
    %52 = math.exp %51 : vector<2x768xf32>
    %cst_17 = arith.constant 1.000000e+00 : f32
    %53 = vector.broadcast %cst_17 : f32 to vector<2x768xf32>
    %54 = arith.addf %53, %52 : vector<2x768xf32>
    %55 = arith.divf %53, %54 : vector<2x768xf32>
    %56 = vector.extract_strided_slice %49 {offsets = [0, 768], sizes = [2, 256], strides = [1, 1]} : vector<2x1024xf32> to vector<2x256xf32>
    %57 = math.tanh %56 : vector<2x256xf32>
    %58 = vector.extract_strided_slice %55 {offsets = [0, 0], sizes = [2, 256], strides = [1, 1]} : vector<2x768xf32> to vector<2x256xf32>
    %59 = vector.extract_strided_slice %55 {offsets = [0, 256], sizes = [2, 256], strides = [1, 1]} : vector<2x768xf32> to vector<2x256xf32>
    %60 = vector.extract_strided_slice %55 {offsets = [0, 512], sizes = [2, 256], strides = [1, 1]} : vector<2x768xf32> to vector<2x256xf32>
    %61 = arith.mulf %59, %40 : vector<2x256xf32>
    %62 = arith.mulf %58, %57 : vector<2x256xf32>
    %63 = arith.addf %61, %62 : vector<2x256xf32>
    %64 = math.tanh %63 : vector<2x256xf32>
    %65 = arith.mulf %60, %64 : vector<2x256xf32>
    %66 = arith.index_cast %c1_i32 : i32 to index
    %c0_18 = arith.constant 0 : index
    %c0_19 = arith.constant 0 : index
    %67 = vector.load %arg6[%66, %c0_18, %c0_19] : memref<4x2x256xf32, #tpu.memory_space<vmem>>, vector<1x2x256xf32>
    %68 = vector.shape_cast %67 : vector<1x2x256xf32> to vector<2x256xf32>
    %69 = vector.shape_cast %65 : vector<2x256xf32> to vector<1x2x256xf32>
    tpu.vector_store %arg6[%66, %c0_18, %c0_19], %69 {strides = array<i32>} : memref<4x2x256xf32, #tpu.memory_space<vmem>>, vector<1x2x256xf32>,
    %70 = arith.addi %5, %c1_i32 : i32
    %c11_i32_20 = arith.constant 11 : i32
    %71 = arith.cmpi slt, %70, %c11_i32_20 : i32
    %72 = arith.select %71, %65, %39 : vector<2x256xf32>
    %73 = arith.select %71, %63, %40 : vector<2x256xf32>
    %c2_i32 = arith.constant 2 : i32
    %74 = arith.truncf %72 : vector<2x256xf32> to vector<2x256xbf16>
    %cst_21 = arith.constant dense<0.000000e+00> : vector<2x1024xf32>
    %75 = tpu.matmul %74, %3, %cst_21 {dimension_numbers = #tpu.dot_dimension_numbers<[1], [0], [0], [1], [0, 0, 1, 1], [], []>} : vector<2x256xbf16>, vector<256x1024xbf16>, vector<2x1024xf32> -> vector<2x1024xf32>
    %76 = arith.index_cast %c2_i32 : i32 to index
    %c0_22 = arith.constant 0 : index
    %c0_23 = arith.constant 0 : index
    %77 = vector.load %arg1[%76, %c0_22, %c0_23] : memref<4x2x1024xbf16, #tpu.memory_space<vmem>>, vector<1x2x1024xbf16>
    %78 = vector.shape_cast %77 : vector<1x2x1024xbf16> to vector<2x1024xbf16>
    %79 = arith.extf %78 : vector<2x1024xbf16> to vector<2x1024xf32>
    %80 = arith.addf %75, %79 : vector<2x1024xf32>
    %81 = vector.broadcast %4 : vector<1x1024xf32> to vector<2x1024xf32>
    %82 = arith.addf %80, %81 : vector<2x1024xf32>
    %83 = vector.extract_strided_slice %82 {offsets = [0, 0], sizes = [2, 768], strides = [1, 1]} : vector<2x1024xf32> to vector<2x768xf32>
    %84 = arith.negf %83 : vector<2x768xf32>
    %85 = math.exp %84 : vector<2x768xf32>
    %cst_24 = arith.constant 1.000000e+00 : f32
    %86 = vector.broadcast %cst_24 : f32 to vector<2x768xf32>
    %87 = arith.addf %86, %85 : vector<2x768xf32>
    %88 = arith.divf %86, %87 : vector<2x768xf32>
    %89 = vector.extract_strided_slice %82 {offsets = [0, 768], sizes = [2, 256], strides = [1, 1]} : vector<2x1024xf32> to vector<2x256xf32>
    %90 = math.tanh %89 : vector<2x256xf32>
    %91 = vector.extract_strided_slice %88 {offsets = [0, 0], sizes = [2, 256], strides = [1, 1]} : vector<2x768xf32> to vector<2x256xf32>
    %92 = vector.extract_strided_slice %88 {offsets = [0, 256], sizes = [2, 256], strides = [1, 1]} : vector<2x768xf32> to vector<2x256xf32>
    %93 = vector.extract_strided_slice %88 {offsets = [0, 512], sizes = [2, 256], strides = [1, 1]} : vector<2x768xf32> to vector<2x256xf32>
    %94 = arith.mulf %92, %73 : vector<2x256xf32>
    %95 = arith.mulf %91, %90 : vector<2x256xf32>
    %96 = arith.addf %94, %95 : vector<2x256xf32>
    %97 = math.tanh %96 : vector<2x256xf32>
    %98 = arith.mulf %93, %97 : vector<2x256xf32>
    %99 = arith.index_cast %c2_i32 : i32 to index
    %c0_25 = arith.constant 0 : index
    %c0_26 = arith.constant 0 : index
    %100 = vector.load %arg6[%99, %c0_25, %c0_26] : memref<4x2x256xf32, #tpu.memory_space<vmem>>, vector<1x2x256xf32>
    %101 = vector.shape_cast %100 : vector<1x2x256xf32> to vector<2x256xf32>
    %102 = vector.shape_cast %98 : vector<2x256xf32> to vector<1x2x256xf32>
    tpu.vector_store %arg6[%99, %c0_25, %c0_26], %102 {strides = array<i32>} : memref<4x2x256xf32, #tpu.memory_space<vmem>>, vector<1x2x256xf32>,
    %103 = arith.addi %5, %c2_i32 : i32
    %c11_i32_27 = arith.constant 11 : i32
    %104 = arith.cmpi slt, %103, %c11_i32_27 : i32
    %105 = arith.select %104, %98, %72 : vector<2x256xf32>
    %106 = arith.select %104, %96, %73 : vector<2x256xf32>
    %c3_i32 = arith.constant 3 : i32
    %107 = arith.truncf %105 : vector<2x256xf32> to vector<2x256xbf16>
    %cst_28 = arith.constant dense<0.000000e+00> : vector<2x1024xf32>
    %108 = tpu.matmul %107, %3, %cst_28 {dimension_numbers = #tpu.dot_dimension_numbers<[1], [0], [0], [1], [0, 0, 1, 1], [], []>} : vector<2x256xbf16>, vector<256x1024xbf16>, vector<2x1024xf32> -> vector<2x1024xf32>
    %109 = arith.index_cast %c3_i32 : i32 to index
    %c0_29 = arith.constant 0 : index
    %c0_30 = arith.constant 0 : index
    %110 = vector.load %arg1[%109, %c0_29, %c0_30] : memref<4x2x1024xbf16, #tpu.memory_space<vmem>>, vector<1x2x1024xbf16>
    %111 = vector.shape_cast %110 : vector<1x2x1024xbf16> to vector<2x1024xbf16>
    %112 = arith.extf %111 : vector<2x1024xbf16> to vector<2x1024xf32>
    %113 = arith.addf %108, %112 : vector<2x1024xf32>
    %114 = vector.broadcast %4 : vector<1x1024xf32> to vector<2x1024xf32>
    %115 = arith.addf %113, %114 : vector<2x1024xf32>
    %116 = vector.extract_strided_slice %115 {offsets = [0, 0], sizes = [2, 768], strides = [1, 1]} : vector<2x1024xf32> to vector<2x768xf32>
    %117 = arith.negf %116 : vector<2x768xf32>
    %118 = math.exp %117 : vector<2x768xf32>
    %cst_31 = arith.constant 1.000000e+00 : f32
    %119 = vector.broadcast %cst_31 : f32 to vector<2x768xf32>
    %120 = arith.addf %119, %118 : vector<2x768xf32>
    %121 = arith.divf %119, %120 : vector<2x768xf32>
    %122 = vector.extract_strided_slice %115 {offsets = [0, 768], sizes = [2, 256], strides = [1, 1]} : vector<2x1024xf32> to vector<2x256xf32>
    %123 = math.tanh %122 : vector<2x256xf32>
    %124 = vector.extract_strided_slice %121 {offsets = [0, 0], sizes = [2, 256], strides = [1, 1]} : vector<2x768xf32> to vector<2x256xf32>
    %125 = vector.extract_strided_slice %121 {offsets = [0, 256], sizes = [2, 256], strides = [1, 1]} : vector<2x768xf32> to vector<2x256xf32>
    %126 = vector.extract_strided_slice %121 {offsets = [0, 512], sizes = [2, 256], strides = [1, 1]} : vector<2x768xf32> to vector<2x256xf32>
    %127 = arith.mulf %125, %106 : vector<2x256xf32>
    %128 = arith.mulf %124, %123 : vector<2x256xf32>
    %129 = arith.addf %127, %128 : vector<2x256xf32>
    %130 = math.tanh %129 : vector<2x256xf32>
    %131 = arith.mulf %126, %130 : vector<2x256xf32>
    %132 = arith.index_cast %c3_i32 : i32 to index
    %c0_32 = arith.constant 0 : index
    %c0_33 = arith.constant 0 : index
    %133 = vector.load %arg6[%132, %c0_32, %c0_33] : memref<4x2x256xf32, #tpu.memory_space<vmem>>, vector<1x2x256xf32>
    %134 = vector.shape_cast %133 : vector<1x2x256xf32> to vector<2x256xf32>
    %135 = vector.shape_cast %131 : vector<2x256xf32> to vector<1x2x256xf32>
    tpu.vector_store %arg6[%132, %c0_32, %c0_33], %135 {strides = array<i32>} : memref<4x2x256xf32, #tpu.memory_space<vmem>>, vector<1x2x256xf32>,
    %136 = arith.addi %5, %c3_i32 : i32
    %c11_i32_34 = arith.constant 11 : i32
    %137 = arith.cmpi slt, %136, %c11_i32_34 : i32
    %138 = arith.select %137, %131, %105 : vector<2x256xf32>
    %139 = arith.select %137, %129, %106 : vector<2x256xf32>
    %c4_i32_35 = arith.constant 4 : i32
    %c0_36 = arith.constant 0 : index
    %c0_37 = arith.constant 0 : index
    %140 = vector.load %arg7[%c0_36, %c0_37] : memref<2x256xf32, #tpu.memory_space<vmem>>, vector<2x256xf32>
    tpu.vector_store %arg7[%c0_36, %c0_37], %138 {strides = array<i32>} : memref<2x256xf32, #tpu.memory_space<vmem>>, vector<2x256xf32>,
    %c0_38 = arith.constant 0 : index
    %c0_39 = arith.constant 0 : index
    %141 = vector.load %arg8[%c0_38, %c0_39] : memref<2x256xf32, #tpu.memory_space<vmem>>, vector<2x256xf32>
    tpu.vector_store %arg8[%c0_38, %c0_39], %139 {strides = array<i32>} : memref<2x256xf32, #tpu.memory_space<vmem>>, vector<2x256xf32>,
    return
  }
  func.func @transform_0(%arg0: i32) -> (i32, i32, i32) {
    %c0_i32 = arith.constant 0 : i32
    %c0_i32_0 = arith.constant 0 : i32
    %c0_i32_1 = arith.constant 0 : i32
    return %arg0, %c0_i32, %c0_i32_0 : i32, i32, i32
  }
  func.func @transform_1(%arg0: i32) -> (i32, i32) {
    %c0_i32 = arith.constant 0 : i32
    %c0_i32_0 = arith.constant 0 : i32
    %c0_i32_1 = arith.constant 0 : i32
    return %c0_i32, %c0_i32_0 : i32, i32
  }
  func.func @transform_2(%arg0: i32) -> (i32, i32) {
    %c0_i32 = arith.constant 0 : i32
    %c0_i32_0 = arith.constant 0 : i32
    %c0_i32_1 = arith.constant 0 : i32
    return %c0_i32, %c0_i32_0 : i32, i32
  }
  func.func @transform_3(%arg0: i32) -> (i32, i32) {
    %c0_i32 = arith.constant 0 : i32
    %c0_i32_0 = arith.constant 0 : i32
    %c0_i32_1 = arith.constant 0 : i32
    return %c0_i32, %c0_i32_0 : i32, i32
  }
  func.func @transform_4(%arg0: i32) -> (i32, i32) {
    %c0_i32 = arith.constant 0 : i32
    %c0_i32_0 = arith.constant 0 : i32
    %c0_i32_1 = arith.constant 0 : i32
    return %c0_i32, %c0_i32_0 : i32, i32
  }
  func.func @transform_5(%arg0: i32) -> (i32, i32, i32) {
    %c0_i32 = arith.constant 0 : i32
    %c0_i32_0 = arith.constant 0 : i32
    %c0_i32_1 = arith.constant 0 : i32
    return %arg0, %c0_i32, %c0_i32_0 : i32, i32, i32
  }
  func.func @transform_6(%arg0: i32) -> (i32, i32) {
    %c0_i32 = arith.constant 0 : i32
    %c0_i32_0 = arith.constant 0 : i32
    %c0_i32_1 = arith.constant 0 : i32
    return %c0_i32, %c0_i32_0 : i32, i32
  }
  func.func @transform_7(%arg0: i32) -> (i32, i32) {
    %c0_i32 = arith.constant 0 : i32
    %c0_i32_0 = arith.constant 0 : i32
    %c0_i32_1 = arith.constant 0 : i32
    return %c0_i32, %c0_i32_0 : i32, i32
  }
}

module attributes {stable_mosaic.version = 11 : i64} {
  func.func @_lstm_layer_kernel(%arg0: i32, %arg1: memref<4x2x1024xbf16, #tpu.memory_space<vmem>>, %arg2: memref<1x1024xf32, #tpu.memory_space<vmem>>, %arg3: memref<2x256xf32, #tpu.memory_space<vmem>>, %arg4: memref<2x256xf32, #tpu.memory_space<vmem>>, %arg5: memref<256x1024xbf16, #tpu.memory_space<vmem>>, %arg6: memref<4x2x256xbf16, #tpu.memory_space<vmem>>, %arg7: memref<2x256xf32, #tpu.memory_space<vmem>>, %arg8: memref<2x256xf32, #tpu.memory_space<vmem>>) attributes {dimension_semantics = [#tpu.dimension_semantics<arbitrary>], iteration_bounds = array<i64: 3>, scalar_prefetch = 0 : i64, scratch_operands = 0 : i64, tpu.core_type = #tpu.core_type<tc>, window_params = [{transform_indices = @transform_0, window_bounds = array<i64: 4, 2, 1024>}, {pipeline_mode = #tpu.pipeline_mode<synchronous>, transform_indices = @transform_1, window_bounds = array<i64: 1, 1024>}, {pipeline_mode = #tpu.pipeline_mode<synchronous>, transform_indices = @transform_2, window_bounds = array<i64: 2, 256>}, {pipeline_mode = #tpu.pipeline_mode<synchronous>, transform_indices = @transform_3, window_bounds = array<i64: 2, 256>}, {pipeline_mode = #tpu.pipeline_mode<synchronous>, transform_indices = @transform_4, window_bounds = array<i64: 256, 1024>}, {transform_indices = @transform_5, window_bounds = array<i64: 4, 2, 256>}, {pipeline_mode = #tpu.pipeline_mode<synchronous>, transform_indices = @transform_6, window_bounds = array<i64: 2, 256>}, {pipeline_mode = #tpu.pipeline_mode<synchronous>, transform_indices = @transform_7, window_bounds = array<i64: 2, 256>}]} {
    %c0_i32 = arith.constant 0 : i32
    %0 = arith.cmpi eq, %arg0, %c0_i32 : i32
    %1 = arith.extui %0 : i1 to i32
    %c0_i32_0 = arith.constant 0 : i32
    %2 = arith.cmpi ne, %1, %c0_i32_0 : i32
    scf.if %2 {
      %c0_40 = arith.constant 0 : index
      %c0_41 = arith.constant 0 : index
      %146 = vector.load %arg3[%c0_40, %c0_41] : memref<2x256xf32, #tpu.memory_space<vmem>>, vector<2x256xf32>
      %c0_42 = arith.constant 0 : index
      %c0_43 = arith.constant 0 : index
      %147 = vector.load %arg7[%c0_42, %c0_43] : memref<2x256xf32, #tpu.memory_space<vmem>>, vector<2x256xf32>
      tpu.vector_store %arg7[%c0_42, %c0_43], %146 {strides = array<i32>} : memref<2x256xf32, #tpu.memory_space<vmem>>, vector<2x256xf32>,
      %c0_44 = arith.constant 0 : index
      %c0_45 = arith.constant 0 : index
      %148 = vector.load %arg4[%c0_44, %c0_45] : memref<2x256xf32, #tpu.memory_space<vmem>>, vector<2x256xf32>
      %c0_46 = arith.constant 0 : index
      %c0_47 = arith.constant 0 : index
      %149 = vector.load %arg8[%c0_46, %c0_47] : memref<2x256xf32, #tpu.memory_space<vmem>>, vector<2x256xf32>
      tpu.vector_store %arg8[%c0_46, %c0_47], %148 {strides = array<i32>} : memref<2x256xf32, #tpu.memory_space<vmem>>, vector<2x256xf32>,
    } else {
    }
    %c0 = arith.constant 0 : index
    %c0_1 = arith.constant 0 : index
    %3 = vector.load %arg5[%c0, %c0_1] : memref<256x1024xbf16, #tpu.memory_space<vmem>>, vector<256x1024xbf16>
    %c0_2 = arith.constant 0 : index
    %c0_3 = arith.constant 0 : index
    %4 = vector.load %arg2[%c0_2, %c0_3] : memref<1x1024xf32, #tpu.memory_space<vmem>>, vector<1x1024xf32>
    %c4_i32 = arith.constant 4 : i32
    %5 = arith.muli %arg0, %c4_i32 : i32
    %c0_4 = arith.constant 0 : index
    %c0_5 = arith.constant 0 : index
    %6 = vector.load %arg7[%c0_4, %c0_5] : memref<2x256xf32, #tpu.memory_space<vmem>>, vector<2x256xf32>
    %c0_6 = arith.constant 0 : index
    %c0_7 = arith.constant 0 : index
    %7 = vector.load %arg8[%c0_6, %c0_7] : memref<2x256xf32, #tpu.memory_space<vmem>>, vector<2x256xf32>
    %c0_i32_8 = arith.constant 0 : i32
    %8 = arith.truncf %6 : vector<2x256xf32> to vector<2x256xbf16>
    %cst = arith.constant dense<0.000000e+00> : vector<2x1024xf32>
    %9 = tpu.matmul %8, %3, %cst {dimension_numbers = #tpu.dot_dimension_numbers<[1], [0], [0], [1], [0, 0, 1, 1], [], []>} : vector<2x256xbf16>, vector<256x1024xbf16>, vector<2x1024xf32> -> vector<2x1024xf32>
    %10 = arith.index_cast %c0_i32_8 : i32 to index
    %c0_9 = arith.constant 0 : index
    %c0_10 = arith.constant 0 : index
    %11 = vector.load %arg1[%10, %c0_9, %c0_10] : memref<4x2x1024xbf16, #tpu.memory_space<vmem>>, vector<1x2x1024xbf16>
    %12 = vector.shape_cast %11 : vector<1x2x1024xbf16> to vector<2x1024xbf16>
    %13 = arith.extf %12 : vector<2x1024xbf16> to vector<2x1024xf32>
    %14 = arith.addf %9, %13 : vector<2x1024xf32>
    %15 = vector.broadcast %4 : vector<1x1024xf32> to vector<2x1024xf32>
    %16 = arith.addf %14, %15 : vector<2x1024xf32>
    %17 = vector.extract_strided_slice %16 {offsets = [0, 0], sizes = [2, 768], strides = [1, 1]} : vector<2x1024xf32> to vector<2x768xf32>
    %18 = arith.negf %17 : vector<2x768xf32>
    %19 = math.exp %18 : vector<2x768xf32>
    %cst_11 = arith.constant 1.000000e+00 : f32
    %20 = vector.broadcast %cst_11 : f32 to vector<2x768xf32>
    %21 = arith.addf %20, %19 : vector<2x768xf32>
    %22 = arith.divf %20, %21 : vector<2x768xf32>
    %23 = vector.extract_strided_slice %16 {offsets = [0, 768], sizes = [2, 256], strides = [1, 1]} : vector<2x1024xf32> to vector<2x256xf32>
    %24 = math.tanh %23 : vector<2x256xf32>
    %25 = vector.extract_strided_slice %22 {offsets = [0, 0], sizes = [2, 256], strides = [1, 1]} : vector<2x768xf32> to vector<2x256xf32>
    %26 = vector.extract_strided_slice %22 {offsets = [0, 256], sizes = [2, 256], strides = [1, 1]} : vector<2x768xf32> to vector<2x256xf32>
    %27 = vector.extract_strided_slice %22 {offsets = [0, 512], sizes = [2, 256], strides = [1, 1]} : vector<2x768xf32> to vector<2x256xf32>
    %28 = arith.mulf %26, %7 : vector<2x256xf32>
    %29 = arith.mulf %25, %24 : vector<2x256xf32>
    %30 = arith.addf %28, %29 : vector<2x256xf32>
    %31 = math.tanh %30 : vector<2x256xf32>
    %32 = arith.mulf %27, %31 : vector<2x256xf32>
    %33 = arith.truncf %32 : vector<2x256xf32> to vector<2x256xbf16>
    %34 = arith.index_cast %c0_i32_8 : i32 to index
    %c0_12 = arith.constant 0 : index
    %c0_13 = arith.constant 0 : index
    %35 = vector.load %arg6[%34, %c0_12, %c0_13] : memref<4x2x256xbf16, #tpu.memory_space<vmem>>, vector<1x2x256xbf16>
    %36 = vector.shape_cast %35 : vector<1x2x256xbf16> to vector<2x256xbf16>
    %37 = vector.shape_cast %33 : vector<2x256xbf16> to vector<1x2x256xbf16>
    tpu.vector_store %arg6[%34, %c0_12, %c0_13], %37 {strides = array<i32>} : memref<4x2x256xbf16, #tpu.memory_space<vmem>>, vector<1x2x256xbf16>,
    %38 = arith.addi %5, %c0_i32_8 : i32
    %c11_i32 = arith.constant 11 : i32
    %39 = arith.cmpi slt, %38, %c11_i32 : i32
    %40 = arith.select %39, %32, %6 : vector<2x256xf32>
    %41 = arith.select %39, %30, %7 : vector<2x256xf32>
    %c1_i32 = arith.constant 1 : i32
    %42 = arith.truncf %40 : vector<2x256xf32> to vector<2x256xbf16>
    %cst_14 = arith.constant dense<0.000000e+00> : vector<2x1024xf32>
    %43 = tpu.matmul %42, %3, %cst_14 {dimension_numbers = #tpu.dot_dimension_numbers<[1], [0], [0], [1], [0, 0, 1, 1], [], []>} : vector<2x256xbf16>, vector<256x1024xbf16>, vector<2x1024xf32> -> vector<2x1024xf32>
    %44 = arith.index_cast %c1_i32 : i32 to index
    %c0_15 = arith.constant 0 : index
    %c0_16 = arith.constant 0 : index
    %45 = vector.load %arg1[%44, %c0_15, %c0_16] : memref<4x2x1024xbf16, #tpu.memory_space<vmem>>, vector<1x2x1024xbf16>
    %46 = vector.shape_cast %45 : vector<1x2x1024xbf16> to vector<2x1024xbf16>
    %47 = arith.extf %46 : vector<2x1024xbf16> to vector<2x1024xf32>
    %48 = arith.addf %43, %47 : vector<2x1024xf32>
    %49 = vector.broadcast %4 : vector<1x1024xf32> to vector<2x1024xf32>
    %50 = arith.addf %48, %49 : vector<2x1024xf32>
    %51 = vector.extract_strided_slice %50 {offsets = [0, 0], sizes = [2, 768], strides = [1, 1]} : vector<2x1024xf32> to vector<2x768xf32>
    %52 = arith.negf %51 : vector<2x768xf32>
    %53 = math.exp %52 : vector<2x768xf32>
    %cst_17 = arith.constant 1.000000e+00 : f32
    %54 = vector.broadcast %cst_17 : f32 to vector<2x768xf32>
    %55 = arith.addf %54, %53 : vector<2x768xf32>
    %56 = arith.divf %54, %55 : vector<2x768xf32>
    %57 = vector.extract_strided_slice %50 {offsets = [0, 768], sizes = [2, 256], strides = [1, 1]} : vector<2x1024xf32> to vector<2x256xf32>
    %58 = math.tanh %57 : vector<2x256xf32>
    %59 = vector.extract_strided_slice %56 {offsets = [0, 0], sizes = [2, 256], strides = [1, 1]} : vector<2x768xf32> to vector<2x256xf32>
    %60 = vector.extract_strided_slice %56 {offsets = [0, 256], sizes = [2, 256], strides = [1, 1]} : vector<2x768xf32> to vector<2x256xf32>
    %61 = vector.extract_strided_slice %56 {offsets = [0, 512], sizes = [2, 256], strides = [1, 1]} : vector<2x768xf32> to vector<2x256xf32>
    %62 = arith.mulf %60, %41 : vector<2x256xf32>
    %63 = arith.mulf %59, %58 : vector<2x256xf32>
    %64 = arith.addf %62, %63 : vector<2x256xf32>
    %65 = math.tanh %64 : vector<2x256xf32>
    %66 = arith.mulf %61, %65 : vector<2x256xf32>
    %67 = arith.truncf %66 : vector<2x256xf32> to vector<2x256xbf16>
    %68 = arith.index_cast %c1_i32 : i32 to index
    %c0_18 = arith.constant 0 : index
    %c0_19 = arith.constant 0 : index
    %69 = vector.load %arg6[%68, %c0_18, %c0_19] : memref<4x2x256xbf16, #tpu.memory_space<vmem>>, vector<1x2x256xbf16>
    %70 = vector.shape_cast %69 : vector<1x2x256xbf16> to vector<2x256xbf16>
    %71 = vector.shape_cast %67 : vector<2x256xbf16> to vector<1x2x256xbf16>
    tpu.vector_store %arg6[%68, %c0_18, %c0_19], %71 {strides = array<i32>} : memref<4x2x256xbf16, #tpu.memory_space<vmem>>, vector<1x2x256xbf16>,
    %72 = arith.addi %5, %c1_i32 : i32
    %c11_i32_20 = arith.constant 11 : i32
    %73 = arith.cmpi slt, %72, %c11_i32_20 : i32
    %74 = arith.select %73, %66, %40 : vector<2x256xf32>
    %75 = arith.select %73, %64, %41 : vector<2x256xf32>
    %c2_i32 = arith.constant 2 : i32
    %76 = arith.truncf %74 : vector<2x256xf32> to vector<2x256xbf16>
    %cst_21 = arith.constant dense<0.000000e+00> : vector<2x1024xf32>
    %77 = tpu.matmul %76, %3, %cst_21 {dimension_numbers = #tpu.dot_dimension_numbers<[1], [0], [0], [1], [0, 0, 1, 1], [], []>} : vector<2x256xbf16>, vector<256x1024xbf16>, vector<2x1024xf32> -> vector<2x1024xf32>
    %78 = arith.index_cast %c2_i32 : i32 to index
    %c0_22 = arith.constant 0 : index
    %c0_23 = arith.constant 0 : index
    %79 = vector.load %arg1[%78, %c0_22, %c0_23] : memref<4x2x1024xbf16, #tpu.memory_space<vmem>>, vector<1x2x1024xbf16>
    %80 = vector.shape_cast %79 : vector<1x2x1024xbf16> to vector<2x1024xbf16>
    %81 = arith.extf %80 : vector<2x1024xbf16> to vector<2x1024xf32>
    %82 = arith.addf %77, %81 : vector<2x1024xf32>
    %83 = vector.broadcast %4 : vector<1x1024xf32> to vector<2x1024xf32>
    %84 = arith.addf %82, %83 : vector<2x1024xf32>
    %85 = vector.extract_strided_slice %84 {offsets = [0, 0], sizes = [2, 768], strides = [1, 1]} : vector<2x1024xf32> to vector<2x768xf32>
    %86 = arith.negf %85 : vector<2x768xf32>
    %87 = math.exp %86 : vector<2x768xf32>
    %cst_24 = arith.constant 1.000000e+00 : f32
    %88 = vector.broadcast %cst_24 : f32 to vector<2x768xf32>
    %89 = arith.addf %88, %87 : vector<2x768xf32>
    %90 = arith.divf %88, %89 : vector<2x768xf32>
    %91 = vector.extract_strided_slice %84 {offsets = [0, 768], sizes = [2, 256], strides = [1, 1]} : vector<2x1024xf32> to vector<2x256xf32>
    %92 = math.tanh %91 : vector<2x256xf32>
    %93 = vector.extract_strided_slice %90 {offsets = [0, 0], sizes = [2, 256], strides = [1, 1]} : vector<2x768xf32> to vector<2x256xf32>
    %94 = vector.extract_strided_slice %90 {offsets = [0, 256], sizes = [2, 256], strides = [1, 1]} : vector<2x768xf32> to vector<2x256xf32>
    %95 = vector.extract_strided_slice %90 {offsets = [0, 512], sizes = [2, 256], strides = [1, 1]} : vector<2x768xf32> to vector<2x256xf32>
    %96 = arith.mulf %94, %75 : vector<2x256xf32>
    %97 = arith.mulf %93, %92 : vector<2x256xf32>
    %98 = arith.addf %96, %97 : vector<2x256xf32>
    %99 = math.tanh %98 : vector<2x256xf32>
    %100 = arith.mulf %95, %99 : vector<2x256xf32>
    %101 = arith.truncf %100 : vector<2x256xf32> to vector<2x256xbf16>
    %102 = arith.index_cast %c2_i32 : i32 to index
    %c0_25 = arith.constant 0 : index
    %c0_26 = arith.constant 0 : index
    %103 = vector.load %arg6[%102, %c0_25, %c0_26] : memref<4x2x256xbf16, #tpu.memory_space<vmem>>, vector<1x2x256xbf16>
    %104 = vector.shape_cast %103 : vector<1x2x256xbf16> to vector<2x256xbf16>
    %105 = vector.shape_cast %101 : vector<2x256xbf16> to vector<1x2x256xbf16>
    tpu.vector_store %arg6[%102, %c0_25, %c0_26], %105 {strides = array<i32>} : memref<4x2x256xbf16, #tpu.memory_space<vmem>>, vector<1x2x256xbf16>,
    %106 = arith.addi %5, %c2_i32 : i32
    %c11_i32_27 = arith.constant 11 : i32
    %107 = arith.cmpi slt, %106, %c11_i32_27 : i32
    %108 = arith.select %107, %100, %74 : vector<2x256xf32>
    %109 = arith.select %107, %98, %75 : vector<2x256xf32>
    %c3_i32 = arith.constant 3 : i32
    %110 = arith.truncf %108 : vector<2x256xf32> to vector<2x256xbf16>
    %cst_28 = arith.constant dense<0.000000e+00> : vector<2x1024xf32>
    %111 = tpu.matmul %110, %3, %cst_28 {dimension_numbers = #tpu.dot_dimension_numbers<[1], [0], [0], [1], [0, 0, 1, 1], [], []>} : vector<2x256xbf16>, vector<256x1024xbf16>, vector<2x1024xf32> -> vector<2x1024xf32>
    %112 = arith.index_cast %c3_i32 : i32 to index
    %c0_29 = arith.constant 0 : index
    %c0_30 = arith.constant 0 : index
    %113 = vector.load %arg1[%112, %c0_29, %c0_30] : memref<4x2x1024xbf16, #tpu.memory_space<vmem>>, vector<1x2x1024xbf16>
    %114 = vector.shape_cast %113 : vector<1x2x1024xbf16> to vector<2x1024xbf16>
    %115 = arith.extf %114 : vector<2x1024xbf16> to vector<2x1024xf32>
    %116 = arith.addf %111, %115 : vector<2x1024xf32>
    %117 = vector.broadcast %4 : vector<1x1024xf32> to vector<2x1024xf32>
    %118 = arith.addf %116, %117 : vector<2x1024xf32>
    %119 = vector.extract_strided_slice %118 {offsets = [0, 0], sizes = [2, 768], strides = [1, 1]} : vector<2x1024xf32> to vector<2x768xf32>
    %120 = arith.negf %119 : vector<2x768xf32>
    %121 = math.exp %120 : vector<2x768xf32>
    %cst_31 = arith.constant 1.000000e+00 : f32
    %122 = vector.broadcast %cst_31 : f32 to vector<2x768xf32>
    %123 = arith.addf %122, %121 : vector<2x768xf32>
    %124 = arith.divf %122, %123 : vector<2x768xf32>
    %125 = vector.extract_strided_slice %118 {offsets = [0, 768], sizes = [2, 256], strides = [1, 1]} : vector<2x1024xf32> to vector<2x256xf32>
    %126 = math.tanh %125 : vector<2x256xf32>
    %127 = vector.extract_strided_slice %124 {offsets = [0, 0], sizes = [2, 256], strides = [1, 1]} : vector<2x768xf32> to vector<2x256xf32>
    %128 = vector.extract_strided_slice %124 {offsets = [0, 256], sizes = [2, 256], strides = [1, 1]} : vector<2x768xf32> to vector<2x256xf32>
    %129 = vector.extract_strided_slice %124 {offsets = [0, 512], sizes = [2, 256], strides = [1, 1]} : vector<2x768xf32> to vector<2x256xf32>
    %130 = arith.mulf %128, %109 : vector<2x256xf32>
    %131 = arith.mulf %127, %126 : vector<2x256xf32>
    %132 = arith.addf %130, %131 : vector<2x256xf32>
    %133 = math.tanh %132 : vector<2x256xf32>
    %134 = arith.mulf %129, %133 : vector<2x256xf32>
    %135 = arith.truncf %134 : vector<2x256xf32> to vector<2x256xbf16>
    %136 = arith.index_cast %c3_i32 : i32 to index
    %c0_32 = arith.constant 0 : index
    %c0_33 = arith.constant 0 : index
    %137 = vector.load %arg6[%136, %c0_32, %c0_33] : memref<4x2x256xbf16, #tpu.memory_space<vmem>>, vector<1x2x256xbf16>
    %138 = vector.shape_cast %137 : vector<1x2x256xbf16> to vector<2x256xbf16>
    %139 = vector.shape_cast %135 : vector<2x256xbf16> to vector<1x2x256xbf16>
    tpu.vector_store %arg6[%136, %c0_32, %c0_33], %139 {strides = array<i32>} : memref<4x2x256xbf16, #tpu.memory_space<vmem>>, vector<1x2x256xbf16>,
    %140 = arith.addi %5, %c3_i32 : i32
    %c11_i32_34 = arith.constant 11 : i32
    %141 = arith.cmpi slt, %140, %c11_i32_34 : i32
    %142 = arith.select %141, %134, %108 : vector<2x256xf32>
    %143 = arith.select %141, %132, %109 : vector<2x256xf32>
    %c4_i32_35 = arith.constant 4 : i32
    %c0_36 = arith.constant 0 : index
    %c0_37 = arith.constant 0 : index
    %144 = vector.load %arg7[%c0_36, %c0_37] : memref<2x256xf32, #tpu.memory_space<vmem>>, vector<2x256xf32>
    tpu.vector_store %arg7[%c0_36, %c0_37], %142 {strides = array<i32>} : memref<2x256xf32, #tpu.memory_space<vmem>>, vector<2x256xf32>,
    %c0_38 = arith.constant 0 : index
    %c0_39 = arith.constant 0 : index
    %145 = vector.load %arg8[%c0_38, %c0_39] : memref<2x256xf32, #tpu.memory_space<vmem>>, vector<2x256xf32>
    tpu.vector_store %arg8[%c0_38, %c0_39], %143 {strides = array<i32>} : memref<2x256xf32, #tpu.memory_space<vmem>>, vector<2x256xf32>,
    return
  }
  func.func @transform_0(%arg0: i32) -> (i32, i32, i32) {
    %c0_i32 = arith.constant 0 : i32
    %c0_i32_0 = arith.constant 0 : i32
    %c0_i32_1 = arith.constant 0 : i32
    return %arg0, %c0_i32, %c0_i32_0 : i32, i32, i32
  }
  func.func @transform_1(%arg0: i32) -> (i32, i32) {
    %c0_i32 = arith.constant 0 : i32
    %c0_i32_0 = arith.constant 0 : i32
    %c0_i32_1 = arith.constant 0 : i32
    return %c0_i32, %c0_i32_0 : i32, i32
  }
  func.func @transform_2(%arg0: i32) -> (i32, i32) {
    %c0_i32 = arith.constant 0 : i32
    %c0_i32_0 = arith.constant 0 : i32
    %c0_i32_1 = arith.constant 0 : i32
    return %c0_i32, %c0_i32_0 : i32, i32
  }
  func.func @transform_3(%arg0: i32) -> (i32, i32) {
    %c0_i32 = arith.constant 0 : i32
    %c0_i32_0 = arith.constant 0 : i32
    %c0_i32_1 = arith.constant 0 : i32
    return %c0_i32, %c0_i32_0 : i32, i32
  }
  func.func @transform_4(%arg0: i32) -> (i32, i32) {
    %c0_i32 = arith.constant 0 : i32
    %c0_i32_0 = arith.constant 0 : i32
    %c0_i32_1 = arith.constant 0 : i32
    return %c0_i32, %c0_i32_0 : i32, i32
  }
  func.func @transform_5(%arg0: i32) -> (i32, i32, i32) {
    %c0_i32 = arith.constant 0 : i32
    %c0_i32_0 = arith.constant 0 : i32
    %c0_i32_1 = arith.constant 0 : i32
    return %arg0, %c0_i32, %c0_i32_0 : i32, i32, i32
  }
  func.func @transform_6(%arg0: i32) -> (i32, i32) {
    %c0_i32 = arith.constant 0 : i32
    %c0_i32_0 = arith.constant 0 : i32
    %c0_i32_1 = arith.constant 0 : i32
    return %c0_i32, %c0_i32_0 : i32, i32
  }
  func.func @transform_7(%arg0: i32) -> (i32, i32) {
    %c0_i32 = arith.constant 0 : i32
    %c0_i32_0 = arith.constant 0 : i32
    %c0_i32_1 = arith.constant 0 : i32
    return %c0_i32, %c0_i32_0 : i32, i32
  }
}

module attributes {stable_mosaic.version = 11 : i64} {
  func.func @_lstm_layer_kernel(%arg0: i32, %arg1: memref<4x2x1024xbf16, #tpu.memory_space<vmem>>, %arg2: memref<1x1024xf32, #tpu.memory_space<vmem>>, %arg3: memref<2x256xf32, #tpu.memory_space<vmem>>, %arg4: memref<2x256xf32, #tpu.memory_space<vmem>>, %arg5: memref<256x1024xbf16, #tpu.memory_space<vmem>>, %arg6: memref<4x2x256xf32, #tpu.memory_space<vmem>>, %arg7: memref<2x256xf32, #tpu.memory_space<vmem>>, %arg8: memref<2x256xf32, #tpu.memory_space<vmem>>) attributes {dimension_semantics = [#tpu.dimension_semantics<arbitrary>], iteration_bounds = array<i64: 3>, scalar_prefetch = 0 : i64, scratch_operands = 0 : i64, tpu.core_type = #tpu.core_type<tc>, window_params = [{transform_indices = @transform_0, window_bounds = array<i64: 4, 2, 1024>}, {pipeline_mode = #tpu.pipeline_mode<synchronous>, transform_indices = @transform_1, window_bounds = array<i64: 1, 1024>}, {pipeline_mode = #tpu.pipeline_mode<synchronous>, transform_indices = @transform_2, window_bounds = array<i64: 2, 256>}, {pipeline_mode = #tpu.pipeline_mode<synchronous>, transform_indices = @transform_3, window_bounds = array<i64: 2, 256>}, {pipeline_mode = #tpu.pipeline_mode<synchronous>, transform_indices = @transform_4, window_bounds = array<i64: 256, 1024>}, {transform_indices = @transform_5, window_bounds = array<i64: 4, 2, 256>}, {pipeline_mode = #tpu.pipeline_mode<synchronous>, transform_indices = @transform_6, window_bounds = array<i64: 2, 256>}, {pipeline_mode = #tpu.pipeline_mode<synchronous>, transform_indices = @transform_7, window_bounds = array<i64: 2, 256>}]} {
    %c0_i32 = arith.constant 0 : i32
    %0 = arith.cmpi eq, %arg0, %c0_i32 : i32
    %1 = arith.extui %0 : i1 to i32
    %c0_i32_0 = arith.constant 0 : i32
    %2 = arith.cmpi ne, %1, %c0_i32_0 : i32
    scf.if %2 {
      %c0_40 = arith.constant 0 : index
      %c0_41 = arith.constant 0 : index
      %142 = vector.load %arg3[%c0_40, %c0_41] : memref<2x256xf32, #tpu.memory_space<vmem>>, vector<2x256xf32>
      %c0_42 = arith.constant 0 : index
      %c0_43 = arith.constant 0 : index
      %143 = vector.load %arg7[%c0_42, %c0_43] : memref<2x256xf32, #tpu.memory_space<vmem>>, vector<2x256xf32>
      tpu.vector_store %arg7[%c0_42, %c0_43], %142 {strides = array<i32>} : memref<2x256xf32, #tpu.memory_space<vmem>>, vector<2x256xf32>,
      %c0_44 = arith.constant 0 : index
      %c0_45 = arith.constant 0 : index
      %144 = vector.load %arg4[%c0_44, %c0_45] : memref<2x256xf32, #tpu.memory_space<vmem>>, vector<2x256xf32>
      %c0_46 = arith.constant 0 : index
      %c0_47 = arith.constant 0 : index
      %145 = vector.load %arg8[%c0_46, %c0_47] : memref<2x256xf32, #tpu.memory_space<vmem>>, vector<2x256xf32>
      tpu.vector_store %arg8[%c0_46, %c0_47], %144 {strides = array<i32>} : memref<2x256xf32, #tpu.memory_space<vmem>>, vector<2x256xf32>,
    } else {
    }
    %c0 = arith.constant 0 : index
    %c0_1 = arith.constant 0 : index
    %3 = vector.load %arg5[%c0, %c0_1] : memref<256x1024xbf16, #tpu.memory_space<vmem>>, vector<256x1024xbf16>
    %c0_2 = arith.constant 0 : index
    %c0_3 = arith.constant 0 : index
    %4 = vector.load %arg2[%c0_2, %c0_3] : memref<1x1024xf32, #tpu.memory_space<vmem>>, vector<1x1024xf32>
    %c4_i32 = arith.constant 4 : i32
    %5 = arith.muli %arg0, %c4_i32 : i32
    %c0_4 = arith.constant 0 : index
    %c0_5 = arith.constant 0 : index
    %6 = vector.load %arg7[%c0_4, %c0_5] : memref<2x256xf32, #tpu.memory_space<vmem>>, vector<2x256xf32>
    %c0_6 = arith.constant 0 : index
    %c0_7 = arith.constant 0 : index
    %7 = vector.load %arg8[%c0_6, %c0_7] : memref<2x256xf32, #tpu.memory_space<vmem>>, vector<2x256xf32>
    %c0_i32_8 = arith.constant 0 : i32
    %8 = arith.truncf %6 : vector<2x256xf32> to vector<2x256xbf16>
    %cst = arith.constant dense<0.000000e+00> : vector<2x1024xf32>
    %9 = tpu.matmul %8, %3, %cst {dimension_numbers = #tpu.dot_dimension_numbers<[1], [0], [0], [1], [0, 0, 1, 1], [], []>} : vector<2x256xbf16>, vector<256x1024xbf16>, vector<2x1024xf32> -> vector<2x1024xf32>
    %10 = arith.index_cast %c0_i32_8 : i32 to index
    %c0_9 = arith.constant 0 : index
    %c0_10 = arith.constant 0 : index
    %11 = vector.load %arg1[%10, %c0_9, %c0_10] : memref<4x2x1024xbf16, #tpu.memory_space<vmem>>, vector<1x2x1024xbf16>
    %12 = vector.shape_cast %11 : vector<1x2x1024xbf16> to vector<2x1024xbf16>
    %13 = arith.extf %12 : vector<2x1024xbf16> to vector<2x1024xf32>
    %14 = arith.addf %9, %13 : vector<2x1024xf32>
    %15 = vector.broadcast %4 : vector<1x1024xf32> to vector<2x1024xf32>
    %16 = arith.addf %14, %15 : vector<2x1024xf32>
    %17 = vector.extract_strided_slice %16 {offsets = [0, 0], sizes = [2, 768], strides = [1, 1]} : vector<2x1024xf32> to vector<2x768xf32>
    %18 = arith.negf %17 : vector<2x768xf32>
    %19 = math.exp %18 : vector<2x768xf32>
    %cst_11 = arith.constant 1.000000e+00 : f32
    %20 = vector.broadcast %cst_11 : f32 to vector<2x768xf32>
    %21 = arith.addf %20, %19 : vector<2x768xf32>
    %22 = arith.divf %20, %21 : vector<2x768xf32>
    %23 = vector.extract_strided_slice %16 {offsets = [0, 768], sizes = [2, 256], strides = [1, 1]} : vector<2x1024xf32> to vector<2x256xf32>
    %24 = math.tanh %23 : vector<2x256xf32>
    %25 = vector.extract_strided_slice %22 {offsets = [0, 0], sizes = [2, 256], strides = [1, 1]} : vector<2x768xf32> to vector<2x256xf32>
    %26 = vector.extract_strided_slice %22 {offsets = [0, 256], sizes = [2, 256], strides = [1, 1]} : vector<2x768xf32> to vector<2x256xf32>
    %27 = vector.extract_strided_slice %22 {offsets = [0, 512], sizes = [2, 256], strides = [1, 1]} : vector<2x768xf32> to vector<2x256xf32>
    %28 = arith.mulf %26, %7 : vector<2x256xf32>
    %29 = arith.mulf %25, %24 : vector<2x256xf32>
    %30 = arith.addf %28, %29 : vector<2x256xf32>
    %31 = math.tanh %30 : vector<2x256xf32>
    %32 = arith.mulf %27, %31 : vector<2x256xf32>
    %33 = arith.index_cast %c0_i32_8 : i32 to index
    %c0_12 = arith.constant 0 : index
    %c0_13 = arith.constant 0 : index
    %34 = vector.load %arg6[%33, %c0_12, %c0_13] : memref<4x2x256xf32, #tpu.memory_space<vmem>>, vector<1x2x256xf32>
    %35 = vector.shape_cast %34 : vector<1x2x256xf32> to vector<2x256xf32>
    %36 = vector.shape_cast %32 : vector<2x256xf32> to vector<1x2x256xf32>
    tpu.vector_store %arg6[%33, %c0_12, %c0_13], %36 {strides = array<i32>} : memref<4x2x256xf32, #tpu.memory_space<vmem>>, vector<1x2x256xf32>,
    %37 = arith.addi %5, %c0_i32_8 : i32
    %c11_i32 = arith.constant 11 : i32
    %38 = arith.cmpi slt, %37, %c11_i32 : i32
    %39 = arith.select %38, %32, %6 : vector<2x256xf32>
    %40 = arith.select %38, %30, %7 : vector<2x256xf32>
    %c1_i32 = arith.constant 1 : i32
    %41 = arith.truncf %39 : vector<2x256xf32> to vector<2x256xbf16>
    %cst_14 = arith.constant dense<0.000000e+00> : vector<2x1024xf32>
    %42 = tpu.matmul %41, %3, %cst_14 {dimension_numbers = #tpu.dot_dimension_numbers<[1], [0], [0], [1], [0, 0, 1, 1], [], []>} : vector<2x256xbf16>, vector<256x1024xbf16>, vector<2x1024xf32> -> vector<2x1024xf32>
    %43 = arith.index_cast %c1_i32 : i32 to index
    %c0_15 = arith.constant 0 : index
    %c0_16 = arith.constant 0 : index
    %44 = vector.load %arg1[%43, %c0_15, %c0_16] : memref<4x2x1024xbf16, #tpu.memory_space<vmem>>, vector<1x2x1024xbf16>
    %45 = vector.shape_cast %44 : vector<1x2x1024xbf16> to vector<2x1024xbf16>
    %46 = arith.extf %45 : vector<2x1024xbf16> to vector<2x1024xf32>
    %47 = arith.addf %42, %46 : vector<2x1024xf32>
    %48 = vector.broadcast %4 : vector<1x1024xf32> to vector<2x1024xf32>
    %49 = arith.addf %47, %48 : vector<2x1024xf32>
    %50 = vector.extract_strided_slice %49 {offsets = [0, 0], sizes = [2, 768], strides = [1, 1]} : vector<2x1024xf32> to vector<2x768xf32>
    %51 = arith.negf %50 : vector<2x768xf32>
    %52 = math.exp %51 : vector<2x768xf32>
    %cst_17 = arith.constant 1.000000e+00 : f32
    %53 = vector.broadcast %cst_17 : f32 to vector<2x768xf32>
    %54 = arith.addf %53, %52 : vector<2x768xf32>
    %55 = arith.divf %53, %54 : vector<2x768xf32>
    %56 = vector.extract_strided_slice %49 {offsets = [0, 768], sizes = [2, 256], strides = [1, 1]} : vector<2x1024xf32> to vector<2x256xf32>
    %57 = math.tanh %56 : vector<2x256xf32>
    %58 = vector.extract_strided_slice %55 {offsets = [0, 0], sizes = [2, 256], strides = [1, 1]} : vector<2x768xf32> to vector<2x256xf32>
    %59 = vector.extract_strided_slice %55 {offsets = [0, 256], sizes = [2, 256], strides = [1, 1]} : vector<2x768xf32> to vector<2x256xf32>
    %60 = vector.extract_strided_slice %55 {offsets = [0, 512], sizes = [2, 256], strides = [1, 1]} : vector<2x768xf32> to vector<2x256xf32>
    %61 = arith.mulf %59, %40 : vector<2x256xf32>
    %62 = arith.mulf %58, %57 : vector<2x256xf32>
    %63 = arith.addf %61, %62 : vector<2x256xf32>
    %64 = math.tanh %63 : vector<2x256xf32>
    %65 = arith.mulf %60, %64 : vector<2x256xf32>
    %66 = arith.index_cast %c1_i32 : i32 to index
    %c0_18 = arith.constant 0 : index
    %c0_19 = arith.constant 0 : index
    %67 = vector.load %arg6[%66, %c0_18, %c0_19] : memref<4x2x256xf32, #tpu.memory_space<vmem>>, vector<1x2x256xf32>
    %68 = vector.shape_cast %67 : vector<1x2x256xf32> to vector<2x256xf32>
    %69 = vector.shape_cast %65 : vector<2x256xf32> to vector<1x2x256xf32>
    tpu.vector_store %arg6[%66, %c0_18, %c0_19], %69 {strides = array<i32>} : memref<4x2x256xf32, #tpu.memory_space<vmem>>, vector<1x2x256xf32>,
    %70 = arith.addi %5, %c1_i32 : i32
    %c11_i32_20 = arith.constant 11 : i32
    %71 = arith.cmpi slt, %70, %c11_i32_20 : i32
    %72 = arith.select %71, %65, %39 : vector<2x256xf32>
    %73 = arith.select %71, %63, %40 : vector<2x256xf32>
    %c2_i32 = arith.constant 2 : i32
    %74 = arith.truncf %72 : vector<2x256xf32> to vector<2x256xbf16>
    %cst_21 = arith.constant dense<0.000000e+00> : vector<2x1024xf32>
    %75 = tpu.matmul %74, %3, %cst_21 {dimension_numbers = #tpu.dot_dimension_numbers<[1], [0], [0], [1], [0, 0, 1, 1], [], []>} : vector<2x256xbf16>, vector<256x1024xbf16>, vector<2x1024xf32> -> vector<2x1024xf32>
    %76 = arith.index_cast %c2_i32 : i32 to index
    %c0_22 = arith.constant 0 : index
    %c0_23 = arith.constant 0 : index
    %77 = vector.load %arg1[%76, %c0_22, %c0_23] : memref<4x2x1024xbf16, #tpu.memory_space<vmem>>, vector<1x2x1024xbf16>
    %78 = vector.shape_cast %77 : vector<1x2x1024xbf16> to vector<2x1024xbf16>
    %79 = arith.extf %78 : vector<2x1024xbf16> to vector<2x1024xf32>
    %80 = arith.addf %75, %79 : vector<2x1024xf32>
    %81 = vector.broadcast %4 : vector<1x1024xf32> to vector<2x1024xf32>
    %82 = arith.addf %80, %81 : vector<2x1024xf32>
    %83 = vector.extract_strided_slice %82 {offsets = [0, 0], sizes = [2, 768], strides = [1, 1]} : vector<2x1024xf32> to vector<2x768xf32>
    %84 = arith.negf %83 : vector<2x768xf32>
    %85 = math.exp %84 : vector<2x768xf32>
    %cst_24 = arith.constant 1.000000e+00 : f32
    %86 = vector.broadcast %cst_24 : f32 to vector<2x768xf32>
    %87 = arith.addf %86, %85 : vector<2x768xf32>
    %88 = arith.divf %86, %87 : vector<2x768xf32>
    %89 = vector.extract_strided_slice %82 {offsets = [0, 768], sizes = [2, 256], strides = [1, 1]} : vector<2x1024xf32> to vector<2x256xf32>
    %90 = math.tanh %89 : vector<2x256xf32>
    %91 = vector.extract_strided_slice %88 {offsets = [0, 0], sizes = [2, 256], strides = [1, 1]} : vector<2x768xf32> to vector<2x256xf32>
    %92 = vector.extract_strided_slice %88 {offsets = [0, 256], sizes = [2, 256], strides = [1, 1]} : vector<2x768xf32> to vector<2x256xf32>
    %93 = vector.extract_strided_slice %88 {offsets = [0, 512], sizes = [2, 256], strides = [1, 1]} : vector<2x768xf32> to vector<2x256xf32>
    %94 = arith.mulf %92, %73 : vector<2x256xf32>
    %95 = arith.mulf %91, %90 : vector<2x256xf32>
    %96 = arith.addf %94, %95 : vector<2x256xf32>
    %97 = math.tanh %96 : vector<2x256xf32>
    %98 = arith.mulf %93, %97 : vector<2x256xf32>
    %99 = arith.index_cast %c2_i32 : i32 to index
    %c0_25 = arith.constant 0 : index
    %c0_26 = arith.constant 0 : index
    %100 = vector.load %arg6[%99, %c0_25, %c0_26] : memref<4x2x256xf32, #tpu.memory_space<vmem>>, vector<1x2x256xf32>
    %101 = vector.shape_cast %100 : vector<1x2x256xf32> to vector<2x256xf32>
    %102 = vector.shape_cast %98 : vector<2x256xf32> to vector<1x2x256xf32>
    tpu.vector_store %arg6[%99, %c0_25, %c0_26], %102 {strides = array<i32>} : memref<4x2x256xf32, #tpu.memory_space<vmem>>, vector<1x2x256xf32>,
    %103 = arith.addi %5, %c2_i32 : i32
    %c11_i32_27 = arith.constant 11 : i32
    %104 = arith.cmpi slt, %103, %c11_i32_27 : i32
    %105 = arith.select %104, %98, %72 : vector<2x256xf32>
    %106 = arith.select %104, %96, %73 : vector<2x256xf32>
    %c3_i32 = arith.constant 3 : i32
    %107 = arith.truncf %105 : vector<2x256xf32> to vector<2x256xbf16>
    %cst_28 = arith.constant dense<0.000000e+00> : vector<2x1024xf32>
    %108 = tpu.matmul %107, %3, %cst_28 {dimension_numbers = #tpu.dot_dimension_numbers<[1], [0], [0], [1], [0, 0, 1, 1], [], []>} : vector<2x256xbf16>, vector<256x1024xbf16>, vector<2x1024xf32> -> vector<2x1024xf32>
    %109 = arith.index_cast %c3_i32 : i32 to index
    %c0_29 = arith.constant 0 : index
    %c0_30 = arith.constant 0 : index
    %110 = vector.load %arg1[%109, %c0_29, %c0_30] : memref<4x2x1024xbf16, #tpu.memory_space<vmem>>, vector<1x2x1024xbf16>
    %111 = vector.shape_cast %110 : vector<1x2x1024xbf16> to vector<2x1024xbf16>
    %112 = arith.extf %111 : vector<2x1024xbf16> to vector<2x1024xf32>
    %113 = arith.addf %108, %112 : vector<2x1024xf32>
    %114 = vector.broadcast %4 : vector<1x1024xf32> to vector<2x1024xf32>
    %115 = arith.addf %113, %114 : vector<2x1024xf32>
    %116 = vector.extract_strided_slice %115 {offsets = [0, 0], sizes = [2, 768], strides = [1, 1]} : vector<2x1024xf32> to vector<2x768xf32>
    %117 = arith.negf %116 : vector<2x768xf32>
    %118 = math.exp %117 : vector<2x768xf32>
    %cst_31 = arith.constant 1.000000e+00 : f32
    %119 = vector.broadcast %cst_31 : f32 to vector<2x768xf32>
    %120 = arith.addf %119, %118 : vector<2x768xf32>
    %121 = arith.divf %119, %120 : vector<2x768xf32>
    %122 = vector.extract_strided_slice %115 {offsets = [0, 768], sizes = [2, 256], strides = [1, 1]} : vector<2x1024xf32> to vector<2x256xf32>
    %123 = math.tanh %122 : vector<2x256xf32>
    %124 = vector.extract_strided_slice %121 {offsets = [0, 0], sizes = [2, 256], strides = [1, 1]} : vector<2x768xf32> to vector<2x256xf32>
    %125 = vector.extract_strided_slice %121 {offsets = [0, 256], sizes = [2, 256], strides = [1, 1]} : vector<2x768xf32> to vector<2x256xf32>
    %126 = vector.extract_strided_slice %121 {offsets = [0, 512], sizes = [2, 256], strides = [1, 1]} : vector<2x768xf32> to vector<2x256xf32>
    %127 = arith.mulf %125, %106 : vector<2x256xf32>
    %128 = arith.mulf %124, %123 : vector<2x256xf32>
    %129 = arith.addf %127, %128 : vector<2x256xf32>
    %130 = math.tanh %129 : vector<2x256xf32>
    %131 = arith.mulf %126, %130 : vector<2x256xf32>
    %132 = arith.index_cast %c3_i32 : i32 to index
    %c0_32 = arith.constant 0 : index
    %c0_33 = arith.constant 0 : index
    %133 = vector.load %arg6[%132, %c0_32, %c0_33] : memref<4x2x256xf32, #tpu.memory_space<vmem>>, vector<1x2x256xf32>
    %134 = vector.shape_cast %133 : vector<1x2x256xf32> to vector<2x256xf32>
    %135 = vector.shape_cast %131 : vector<2x256xf32> to vector<1x2x256xf32>
    tpu.vector_store %arg6[%132, %c0_32, %c0_33], %135 {strides = array<i32>} : memref<4x2x256xf32, #tpu.memory_space<vmem>>, vector<1x2x256xf32>,
    %136 = arith.addi %5, %c3_i32 : i32
    %c11_i32_34 = arith.constant 11 : i32
    %137 = arith.cmpi slt, %136, %c11_i32_34 : i32
    %138 = arith.select %137, %131, %105 : vector<2x256xf32>
    %139 = arith.select %137, %129, %106 : vector<2x256xf32>
    %c4_i32_35 = arith.constant 4 : i32
    %c0_36 = arith.constant 0 : index
    %c0_37 = arith.constant 0 : index
    %140 = vector.load %arg7[%c0_36, %c0_37] : memref<2x256xf32, #tpu.memory_space<vmem>>, vector<2x256xf32>
    tpu.vector_store %arg7[%c0_36, %c0_37], %138 {strides = array<i32>} : memref<2x256xf32, #tpu.memory_space<vmem>>, vector<2x256xf32>,
    %c0_38 = arith.constant 0 : index
    %c0_39 = arith.constant 0 : index
    %141 = vector.load %arg8[%c0_38, %c0_39] : memref<2x256xf32, #tpu.memory_space<vmem>>, vector<2x256xf32>
    tpu.vector_store %arg8[%c0_38, %c0_39], %139 {strides = array<i32>} : memref<2x256xf32, #tpu.memory_space<vmem>>, vector<2x256xf32>,
    return
  }
  func.func @transform_0(%arg0: i32) -> (i32, i32, i32) {
    %c0_i32 = arith.constant 0 : i32
    %c0_i32_0 = arith.constant 0 : i32
    %c0_i32_1 = arith.constant 0 : i32
    return %arg0, %c0_i32, %c0_i32_0 : i32, i32, i32
  }
  func.func @transform_1(%arg0: i32) -> (i32, i32) {
    %c0_i32 = arith.constant 0 : i32
    %c0_i32_0 = arith.constant 0 : i32
    %c0_i32_1 = arith.constant 0 : i32
    return %c0_i32, %c0_i32_0 : i32, i32
  }
  func.func @transform_2(%arg0: i32) -> (i32, i32) {
    %c0_i32 = arith.constant 0 : i32
    %c0_i32_0 = arith.constant 0 : i32
    %c0_i32_1 = arith.constant 0 : i32
    return %c0_i32, %c0_i32_0 : i32, i32
  }
  func.func @transform_3(%arg0: i32) -> (i32, i32) {
    %c0_i32 = arith.constant 0 : i32
    %c0_i32_0 = arith.constant 0 : i32
    %c0_i32_1 = arith.constant 0 : i32
    return %c0_i32, %c0_i32_0 : i32, i32
  }
  func.func @transform_4(%arg0: i32) -> (i32, i32) {
    %c0_i32 = arith.constant 0 : i32
    %c0_i32_0 = arith.constant 0 : i32
    %c0_i32_1 = arith.constant 0 : i32
    return %c0_i32, %c0_i32_0 : i32, i32
  }
  func.func @transform_5(%arg0: i32) -> (i32, i32, i32) {
    %c0_i32 = arith.constant 0 : i32
    %c0_i32_0 = arith.constant 0 : i32
    %c0_i32_1 = arith.constant 0 : i32
    return %arg0, %c0_i32, %c0_i32_0 : i32, i32, i32
  }
  func.func @transform_6(%arg0: i32) -> (i32, i32) {
    %c0_i32 = arith.constant 0 : i32
    %c0_i32_0 = arith.constant 0 : i32
    %c0_i32_1 = arith.constant 0 : i32
    return %c0_i32, %c0_i32_0 : i32, i32
  }
  func.func @transform_7(%arg0: i32) -> (i32, i32) {
    %c0_i32 = arith.constant 0 : i32
    %c0_i32_0 = arith.constant 0 : i32
    %c0_i32_1 = arith.constant 0 : i32
    return %c0_i32, %c0_i32_0 : i32, i32
  }
}

</mosaic_0001>

<llo_original>
// kernel: plugin_lstm_rnnt_pre.2
$region0: #{plugin_lstm_rnnt_pre.2}
  #allocation0 [shape = 'u32[]', space=smem, size = 0x4, offset = 0x4, fixed_abs, tag = 'smem constant byte address 0x4 - core index']
  #allocation1 [shape = 'u32[144,128]{1,0:T(1,128)}', space=vmem, size = 0x12000, scoped, tag = 'internal scratch']
  %s0 = inlined_call_operand.vmem [shape: bf16[12,2,1024], index: 0, kind: input, shape index: {}]
  %s1 = inlined_call_operand.vmem [shape: f32[1,1024], index: 1, kind: input, shape index: {}]
  %s2 = inlined_call_operand.vmem [shape: f32[2,256], index: 2, kind: input, shape index: {}]
  %s3 = inlined_call_operand.vmem [shape: f32[2,256], index: 3, kind: input, shape index: {}]
  %s4 = inlined_call_operand.vmem [shape: bf16[256,1024], index: 4, kind: input, shape index: {}]
  %s5 = inlined_call_operand.vmem [shape: bf16[12,2,256], index: 5, kind: output, shape index: {0}]
  %s6 = inlined_call_operand.vmem [shape: f32[2,256], index: 6, kind: output, shape index: {1}]
  %s7 = inlined_call_operand.vmem [shape: f32[2,256], index: 7, kind: output, shape index: {2}]
  %8 = xla_tuple %s5, %s6, %s7
  %s9 = sld [smem:[#allocation0]]
  $region73: #{plugin_lstm_rnnt_pre.2} parent=0
    _
  %s11 = ssub.s32 1, %s9
  %s12 = scalar_select 0, %s11, %s9
  loop: start=0, step=1, limit=5
  $region2: #{plugin_lstm_rnnt_pre.2} parent=0 // loop_pre_header
    _
  $region3: #{plugin_lstm_rnnt_pre.2} parent=0 // loop_header
    %s14 = sphi 0, %s18
    %p15 = scmp.ge.s32.totalorder %s14, 5
    %s24 = sphi 0, %s26
    %s27 = sphi 0, %s24
    %s28 = sphi 0, %s27
    %s44 = sphi 0, %s28
    %s48 = sphi 0, %s48
    %s50 = sphi 0, %s48
    %s51 = sphi 0, %s50
    %s65 = sphi 0, %s51
    %s69 = sphi 0, %s69
    %s71 = sphi 0, %s69
    %s72 = sphi 0, %s71
    %s86 = sphi 0, %s72
    %s90 = sphi 0, %s90
    %s92 = sphi 0, %s90
    %s93 = sphi 0, %s92
    %s107 = sphi 0, %s93
    %s111 = sphi 0, %s111
    %s113 = sphi 0, %s111
    %s114 = sphi 0, %s113
    %s128 = sphi 0, %s114
    %s134 = sphi 0, %s136
    %s137 = sphi 0, %s134
    %s138 = sphi 0, %s137
    %s154 = sphi 0, %s138
    %s158 = sphi 0, %s158
    %s160 = sphi 0, %s158
    %s161 = sphi 0, %s160
    %s175 = sphi 0, %s161
    %s179 = sphi 0, %s179
    %s181 = sphi 0, %s179
    %s182 = sphi 0, %s181
    %s196 = sphi 0, %s182
  $region4: #{plugin_lstm_rnnt_pre.2} parent=0 // loop_header_branch
    %17 = sbr.rel (%p15) target = $region8
  $region5: #{plugin_lstm_rnnt_pre.2} parent=0 // loop_body
    %s19 = ssub.s32 %s14, 1
    %s20 = ssub.s32 %s14, 2
    %s21 = sadd.s32 %s14, 1
    %s22 = ssub.s32 %s14, %s21
    %p23 = scmp.eq.s32.totalorder %s22, 0
    %s25 = sadd.s32 %s24, 1
    %s26 = scalar_select %p23, %s24, %s25
    %p29 = pneg %p23
    %p30 = scmp.eq.s32.totalorder %s14, 2
    %p31 = por %p29, %p30
    %p32 = scmp.ne.s32.totalorder %s24, %s27
    %p33 = scmp.eq.s32.totalorder %s14, 0
    %p34 = por %p32, %p33
    %p35 = scmp.ne.s32.totalorder %s24, %s27
    %p36 = scmp.eq.s32.totalorder %s19, 2
    %p37 = por %p35, %p36
    %p38 = scmp.ne.s32.totalorder %s27, %s28
    %p39 = scmp.eq.s32.totalorder %s19, 0
    %p40 = por %p38, %p39
    %p41 = scmp.ne.s32.totalorder %s27, %s28
    %p42 = scmp.eq.s32.totalorder %s20, 2
    %p43 = por %p41, %p42
    %p45 = scmp.ne.s32.totalorder %s28, %s44
    %p46 = scmp.eq.s32.totalorder %s20, 0
    %p47 = por %p45, %p46
    %s49 = sadd.s32 %s48, 1
    %p52 = scmp.eq.s32.totalorder %s14, 2
    %p53 = scmp.ne.s32.totalorder %s48, %s50
    %p54 = scmp.eq.s32.totalorder %s14, 0
    %p55 = por %p53, %p54
    %p56 = scmp.ne.s32.totalorder %s48, %s50
    %p57 = scmp.eq.s32.totalorder %s19, 2
    %p58 = por %p56, %p57
    %p59 = scmp.ne.s32.totalorder %s50, %s51
    %p60 = scmp.eq.s32.totalorder %s19, 0
    %p61 = por %p59, %p60
    %p62 = scmp.ne.s32.totalorder %s50, %s51
    %p63 = scmp.eq.s32.totalorder %s20, 2
    %p64 = por %p62, %p63
    %p66 = scmp.ne.s32.totalorder %s51, %s65
    %p67 = scmp.eq.s32.totalorder %s20, 0
    %p68 = por %p66, %p67
    %s70 = sadd.s32 %s69, 1
    %p73 = scmp.eq.s32.totalorder %s14, 2
    %p74 = scmp.ne.s32.totalorder %s69, %s71
    %p75 = scmp.eq.s32.totalorder %s14, 0
    %p76 = por %p74, %p75
    %p77 = scmp.ne.s32.totalorder %s69, %s71
    %p78 = scmp.eq.s32.totalorder %s19, 2
    %p79 = por %p77, %p78
    %p80 = scmp.ne.s32.totalorder %s71, %s72
    %p81 = scmp.eq.s32.totalorder %s19, 0
    %p82 = por %p80, %p81
    %p83 = scmp.ne.s32.totalorder %s71, %s72
    %p84 = scmp.eq.s32.totalorder %s20, 2
    %p85 = por %p83, %p84
    %p87 = scmp.ne.s32.totalorder %s72, %s86
    %p88 = scmp.eq.s32.totalorder %s20, 0
    %p89 = por %p87, %p88
    %s91 = sadd.s32 %s90, 1
    %p94 = scmp.eq.s32.totalorder %s14, 2
    %p95 = scmp.ne.s32.totalorder %s90, %s92
    %p96 = scmp.eq.s32.totalorder %s14, 0
    %p97 = por %p95, %p96
    %p98 = scmp.ne.s32.totalorder %s90, %s92
    %p99 = scmp.eq.s32.totalorder %s19, 2
    %p100 = por %p98, %p99
    %p101 = scmp.ne.s32.totalorder %s92, %s93
    %p102 = scmp.eq.s32.totalorder %s19, 0
    %p103 = por %p101, %p102
    %p104 = scmp.ne.s32.totalorder %s92, %s93
    %p105 = scmp.eq.s32.totalorder %s20, 2
    %p106 = por %p104, %p105
    %p108 = scmp.ne.s32.totalorder %s93, %s107
    %p109 = scmp.eq.s32.totalorder %s20, 0
    %p110 = por %p108, %p109
    %s112 = sadd.s32 %s111, 1
    %p115 = scmp.eq.s32.totalorder %s14, 2
    %p116 = scmp.ne.s32.totalorder %s111, %s113
    %p117 = scmp.eq.s32.totalorder %s14, 0
    %p118 = por %p116, %p117
    %p119 = scmp.ne.s32.totalorder %s111, %s113
    %p120 = scmp.eq.s32.totalorder %s19, 2
    %p121 = por %p119, %p120
    %p122 = scmp.ne.s32.totalorder %s113, %s114
    %p123 = scmp.eq.s32.totalorder %s19, 0
    %p124 = por %p122, %p123
    %p125 = scmp.ne.s32.totalorder %s113, %s114
    %p126 = scmp.eq.s32.totalorder %s20, 2
    %p127 = por %p125, %p126
    %p129 = scmp.ne.s32.totalorder %s114, %s128
    %p130 = scmp.eq.s32.totalorder %s20, 0
    %p131 = por %p129, %p130
    %s132 = ssub.s32 %s14, %s21
    %p133 = scmp.eq.s32.totalorder %s132, 0
    %s135 = sadd.s32 %s134, 1
    %s136 = scalar_select %p133, %s134, %s135
    %p139 = pneg %p133
    %p140 = scmp.eq.s32.totalorder %s14, 2
    %p141 = por %p139, %p140
    %p142 = scmp.ne.s32.totalorder %s134, %s137
    %p143 = scmp.eq.s32.totalorder %s14, 0
    %p144 = por %p142, %p143
    %p145 = scmp.ne.s32.totalorder %s134, %s137
    %p146 = scmp.eq.s32.totalorder %s19, 2
    %p147 = por %p145, %p146
    %p148 = scmp.ne.s32.totalorder %s137, %s138
    %p149 = scmp.eq.s32.totalorder %s19, 0
    %p150 = por %p148, %p149
    %p151 = scmp.ne.s32.totalorder %s137, %s138
    %p152 = scmp.eq.s32.totalorder %s20, 2
    %p153 = por %p151, %p152
    %p155 = scmp.ne.s32.totalorder %s138, %s154
    %p156 = scmp.eq.s32.totalorder %s20, 0
    %p157 = por %p155, %p156
    %s159 = sadd.s32 %s158, 1
    %p162 = scmp.eq.s32.totalorder %s14, 2
    %p163 = scmp.ne.s32.totalorder %s158, %s160
    %p164 = scmp.eq.s32.totalorder %s14, 0
    %p165 = por %p163, %p164
    %p166 = scmp.ne.s32.totalorder %s158, %s160
    %p167 = scmp.eq.s32.totalorder %s19, 2
    %p168 = por %p166, %p167
    %p169 = scmp.ne.s32.totalorder %s160, %s161
    %p170 = scmp.eq.s32.totalorder %s19, 0
    %p171 = por %p169, %p170
    %p172 = scmp.ne.s32.totalorder %s160, %s161
    %p173 = scmp.eq.s32.totalorder %s20, 2
    %p174 = por %p172, %p173
    %p176 = scmp.ne.s32.totalorder %s161, %s175
    %p177 = scmp.eq.s32.totalorder %s20, 0
    %p178 = por %p176, %p177
    %s180 = sadd.s32 %s179, 1
    %p183 = scmp.eq.s32.totalorder %s14, 2
    %p184 = scmp.ne.s32.totalorder %s179, %s181
    %p185 = scmp.eq.s32.totalorder %s14, 0
    %p186 = por %p184, %p185
    %p187 = scmp.ne.s32.totalorder %s179, %s181
    %p188 = scmp.eq.s32.totalorder %s19, 2
    %p189 = por %p187, %p188
    %p190 = scmp.ne.s32.totalorder %s181, %s182
    %p191 = scmp.eq.s32.totalorder %s19, 0
    %p192 = por %p190, %p191
    %p193 = scmp.ne.s32.totalorder %s181, %s182
    %p194 = scmp.eq.s32.totalorder %s20, 2
    %p195 = por %p193, %p194
    %p197 = scmp.ne.s32.totalorder %s182, %s196
    %p198 = scmp.eq.s32.totalorder %s20, 0
    %p199 = por %p197, %p198
    %p200 = scmp.le.s32.totalorder 1, %s14
    %p201 = scmp.lt.s32.totalorder %s14, 4
    %p202 = pnand %p200, %p201
    %p203 = pneg %p202
    // Predicated region
    $region9: #{plugin_lstm_rnnt_pre.2} parent=5 // pred_check
      _
    $region10: #{plugin_lstm_rnnt_pre.2} parent=5 // pred_check_branch
      %205 = sbr.rel (%p202) target = $region12
    $region11: #{plugin_lstm_rnnt_pre.2} parent=5 // pred_region
      %s206 = ssub.s32 %s14, 1
      // Predicated region
      $region13: #{plugin_lstm_rnnt_pre.2} parent=11 // pred_check
        %p207 = pneg %p61
      $region14: #{plugin_lstm_rnnt_pre.2} parent=11 // pred_check_branch
        %209 = sbr.rel (%p207) target = $region16
      $region15: #{plugin_lstm_rnnt_pre.2} parent=11 // pred_region
        _
      $region16: #{plugin_lstm_rnnt_pre.2} parent=11 // pred_fallthru
        _
      // Predicated region
      $region17: #{plugin_lstm_rnnt_pre.2} parent=11 // pred_check
        %p210 = pneg %p82
      $region18: #{plugin_lstm_rnnt_pre.2} parent=11 // pred_check_branch
        %212 = sbr.rel (%p210) target = $region20
      $region19: #{plugin_lstm_rnnt_pre.2} parent=11 // pred_region
        _
      $region20: #{plugin_lstm_rnnt_pre.2} parent=11 // pred_fallthru
        _
      // Predicated region
      $region21: #{plugin_lstm_rnnt_pre.2} parent=11 // pred_check
        %p213 = pneg %p103
      $region22: #{plugin_lstm_rnnt_pre.2} parent=11 // pred_check_branch
        %215 = sbr.rel (%p213) target = $region24
      $region23: #{plugin_lstm_rnnt_pre.2} parent=11 // pred_region
        _
      $region24: #{plugin_lstm_rnnt_pre.2} parent=11 // pred_fallthru
        _
      // Predicated region
      $region25: #{plugin_lstm_rnnt_pre.2} parent=11 // pred_check
        %p216 = pneg %p124
      $region26: #{plugin_lstm_rnnt_pre.2} parent=11 // pred_check_branch
        %218 = sbr.rel (%p216) target = $region28
      $region27: #{plugin_lstm_rnnt_pre.2} parent=11 // pred_region
        _
      $region28: #{plugin_lstm_rnnt_pre.2} parent=11 // pred_fallthru
        _
    $region12: #{plugin_lstm_rnnt_pre.2} parent=5 // pred_fallthru
      _
    %p219 = scmp.lt.s32.totalorder %s14, 3
    // Predicated region
    $region29: #{plugin_lstm_rnnt_pre.2} parent=5 // pred_check
      %p220 = pneg %p219
    $region30: #{plugin_lstm_rnnt_pre.2} parent=5 // pred_check_branch
      %222 = sbr.rel (%p220) target = $region32
    $region31: #{plugin_lstm_rnnt_pre.2} parent=5 // pred_region
      // Predicated region
      $region33: #{plugin_lstm_rnnt_pre.2} parent=31 // pred_check
        %p223 = pneg %p34
      $region34: #{plugin_lstm_rnnt_pre.2} parent=31 // pred_check_branch
        %225 = sbr.rel (%p223) target = $region36
      $region35: #{plugin_lstm_rnnt_pre.2} parent=31 // pred_region
        %s226 = smul.u32 4, %s14
        %p227 = scmp.lt.s32.totalorder %s226, 11
        %s228 = scalar_select %p227, %s226, 11
        %s229 = smul.addr %s228, 8
        %s230 = scalar_lea.vmem %s0, %s229
        %s231 = smul.u32 4, %s14
      $region36: #{plugin_lstm_rnnt_pre.2} parent=31 // pred_fallthru
        _
    $region32: #{plugin_lstm_rnnt_pre.2} parent=5 // pred_fallthru
      _
    %p232 = scmp.le.s32.totalorder 1, %s14
    %p233 = scmp.lt.s32.totalorder %s14, 4
    %p234 = pnand %p232, %p233
    %p235 = pneg %p234
    // Predicated region
    $region37: #{plugin_lstm_rnnt_pre.2} parent=5 // pred_check
      _
    $region38: #{plugin_lstm_rnnt_pre.2} parent=5 // pred_check_branch
      %237 = sbr.rel (%p234) target = $region40
    $region39: #{plugin_lstm_rnnt_pre.2} parent=5 // pred_region
      %s238 = ssub.s32 %s14, 1
      %s239 = smul.u32 4, %s19
      %p240 = scmp.lt.s32.totalorder %s239, 11
      %s241 = scalar_select %p240, %s239, 11
      %s242 = smul.addr %s241, 8
      %s243 = scalar_lea.vmem %s0, %s242
      %p244 = pneg %p40
      %p245 = pneg %p37
      %p246 = pneg %p61
      %p247 = pneg %p58
      %p248 = pneg %p82
      %p249 = pneg %p79
      %p250 = pneg %p103
      %p251 = pneg %p100
      %p252 = pneg %p124
      %p253 = pneg %p121
      %p254 = pneg %p150
      %p255 = pneg %p147
      %s256 = smul.u32 4, %s19
      %p257 = scmp.lt.s32.totalorder %s256, 11
      %s258 = scalar_select %p257, %s256, 11
      %s259 = smul.addr %s258, 2
      %s260 = scalar_lea.vmem %s5, %s259
      %p261 = pneg %p171
      %p262 = pneg %p168
      %p263 = pneg %p192
      %p264 = pneg %p189
      %s265 = smul.u32 4, %s19
      %p266 = scmp.lt.s32.totalorder %s265, 11
      %s267 = scalar_select %p266, %s265, 11
      %s268 = smul.addr %s267, 8
      %s269 = scalar_lea.vmem %s0, %s268
      %s270 = smul.u32 4, %s19
      %s271 = smul.u32 4, %s19
      %p272 = scmp.lt.s32.totalorder %s271, 11
      %s273 = scalar_select %p272, %s271, 11
      %s274 = smul.addr %s273, 2
      %s275 = scalar_lea.vmem %s5, %s274
      %s276 = smul.u32 4, %s19
      %p277 = scmp.eq.s32.totalorder %s19, 0
      // Predicated region
      $region41: #{plugin_lstm_rnnt_pre.2} parent=39 // pred_check
        %p278 = pneg %p277
      $region42: #{plugin_lstm_rnnt_pre.2} parent=39 // pred_check_branch
        %280 = sbr.rel (%p278) target = $region44
      $region43: #{plugin_lstm_rnnt_pre.2} parent=39 // pred_region
        %v281 = vld [vmem:[%s2] sm:$0xf]
        %282 = vst [vmem:[%s6] sm:$0xf] %v281
        %v283 = vld [vmem:[%s3] sm:$0xf]
        %284 = vst [vmem:[%s7] sm:$0xf] %v283
      $region44: #{plugin_lstm_rnnt_pre.2} parent=39 // pred_fallthru
        _
      %v285 = vld [vmem:[%s4] sm:$0xff]
      %v286 = vld [vmem:[%s4 + $0x8] sm:$0xff]
      %v287 = vld [vmem:[%s4 + $0x10] sm:$0xff]
      %v288 = vld [vmem:[%s4 + $0x18] sm:$0xff]
      %v289 = vld [vmem:[%s4 + $0x20] sm:$0xff]
      %v290 = vld [vmem:[%s4 + $0x28] sm:$0xff]
      %v291 = vld [vmem:[%s4 + $0x30] sm:$0xff]
      %v292 = vld [vmem:[%s4 + $0x38] sm:$0xff]
      %v293 = vld [vmem:[%s4 + $0x40] sm:$0xff]
      %v294 = vld [vmem:[%s4 + $0x48] sm:$0xff]
      %v295 = vld [vmem:[%s4 + $0x50] sm:$0xff]
      %v296 = vld [vmem:[%s4 + $0x58] sm:$0xff]
      %v297 = vld [vmem:[%s4 + $0x60] sm:$0xff]
      %v298 = vld [vmem:[%s4 + $0x68] sm:$0xff]
      %v299 = vld [vmem:[%s4 + $0x70] sm:$0xff]
      %v300 = vld [vmem:[%s4 + $0x78] sm:$0xff]
      %v301 = vld [vmem:[%s4 + $0x80] sm:$0xff]
      %v302 = vld [vmem:[%s4 + $0x88] sm:$0xff]
      %v303 = vld [vmem:[%s4 + $0x90] sm:$0xff]
      %v304 = vld [vmem:[%s4 + $0x98] sm:$0xff]
      %v305 = vld [vmem:[%s4 + $0xa0] sm:$0xff]
      %v306 = vld [vmem:[%s4 + $0xa8] sm:$0xff]
      %v307 = vld [vmem:[%s4 + $0xb0] sm:$0xff]
      %v308 = vld [vmem:[%s4 + $0xb8] sm:$0xff]
      %v309 = vld [vmem:[%s4 + $0xc0] sm:$0xff]
      %v310 = vld [vmem:[%s4 + $0xc8] sm:$0xff]
      %v311 = vld [vmem:[%s4 + $0xd0] sm:$0xff]
      %v312 = vld [vmem:[%s4 + $0xd8] sm:$0xff]
      %v313 = vld [vmem:[%s4 + $0xe0] sm:$0xff]
      %v314 = vld [vmem:[%s4 + $0xe8] sm:$0xff]
      %v315 = vld [vmem:[%s4 + $0xf0] sm:$0xff]
      %v316 = vld [vmem:[%s4 + $0xf8] sm:$0xff]
      %v317 = vld [vmem:[%s4 + $0x100] sm:$0xff]
      %v318 = vld [vmem:[%s4 + $0x108] sm:$0xff]
      %v319 = vld [vmem:[%s4 + $0x110] sm:$0xff]
      %v320 = vld [vmem:[%s4 + $0x118] sm:$0xff]
      %v321 = vld [vmem:[%s4 + $0x120] sm:$0xff]
      %v322 = vld [vmem:[%s4 + $0x128] sm:$0xff]
      %v323 = vld [vmem:[%s4 + $0x130] sm:$0xff]
      %v324 = vld [vmem:[%s4 + $0x138] sm:$0xff]
      %v325 = vld [vmem:[%s4 + $0x140] sm:$0xff]
      %v326 = vld [vmem:[%s4 + $0x148] sm:$0xff]
      %v327 = vld [vmem:[%s4 + $0x150] sm:$0xff]
      %v328 = vld [vmem:[%s4 + $0x158] sm:$0xff]
      %v329 = vld [vmem:[%s4 + $0x160] sm:$0xff]
      %v330 = vld [vmem:[%s4 + $0x168] sm:$0xff]
      %v331 = vld [vmem:[%s4 + $0x170] sm:$0xff]
      %v332 = vld [vmem:[%s4 + $0x178] sm:$0xff]
      %v333 = vld [vmem:[%s4 + $0x180] sm:$0xff]
      %v334 = vld [vmem:[%s4 + $0x188] sm:$0xff]
      %v335 = vld [vmem:[%s4 + $0x190] sm:$0xff]
      %v336 = vld [vmem:[%s4 + $0x198] sm:$0xff]
      %v337 = vld [vmem:[%s4 + $0x1a0] sm:$0xff]
      %v338 = vld [vmem:[%s4 + $0x1a8] sm:$0xff]
      %v339 = vld [vmem:[%s4 + $0x1b0] sm:$0xff]
      %v340 = vld [vmem:[%s4 + $0x1b8] sm:$0xff]
      %v341 = vld [vmem:[%s4 + $0x1c0] sm:$0xff]
      %v342 = vld [vmem:[%s4 + $0x1c8] sm:$0xff]
      %v343 = vld [vmem:[%s4 + $0x1d0] sm:$0xff]
      %v344 = vld [vmem:[%s4 + $0x1d8] sm:$0xff]
      %v345 = vld [vmem:[%s4 + $0x1e0] sm:$0xff]
      %v346 = vld [vmem:[%s4 + $0x1e8] sm:$0xff]
      %v347 = vld [vmem:[%s4 + $0x1f0] sm:$0xff]
      %v348 = vld [vmem:[%s4 + $0x1f8] sm:$0xff]
      %v349 = vld [vmem:[%s4 + $0x200] sm:$0xff]
      %v350 = vld [vmem:[%s4 + $0x208] sm:$0xff]
      %v351 = vld [vmem:[%s4 + $0x210] sm:$0xff]
      %v352 = vld [vmem:[%s4 + $0x218] sm:$0xff]
      %v353 = vld [vmem:[%s4 + $0x220] sm:$0xff]
      %v354 = vld [vmem:[%s4 + $0x228] sm:$0xff]
      %v355 = vld [vmem:[%s4 + $0x230] sm:$0xff]
      %v356 = vld [vmem:[%s4 + $0x238] sm:$0xff]
      %v357 = vld [vmem:[%s4 + $0x240] sm:$0xff]
      %v358 = vld [vmem:[%s4 + $0x248] sm:$0xff]
      %v359 = vld [vmem:[%s4 + $0x250] sm:$0xff]
      %v360 = vld [vmem:[%s4 + $0x258] sm:$0xff]
      %v361 = vld [vmem:[%s4 + $0x260] sm:$0xff]
      %v362 = vld [vmem:[%s4 + $0x268] sm:$0xff]
      %v363 = vld [vmem:[%s4 + $0x270] sm:$0xff]
      %v364 = vld [vmem:[%s4 + $0x278] sm:$0xff]
      %v365 = vld [vmem:[%s4 + $0x280] sm:$0xff]
      %v366 = vld [vmem:[%s4 + $0x288] sm:$0xff]
      %v367 = vld [vmem:[%s4 + $0x290] sm:$0xff]
      %v368 = vld [vmem:[%s4 + $0x298] sm:$0xff]
      %v369 = vld [vmem:[%s4 + $0x2a0] sm:$0xff]
      %v370 = vld [vmem:[%s4 + $0x2a8] sm:$0xff]
      %v371 = vld [vmem:[%s4 + $0x2b0] sm:$0xff]
      %v372 = vld [vmem:[%s4 + $0x2b8] sm:$0xff]
      %v373 = vld [vmem:[%s4 + $0x2c0] sm:$0xff]
      %v374 = vld [vmem:[%s4 + $0x2c8] sm:$0xff]
      %v375 = vld [vmem:[%s4 + $0x2d0] sm:$0xff]
      %v376 = vld [vmem:[%s4 + $0x2d8] sm:$0xff]
      %v377 = vld [vmem:[%s4 + $0x2e0] sm:$0xff]
      %v378 = vld [vmem:[%s4 + $0x2e8] sm:$0xff]
      %v379 = vld [vmem:[%s4 + $0x2f0] sm:$0xff]
      %v380 = vld [vmem:[%s4 + $0x2f8] sm:$0xff]
      %v381 = vld [vmem:[%s4 + $0x300] sm:$0xff]
      %v382 = vld [vmem:[%s4 + $0x308] sm:$0xff]
      %v383 = vld [vmem:[%s4 + $0x310] sm:$0xff]
      %v384 = vld [vmem:[%s4 + $0x318] sm:$0xff]
      %v385 = vld [vmem:[%s4 + $0x320] sm:$0xff]
      %v386 = vld [vmem:[%s4 + $0x328] sm:$0xff]
      %v387 = vld [vmem:[%s4 + $0x330] sm:$0xff]
      %v388 = vld [vmem:[%s4 + $0x338] sm:$0xff]
      %v389 = vld [vmem:[%s4 + $0x340] sm:$0xff]
      %v390 = vld [vmem:[%s4 + $0x348] sm:$0xff]
      %v391 = vld [vmem:[%s4 + $0x350] sm:$0xff]
      %v392 = vld [vmem:[%s4 + $0x358] sm:$0xff]
      %v393 = vld [vmem:[%s4 + $0x360] sm:$0xff]
      %v394 = vld [vmem:[%s4 + $0x368] sm:$0xff]
      %v395 = vld [vmem:[%s4 + $0x370] sm:$0xff]
      %v396 = vld [vmem:[%s4 + $0x378] sm:$0xff]
      %v397 = vld [vmem:[%s4 + $0x380] sm:$0xff]
      %v398 = vld [vmem:[%s4 + $0x388] sm:$0xff]
      %v399 = vld [vmem:[%s4 + $0x390] sm:$0xff]
      %v400 = vld [vmem:[%s4 + $0x398] sm:$0xff]
      %v401 = vld [vmem:[%s4 + $0x3a0] sm:$0xff]
      %v402 = vld [vmem:[%s4 + $0x3a8] sm:$0xff]
      %v403 = vld [vmem:[%s4 + $0x3b0] sm:$0xff]
      %v404 = vld [vmem:[%s4 + $0x3b8] sm:$0xff]
      %v405 = vld [vmem:[%s4 + $0x3c0] sm:$0xff]
      %v406 = vld [vmem:[%s4 + $0x3c8] sm:$0xff]
      %v407 = vld [vmem:[%s4 + $0x3d0] sm:$0xff]
      %v408 = vld [vmem:[%s4 + $0x3d8] sm:$0xff]
      %v409 = vld [vmem:[%s4 + $0x3e0] sm:$0xff]
      %v410 = vld [vmem:[%s4 + $0x3e8] sm:$0xff]
      %v411 = vld [vmem:[%s4 + $0x3f0] sm:$0xff]
      %v412 = vld [vmem:[%s4 + $0x3f8] sm:$0xff]
      %v413 = vld [vmem:[%s1] sm:$0xff]
      %s414 = smul.u32 %s19, 4
      %v415 = vld [vmem:[%s6] sm:$0xf]
      %v416 = vld [vmem:[%s7] sm:$0xf]
      %v419 = vunpack.c.l.s4 1983009808
      %v420 = vunpack.c.0.s8 %v419
      %v421 = vlaneseq
      %v422 = vshrl.u32 %v421, 7
      %v423 = vsub.s32 %v420, %v422
      %v424 = vrot.slane %v415, %v423
      %v425 = vcombine.high %v424, %v424
      %v428 = vpack.c.bf16 %v424, %v424
      %v429 = vpack.c.bf16 %v425, %v425
      %v430 = vld [vmem:[%s269] sm:$0xff]
      %v431 = vunpack.c.l.bf16 %v430
      %v432 = vunpack.c.h.bf16 %v430
      %v561 = vunpack.c.l.b16 %v285
      %v562 = vunpack.c.h.b16 %v285
      %v563 = vunpack.c.l.b16 %v286
      %v564 = vunpack.c.h.b16 %v286
      %v565 = vunpack.c.l.b16 %v287
      %v566 = vunpack.c.h.b16 %v287
      %v567 = vunpack.c.l.b16 %v288
      %v568 = vunpack.c.h.b16 %v288
      %v569 = vunpack.c.l.b16 %v289
      %v570 = vunpack.c.h.b16 %v289
      %v571 = vunpack.c.l.b16 %v290
      %v572 = vunpack.c.h.b16 %v290
      %v573 = vunpack.c.l.b16 %v291
      %v574 = vunpack.c.h.b16 %v291
      %v575 = vunpack.c.l.b16 %v292
      %v576 = vunpack.c.h.b16 %v292
      %v577 = vunpack.c.l.b16 %v293
      %v578 = vunpack.c.h.b16 %v293
      %v579 = vunpack.c.l.b16 %v294
      %v580 = vunpack.c.h.b16 %v294
      %v581 = vunpack.c.l.b16 %v295
      %v582 = vunpack.c.h.b16 %v295
      %v583 = vunpack.c.l.b16 %v296
      %v584 = vunpack.c.h.b16 %v296
      %v585 = vunpack.c.l.b16 %v297
      %v586 = vunpack.c.h.b16 %v297
      %v587 = vunpack.c.l.b16 %v298
      %v588 = vunpack.c.h.b16 %v298
      %v589 = vunpack.c.l.b16 %v299
      %v590 = vunpack.c.h.b16 %v299
      %v591 = vunpack.c.l.b16 %v300
      %v592 = vunpack.c.h.b16 %v300
      %v593 = vunpack.c.l.b16 %v301
      %v594 = vunpack.c.h.b16 %v301
      %v595 = vunpack.c.l.b16 %v302
      %v596 = vunpack.c.h.b16 %v302
      %v597 = vunpack.c.l.b16 %v303
      %v598 = vunpack.c.h.b16 %v303
      %v599 = vunpack.c.l.b16 %v304
      %v600 = vunpack.c.h.b16 %v304
      %v601 = vunpack.c.l.b16 %v305
      %v602 = vunpack.c.h.b16 %v305
      %v603 = vunpack.c.l.b16 %v306
      %v604 = vunpack.c.h.b16 %v306
      %v605 = vunpack.c.l.b16 %v307
      %v606 = vunpack.c.h.b16 %v307
      %v607 = vunpack.c.l.b16 %v308
      %v608 = vunpack.c.h.b16 %v308
      %v609 = vunpack.c.l.b16 %v309
      %v610 = vunpack.c.h.b16 %v309
      %v611 = vunpack.c.l.b16 %v310
      %v612 = vunpack.c.h.b16 %v310
      %v613 = vunpack.c.l.b16 %v311
      %v614 = vunpack.c.h.b16 %v311
      %v615 = vunpack.c.l.b16 %v312
      %v616 = vunpack.c.h.b16 %v312
      %v617 = vunpack.c.l.b16 %v313
      %v618 = vunpack.c.h.b16 %v313
      %v619 = vunpack.c.l.b16 %v314
      %v620 = vunpack.c.h.b16 %v314
      %v621 = vunpack.c.l.b16 %v315
      %v622 = vunpack.c.h.b16 %v315
      %v623 = vunpack.c.l.b16 %v316
      %v624 = vunpack.c.h.b16 %v316
      %v625 = vunpack.c.l.b16 %v317
      %v626 = vunpack.c.h.b16 %v317
      %v627 = vunpack.c.l.b16 %v318
      %v628 = vunpack.c.h.b16 %v318
      %v629 = vunpack.c.l.b16 %v319
      %v630 = vunpack.c.h.b16 %v319
      %v631 = vunpack.c.l.b16 %v320
      %v632 = vunpack.c.h.b16 %v320
      %v633 = vunpack.c.l.b16 %v321
      %v634 = vunpack.c.h.b16 %v321
      %v635 = vunpack.c.l.b16 %v322
      %v636 = vunpack.c.h.b16 %v322
      %v637 = vunpack.c.l.b16 %v323
      %v638 = vunpack.c.h.b16 %v323
      %v639 = vunpack.c.l.b16 %v324
      %v640 = vunpack.c.h.b16 %v324
      %v641 = vunpack.c.l.b16 %v325
      %v642 = vunpack.c.h.b16 %v325
      %v643 = vunpack.c.l.b16 %v326
      %v644 = vunpack.c.h.b16 %v326
      %v645 = vunpack.c.l.b16 %v327
      %v646 = vunpack.c.h.b16 %v327
      %v647 = vunpack.c.l.b16 %v328
      %v648 = vunpack.c.h.b16 %v328
      %v649 = vunpack.c.l.b16 %v329
      %v650 = vunpack.c.h.b16 %v329
      %v651 = vunpack.c.l.b16 %v330
      %v652 = vunpack.c.h.b16 %v330
      %v653 = vunpack.c.l.b16 %v331
      %v654 = vunpack.c.h.b16 %v331
      %v655 = vunpack.c.l.b16 %v332
      %v656 = vunpack.c.h.b16 %v332
      %v657 = vunpack.c.l.b16 %v333
      %v658 = vunpack.c.h.b16 %v333
      %v659 = vunpack.c.l.b16 %v334
      %v660 = vunpack.c.h.b16 %v334
      %v661 = vunpack.c.l.b16 %v335
      %v662 = vunpack.c.h.b16 %v335
      %v663 = vunpack.c.l.b16 %v336
      %v664 = vunpack.c.h.b16 %v336
      %v665 = vunpack.c.l.b16 %v337
      %v666 = vunpack.c.h.b16 %v337
      %v667 = vunpack.c.l.b16 %v338
      %v668 = vunpack.c.h.b16 %v338
      %v669 = vunpack.c.l.b16 %v339
      %v670 = vunpack.c.h.b16 %v339
      %v671 = vunpack.c.l.b16 %v340
      %v672 = vunpack.c.h.b16 %v340
      %v673 = vunpack.c.l.b16 %v341
      %v674 = vunpack.c.h.b16 %v341
      %v675 = vunpack.c.l.b16 %v342
      %v676 = vunpack.c.h.b16 %v342
      %v677 = vunpack.c.l.b16 %v343
      %v678 = vunpack.c.h.b16 %v343
      %v679 = vunpack.c.l.b16 %v344
      %v680 = vunpack.c.h.b16 %v344
      %v681 = vunpack.c.l.b16 %v345
      %v682 = vunpack.c.h.b16 %v345
      %v683 = vunpack.c.l.b16 %v346
      %v684 = vunpack.c.h.b16 %v346
      %v685 = vunpack.c.l.b16 %v347
      %v686 = vunpack.c.h.b16 %v347
      %v687 = vunpack.c.l.b16 %v348
      %v688 = vunpack.c.h.b16 %v348
      %v689 = vunpack.c.l.b16 %v349
      %v690 = vunpack.c.h.b16 %v349
      %v691 = vunpack.c.l.b16 %v350
      %v692 = vunpack.c.h.b16 %v350
      %v693 = vunpack.c.l.b16 %v351
      %v694 = vunpack.c.h.b16 %v351
      %v695 = vunpack.c.l.b16 %v352
      %v696 = vunpack.c.h.b16 %v352
      %v697 = vunpack.c.l.b16 %v353
      %v698 = vunpack.c.h.b16 %v353
      %v699 = vunpack.c.l.b16 %v354
      %v700 = vunpack.c.h.b16 %v354
      %v701 = vunpack.c.l.b16 %v355
      %v702 = vunpack.c.h.b16 %v355
      %v703 = vunpack.c.l.b16 %v356
      %v704 = vunpack.c.h.b16 %v356
      %v705 = vunpack.c.l.b16 %v357
      %v706 = vunpack.c.h.b16 %v357
      %v707 = vunpack.c.l.b16 %v358
      %v708 = vunpack.c.h.b16 %v358
      %v709 = vunpack.c.l.b16 %v359
      %v710 = vunpack.c.h.b16 %v359
      %v711 = vunpack.c.l.b16 %v360
      %v712 = vunpack.c.h.b16 %v360
      %v713 = vunpack.c.l.b16 %v361
      %v714 = vunpack.c.h.b16 %v361
      %v715 = vunpack.c.l.b16 %v362
      %v716 = vunpack.c.h.b16 %v362
      %v717 = vunpack.c.l.b16 %v363
      %v718 = vunpack.c.h.b16 %v363
      %v719 = vunpack.c.l.b16 %v364
      %v720 = vunpack.c.h.b16 %v364
      %v721 = vunpack.c.l.b16 %v365
      %v722 = vunpack.c.h.b16 %v365
      %v723 = vunpack.c.l.b16 %v366
      %v724 = vunpack.c.h.b16 %v366
      %v725 = vunpack.c.l.b16 %v367
      %v726 = vunpack.c.h.b16 %v367
      %v727 = vunpack.c.l.b16 %v368
      %v728 = vunpack.c.h.b16 %v368
      %v729 = vunpack.c.l.b16 %v369
      %v730 = vunpack.c.h.b16 %v369
      %v731 = vunpack.c.l.b16 %v370
      %v732 = vunpack.c.h.b16 %v370
      %v733 = vunpack.c.l.b16 %v371
      %v734 = vunpack.c.h.b16 %v371
      %v735 = vunpack.c.l.b16 %v372
      %v736 = vunpack.c.h.b16 %v372
      %v737 = vunpack.c.l.b16 %v373
      %v738 = vunpack.c.h.b16 %v373
      %v739 = vunpack.c.l.b16 %v374
      %v740 = vunpack.c.h.b16 %v374
      %v741 = vunpack.c.l.b16 %v375
      %v742 = vunpack.c.h.b16 %v375
      %v743 = vunpack.c.l.b16 %v376
      %v744 = vunpack.c.h.b16 %v376
      %v745 = vunpack.c.l.b16 %v377
      %v746 = vunpack.c.h.b16 %v377
      %v747 = vunpack.c.l.b16 %v378
      %v748 = vunpack.c.h.b16 %v378
      %v749 = vunpack.c.l.b16 %v379
      %v750 = vunpack.c.h.b16 %v379
      %v751 = vunpack.c.l.b16 %v380
      %v752 = vunpack.c.h.b16 %v380
      %v753 = vunpack.c.l.b16 %v381
      %v754 = vunpack.c.h.b16 %v381
      %v755 = vunpack.c.l.b16 %v382
      %v756 = vunpack.c.h.b16 %v382
      %v757 = vunpack.c.l.b16 %v383
      %v758 = vunpack.c.h.b16 %v383
      %v759 = vunpack.c.l.b16 %v384
      %v760 = vunpack.c.h.b16 %v384
      %v761 = vunpack.c.l.b16 %v385
      %v762 = vunpack.c.h.b16 %v385
      %v763 = vunpack.c.l.b16 %v386
      %v764 = vunpack.c.h.b16 %v386
      %v765 = vunpack.c.l.b16 %v387
      %v766 = vunpack.c.h.b16 %v387
      %v767 = vunpack.c.l.b16 %v388
      %v768 = vunpack.c.h.b16 %v388
      %v769 = vunpack.c.l.b16 %v389
      %v770 = vunpack.c.h.b16 %v389
      %v771 = vunpack.c.l.b16 %v390
      %v772 = vunpack.c.h.b16 %v390
      %v773 = vunpack.c.l.b16 %v391
      %v774 = vunpack.c.h.b16 %v391
      %v775 = vunpack.c.l.b16 %v392
      %v776 = vunpack.c.h.b16 %v392
      %v777 = vunpack.c.l.b16 %v393
      %v778 = vunpack.c.h.b16 %v393
      %v779 = vunpack.c.l.b16 %v394
      %v780 = vunpack.c.h.b16 %v394
      %v781 = vunpack.c.l.b16 %v395
      %v782 = vunpack.c.h.b16 %v395
      %v783 = vunpack.c.l.b16 %v396
      %v784 = vunpack.c.h.b16 %v396
      %v785 = vunpack.c.l.b16 %v397
      %v786 = vunpack.c.h.b16 %v397
      %v787 = vunpack.c.l.b16 %v398
      %v788 = vunpack.c.h.b16 %v398
      %v789 = vunpack.c.l.b16 %v399
      %v790 = vunpack.c.h.b16 %v399
      %v791 = vunpack.c.l.b16 %v400
      %v792 = vunpack.c.h.b16 %v400
      %v793 = vunpack.c.l.b16 %v401
      %v794 = vunpack.c.h.b16 %v401
      %v795 = vunpack.c.l.b16 %v402
      %v796 = vunpack.c.h.b16 %v402
      %v797 = vunpack.c.l.b16 %v403
      %v798 = vunpack.c.h.b16 %v403
      %v799 = vunpack.c.l.b16 %v404
      %v800 = vunpack.c.h.b16 %v404
      %v801 = vunpack.c.l.b16 %v405
      %v802 = vunpack.c.h.b16 %v405
      %v803 = vunpack.c.l.b16 %v406
      %v804 = vunpack.c.h.b16 %v406
      %v805 = vunpack.c.l.b16 %v407
      %v806 = vunpack.c.h.b16 %v407
      %v807 = vunpack.c.l.b16 %v408
      %v808 = vunpack.c.h.b16 %v408
      %v809 = vunpack.c.l.b16 %v409
      %v810 = vunpack.c.h.b16 %v409
      %v811 = vunpack.c.l.b16 %v410
      %v812 = vunpack.c.h.b16 %v410
      %v813 = vunpack.c.l.b16 %v411
      %v814 = vunpack.c.h.b16 %v411
      %v815 = vunpack.c.l.b16 %v412
      %v816 = vunpack.c.h.b16 %v412
      %v817 = vpack.c.b16 %v569, %v561
      %v818 = vpack.c.b16 %v570, %v562
      %v819 = vpack.c.b16 %v571, %v563
      %v820 = vpack.c.b16 %v572, %v564
      %v821 = vpack.c.b16 %v573, %v565
      %v822 = vpack.c.b16 %v574, %v566
      %v823 = vpack.c.b16 %v575, %v567
      %v824 = vpack.c.b16 %v576, %v568
      %v825 = vpack.c.b16 %v585, %v577
      %v826 = vpack.c.b16 %v586, %v578
      %v827 = vpack.c.b16 %v587, %v579
      %v828 = vpack.c.b16 %v588, %v580
      %v829 = vpack.c.b16 %v589, %v581
      %v830 = vpack.c.b16 %v590, %v582
      %v831 = vpack.c.b16 %v591, %v583
      %v832 = vpack.c.b16 %v592, %v584
      %v833 = vpack.c.b16 %v601, %v593
      %v834 = vpack.c.b16 %v602, %v594
      %v835 = vpack.c.b16 %v603, %v595
      %v836 = vpack.c.b16 %v604, %v596
      %v837 = vpack.c.b16 %v605, %v597
      %v838 = vpack.c.b16 %v606, %v598
      %v839 = vpack.c.b16 %v607, %v599
      %v840 = vpack.c.b16 %v608, %v600
      %v841 = vpack.c.b16 %v617, %v609
      %v842 = vpack.c.b16 %v618, %v610
      %v843 = vpack.c.b16 %v619, %v611
      %v844 = vpack.c.b16 %v620, %v612
      %v845 = vpack.c.b16 %v621, %v613
      %v846 = vpack.c.b16 %v622, %v614
      %v847 = vpack.c.b16 %v623, %v615
      %v848 = vpack.c.b16 %v624, %v616
      %v849 = vpack.c.b16 %v633, %v625
      %v850 = vpack.c.b16 %v634, %v626
      %v851 = vpack.c.b16 %v635, %v627
      %v852 = vpack.c.b16 %v636, %v628
      %v853 = vpack.c.b16 %v637, %v629
      %v854 = vpack.c.b16 %v638, %v630
      %v855 = vpack.c.b16 %v639, %v631
      %v856 = vpack.c.b16 %v640, %v632
      %v857 = vpack.c.b16 %v649, %v641
      %v858 = vpack.c.b16 %v650, %v642
      %v859 = vpack.c.b16 %v651, %v643
      %v860 = vpack.c.b16 %v652, %v644
      %v861 = vpack.c.b16 %v653, %v645
      %v862 = vpack.c.b16 %v654, %v646
      %v863 = vpack.c.b16 %v655, %v647
      %v864 = vpack.c.b16 %v656, %v648
      %v865 = vpack.c.b16 %v665, %v657
      %v866 = vpack.c.b16 %v666, %v658
      %v867 = vpack.c.b16 %v667, %v659
      %v868 = vpack.c.b16 %v668, %v660
      %v869 = vpack.c.b16 %v669, %v661
      %v870 = vpack.c.b16 %v670, %v662
      %v871 = vpack.c.b16 %v671, %v663
      %v872 = vpack.c.b16 %v672, %v664
      %v873 = vpack.c.b16 %v681, %v673
      %v874 = vpack.c.b16 %v682, %v674
      %v875 = vpack.c.b16 %v683, %v675
      %v876 = vpack.c.b16 %v684, %v676
      %v877 = vpack.c.b16 %v685, %v677
      %v878 = vpack.c.b16 %v686, %v678
      %v879 = vpack.c.b16 %v687, %v679
      %v880 = vpack.c.b16 %v688, %v680
      %v881 = vpack.c.b16 %v697, %v689
      %v882 = vpack.c.b16 %v698, %v690
      %v883 = vpack.c.b16 %v699, %v691
      %v884 = vpack.c.b16 %v700, %v692
      %v885 = vpack.c.b16 %v701, %v693
      %v886 = vpack.c.b16 %v702, %v694
      %v887 = vpack.c.b16 %v703, %v695
      %v888 = vpack.c.b16 %v704, %v696
      %v889 = vpack.c.b16 %v713, %v705
      %v890 = vpack.c.b16 %v714, %v706
      %v891 = vpack.c.b16 %v715, %v707
      %v892 = vpack.c.b16 %v716, %v708
      %v893 = vpack.c.b16 %v717, %v709
      %v894 = vpack.c.b16 %v718, %v710
      %v895 = vpack.c.b16 %v719, %v711
      %v896 = vpack.c.b16 %v720, %v712
      %v897 = vpack.c.b16 %v729, %v721
      %v898 = vpack.c.b16 %v730, %v722
      %v899 = vpack.c.b16 %v731, %v723
      %v900 = vpack.c.b16 %v732, %v724
      %v901 = vpack.c.b16 %v733, %v725
      %v902 = vpack.c.b16 %v734, %v726
      %v903 = vpack.c.b16 %v735, %v727
      %v904 = vpack.c.b16 %v736, %v728
      %v905 = vpack.c.b16 %v745, %v737
      %v906 = vpack.c.b16 %v746, %v738
      %v907 = vpack.c.b16 %v747, %v739
      %v908 = vpack.c.b16 %v748, %v740
      %v909 = vpack.c.b16 %v749, %v741
      %v910 = vpack.c.b16 %v750, %v742
      %v911 = vpack.c.b16 %v751, %v743
      %v912 = vpack.c.b16 %v752, %v744
      %v913 = vpack.c.b16 %v761, %v753
      %v914 = vpack.c.b16 %v762, %v754
      %v915 = vpack.c.b16 %v763, %v755
      %v916 = vpack.c.b16 %v764, %v756
      %v917 = vpack.c.b16 %v765, %v757
      %v918 = vpack.c.b16 %v766, %v758
      %v919 = vpack.c.b16 %v767, %v759
      %v920 = vpack.c.b16 %v768, %v760
      %v921 = vpack.c.b16 %v777, %v769
      %v922 = vpack.c.b16 %v778, %v770
      %v923 = vpack.c.b16 %v779, %v771
      %v924 = vpack.c.b16 %v780, %v772
      %v925 = vpack.c.b16 %v781, %v773
      %v926 = vpack.c.b16 %v782, %v774
      %v927 = vpack.c.b16 %v783, %v775
      %v928 = vpack.c.b16 %v784, %v776
      %v929 = vpack.c.b16 %v793, %v785
      %v930 = vpack.c.b16 %v794, %v786
      %v931 = vpack.c.b16 %v795, %v787
      %v932 = vpack.c.b16 %v796, %v788
      %v933 = vpack.c.b16 %v797, %v789
      %v934 = vpack.c.b16 %v798, %v790
      %v935 = vpack.c.b16 %v799, %v791
      %v936 = vpack.c.b16 %v800, %v792
      %v937 = vpack.c.b16 %v809, %v801
      %v938 = vpack.c.b16 %v810, %v802
      %v939 = vpack.c.b16 %v811, %v803
      %v940 = vpack.c.b16 %v812, %v804
      %v941 = vpack.c.b16 %v813, %v805
      %v942 = vpack.c.b16 %v814, %v806
      %v943 = vpack.c.b16 %v815, %v807
      %v944 = vpack.c.b16 %v816, %v808
      %v1075 = vcombine.high %v431, %v431
      %v1077 = vunpack.c.l.s4 1983009808
      %v1078 = vunpack.c.0.s8 %v1077
      %v1079 = vlaneseq
      %v1080 = vshrl.u32 %v1079, 7
      %v1081 = vsub.s32 %v1078, %v1080
      %v1082 = vrot.slane %v431, %v1081
      %v1084 = vunpack.c.l.s4 1983009808
      %v1085 = vunpack.c.0.s8 %v1084
      %v1086 = vlaneseq
      %v1087 = vshrl.u32 %v1086, 7
      %v1088 = vsub.s32 %v1085, %v1087
      %v1089 = vrot.slane %v1075, %v1088
      %v1090 = vcombine.high %v1082, %v1082
      %v1091 = vcombine.high %v1089, %v1089
      %v1092 = vcombine.high %v432, %v432
      %v1094 = vunpack.c.l.s4 1983009808
      %v1095 = vunpack.c.0.s8 %v1094
      %v1096 = vlaneseq
      %v1097 = vshrl.u32 %v1096, 7
      %v1098 = vsub.s32 %v1095, %v1097
      %v1099 = vrot.slane %v432, %v1098
      %v1101 = vunpack.c.l.s4 1983009808
      %v1102 = vunpack.c.0.s8 %v1101
      %v1103 = vlaneseq
      %v1104 = vshrl.u32 %v1103, 7
      %v1105 = vsub.s32 %v1102, %v1104
      %v1106 = vrot.slane %v1092, %v1105
      %v1107 = vcombine.high %v1099, %v1099
      %v1108 = vcombine.high %v1106, %v1106
      %1117 = vmatprep.subr.bf16.mxu0 %v818
      %1118 = vmatpush1.bf16.msra.mxu0 %v817
      %1119 = vmatprep.subr.bf16.mxu0 %v826
      %1120 = vmatpush1.bf16.msra.mxu0 %v825
      %1121 = vmatprep.subr.bf16.mxu0 %v834
      %1122 = vmatpush1.bf16.msra.mxu0 %v833
      %1123 = vmatprep.subr.bf16.mxu0 %v842
      %1124 = vmatpush1.bf16.msra.mxu0 %v841
      %1125 = vmatprep.subr.bf16.mxu0 %v850
      %1126 = vmatpush1.bf16.msra.mxu0 %v849
      %1127 = vmatprep.subr.bf16.mxu0 %v858
      %1128 = vmatpush1.bf16.msra.mxu0 %v857
      %1129 = vmatprep.subr.bf16.mxu0 %v866
      %1130 = vmatpush1.bf16.msra.mxu0 %v865
      %1131 = vmatprep.subr.bf16.mxu0 %v874
      %1132 = vmatpush1.bf16.msra.mxu0 %v873
      %1133 = vmatprep.subr.bf16.mxu0 %v882
      %1134 = vmatpush1.bf16.msra.mxu0 %v881
      %1135 = vmatprep.subr.bf16.mxu0 %v890
      %1136 = vmatpush1.bf16.msra.mxu0 %v889
      %1137 = vmatprep.subr.bf16.mxu0 %v898
      %1138 = vmatpush1.bf16.msra.mxu0 %v897
      %1139 = vmatprep.subr.bf16.mxu0 %v906
      %1140 = vmatpush1.bf16.msra.mxu0 %v905
      %1141 = vmatprep.subr.bf16.mxu0 %v914
      %1142 = vmatpush1.bf16.msra.mxu0 %v913
      %1143 = vmatprep.subr.bf16.mxu0 %v922
      %1144 = vmatpush1.bf16.msra.mxu0 %v921
      %1145 = vmatprep.subr.bf16.mxu0 %v930
      %1146 = vmatpush1.bf16.msra.mxu0 %v929
      %1147 = vmatprep.subr.bf16.mxu0 %v938
      %1148 = vmatpush1.bf16.msra.mxu0 %v937
      %1149 = vmatprep.mubr.bf16.mxu0 %v429
      %1150 = vmatmul.mubr.bf16.gmra.mrb[0].mxu0 %v428
      %v1151 = vpop.f32.mrb[0].mxu0
      %v1152 = vadd.f32 %v1082, %v1151
      %v1153 = vpop.f32.mrb[0].mxu0
      %v1154 = vadd.f32 %v1090, %v1153
      %v1155 = vpop.f32.mrb[0].mxu0
      %v1156 = vpop.f32.mrb[0].mxu0
      %1157 = vdwg.mxu0
      %1158 = vmatprep.subr.bf16.mxu0 %v820
      %1159 = vmatpush1.bf16.msra.mxu0 %v819
      %1160 = vmatprep.subr.bf16.mxu0 %v828
      %1161 = vmatpush1.bf16.msra.mxu0 %v827
      %1162 = vmatprep.subr.bf16.mxu0 %v836
      %1163 = vmatpush1.bf16.msra.mxu0 %v835
      %1164 = vmatprep.subr.bf16.mxu0 %v844
      %1165 = vmatpush1.bf16.msra.mxu0 %v843
      %1166 = vmatprep.subr.bf16.mxu0 %v852
      %1167 = vmatpush1.bf16.msra.mxu0 %v851
      %1168 = vmatprep.subr.bf16.mxu0 %v860
      %1169 = vmatpush1.bf16.msra.mxu0 %v859
      %1170 = vmatprep.subr.bf16.mxu0 %v868
      %1171 = vmatpush1.bf16.msra.mxu0 %v867
      %1172 = vmatprep.subr.bf16.mxu0 %v876
      %1173 = vmatpush1.bf16.msra.mxu0 %v875
      %1174 = vmatprep.subr.bf16.mxu0 %v884
      %1175 = vmatpush1.bf16.msra.mxu0 %v883
      %1176 = vmatprep.subr.bf16.mxu0 %v892
      %1177 = vmatpush1.bf16.msra.mxu0 %v891
      %1178 = vmatprep.subr.bf16.mxu0 %v900
      %1179 = vmatpush1.bf16.msra.mxu0 %v899
      %1180 = vmatprep.subr.bf16.mxu0 %v908
      %1181 = vmatpush1.bf16.msra.mxu0 %v907
      %1182 = vmatprep.subr.bf16.mxu0 %v916
      %1183 = vmatpush1.bf16.msra.mxu0 %v915
      %1184 = vmatprep.subr.bf16.mxu0 %v924
      %1185 = vmatpush1.bf16.msra.mxu0 %v923
      %1186 = vmatprep.subr.bf16.mxu0 %v932
      %1187 = vmatpush1.bf16.msra.mxu0 %v931
      %1188 = vmatprep.subr.bf16.mxu0 %v940
      %1189 = vmatpush1.bf16.msra.mxu0 %v939
      %1190 = vmatprep.mubr.bf16.mxu0 %v429
      %1191 = vmatmul.mubr.bf16.gmra.mrb[0].mxu0 %v428
      %v1192 = vpop.f32.mrb[0].mxu0
      %v1193 = vadd.f32 %v1089, %v1192
      %v1194 = vpop.f32.mrb[0].mxu0
      %v1195 = vadd.f32 %v1091, %v1194
      %v1196 = vpop.f32.mrb[0].mxu0
      %v1197 = vpop.f32.mrb[0].mxu0
      %1198 = vdwg.mxu0
      %1199 = vmatprep.subr.bf16.mxu0 %v822
      %1200 = vmatpush1.bf16.msra.mxu0 %v821
      %1201 = vmatprep.subr.bf16.mxu0 %v830
      %1202 = vmatpush1.bf16.msra.mxu0 %v829
      %1203 = vmatprep.subr.bf16.mxu0 %v838
      %1204 = vmatpush1.bf16.msra.mxu0 %v837
      %1205 = vmatprep.subr.bf16.mxu0 %v846
      %1206 = vmatpush1.bf16.msra.mxu0 %v845
      %1207 = vmatprep.subr.bf16.mxu0 %v854
      %1208 = vmatpush1.bf16.msra.mxu0 %v853
      %1209 = vmatprep.subr.bf16.mxu0 %v862
      %1210 = vmatpush1.bf16.msra.mxu0 %v861
      %1211 = vmatprep.subr.bf16.mxu0 %v870
      %1212 = vmatpush1.bf16.msra.mxu0 %v869
      %1213 = vmatprep.subr.bf16.mxu0 %v878
      %1214 = vmatpush1.bf16.msra.mxu0 %v877
      %1215 = vmatprep.subr.bf16.mxu0 %v886
      %1216 = vmatpush1.bf16.msra.mxu0 %v885
      %1217 = vmatprep.subr.bf16.mxu0 %v894
      %1218 = vmatpush1.bf16.msra.mxu0 %v893
      %1219 = vmatprep.subr.bf16.mxu0 %v902
      %1220 = vmatpush1.bf16.msra.mxu0 %v901
      %1221 = vmatprep.subr.bf16.mxu0 %v910
      %1222 = vmatpush1.bf16.msra.mxu0 %v909
      %1223 = vmatprep.subr.bf16.mxu0 %v918
      %1224 = vmatpush1.bf16.msra.mxu0 %v917
      %1225 = vmatprep.subr.bf16.mxu0 %v926
      %1226 = vmatpush1.bf16.msra.mxu0 %v925
      %1227 = vmatprep.subr.bf16.mxu0 %v934
      %1228 = vmatpush1.bf16.msra.mxu0 %v933
      %1229 = vmatprep.subr.bf16.mxu0 %v942
      %1230 = vmatpush1.bf16.msra.mxu0 %v941
      %1231 = vmatprep.mubr.bf16.mxu0 %v429
      %1232 = vmatmul.mubr.bf16.gmra.mrb[0].mxu0 %v428
      %v1233 = vpop.f32.mrb[0].mxu0
      %v1234 = vadd.f32 %v1099, %v1233
      %v1235 = vpop.f32.mrb[0].mxu0
      %v1236 = vadd.f32 %v1107, %v1235
      %v1237 = vpop.f32.mrb[0].mxu0
      %v1238 = vpop.f32.mrb[0].mxu0
      %1239 = vdwg.mxu0
      %1240 = vmatprep.subr.bf16.mxu0 %v824
      %1241 = vmatpush1.bf16.msra.mxu0 %v823
      %1242 = vmatprep.subr.bf16.mxu0 %v832
      %1243 = vmatpush1.bf16.msra.mxu0 %v831
      %1244 = vmatprep.subr.bf16.mxu0 %v840
      %1245 = vmatpush1.bf16.msra.mxu0 %v839
      %1246 = vmatprep.subr.bf16.mxu0 %v848
      %1247 = vmatpush1.bf16.msra.mxu0 %v847
      %1248 = vmatprep.subr.bf16.mxu0 %v856
      %1249 = vmatpush1.bf16.msra.mxu0 %v855
      %1250 = vmatprep.subr.bf16.mxu0 %v864
      %1251 = vmatpush1.bf16.msra.mxu0 %v863
      %1252 = vmatprep.subr.bf16.mxu0 %v872
      %1253 = vmatpush1.bf16.msra.mxu0 %v871
      %1254 = vmatprep.subr.bf16.mxu0 %v880
      %1255 = vmatpush1.bf16.msra.mxu0 %v879
      %1256 = vmatprep.subr.bf16.mxu0 %v888
      %1257 = vmatpush1.bf16.msra.mxu0 %v887
      %1258 = vmatprep.subr.bf16.mxu0 %v896
      %1259 = vmatpush1.bf16.msra.mxu0 %v895
      %1260 = vmatprep.subr.bf16.mxu0 %v904
      %1261 = vmatpush1.bf16.msra.mxu0 %v903
      %1262 = vmatprep.subr.bf16.mxu0 %v912
      %1263 = vmatpush1.bf16.msra.mxu0 %v911
      %1264 = vmatprep.subr.bf16.mxu0 %v920
      %1265 = vmatpush1.bf16.msra.mxu0 %v919
      %1266 = vmatprep.subr.bf16.mxu0 %v928
      %1267 = vmatpush1.bf16.msra.mxu0 %v927
      %1268 = vmatprep.subr.bf16.mxu0 %v936
      %1269 = vmatpush1.bf16.msra.mxu0 %v935
      %1270 = vmatprep.subr.bf16.mxu0 %v944
      %1271 = vmatpush1.bf16.msra.mxu0 %v943
      %1272 = vmatprep.mubr.bf16.mxu0 %v429
      %1273 = vmatmul.mubr.bf16.gmra.mrb[0].mxu0 %v428
      %v1274 = vpop.f32.mrb[0].mxu0
      %v1275 = vadd.f32 %v1106, %v1274
      %v1276 = vpop.f32.mrb[0].mxu0
      %v1277 = vadd.f32 %v1108, %v1276
      %v1278 = vpop.f32.mrb[0].mxu0
      %v1279 = vpop.f32.mrb[0].mxu0
      %1280 = vdwg.mxu0
      %v1282 = vlaneseq
      %v1283 = vshrl.u32 %v1282, 7
      %v1284 = vsub.s32 0, %v1283
      %v1285 = vrot.slane %v413, %v1284
      %v1286 = vlaneseq
      %v1287 = vshrl.u32 %v1286, 7
      %v1288 = vsub.s32 1, %v1287
      %v1289 = vrot.slane %v413, %v1288
      %v1290 = vlaneseq
      %v1291 = vshrl.u32 %v1290, 7
      %v1292 = vsub.s32 2, %v1291
      %v1293 = vrot.slane %v413, %v1292
      %v1294 = vlaneseq
      %v1295 = vshrl.u32 %v1294, 7
      %v1296 = vsub.s32 3, %v1295
      %v1297 = vrot.slane %v413, %v1296
      %v1298 = vlaneseq
      %v1299 = vshrl.u32 %v1298, 7
      %v1300 = vsub.s32 4, %v1299
      %v1301 = vrot.slane %v413, %v1300
      %v1302 = vlaneseq
      %v1303 = vshrl.u32 %v1302, 7
      %v1304 = vsub.s32 5, %v1303
      %v1305 = vrot.slane %v413, %v1304
      %v1306 = vlaneseq
      %v1307 = vshrl.u32 %v1306, 7
      %v1308 = vsub.s32 6, %v1307
      %v1309 = vrot.slane %v413, %v1308
      %v1310 = vlaneseq
      %v1311 = vshrl.u32 %v1310, 7
      %v1312 = vsub.s32 7, %v1311
      %v1313 = vrot.slane %v413, %v1312
      %v1322 = vadd.f32 %v1152, %v1285
      %v1323 = vadd.f32 %v1154, %v1289
      %v1324 = vadd.f32 %v1193, %v1293
      %v1325 = vadd.f32 %v1195, %v1297
      %v1326 = vadd.f32 %v1234, %v1301
      %v1327 = vadd.f32 %v1236, %v1305
      %v1328 = vadd.f32 %v1275, %v1309
      %v1329 = vadd.f32 %v1277, %v1313
      %v1330 = vxor.u32 %v1322, 2147483648
      %v1331 = vxor.u32 %v1323, 2147483648
      %v1332 = vxor.u32 %v1324, 2147483648
      %v1333 = vxor.u32 %v1325, 2147483648
      %v1334 = vxor.u32 %v1326, 2147483648
      %v1335 = vxor.u32 %v1327, 2147483648
      %v1336 = vmul.f32 %v1330, 1.442695
      %v1337 = vpow.pop %v1336
      %v1338 = vmul.f32 %v1331, 1.442695
      %v1339 = vpow.pop %v1338
      %v1340 = vmul.f32 %v1332, 1.442695
      %v1341 = vpow.pop %v1340
      %v1342 = vmul.f32 %v1333, 1.442695
      %v1343 = vpow.pop %v1342
      %v1344 = vmul.f32 %v1334, 1.442695
      %v1345 = vpow.pop %v1344
      %v1346 = vmul.f32 %v1335, 1.442695
      %v1347 = vpow.pop %v1346
      %v1348 = vadd.f32 %v1337, 1.0
      %v1349 = vadd.f32 %v1339, 1.0
      %v1350 = vadd.f32 %v1341, 1.0
      %v1351 = vadd.f32 %v1343, 1.0
      %v1352 = vadd.f32 %v1345, 1.0
      %v1353 = vadd.f32 %v1347, 1.0
      %v1354 = vrcp.pop %v1348
      %v1355 = vmul.f32 1.0, %v1354
      %v1356 = vrcp.pop %v1349
      %v1357 = vmul.f32 1.0, %v1356
      %v1358 = vrcp.pop %v1350
      %v1359 = vmul.f32 1.0, %v1358
      %v1360 = vrcp.pop %v1351
      %v1361 = vmul.f32 1.0, %v1360
      %v1362 = vrcp.pop %v1352
      %v1363 = vmul.f32 1.0, %v1362
      %v1364 = vrcp.pop %v1353
      %v1365 = vmul.f32 1.0, %v1364
      %v1366 = vtanh.pop %v1328
      %v1367 = vtanh.pop %v1329
      %v1370 = vunpack.c.l.s4 1983009808
      %v1371 = vunpack.c.0.s8 %v1370
      %v1372 = vlaneseq
      %v1373 = vshrl.u32 %v1372, 7
      %v1374 = vsub.s32 %v1371, %v1373
      %v1375 = vrot.slane %v416, %v1374
      %v1376 = vcombine.high %v1375, %v1375
      %v1379 = vmul.f32 %v1359, %v1375
      %v1380 = vmul.f32 %v1361, %v1376
      %v1381 = vmul.f32 %v1355, %v1366
      %v1382 = vmul.f32 %v1357, %v1367
      %v1383 = vadd.f32 %v1379, %v1381
      %v1384 = vadd.f32 %v1380, %v1382
      %v1385 = vtanh.pop %v1383
      %v1386 = vtanh.pop %v1384
      %v1387 = vmul.f32 %v1363, %v1385
      %v1388 = vmul.f32 %v1365, %v1386
      %v1389 = vpack.c.bf16 %v1387, %v1387
      %v1390 = vpack.c.bf16 %v1388, %v1388
      %v1393 = vcombine.low %v1389, %v1390
      %v1395 = vunpack.c.l.s4 1966171168
      %v1396 = vunpack.c.0.s8 %v1395
      %v1397 = vlaneseq
      %v1398 = vshrl.u32 %v1397, 7
      %v1399 = vsub.s32 %v1396, %v1398
      %v1400 = vrot.slane %v1393, %v1399
      %v1402 = vunpack.c.l.s4 1966171168
      %v1403 = vunpack.c.0.s8 %v1402
      %v1404 = vlaneseq
      %v1405 = vshrl.u32 %v1404, 7
      %v1406 = vsub.s32 %v1403, %v1405
      %v1407 = vrot.slane %v1400, %v1406
      %1409 = vst [vmem:[%s275] sm:$0x3] %v1407
      %p1410 = scmp.lt.s32.totalorder %s414, 11
      %s1411 = scalar_select %p1410, 1, 0
      %v1412 = vstv %s1411
      %vm1413 = vcmp.eq.s32.totalorder %v1412, 1
      %v1414 = vsel %vm1413, %v1387, %v424
      %v1415 = vsel %vm1413, %v1388, %v425
      %v1416 = vsel %vm1413, %v1383, %v1375
      %v1417 = vsel %vm1413, %v1384, %v1376
      %v1418 = vpack.c.bf16 %v1414, %v1414
      %v1419 = vpack.c.bf16 %v1415, %v1415
      %s1420 = scalar_lea.vmem %s269, 8
      %v1421 = vld [vmem:[%s1420] sm:$0xff]
      %v1422 = vunpack.c.l.bf16 %v1421
      %v1423 = vunpack.c.h.bf16 %v1421
      %v1426 = vcombine.high %v1422, %v1422
      %v1428 = vunpack.c.l.s4 1983009808
      %v1429 = vunpack.c.0.s8 %v1428
      %v1430 = vlaneseq
      %v1431 = vshrl.u32 %v1430, 7
      %v1432 = vsub.s32 %v1429, %v1431
      %v1433 = vrot.slane %v1422, %v1432
      %v1435 = vunpack.c.l.s4 1983009808
      %v1436 = vunpack.c.0.s8 %v1435
      %v1437 = vlaneseq
      %v1438 = vshrl.u32 %v1437, 7
      %v1439 = vsub.s32 %v1436, %v1438
      %v1440 = vrot.slane %v1426, %v1439
      %v1441 = vcombine.high %v1433, %v1433
      %v1442 = vcombine.high %v1440, %v1440
      %v1443 = vcombine.high %v1423, %v1423
      %v1445 = vunpack.c.l.s4 1983009808
      %v1446 = vunpack.c.0.s8 %v1445
      %v1447 = vlaneseq
      %v1448 = vshrl.u32 %v1447, 7
      %v1449 = vsub.s32 %v1446, %v1448
      %v1450 = vrot.slane %v1423, %v1449
      %v1452 = vunpack.c.l.s4 1983009808
      %v1453 = vunpack.c.0.s8 %v1452
      %v1454 = vlaneseq
      %v1455 = vshrl.u32 %v1454, 7
      %v1456 = vsub.s32 %v1453, %v1455
      %v1457 = vrot.slane %v1443, %v1456
      %v1458 = vcombine.high %v1450, %v1450
      %v1459 = vcombine.high %v1457, %v1457
      %1468 = vmatprep.subr.bf16.mxu0 %v818
      %1469 = vmatpush1.bf16.msra.mxu0 %v817
      %1470 = vmatprep.subr.bf16.mxu0 %v826
      %1471 = vmatpush1.bf16.msra.mxu0 %v825
      %1472 = vmatprep.subr.bf16.mxu0 %v834
      %1473 = vmatpush1.bf16.msra.mxu0 %v833
      %1474 = vmatprep.subr.bf16.mxu0 %v842
      %1475 = vmatpush1.bf16.msra.mxu0 %v841
      %1476 = vmatprep.subr.bf16.mxu0 %v850
      %1477 = vmatpush1.bf16.msra.mxu0 %v849
      %1478 = vmatprep.subr.bf16.mxu0 %v858
      %1479 = vmatpush1.bf16.msra.mxu0 %v857
      %1480 = vmatprep.subr.bf16.mxu0 %v866
      %1481 = vmatpush1.bf16.msra.mxu0 %v865
      %1482 = vmatprep.subr.bf16.mxu0 %v874
      %1483 = vmatpush1.bf16.msra.mxu0 %v873
      %1484 = vmatprep.subr.bf16.mxu0 %v882
      %1485 = vmatpush1.bf16.msra.mxu0 %v881
      %1486 = vmatprep.subr.bf16.mxu0 %v890
      %1487 = vmatpush1.bf16.msra.mxu0 %v889
      %1488 = vmatprep.subr.bf16.mxu0 %v898
      %1489 = vmatpush1.bf16.msra.mxu0 %v897
      %1490 = vmatprep.subr.bf16.mxu0 %v906
      %1491 = vmatpush1.bf16.msra.mxu0 %v905
      %1492 = vmatprep.subr.bf16.mxu0 %v914
      %1493 = vmatpush1.bf16.msra.mxu0 %v913
      %1494 = vmatprep.subr.bf16.mxu0 %v922
      %1495 = vmatpush1.bf16.msra.mxu0 %v921
      %1496 = vmatprep.subr.bf16.mxu0 %v930
      %1497 = vmatpush1.bf16.msra.mxu0 %v929
      %1498 = vmatprep.subr.bf16.mxu0 %v938
      %1499 = vmatpush1.bf16.msra.mxu0 %v937
      %1500 = vmatprep.mubr.bf16.mxu0 %v1419
      %1501 = vmatmul.mubr.bf16.gmra.mrb[0].mxu0 %v1418
      %v1502 = vpop.f32.mrb[0].mxu0
      %v1503 = vadd.f32 %v1433, %v1502
      %v1504 = vpop.f32.mrb[0].mxu0
      %v1505 = vadd.f32 %v1441, %v1504
      %v1506 = vpop.f32.mrb[0].mxu0
      %v1507 = vpop.f32.mrb[0].mxu0
      %1508 = vdwg.mxu0
      %1509 = vmatprep.subr.bf16.mxu0 %v820
      %1510 = vmatpush1.bf16.msra.mxu0 %v819
      %1511 = vmatprep.subr.bf16.mxu0 %v828
      %1512 = vmatpush1.bf16.msra.mxu0 %v827
      %1513 = vmatprep.subr.bf16.mxu0 %v836
      %1514 = vmatpush1.bf16.msra.mxu0 %v835
      %1515 = vmatprep.subr.bf16.mxu0 %v844
      %1516 = vmatpush1.bf16.msra.mxu0 %v843
      %1517 = vmatprep.subr.bf16.mxu0 %v852
      %1518 = vmatpush1.bf16.msra.mxu0 %v851
      %1519 = vmatprep.subr.bf16.mxu0 %v860
      %1520 = vmatpush1.bf16.msra.mxu0 %v859
      %1521 = vmatprep.subr.bf16.mxu0 %v868
      %1522 = vmatpush1.bf16.msra.mxu0 %v867
      %1523 = vmatprep.subr.bf16.mxu0 %v876
      %1524 = vmatpush1.bf16.msra.mxu0 %v875
      %1525 = vmatprep.subr.bf16.mxu0 %v884
      %1526 = vmatpush1.bf16.msra.mxu0 %v883
      %1527 = vmatprep.subr.bf16.mxu0 %v892
      %1528 = vmatpush1.bf16.msra.mxu0 %v891
      %1529 = vmatprep.subr.bf16.mxu0 %v900
      %1530 = vmatpush1.bf16.msra.mxu0 %v899
      %1531 = vmatprep.subr.bf16.mxu0 %v908
      %1532 = vmatpush1.bf16.msra.mxu0 %v907
      %1533 = vmatprep.subr.bf16.mxu0 %v916
      %1534 = vmatpush1.bf16.msra.mxu0 %v915
      %1535 = vmatprep.subr.bf16.mxu0 %v924
      %1536 = vmatpush1.bf16.msra.mxu0 %v923
      %1537 = vmatprep.subr.bf16.mxu0 %v932
      %1538 = vmatpush1.bf16.msra.mxu0 %v931
      %1539 = vmatprep.subr.bf16.mxu0 %v940
      %1540 = vmatpush1.bf16.msra.mxu0 %v939
      %1541 = vmatprep.mubr.bf16.mxu0 %v1419
      %1542 = vmatmul.mubr.bf16.gmra.mrb[0].mxu0 %v1418
      %v1543 = vpop.f32.mrb[0].mxu0
      %v1544 = vadd.f32 %v1440, %v1543
      %v1545 = vpop.f32.mrb[0].mxu0
      %v1546 = vadd.f32 %v1442, %v1545
      %v1547 = vpop.f32.mrb[0].mxu0
      %v1548 = vpop.f32.mrb[0].mxu0
      %1549 = vdwg.mxu0
      %1550 = vmatprep.subr.bf16.mxu0 %v822
      %1551 = vmatpush1.bf16.msra.mxu0 %v821
      %1552 = vmatprep.subr.bf16.mxu0 %v830
      %1553 = vmatpush1.bf16.msra.mxu0 %v829
      %1554 = vmatprep.subr.bf16.mxu0 %v838
      %1555 = vmatpush1.bf16.msra.mxu0 %v837
      %1556 = vmatprep.subr.bf16.mxu0 %v846
      %1557 = vmatpush1.bf16.msra.mxu0 %v845
      %1558 = vmatprep.subr.bf16.mxu0 %v854
      %1559 = vmatpush1.bf16.msra.mxu0 %v853
      %1560 = vmatprep.subr.bf16.mxu0 %v862
      %1561 = vmatpush1.bf16.msra.mxu0 %v861
      %1562 = vmatprep.subr.bf16.mxu0 %v870
      %1563 = vmatpush1.bf16.msra.mxu0 %v869
      %1564 = vmatprep.subr.bf16.mxu0 %v878
      %1565 = vmatpush1.bf16.msra.mxu0 %v877
      %1566 = vmatprep.subr.bf16.mxu0 %v886
      %1567 = vmatpush1.bf16.msra.mxu0 %v885
      %1568 = vmatprep.subr.bf16.mxu0 %v894
      %1569 = vmatpush1.bf16.msra.mxu0 %v893
      %1570 = vmatprep.subr.bf16.mxu0 %v902
      %1571 = vmatpush1.bf16.msra.mxu0 %v901
      %1572 = vmatprep.subr.bf16.mxu0 %v910
      %1573 = vmatpush1.bf16.msra.mxu0 %v909
      %1574 = vmatprep.subr.bf16.mxu0 %v918
      %1575 = vmatpush1.bf16.msra.mxu0 %v917
      %1576 = vmatprep.subr.bf16.mxu0 %v926
      %1577 = vmatpush1.bf16.msra.mxu0 %v925
      %1578 = vmatprep.subr.bf16.mxu0 %v934
      %1579 = vmatpush1.bf16.msra.mxu0 %v933
      %1580 = vmatprep.subr.bf16.mxu0 %v942
      %1581 = vmatpush1.bf16.msra.mxu0 %v941
      %1582 = vmatprep.mubr.bf16.mxu0 %v1419
      %1583 = vmatmul.mubr.bf16.gmra.mrb[0].mxu0 %v1418
      %v1584 = vpop.f32.mrb[0].mxu0
      %v1585 = vadd.f32 %v1450, %v1584
      %v1586 = vpop.f32.mrb[0].mxu0
      %v1587 = vadd.f32 %v1458, %v1586
      %v1588 = vpop.f32.mrb[0].mxu0
      %v1589 = vpop.f32.mrb[0].mxu0
      %1590 = vdwg.mxu0
      %1591 = vmatprep.subr.bf16.mxu0 %v824
      %1592 = vmatpush1.bf16.msra.mxu0 %v823
      %1593 = vmatprep.subr.bf16.mxu0 %v832
      %1594 = vmatpush1.bf16.msra.mxu0 %v831
      %1595 = vmatprep.subr.bf16.mxu0 %v840
      %1596 = vmatpush1.bf16.msra.mxu0 %v839
      %1597 = vmatprep.subr.bf16.mxu0 %v848
      %1598 = vmatpush1.bf16.msra.mxu0 %v847
      %1599 = vmatprep.subr.bf16.mxu0 %v856
      %1600 = vmatpush1.bf16.msra.mxu0 %v855
      %1601 = vmatprep.subr.bf16.mxu0 %v864
      %1602 = vmatpush1.bf16.msra.mxu0 %v863
      %1603 = vmatprep.subr.bf16.mxu0 %v872
      %1604 = vmatpush1.bf16.msra.mxu0 %v871
      %1605 = vmatprep.subr.bf16.mxu0 %v880
      %1606 = vmatpush1.bf16.msra.mxu0 %v879
      %1607 = vmatprep.subr.bf16.mxu0 %v888
      %1608 = vmatpush1.bf16.msra.mxu0 %v887
      %1609 = vmatprep.subr.bf16.mxu0 %v896
      %1610 = vmatpush1.bf16.msra.mxu0 %v895
      %1611 = vmatprep.subr.bf16.mxu0 %v904
      %1612 = vmatpush1.bf16.msra.mxu0 %v903
      %1613 = vmatprep.subr.bf16.mxu0 %v912
      %1614 = vmatpush1.bf16.msra.mxu0 %v911
      %1615 = vmatprep.subr.bf16.mxu0 %v920
      %1616 = vmatpush1.bf16.msra.mxu0 %v919
      %1617 = vmatprep.subr.bf16.mxu0 %v928
      %1618 = vmatpush1.bf16.msra.mxu0 %v927
      %1619 = vmatprep.subr.bf16.mxu0 %v936
      %1620 = vmatpush1.bf16.msra.mxu0 %v935
      %1621 = vmatprep.subr.bf16.mxu0 %v944
      %1622 = vmatpush1.bf16.msra.mxu0 %v943
      %1623 = vmatprep.mubr.bf16.mxu0 %v1419
      %1624 = vmatmul.mubr.bf16.gmra.mrb[0].mxu0 %v1418
      %v1625 = vpop.f32.mrb[0].mxu0
      %v1626 = vadd.f32 %v1457, %v1625
      %v1627 = vpop.f32.mrb[0].mxu0
      %v1628 = vadd.f32 %v1459, %v1627
      %v1629 = vpop.f32.mrb[0].mxu0
      %v1630 = vpop.f32.mrb[0].mxu0
      %1631 = vdwg.mxu0
      %v1632 = vadd.f32 %v1503, %v1285
      %v1633 = vadd.f32 %v1505, %v1289
      %v1634 = vadd.f32 %v1544, %v1293
      %v1635 = vadd.f32 %v1546, %v1297
      %v1636 = vadd.f32 %v1585, %v1301
      %v1637 = vadd.f32 %v1587, %v1305
      %v1638 = vadd.f32 %v1626, %v1309
      %v1639 = vadd.f32 %v1628, %v1313
      %v1640 = vxor.u32 %v1632, 2147483648
      %v1641 = vxor.u32 %v1633, 2147483648
      %v1642 = vxor.u32 %v1634, 2147483648
      %v1643 = vxor.u32 %v1635, 2147483648
      %v1644 = vxor.u32 %v1636, 2147483648
      %v1645 = vxor.u32 %v1637, 2147483648
      %v1646 = vmul.f32 %v1640, 1.442695
      %v1647 = vpow.pop %v1646
      %v1648 = vmul.f32 %v1641, 1.442695
      %v1649 = vpow.pop %v1648
      %v1650 = vmul.f32 %v1642, 1.442695
      %v1651 = vpow.pop %v1650
      %v1652 = vmul.f32 %v1643, 1.442695
      %v1653 = vpow.pop %v1652
      %v1654 = vmul.f32 %v1644, 1.442695
      %v1655 = vpow.pop %v1654
      %v1656 = vmul.f32 %v1645, 1.442695
      %v1657 = vpow.pop %v1656
      %v1658 = vadd.f32 %v1647, 1.0
      %v1659 = vadd.f32 %v1649, 1.0
      %v1660 = vadd.f32 %v1651, 1.0
      %v1661 = vadd.f32 %v1653, 1.0
      %v1662 = vadd.f32 %v1655, 1.0
      %v1663 = vadd.f32 %v1657, 1.0
      %v1664 = vrcp.pop %v1658
      %v1665 = vmul.f32 1.0, %v1664
      %v1666 = vrcp.pop %v1659
      %v1667 = vmul.f32 1.0, %v1666
      %v1668 = vrcp.pop %v1660
      %v1669 = vmul.f32 1.0, %v1668
      %v1670 = vrcp.pop %v1661
      %v1671 = vmul.f32 1.0, %v1670
      %v1672 = vrcp.pop %v1662
      %v1673 = vmul.f32 1.0, %v1672
      %v1674 = vrcp.pop %v1663
      %v1675 = vmul.f32 1.0, %v1674
      %v1676 = vtanh.pop %v1638
      %v1677 = vtanh.pop %v1639
      %v1678 = vmul.f32 %v1669, %v1416
      %v1679 = vmul.f32 %v1671, %v1417
      %v1680 = vmul.f32 %v1665, %v1676
      %v1681 = vmul.f32 %v1667, %v1677
      %v1682 = vadd.f32 %v1678, %v1680
      %v1683 = vadd.f32 %v1679, %v1681
      %v1684 = vtanh.pop %v1682
      %v1685 = vtanh.pop %v1683
      %v1686 = vmul.f32 %v1673, %v1684
      %v1687 = vmul.f32 %v1675, %v1685
      %v1688 = vpack.c.bf16 %v1686, %v1686
      %v1689 = vpack.c.bf16 %v1687, %v1687
      %v1692 = vcombine.low %v1688, %v1689
      %v1694 = vunpack.c.l.s4 1966171168
      %v1695 = vunpack.c.0.s8 %v1694
      %v1696 = vlaneseq
      %v1697 = vshrl.u32 %v1696, 7
      %v1698 = vsub.s32 %v1695, %v1697
      %v1699 = vrot.slane %v1692, %v1698
      %v1701 = vunpack.c.l.s4 1966171168
      %v1702 = vunpack.c.0.s8 %v1701
      %v1703 = vlaneseq
      %v1704 = vshrl.u32 %v1703, 7
      %v1705 = vsub.s32 %v1702, %v1704
      %v1706 = vrot.slane %v1699, %v1705
      %s1708 = scalar_lea.vmem %s275, 2
      %1709 = vst [vmem:[%s1708] sm:$0x3] %v1706
      %s1710 = sadd.s32 %s414, 1
      %p1711 = scmp.lt.s32.totalorder %s1710, 11
      %s1712 = scalar_select %p1711, 1, 0
      %v1713 = vstv %s1712
      %vm1714 = vcmp.eq.s32.totalorder %v1713, 1
      %v1715 = vsel %vm1714, %v1686, %v1414
      %v1716 = vsel %vm1714, %v1687, %v1415
      %v1717 = vsel %vm1714, %v1682, %v1416
      %v1718 = vsel %vm1714, %v1683, %v1417
      %v1719 = vpack.c.bf16 %v1715, %v1715
      %v1720 = vpack.c.bf16 %v1716, %v1716
      %s1721 = scalar_lea.vmem %s269, 16
      %v1722 = vld [vmem:[%s1721] sm:$0xff]
      %v1723 = vunpack.c.l.bf16 %v1722
      %v1724 = vunpack.c.h.bf16 %v1722
      %v1727 = vcombine.high %v1723, %v1723
      %v1729 = vunpack.c.l.s4 1983009808
      %v1730 = vunpack.c.0.s8 %v1729
      %v1731 = vlaneseq
      %v1732 = vshrl.u32 %v1731, 7
      %v1733 = vsub.s32 %v1730, %v1732
      %v1734 = vrot.slane %v1723, %v1733
      %v1736 = vunpack.c.l.s4 1983009808
      %v1737 = vunpack.c.0.s8 %v1736
      %v1738 = vlaneseq
      %v1739 = vshrl.u32 %v1738, 7
      %v1740 = vsub.s32 %v1737, %v1739
      %v1741 = vrot.slane %v1727, %v1740
      %v1742 = vcombine.high %v1734, %v1734
      %v1743 = vcombine.high %v1741, %v1741
      %v1744 = vcombine.high %v1724, %v1724
      %v1746 = vunpack.c.l.s4 1983009808
      %v1747 = vunpack.c.0.s8 %v1746
      %v1748 = vlaneseq
      %v1749 = vshrl.u32 %v1748, 7
      %v1750 = vsub.s32 %v1747, %v1749
      %v1751 = vrot.slane %v1724, %v1750
      %v1753 = vunpack.c.l.s4 1983009808
      %v1754 = vunpack.c.0.s8 %v1753
      %v1755 = vlaneseq
      %v1756 = vshrl.u32 %v1755, 7
      %v1757 = vsub.s32 %v1754, %v1756
      %v1758 = vrot.slane %v1744, %v1757
      %v1759 = vcombine.high %v1751, %v1751
      %v1760 = vcombine.high %v1758, %v1758
      %1769 = vmatprep.subr.bf16.mxu0 %v818
      %1770 = vmatpush1.bf16.msra.mxu0 %v817
      %1771 = vmatprep.subr.bf16.mxu0 %v826
      %1772 = vmatpush1.bf16.msra.mxu0 %v825
      %1773 = vmatprep.subr.bf16.mxu0 %v834
      %1774 = vmatpush1.bf16.msra.mxu0 %v833
      %1775 = vmatprep.subr.bf16.mxu0 %v842
      %1776 = vmatpush1.bf16.msra.mxu0 %v841
      %1777 = vmatprep.subr.bf16.mxu0 %v850
      %1778 = vmatpush1.bf16.msra.mxu0 %v849
      %1779 = vmatprep.subr.bf16.mxu0 %v858
      %1780 = vmatpush1.bf16.msra.mxu0 %v857
      %1781 = vmatprep.subr.bf16.mxu0 %v866
      %1782 = vmatpush1.bf16.msra.mxu0 %v865
      %1783 = vmatprep.subr.bf16.mxu0 %v874
      %1784 = vmatpush1.bf16.msra.mxu0 %v873
      %1785 = vmatprep.subr.bf16.mxu0 %v882
      %1786 = vmatpush1.bf16.msra.mxu0 %v881
      %1787 = vmatprep.subr.bf16.mxu0 %v890
      %1788 = vmatpush1.bf16.msra.mxu0 %v889
      %1789 = vmatprep.subr.bf16.mxu0 %v898
      %1790 = vmatpush1.bf16.msra.mxu0 %v897
      %1791 = vmatprep.subr.bf16.mxu0 %v906
      %1792 = vmatpush1.bf16.msra.mxu0 %v905
      %1793 = vmatprep.subr.bf16.mxu0 %v914
      %1794 = vmatpush1.bf16.msra.mxu0 %v913
      %1795 = vmatprep.subr.bf16.mxu0 %v922
      %1796 = vmatpush1.bf16.msra.mxu0 %v921
      %1797 = vmatprep.subr.bf16.mxu0 %v930
      %1798 = vmatpush1.bf16.msra.mxu0 %v929
      %1799 = vmatprep.subr.bf16.mxu0 %v938
      %1800 = vmatpush1.bf16.msra.mxu0 %v937
      %1801 = vmatprep.mubr.bf16.mxu0 %v1720
      %1802 = vmatmul.mubr.bf16.gmra.mrb[0].mxu0 %v1719
      %v1803 = vpop.f32.mrb[0].mxu0
      %v1804 = vadd.f32 %v1734, %v1803
      %v1805 = vpop.f32.mrb[0].mxu0
      %v1806 = vadd.f32 %v1742, %v1805
      %v1807 = vpop.f32.mrb[0].mxu0
      %v1808 = vpop.f32.mrb[0].mxu0
      %1809 = vdwg.mxu0
      %1810 = vmatprep.subr.bf16.mxu0 %v820
      %1811 = vmatpush1.bf16.msra.mxu0 %v819
      %1812 = vmatprep.subr.bf16.mxu0 %v828
      %1813 = vmatpush1.bf16.msra.mxu0 %v827
      %1814 = vmatprep.subr.bf16.mxu0 %v836
      %1815 = vmatpush1.bf16.msra.mxu0 %v835
      %1816 = vmatprep.subr.bf16.mxu0 %v844
      %1817 = vmatpush1.bf16.msra.mxu0 %v843
      %1818 = vmatprep.subr.bf16.mxu0 %v852
      %1819 = vmatpush1.bf16.msra.mxu0 %v851
      %1820 = vmatprep.subr.bf16.mxu0 %v860
      %1821 = vmatpush1.bf16.msra.mxu0 %v859
      %1822 = vmatprep.subr.bf16.mxu0 %v868
      %1823 = vmatpush1.bf16.msra.mxu0 %v867
      %1824 = vmatprep.subr.bf16.mxu0 %v876
      %1825 = vmatpush1.bf16.msra.mxu0 %v875
      %1826 = vmatprep.subr.bf16.mxu0 %v884
      %1827 = vmatpush1.bf16.msra.mxu0 %v883
      %1828 = vmatprep.subr.bf16.mxu0 %v892
      %1829 = vmatpush1.bf16.msra.mxu0 %v891
      %1830 = vmatprep.subr.bf16.mxu0 %v900
      %1831 = vmatpush1.bf16.msra.mxu0 %v899
      %1832 = vmatprep.subr.bf16.mxu0 %v908
      %1833 = vmatpush1.bf16.msra.mxu0 %v907
      %1834 = vmatprep.subr.bf16.mxu0 %v916
      %1835 = vmatpush1.bf16.msra.mxu0 %v915
      %1836 = vmatprep.subr.bf16.mxu0 %v924
      %1837 = vmatpush1.bf16.msra.mxu0 %v923
      %1838 = vmatprep.subr.bf16.mxu0 %v932
      %1839 = vmatpush1.bf16.msra.mxu0 %v931
      %1840 = vmatprep.subr.bf16.mxu0 %v940
      %1841 = vmatpush1.bf16.msra.mxu0 %v939
      %1842 = vmatprep.mubr.bf16.mxu0 %v1720
      %1843 = vmatmul.mubr.bf16.gmra.mrb[0].mxu0 %v1719
      %v1844 = vpop.f32.mrb[0].mxu0
      %v1845 = vadd.f32 %v1741, %v1844
      %v1846 = vpop.f32.mrb[0].mxu0
      %v1847 = vadd.f32 %v1743, %v1846
      %v1848 = vpop.f32.mrb[0].mxu0
      %v1849 = vpop.f32.mrb[0].mxu0
      %1850 = vdwg.mxu0
      %1851 = vmatprep.subr.bf16.mxu0 %v822
      %1852 = vmatpush1.bf16.msra.mxu0 %v821
      %1853 = vmatprep.subr.bf16.mxu0 %v830
      %1854 = vmatpush1.bf16.msra.mxu0 %v829
      %1855 = vmatprep.subr.bf16.mxu0 %v838
      %1856 = vmatpush1.bf16.msra.mxu0 %v837
      %1857 = vmatprep.subr.bf16.mxu0 %v846
      %1858 = vmatpush1.bf16.msra.mxu0 %v845
      %1859 = vmatprep.subr.bf16.mxu0 %v854
      %1860 = vmatpush1.bf16.msra.mxu0 %v853
      %1861 = vmatprep.subr.bf16.mxu0 %v862
      %1862 = vmatpush1.bf16.msra.mxu0 %v861
      %1863 = vmatprep.subr.bf16.mxu0 %v870
      %1864 = vmatpush1.bf16.msra.mxu0 %v869
      %1865 = vmatprep.subr.bf16.mxu0 %v878
      %1866 = vmatpush1.bf16.msra.mxu0 %v877
      %1867 = vmatprep.subr.bf16.mxu0 %v886
      %1868 = vmatpush1.bf16.msra.mxu0 %v885
      %1869 = vmatprep.subr.bf16.mxu0 %v894
      %1870 = vmatpush1.bf16.msra.mxu0 %v893
      %1871 = vmatprep.subr.bf16.mxu0 %v902
      %1872 = vmatpush1.bf16.msra.mxu0 %v901
      %1873 = vmatprep.subr.bf16.mxu0 %v910
      %1874 = vmatpush1.bf16.msra.mxu0 %v909
      %1875 = vmatprep.subr.bf16.mxu0 %v918
      %1876 = vmatpush1.bf16.msra.mxu0 %v917
      %1877 = vmatprep.subr.bf16.mxu0 %v926
      %1878 = vmatpush1.bf16.msra.mxu0 %v925
      %1879 = vmatprep.subr.bf16.mxu0 %v934
      %1880 = vmatpush1.bf16.msra.mxu0 %v933
      %1881 = vmatprep.subr.bf16.mxu0 %v942
      %1882 = vmatpush1.bf16.msra.mxu0 %v941
      %1883 = vmatprep.mubr.bf16.mxu0 %v1720
      %1884 = vmatmul.mubr.bf16.gmra.mrb[0].mxu0 %v1719
      %v1885 = vpop.f32.mrb[0].mxu0
      %v1886 = vadd.f32 %v1751, %v1885
      %v1887 = vpop.f32.mrb[0].mxu0
      %v1888 = vadd.f32 %v1759, %v1887
      %v1889 = vpop.f32.mrb[0].mxu0
      %v1890 = vpop.f32.mrb[0].mxu0
      %1891 = vdwg.mxu0
      %1892 = vmatprep.subr.bf16.mxu0 %v824
      %1893 = vmatpush1.bf16.msra.mxu0 %v823
      %1894 = vmatprep.subr.bf16.mxu0 %v832
      %1895 = vmatpush1.bf16.msra.mxu0 %v831
      %1896 = vmatprep.subr.bf16.mxu0 %v840
      %1897 = vmatpush1.bf16.msra.mxu0 %v839
      %1898 = vmatprep.subr.bf16.mxu0 %v848
      %1899 = vmatpush1.bf16.msra.mxu0 %v847
      %1900 = vmatprep.subr.bf16.mxu0 %v856
      %1901 = vmatpush1.bf16.msra.mxu0 %v855
      %1902 = vmatprep.subr.bf16.mxu0 %v864
      %1903 = vmatpush1.bf16.msra.mxu0 %v863
      %1904 = vmatprep.subr.bf16.mxu0 %v872
      %1905 = vmatpush1.bf16.msra.mxu0 %v871
      %1906 = vmatprep.subr.bf16.mxu0 %v880
      %1907 = vmatpush1.bf16.msra.mxu0 %v879
      %1908 = vmatprep.subr.bf16.mxu0 %v888
      %1909 = vmatpush1.bf16.msra.mxu0 %v887
      %1910 = vmatprep.subr.bf16.mxu0 %v896
      %1911 = vmatpush1.bf16.msra.mxu0 %v895
      %1912 = vmatprep.subr.bf16.mxu0 %v904
      %1913 = vmatpush1.bf16.msra.mxu0 %v903
      %1914 = vmatprep.subr.bf16.mxu0 %v912
      %1915 = vmatpush1.bf16.msra.mxu0 %v911
      %1916 = vmatprep.subr.bf16.mxu0 %v920
      %1917 = vmatpush1.bf16.msra.mxu0 %v919
      %1918 = vmatprep.subr.bf16.mxu0 %v928
      %1919 = vmatpush1.bf16.msra.mxu0 %v927
      %1920 = vmatprep.subr.bf16.mxu0 %v936
      %1921 = vmatpush1.bf16.msra.mxu0 %v935
      %1922 = vmatprep.subr.bf16.mxu0 %v944
      %1923 = vmatpush1.bf16.msra.mxu0 %v943
      %1924 = vmatprep.mubr.bf16.mxu0 %v1720
      %1925 = vmatmul.mubr.bf16.gmra.mrb[0].mxu0 %v1719
      %v1926 = vpop.f32.mrb[0].mxu0
      %v1927 = vadd.f32 %v1758, %v1926
      %v1928 = vpop.f32.mrb[0].mxu0
      %v1929 = vadd.f32 %v1760, %v1928
      %v1930 = vpop.f32.mrb[0].mxu0
      %v1931 = vpop.f32.mrb[0].mxu0
      %1932 = vdwg.mxu0
      %v1933 = vadd.f32 %v1804, %v1285
      %v1934 = vadd.f32 %v1806, %v1289
      %v1935 = vadd.f32 %v1845, %v1293
      %v1936 = vadd.f32 %v1847, %v1297
      %v1937 = vadd.f32 %v1886, %v1301
      %v1938 = vadd.f32 %v1888, %v1305
      %v1939 = vadd.f32 %v1927, %v1309
      %v1940 = vadd.f32 %v1929, %v1313
      %v1941 = vxor.u32 %v1933, 2147483648
      %v1942 = vxor.u32 %v1934, 2147483648
      %v1943 = vxor.u32 %v1935, 2147483648
      %v1944 = vxor.u32 %v1936, 2147483648
      %v1945 = vxor.u32 %v1937, 2147483648
      %v1946 = vxor.u32 %v1938, 2147483648
      %v1947 = vmul.f32 %v1941, 1.442695
      %v1948 = vpow.pop %v1947
      %v1949 = vmul.f32 %v1942, 1.442695
      %v1950 = vpow.pop %v1949
      %v1951 = vmul.f32 %v1943, 1.442695
      %v1952 = vpow.pop %v1951
      %v1953 = vmul.f32 %v1944, 1.442695
      %v1954 = vpow.pop %v1953
      %v1955 = vmul.f32 %v1945, 1.442695
      %v1956 = vpow.pop %v1955
      %v1957 = vmul.f32 %v1946, 1.442695
      %v1958 = vpow.pop %v1957
      %v1959 = vadd.f32 %v1948, 1.0
      %v1960 = vadd.f32 %v1950, 1.0
      %v1961 = vadd.f32 %v1952, 1.0
      %v1962 = vadd.f32 %v1954, 1.0
      %v1963 = vadd.f32 %v1956, 1.0
      %v1964 = vadd.f32 %v1958, 1.0
      %v1965 = vrcp.pop %v1959
      %v1966 = vmul.f32 1.0, %v1965
      %v1967 = vrcp.pop %v1960
      %v1968 = vmul.f32 1.0, %v1967
      %v1969 = vrcp.pop %v1961
      %v1970 = vmul.f32 1.0, %v1969
      %v1971 = vrcp.pop %v1962
      %v1972 = vmul.f32 1.0, %v1971
      %v1973 = vrcp.pop %v1963
      %v1974 = vmul.f32 1.0, %v1973
      %v1975 = vrcp.pop %v1964
      %v1976 = vmul.f32 1.0, %v1975
      %v1977 = vtanh.pop %v1939
      %v1978 = vtanh.pop %v1940
      %v1979 = vmul.f32 %v1970, %v1717
      %v1980 = vmul.f32 %v1972, %v1718
      %v1981 = vmul.f32 %v1966, %v1977
      %v1982 = vmul.f32 %v1968, %v1978
      %v1983 = vadd.f32 %v1979, %v1981
      %v1984 = vadd.f32 %v1980, %v1982
      %v1985 = vtanh.pop %v1983
      %v1986 = vtanh.pop %v1984
      %v1987 = vmul.f32 %v1974, %v1985
      %v1988 = vmul.f32 %v1976, %v1986
      %v1989 = vpack.c.bf16 %v1987, %v1987
      %v1990 = vpack.c.bf16 %v1988, %v1988
      %v1993 = vcombine.low %v1989, %v1990
      %v1995 = vunpack.c.l.s4 1966171168
      %v1996 = vunpack.c.0.s8 %v1995
      %v1997 = vlaneseq
      %v1998 = vshrl.u32 %v1997, 7
      %v1999 = vsub.s32 %v1996, %v1998
      %v2000 = vrot.slane %v1993, %v1999
      %v2002 = vunpack.c.l.s4 1966171168
      %v2003 = vunpack.c.0.s8 %v2002
      %v2004 = vlaneseq
      %v2005 = vshrl.u32 %v2004, 7
      %v2006 = vsub.s32 %v2003, %v2005
      %v2007 = vrot.slane %v2000, %v2006
      %s2009 = scalar_lea.vmem %s275, 4
      %2010 = vst [vmem:[%s2009] sm:$0x3] %v2007
      %s2011 = sadd.s32 %s414, 2
      %p2012 = scmp.lt.s32.totalorder %s2011, 11
      %s2013 = scalar_select %p2012, 1, 0
      %v2014 = vstv %s2013
      %vm2015 = vcmp.eq.s32.totalorder %v2014, 1
      %v2016 = vsel %vm2015, %v1987, %v1715
      %v2017 = vsel %vm2015, %v1988, %v1716
      %v2018 = vsel %vm2015, %v1983, %v1717
      %v2019 = vsel %vm2015, %v1984, %v1718
      %v2020 = vpack.c.bf16 %v2016, %v2016
      %v2021 = vpack.c.bf16 %v2017, %v2017
      %s2022 = scalar_lea.vmem %s269, 24
      %v2023 = vld [vmem:[%s2022] sm:$0xff]
      %v2024 = vunpack.c.l.bf16 %v2023
      %v2025 = vunpack.c.h.bf16 %v2023
      %v2028 = vcombine.high %v2024, %v2024
      %v2030 = vunpack.c.l.s4 1983009808
      %v2031 = vunpack.c.0.s8 %v2030
      %v2032 = vlaneseq
      %v2033 = vshrl.u32 %v2032, 7
      %v2034 = vsub.s32 %v2031, %v2033
      %v2035 = vrot.slane %v2024, %v2034
      %v2037 = vunpack.c.l.s4 1983009808
      %v2038 = vunpack.c.0.s8 %v2037
      %v2039 = vlaneseq
      %v2040 = vshrl.u32 %v2039, 7
      %v2041 = vsub.s32 %v2038, %v2040
      %v2042 = vrot.slane %v2028, %v2041
      %v2043 = vcombine.high %v2035, %v2035
      %v2044 = vcombine.high %v2042, %v2042
      %v2045 = vcombine.high %v2025, %v2025
      %v2047 = vunpack.c.l.s4 1983009808
      %v2048 = vunpack.c.0.s8 %v2047
      %v2049 = vlaneseq
      %v2050 = vshrl.u32 %v2049, 7
      %v2051 = vsub.s32 %v2048, %v2050
      %v2052 = vrot.slane %v2025, %v2051
      %v2054 = vunpack.c.l.s4 1983009808
      %v2055 = vunpack.c.0.s8 %v2054
      %v2056 = vlaneseq
      %v2057 = vshrl.u32 %v2056, 7
      %v2058 = vsub.s32 %v2055, %v2057
      %v2059 = vrot.slane %v2045, %v2058
      %v2060 = vcombine.high %v2052, %v2052
      %v2061 = vcombine.high %v2059, %v2059
      %2070 = vmatprep.subr.bf16.mxu0 %v818
      %2071 = vmatpush1.bf16.msra.mxu0 %v817
      %2072 = vmatprep.subr.bf16.mxu0 %v826
      %2073 = vmatpush1.bf16.msra.mxu0 %v825
      %2074 = vmatprep.subr.bf16.mxu0 %v834
      %2075 = vmatpush1.bf16.msra.mxu0 %v833
      %2076 = vmatprep.subr.bf16.mxu0 %v842
      %2077 = vmatpush1.bf16.msra.mxu0 %v841
      %2078 = vmatprep.subr.bf16.mxu0 %v850
      %2079 = vmatpush1.bf16.msra.mxu0 %v849
      %2080 = vmatprep.subr.bf16.mxu0 %v858
      %2081 = vmatpush1.bf16.msra.mxu0 %v857
      %2082 = vmatprep.subr.bf16.mxu0 %v866
      %2083 = vmatpush1.bf16.msra.mxu0 %v865
      %2084 = vmatprep.subr.bf16.mxu0 %v874
      %2085 = vmatpush1.bf16.msra.mxu0 %v873
      %2086 = vmatprep.subr.bf16.mxu0 %v882
      %2087 = vmatpush1.bf16.msra.mxu0 %v881
      %2088 = vmatprep.subr.bf16.mxu0 %v890
      %2089 = vmatpush1.bf16.msra.mxu0 %v889
      %2090 = vmatprep.subr.bf16.mxu0 %v898
      %2091 = vmatpush1.bf16.msra.mxu0 %v897
      %2092 = vmatprep.subr.bf16.mxu0 %v906
      %2093 = vmatpush1.bf16.msra.mxu0 %v905
      %2094 = vmatprep.subr.bf16.mxu0 %v914
      %2095 = vmatpush1.bf16.msra.mxu0 %v913
      %2096 = vmatprep.subr.bf16.mxu0 %v922
      %2097 = vmatpush1.bf16.msra.mxu0 %v921
      %2098 = vmatprep.subr.bf16.mxu0 %v930
      %2099 = vmatpush1.bf16.msra.mxu0 %v929
      %2100 = vmatprep.subr.bf16.mxu0 %v938
      %2101 = vmatpush1.bf16.msra.mxu0 %v937
      %2102 = vmatprep.mubr.bf16.mxu0 %v2021
      %2103 = vmatmul.mubr.bf16.gmra.mrb[0].mxu0 %v2020
      %v2104 = vpop.f32.mrb[0].mxu0
      %v2105 = vadd.f32 %v2035, %v2104
      %v2106 = vpop.f32.mrb[0].mxu0
      %v2107 = vadd.f32 %v2043, %v2106
      %v2108 = vpop.f32.mrb[0].mxu0
      %v2109 = vpop.f32.mrb[0].mxu0
      %2110 = vdwg.mxu0
      %2111 = vmatprep.subr.bf16.mxu0 %v820
      %2112 = vmatpush1.bf16.msra.mxu0 %v819
      %2113 = vmatprep.subr.bf16.mxu0 %v828
      %2114 = vmatpush1.bf16.msra.mxu0 %v827
      %2115 = vmatprep.subr.bf16.mxu0 %v836
      %2116 = vmatpush1.bf16.msra.mxu0 %v835
      %2117 = vmatprep.subr.bf16.mxu0 %v844
      %2118 = vmatpush1.bf16.msra.mxu0 %v843
      %2119 = vmatprep.subr.bf16.mxu0 %v852
      %2120 = vmatpush1.bf16.msra.mxu0 %v851
      %2121 = vmatprep.subr.bf16.mxu0 %v860
      %2122 = vmatpush1.bf16.msra.mxu0 %v859
      %2123 = vmatprep.subr.bf16.mxu0 %v868
      %2124 = vmatpush1.bf16.msra.mxu0 %v867
      %2125 = vmatprep.subr.bf16.mxu0 %v876
      %2126 = vmatpush1.bf16.msra.mxu0 %v875
      %2127 = vmatprep.subr.bf16.mxu0 %v884
      %2128 = vmatpush1.bf16.msra.mxu0 %v883
      %2129 = vmatprep.subr.bf16.mxu0 %v892
      %2130 = vmatpush1.bf16.msra.mxu0 %v891
      %2131 = vmatprep.subr.bf16.mxu0 %v900
      %2132 = vmatpush1.bf16.msra.mxu0 %v899
      %2133 = vmatprep.subr.bf16.mxu0 %v908
      %2134 = vmatpush1.bf16.msra.mxu0 %v907
      %2135 = vmatprep.subr.bf16.mxu0 %v916
      %2136 = vmatpush1.bf16.msra.mxu0 %v915
      %2137 = vmatprep.subr.bf16.mxu0 %v924
      %2138 = vmatpush1.bf16.msra.mxu0 %v923
      %2139 = vmatprep.subr.bf16.mxu0 %v932
      %2140 = vmatpush1.bf16.msra.mxu0 %v931
      %2141 = vmatprep.subr.bf16.mxu0 %v940
      %2142 = vmatpush1.bf16.msra.mxu0 %v939
      %2143 = vmatprep.mubr.bf16.mxu0 %v2021
      %2144 = vmatmul.mubr.bf16.gmra.mrb[0].mxu0 %v2020
      %v2145 = vpop.f32.mrb[0].mxu0
      %v2146 = vadd.f32 %v2042, %v2145
      %v2147 = vpop.f32.mrb[0].mxu0
      %v2148 = vadd.f32 %v2044, %v2147
      %v2149 = vpop.f32.mrb[0].mxu0
      %v2150 = vpop.f32.mrb[0].mxu0
      %2151 = vdwg.mxu0
      %2152 = vmatprep.subr.bf16.mxu0 %v822
      %2153 = vmatpush1.bf16.msra.mxu0 %v821
      %2154 = vmatprep.subr.bf16.mxu0 %v830
      %2155 = vmatpush1.bf16.msra.mxu0 %v829
      %2156 = vmatprep.subr.bf16.mxu0 %v838
      %2157 = vmatpush1.bf16.msra.mxu0 %v837
      %2158 = vmatprep.subr.bf16.mxu0 %v846
      %2159 = vmatpush1.bf16.msra.mxu0 %v845
      %2160 = vmatprep.subr.bf16.mxu0 %v854
      %2161 = vmatpush1.bf16.msra.mxu0 %v853
      %2162 = vmatprep.subr.bf16.mxu0 %v862
      %2163 = vmatpush1.bf16.msra.mxu0 %v861
      %2164 = vmatprep.subr.bf16.mxu0 %v870
      %2165 = vmatpush1.bf16.msra.mxu0 %v869
      %2166 = vmatprep.subr.bf16.mxu0 %v878
      %2167 = vmatpush1.bf16.msra.mxu0 %v877
      %2168 = vmatprep.subr.bf16.mxu0 %v886
      %2169 = vmatpush1.bf16.msra.mxu0 %v885
      %2170 = vmatprep.subr.bf16.mxu0 %v894
      %2171 = vmatpush1.bf16.msra.mxu0 %v893
      %2172 = vmatprep.subr.bf16.mxu0 %v902
      %2173 = vmatpush1.bf16.msra.mxu0 %v901
      %2174 = vmatprep.subr.bf16.mxu0 %v910
      %2175 = vmatpush1.bf16.msra.mxu0 %v909
      %2176 = vmatprep.subr.bf16.mxu0 %v918
      %2177 = vmatpush1.bf16.msra.mxu0 %v917
      %2178 = vmatprep.subr.bf16.mxu0 %v926
      %2179 = vmatpush1.bf16.msra.mxu0 %v925
      %2180 = vmatprep.subr.bf16.mxu0 %v934
      %2181 = vmatpush1.bf16.msra.mxu0 %v933
      %2182 = vmatprep.subr.bf16.mxu0 %v942
      %2183 = vmatpush1.bf16.msra.mxu0 %v941
      %2184 = vmatprep.mubr.bf16.mxu0 %v2021
      %2185 = vmatmul.mubr.bf16.gmra.mrb[0].mxu0 %v2020
      %v2186 = vpop.f32.mrb[0].mxu0
      %v2187 = vadd.f32 %v2052, %v2186
      %v2188 = vpop.f32.mrb[0].mxu0
      %v2189 = vadd.f32 %v2060, %v2188
      %v2190 = vpop.f32.mrb[0].mxu0
      %v2191 = vpop.f32.mrb[0].mxu0
      %2192 = vdwg.mxu0
      %2193 = vmatprep.subr.bf16.mxu0 %v824
      %2194 = vmatpush1.bf16.msra.mxu0 %v823
      %2195 = vmatprep.subr.bf16.mxu0 %v832
      %2196 = vmatpush1.bf16.msra.mxu0 %v831
      %2197 = vmatprep.subr.bf16.mxu0 %v840
      %2198 = vmatpush1.bf16.msra.mxu0 %v839
      %2199 = vmatprep.subr.bf16.mxu0 %v848
      %2200 = vmatpush1.bf16.msra.mxu0 %v847
      %2201 = vmatprep.subr.bf16.mxu0 %v856
      %2202 = vmatpush1.bf16.msra.mxu0 %v855
      %2203 = vmatprep.subr.bf16.mxu0 %v864
      %2204 = vmatpush1.bf16.msra.mxu0 %v863
      %2205 = vmatprep.subr.bf16.mxu0 %v872
      %2206 = vmatpush1.bf16.msra.mxu0 %v871
      %2207 = vmatprep.subr.bf16.mxu0 %v880
      %2208 = vmatpush1.bf16.msra.mxu0 %v879
      %2209 = vmatprep.subr.bf16.mxu0 %v888
      %2210 = vmatpush1.bf16.msra.mxu0 %v887
      %2211 = vmatprep.subr.bf16.mxu0 %v896
      %2212 = vmatpush1.bf16.msra.mxu0 %v895
      %2213 = vmatprep.subr.bf16.mxu0 %v904
      %2214 = vmatpush1.bf16.msra.mxu0 %v903
      %2215 = vmatprep.subr.bf16.mxu0 %v912
      %2216 = vmatpush1.bf16.msra.mxu0 %v911
      %2217 = vmatprep.subr.bf16.mxu0 %v920
      %2218 = vmatpush1.bf16.msra.mxu0 %v919
      %2219 = vmatprep.subr.bf16.mxu0 %v928
      %2220 = vmatpush1.bf16.msra.mxu0 %v927
      %2221 = vmatprep.subr.bf16.mxu0 %v936
      %2222 = vmatpush1.bf16.msra.mxu0 %v935
      %2223 = vmatprep.subr.bf16.mxu0 %v944
      %2224 = vmatpush1.bf16.msra.mxu0 %v943
      %2225 = vmatprep.mubr.bf16.mxu0 %v2021
      %2226 = vmatmul.mubr.bf16.gmra.mrb[0].mxu0 %v2020
      %v2227 = vpop.f32.mrb[0].mxu0
      %v2228 = vadd.f32 %v2059, %v2227
      %v2229 = vpop.f32.mrb[0].mxu0
      %v2230 = vadd.f32 %v2061, %v2229
      %v2231 = vpop.f32.mrb[0].mxu0
      %v2232 = vpop.f32.mrb[0].mxu0
      %2233 = vdwg.mxu0
      %v2234 = vadd.f32 %v2105, %v1285
      %v2235 = vadd.f32 %v2107, %v1289
      %v2236 = vadd.f32 %v2146, %v1293
      %v2237 = vadd.f32 %v2148, %v1297
      %v2238 = vadd.f32 %v2187, %v1301
      %v2239 = vadd.f32 %v2189, %v1305
      %v2240 = vadd.f32 %v2228, %v1309
      %v2241 = vadd.f32 %v2230, %v1313
      %v2242 = vxor.u32 %v2234, 2147483648
      %v2243 = vxor.u32 %v2235, 2147483648
      %v2244 = vxor.u32 %v2236, 2147483648
      %v2245 = vxor.u32 %v2237, 2147483648
      %v2246 = vxor.u32 %v2238, 2147483648
      %v2247 = vxor.u32 %v2239, 2147483648
      %v2248 = vmul.f32 %v2242, 1.442695
      %v2249 = vpow.pop %v2248
      %v2250 = vmul.f32 %v2243, 1.442695
      %v2251 = vpow.pop %v2250
      %v2252 = vmul.f32 %v2244, 1.442695
      %v2253 = vpow.pop %v2252
      %v2254 = vmul.f32 %v2245, 1.442695
      %v2255 = vpow.pop %v2254
      %v2256 = vmul.f32 %v2246, 1.442695
      %v2257 = vpow.pop %v2256
      %v2258 = vmul.f32 %v2247, 1.442695
      %v2259 = vpow.pop %v2258
      %v2260 = vadd.f32 %v2249, 1.0
      %v2261 = vadd.f32 %v2251, 1.0
      %v2262 = vadd.f32 %v2253, 1.0
      %v2263 = vadd.f32 %v2255, 1.0
      %v2264 = vadd.f32 %v2257, 1.0
      %v2265 = vadd.f32 %v2259, 1.0
      %v2266 = vrcp.pop %v2260
      %v2267 = vmul.f32 1.0, %v2266
      %v2268 = vrcp.pop %v2261
      %v2269 = vmul.f32 1.0, %v2268
      %v2270 = vrcp.pop %v2262
      %v2271 = vmul.f32 1.0, %v2270
      %v2272 = vrcp.pop %v2263
      %v2273 = vmul.f32 1.0, %v2272
      %v2274 = vrcp.pop %v2264
      %v2275 = vmul.f32 1.0, %v2274
      %v2276 = vrcp.pop %v2265
      %v2277 = vmul.f32 1.0, %v2276
      %v2278 = vtanh.pop %v2240
      %v2279 = vtanh.pop %v2241
      %v2280 = vmul.f32 %v2271, %v2018
      %v2281 = vmul.f32 %v2273, %v2019
      %v2282 = vmul.f32 %v2267, %v2278
      %v2283 = vmul.f32 %v2269, %v2279
      %v2284 = vadd.f32 %v2280, %v2282
      %v2285 = vadd.f32 %v2281, %v2283
      %v2286 = vtanh.pop %v2284
      %v2287 = vtanh.pop %v2285
      %v2288 = vmul.f32 %v2275, %v2286
      %v2289 = vmul.f32 %v2277, %v2287
      %v2290 = vpack.c.bf16 %v2288, %v2288
      %v2291 = vpack.c.bf16 %v2289, %v2289
      %v2294 = vcombine.low %v2290, %v2291
      %v2296 = vunpack.c.l.s4 1966171168
      %v2297 = vunpack.c.0.s8 %v2296
      %v2298 = vlaneseq
      %v2299 = vshrl.u32 %v2298, 7
      %v2300 = vsub.s32 %v2297, %v2299
      %v2301 = vrot.slane %v2294, %v2300
      %v2303 = vunpack.c.l.s4 1966171168
      %v2304 = vunpack.c.0.s8 %v2303
      %v2305 = vlaneseq
      %v2306 = vshrl.u32 %v2305, 7
      %v2307 = vsub.s32 %v2304, %v2306
      %v2308 = vrot.slane %v2301, %v2307
      %s2310 = scalar_lea.vmem %s275, 6
      %2311 = vst [vmem:[%s2310] sm:$0x3] %v2308
      %s2312 = sadd.s32 %s414, 3
      %p2313 = scmp.lt.s32.totalorder %s2312, 11
      %s2314 = scalar_select %p2313, 1, 0
      %v2315 = vstv %s2314
      %vm2316 = vcmp.eq.s32.totalorder %v2315, 1
      %v2317 = vsel %vm2316, %v2288, %v2016
      %v2318 = vsel %vm2316, %v2289, %v2017
      %v2319 = vsel %vm2316, %v2284, %v2018
      %v2320 = vsel %vm2316, %v2285, %v2019
      %v2323 = vcombine.low %v2317, %v2318
      %v2325 = vunpack.c.l.s4 1983009808
      %v2326 = vunpack.c.0.s8 %v2325
      %v2327 = vlaneseq
      %v2328 = vshrl.u32 %v2327, 7
      %v2329 = vsub.s32 %v2326, %v2328
      %v2330 = vrot.slane %v2323, %v2329
      %2332 = vst [vmem:[%s6] sm:$0xf] %v2330
      %v2335 = vcombine.low %v2319, %v2320
      %v2337 = vunpack.c.l.s4 1983009808
      %v2338 = vunpack.c.0.s8 %v2337
      %v2339 = vlaneseq
      %v2340 = vshrl.u32 %v2339, 7
      %v2341 = vsub.s32 %v2338, %v2340
      %v2342 = vrot.slane %v2335, %v2341
      %2344 = vst [vmem:[%s7] sm:$0xf] %v2342
      %s2345 = smul.u32 4, %s19
      %p2346 = scmp.lt.s32.totalorder %s2345, 11
      %s2347 = scalar_select %p2346, %s2345, 11
      %s2348 = smul.addr %s2347, 2
      %s2349 = scalar_lea.vmem %s5, %s2348
      // Predicated region
      $region45: #{plugin_lstm_rnnt_pre.2} parent=39 // pred_check
        %p2350 = pneg %p147
      $region46: #{plugin_lstm_rnnt_pre.2} parent=39 // pred_check_branch
        %2352 = sbr.rel (%p2350) target = $region48
      $region47: #{plugin_lstm_rnnt_pre.2} parent=39 // pred_region
        %s2353 = smul.u32 4, %s19
      $region48: #{plugin_lstm_rnnt_pre.2} parent=39 // pred_fallthru
        _
      // Predicated region
      $region49: #{plugin_lstm_rnnt_pre.2} parent=39 // pred_check
        %p2354 = pneg %p168
      $region50: #{plugin_lstm_rnnt_pre.2} parent=39 // pred_check_branch
        %2356 = sbr.rel (%p2354) target = $region52
      $region51: #{plugin_lstm_rnnt_pre.2} parent=39 // pred_region
        _
      $region52: #{plugin_lstm_rnnt_pre.2} parent=39 // pred_fallthru
        _
      // Predicated region
      $region53: #{plugin_lstm_rnnt_pre.2} parent=39 // pred_check
        %p2357 = pneg %p189
      $region54: #{plugin_lstm_rnnt_pre.2} parent=39 // pred_check_branch
        %2359 = sbr.rel (%p2357) target = $region56
      $region55: #{plugin_lstm_rnnt_pre.2} parent=39 // pred_region
        _
      $region56: #{plugin_lstm_rnnt_pre.2} parent=39 // pred_fallthru
        _
      // Predicated region
      $region57: #{plugin_lstm_rnnt_pre.2} parent=39 // pred_check
        %p2360 = pneg %p168
      $region58: #{plugin_lstm_rnnt_pre.2} parent=39 // pred_check_branch
        %2362 = sbr.rel (%p2360) target = $region60
      $region59: #{plugin_lstm_rnnt_pre.2} parent=39 // pred_region
        _
      $region60: #{plugin_lstm_rnnt_pre.2} parent=39 // pred_fallthru
        _
      // Predicated region
      $region61: #{plugin_lstm_rnnt_pre.2} parent=39 // pred_check
        %p2363 = pneg %p189
      $region62: #{plugin_lstm_rnnt_pre.2} parent=39 // pred_check_branch
        %2365 = sbr.rel (%p2363) target = $region64
      $region63: #{plugin_lstm_rnnt_pre.2} parent=39 // pred_region
        _
      $region64: #{plugin_lstm_rnnt_pre.2} parent=39 // pred_fallthru
        _
    $region40: #{plugin_lstm_rnnt_pre.2} parent=5 // pred_fallthru
      _
    %p2366 = scmp.le.s32.totalorder 2, %s14
    // Predicated region
    $region65: #{plugin_lstm_rnnt_pre.2} parent=5 // pred_check
      %p2367 = pneg %p2366
    $region66: #{plugin_lstm_rnnt_pre.2} parent=5 // pred_check_branch
      %2369 = sbr.rel (%p2367) target = $region68
    $region67: #{plugin_lstm_rnnt_pre.2} parent=5 // pred_region
      %s2370 = ssub.s32 %s14, 2
      // Predicated region
      $region69: #{plugin_lstm_rnnt_pre.2} parent=67 // pred_check
        %p2371 = pneg %p153
      $region70: #{plugin_lstm_rnnt_pre.2} parent=67 // pred_check_branch
        %2373 = sbr.rel (%p2371) target = $region72
      $region71: #{plugin_lstm_rnnt_pre.2} parent=67 // pred_region
        %s2374 = smul.u32 4, %s20
        %p2375 = scmp.lt.s32.totalorder %s2374, 11
        %s2376 = scalar_select %p2375, %s2374, 11
        %s2377 = smul.addr %s2376, 2
        %s2378 = scalar_lea.vmem %s5, %s2377
      $region72: #{plugin_lstm_rnnt_pre.2} parent=67 // pred_fallthru
        _
    $region68: #{plugin_lstm_rnnt_pre.2} parent=5 // pred_fallthru
      _
  $region6: #{plugin_lstm_rnnt_pre.2} parent=0 // loop_footer
    %s18 = sadd.s32 1, %s14
  $region7: #{plugin_lstm_rnnt_pre.2} parent=0 // loop_footer_branch
    %13 = sbr.rel target = $region3
  $region8: #{plugin_lstm_rnnt_pre.2} parent=0 // loop_exit
    _

// kernel: plugin_lstm_rnnt_pre.3
$region0: #{plugin_lstm_rnnt_pre.3}
  #allocation0 [shape = 'u32[]', space=smem, size = 0x4, offset = 0x4, fixed_abs, tag = 'smem constant byte address 0x4 - core index']
  #allocation1 [shape = 'u32[144,128]{1,0:T(1,128)}', space=vmem, size = 0x12000, scoped, tag = 'internal scratch']
  %s0 = inlined_call_operand.vmem [shape: bf16[12,2,1024], index: 0, kind: input, shape index: {}]
  %s1 = inlined_call_operand.vmem [shape: f32[1,1024], index: 1, kind: input, shape index: {}]
  %s2 = inlined_call_operand.vmem [shape: f32[2,256], index: 2, kind: input, shape index: {}]
  %s3 = inlined_call_operand.vmem [shape: f32[2,256], index: 3, kind: input, shape index: {}]
  %s4 = inlined_call_operand.vmem [shape: bf16[256,1024], index: 4, kind: input, shape index: {}]
  %s5 = inlined_call_operand.vmem [shape: f32[12,2,256], index: 5, kind: output, shape index: {0}]
  %s6 = inlined_call_operand.vmem [shape: f32[2,256], index: 6, kind: output, shape index: {1}]
  %s7 = inlined_call_operand.vmem [shape: f32[2,256], index: 7, kind: output, shape index: {2}]
  %8 = xla_tuple %s5, %s6, %s7
  %s9 = sld [smem:[#allocation0]]
  $region73: #{plugin_lstm_rnnt_pre.3} parent=0
    _
  %s11 = ssub.s32 1, %s9
  %s12 = scalar_select 0, %s11, %s9
  loop: start=0, step=1, limit=5
  $region2: #{plugin_lstm_rnnt_pre.3} parent=0 // loop_pre_header
    _
  $region3: #{plugin_lstm_rnnt_pre.3} parent=0 // loop_header
    %s14 = sphi 0, %s18
    %p15 = scmp.ge.s32.totalorder %s14, 5
    %s24 = sphi 0, %s26
    %s27 = sphi 0, %s24
    %s28 = sphi 0, %s27
    %s44 = sphi 0, %s28
    %s48 = sphi 0, %s48
    %s50 = sphi 0, %s48
    %s51 = sphi 0, %s50
    %s65 = sphi 0, %s51
    %s69 = sphi 0, %s69
    %s71 = sphi 0, %s69
    %s72 = sphi 0, %s71
    %s86 = sphi 0, %s72
    %s90 = sphi 0, %s90
    %s92 = sphi 0, %s90
    %s93 = sphi 0, %s92
    %s107 = sphi 0, %s93
    %s111 = sphi 0, %s111
    %s113 = sphi 0, %s111
    %s114 = sphi 0, %s113
    %s128 = sphi 0, %s114
    %s134 = sphi 0, %s136
    %s137 = sphi 0, %s134
    %s138 = sphi 0, %s137
    %s154 = sphi 0, %s138
    %s158 = sphi 0, %s158
    %s160 = sphi 0, %s158
    %s161 = sphi 0, %s160
    %s175 = sphi 0, %s161
    %s179 = sphi 0, %s179
    %s181 = sphi 0, %s179
    %s182 = sphi 0, %s181
    %s196 = sphi 0, %s182
  $region4: #{plugin_lstm_rnnt_pre.3} parent=0 // loop_header_branch
    %17 = sbr.rel (%p15) target = $region8
  $region5: #{plugin_lstm_rnnt_pre.3} parent=0 // loop_body
    %s19 = ssub.s32 %s14, 1
    %s20 = ssub.s32 %s14, 2
    %s21 = sadd.s32 %s14, 1
    %s22 = ssub.s32 %s14, %s21
    %p23 = scmp.eq.s32.totalorder %s22, 0
    %s25 = sadd.s32 %s24, 1
    %s26 = scalar_select %p23, %s24, %s25
    %p29 = pneg %p23
    %p30 = scmp.eq.s32.totalorder %s14, 2
    %p31 = por %p29, %p30
    %p32 = scmp.ne.s32.totalorder %s24, %s27
    %p33 = scmp.eq.s32.totalorder %s14, 0
    %p34 = por %p32, %p33
    %p35 = scmp.ne.s32.totalorder %s24, %s27
    %p36 = scmp.eq.s32.totalorder %s19, 2
    %p37 = por %p35, %p36
    %p38 = scmp.ne.s32.totalorder %s27, %s28
    %p39 = scmp.eq.s32.totalorder %s19, 0
    %p40 = por %p38, %p39
    %p41 = scmp.ne.s32.totalorder %s27, %s28
    %p42 = scmp.eq.s32.totalorder %s20, 2
    %p43 = por %p41, %p42
    %p45 = scmp.ne.s32.totalorder %s28, %s44
    %p46 = scmp.eq.s32.totalorder %s20, 0
    %p47 = por %p45, %p46
    %s49 = sadd.s32 %s48, 1
    %p52 = scmp.eq.s32.totalorder %s14, 2
    %p53 = scmp.ne.s32.totalorder %s48, %s50
    %p54 = scmp.eq.s32.totalorder %s14, 0
    %p55 = por %p53, %p54
    %p56 = scmp.ne.s32.totalorder %s48, %s50
    %p57 = scmp.eq.s32.totalorder %s19, 2
    %p58 = por %p56, %p57
    %p59 = scmp.ne.s32.totalorder %s50, %s51
    %p60 = scmp.eq.s32.totalorder %s19, 0
    %p61 = por %p59, %p60
    %p62 = scmp.ne.s32.totalorder %s50, %s51
    %p63 = scmp.eq.s32.totalorder %s20, 2
    %p64 = por %p62, %p63
    %p66 = scmp.ne.s32.totalorder %s51, %s65
    %p67 = scmp.eq.s32.totalorder %s20, 0
    %p68 = por %p66, %p67
    %s70 = sadd.s32 %s69, 1
    %p73 = scmp.eq.s32.totalorder %s14, 2
    %p74 = scmp.ne.s32.totalorder %s69, %s71
    %p75 = scmp.eq.s32.totalorder %s14, 0
    %p76 = por %p74, %p75
    %p77 = scmp.ne.s32.totalorder %s69, %s71
    %p78 = scmp.eq.s32.totalorder %s19, 2
    %p79 = por %p77, %p78
    %p80 = scmp.ne.s32.totalorder %s71, %s72
    %p81 = scmp.eq.s32.totalorder %s19, 0
    %p82 = por %p80, %p81
    %p83 = scmp.ne.s32.totalorder %s71, %s72
    %p84 = scmp.eq.s32.totalorder %s20, 2
    %p85 = por %p83, %p84
    %p87 = scmp.ne.s32.totalorder %s72, %s86
    %p88 = scmp.eq.s32.totalorder %s20, 0
    %p89 = por %p87, %p88
    %s91 = sadd.s32 %s90, 1
    %p94 = scmp.eq.s32.totalorder %s14, 2
    %p95 = scmp.ne.s32.totalorder %s90, %s92
    %p96 = scmp.eq.s32.totalorder %s14, 0
    %p97 = por %p95, %p96
    %p98 = scmp.ne.s32.totalorder %s90, %s92
    %p99 = scmp.eq.s32.totalorder %s19, 2
    %p100 = por %p98, %p99
    %p101 = scmp.ne.s32.totalorder %s92, %s93
    %p102 = scmp.eq.s32.totalorder %s19, 0
    %p103 = por %p101, %p102
    %p104 = scmp.ne.s32.totalorder %s92, %s93
    %p105 = scmp.eq.s32.totalorder %s20, 2
    %p106 = por %p104, %p105
    %p108 = scmp.ne.s32.totalorder %s93, %s107
    %p109 = scmp.eq.s32.totalorder %s20, 0
    %p110 = por %p108, %p109
    %s112 = sadd.s32 %s111, 1
    %p115 = scmp.eq.s32.totalorder %s14, 2
    %p116 = scmp.ne.s32.totalorder %s111, %s113
    %p117 = scmp.eq.s32.totalorder %s14, 0
    %p118 = por %p116, %p117
    %p119 = scmp.ne.s32.totalorder %s111, %s113
    %p120 = scmp.eq.s32.totalorder %s19, 2
    %p121 = por %p119, %p120
    %p122 = scmp.ne.s32.totalorder %s113, %s114
    %p123 = scmp.eq.s32.totalorder %s19, 0
    %p124 = por %p122, %p123
    %p125 = scmp.ne.s32.totalorder %s113, %s114
    %p126 = scmp.eq.s32.totalorder %s20, 2
    %p127 = por %p125, %p126
    %p129 = scmp.ne.s32.totalorder %s114, %s128
    %p130 = scmp.eq.s32.totalorder %s20, 0
    %p131 = por %p129, %p130
    %s132 = ssub.s32 %s14, %s21
    %p133 = scmp.eq.s32.totalorder %s132, 0
    %s135 = sadd.s32 %s134, 1
    %s136 = scalar_select %p133, %s134, %s135
    %p139 = pneg %p133
    %p140 = scmp.eq.s32.totalorder %s14, 2
    %p141 = por %p139, %p140
    %p142 = scmp.ne.s32.totalorder %s134, %s137
    %p143 = scmp.eq.s32.totalorder %s14, 0
    %p144 = por %p142, %p143
    %p145 = scmp.ne.s32.totalorder %s134, %s137
    %p146 = scmp.eq.s32.totalorder %s19, 2
    %p147 = por %p145, %p146
    %p148 = scmp.ne.s32.totalorder %s137, %s138
    %p149 = scmp.eq.s32.totalorder %s19, 0
    %p150 = por %p148, %p149
    %p151 = scmp.ne.s32.totalorder %s137, %s138
    %p152 = scmp.eq.s32.totalorder %s20, 2
    %p153 = por %p151, %p152
    %p155 = scmp.ne.s32.totalorder %s138, %s154
    %p156 = scmp.eq.s32.totalorder %s20, 0
    %p157 = por %p155, %p156
    %s159 = sadd.s32 %s158, 1
    %p162 = scmp.eq.s32.totalorder %s14, 2
    %p163 = scmp.ne.s32.totalorder %s158, %s160
    %p164 = scmp.eq.s32.totalorder %s14, 0
    %p165 = por %p163, %p164
    %p166 = scmp.ne.s32.totalorder %s158, %s160
    %p167 = scmp.eq.s32.totalorder %s19, 2
    %p168 = por %p166, %p167
    %p169 = scmp.ne.s32.totalorder %s160, %s161
    %p170 = scmp.eq.s32.totalorder %s19, 0
    %p171 = por %p169, %p170
    %p172 = scmp.ne.s32.totalorder %s160, %s161
    %p173 = scmp.eq.s32.totalorder %s20, 2
    %p174 = por %p172, %p173
    %p176 = scmp.ne.s32.totalorder %s161, %s175
    %p177 = scmp.eq.s32.totalorder %s20, 0
    %p178 = por %p176, %p177
    %s180 = sadd.s32 %s179, 1
    %p183 = scmp.eq.s32.totalorder %s14, 2
    %p184 = scmp.ne.s32.totalorder %s179, %s181
    %p185 = scmp.eq.s32.totalorder %s14, 0
    %p186 = por %p184, %p185
    %p187 = scmp.ne.s32.totalorder %s179, %s181
    %p188 = scmp.eq.s32.totalorder %s19, 2
    %p189 = por %p187, %p188
    %p190 = scmp.ne.s32.totalorder %s181, %s182
    %p191 = scmp.eq.s32.totalorder %s19, 0
    %p192 = por %p190, %p191
    %p193 = scmp.ne.s32.totalorder %s181, %s182
    %p194 = scmp.eq.s32.totalorder %s20, 2
    %p195 = por %p193, %p194
    %p197 = scmp.ne.s32.totalorder %s182, %s196
    %p198 = scmp.eq.s32.totalorder %s20, 0
    %p199 = por %p197, %p198
    %p200 = scmp.le.s32.totalorder 1, %s14
    %p201 = scmp.lt.s32.totalorder %s14, 4
    %p202 = pnand %p200, %p201
    %p203 = pneg %p202
    // Predicated region
    $region9: #{plugin_lstm_rnnt_pre.3} parent=5 // pred_check
      _
    $region10: #{plugin_lstm_rnnt_pre.3} parent=5 // pred_check_branch
      %205 = sbr.rel (%p202) target = $region12
    $region11: #{plugin_lstm_rnnt_pre.3} parent=5 // pred_region
      %s206 = ssub.s32 %s14, 1
      // Predicated region
      $region13: #{plugin_lstm_rnnt_pre.3} parent=11 // pred_check
        %p207 = pneg %p61
      $region14: #{plugin_lstm_rnnt_pre.3} parent=11 // pred_check_branch
        %209 = sbr.rel (%p207) target = $region16
      $region15: #{plugin_lstm_rnnt_pre.3} parent=11 // pred_region
        _
      $region16: #{plugin_lstm_rnnt_pre.3} parent=11 // pred_fallthru
        _
      // Predicated region
      $region17: #{plugin_lstm_rnnt_pre.3} parent=11 // pred_check
        %p210 = pneg %p82
      $region18: #{plugin_lstm_rnnt_pre.3} parent=11 // pred_check_branch
        %212 = sbr.rel (%p210) target = $region20
      $region19: #{plugin_lstm_rnnt_pre.3} parent=11 // pred_region
        _
      $region20: #{plugin_lstm_rnnt_pre.3} parent=11 // pred_fallthru
        _
      // Predicated region
      $region21: #{plugin_lstm_rnnt_pre.3} parent=11 // pred_check
        %p213 = pneg %p103
      $region22: #{plugin_lstm_rnnt_pre.3} parent=11 // pred_check_branch
        %215 = sbr.rel (%p213) target = $region24
      $region23: #{plugin_lstm_rnnt_pre.3} parent=11 // pred_region
        _
      $region24: #{plugin_lstm_rnnt_pre.3} parent=11 // pred_fallthru
        _
      // Predicated region
      $region25: #{plugin_lstm_rnnt_pre.3} parent=11 // pred_check
        %p216 = pneg %p124
      $region26: #{plugin_lstm_rnnt_pre.3} parent=11 // pred_check_branch
        %218 = sbr.rel (%p216) target = $region28
      $region27: #{plugin_lstm_rnnt_pre.3} parent=11 // pred_region
        _
      $region28: #{plugin_lstm_rnnt_pre.3} parent=11 // pred_fallthru
        _
    $region12: #{plugin_lstm_rnnt_pre.3} parent=5 // pred_fallthru
      _
    %p219 = scmp.lt.s32.totalorder %s14, 3
    // Predicated region
    $region29: #{plugin_lstm_rnnt_pre.3} parent=5 // pred_check
      %p220 = pneg %p219
    $region30: #{plugin_lstm_rnnt_pre.3} parent=5 // pred_check_branch
      %222 = sbr.rel (%p220) target = $region32
    $region31: #{plugin_lstm_rnnt_pre.3} parent=5 // pred_region
      // Predicated region
      $region33: #{plugin_lstm_rnnt_pre.3} parent=31 // pred_check
        %p223 = pneg %p34
      $region34: #{plugin_lstm_rnnt_pre.3} parent=31 // pred_check_branch
        %225 = sbr.rel (%p223) target = $region36
      $region35: #{plugin_lstm_rnnt_pre.3} parent=31 // pred_region
        %s226 = smul.u32 4, %s14
        %p227 = scmp.lt.s32.totalorder %s226, 11
        %s228 = scalar_select %p227, %s226, 11
        %s229 = smul.addr %s228, 8
        %s230 = scalar_lea.vmem %s0, %s229
        %s231 = smul.u32 4, %s14
      $region36: #{plugin_lstm_rnnt_pre.3} parent=31 // pred_fallthru
        _
    $region32: #{plugin_lstm_rnnt_pre.3} parent=5 // pred_fallthru
      _
    %p232 = scmp.le.s32.totalorder 1, %s14
    %p233 = scmp.lt.s32.totalorder %s14, 4
    %p234 = pnand %p232, %p233
    %p235 = pneg %p234
    // Predicated region
    $region37: #{plugin_lstm_rnnt_pre.3} parent=5 // pred_check
      _
    $region38: #{plugin_lstm_rnnt_pre.3} parent=5 // pred_check_branch
      %237 = sbr.rel (%p234) target = $region40
    $region39: #{plugin_lstm_rnnt_pre.3} parent=5 // pred_region
      %s238 = ssub.s32 %s14, 1
      %s239 = smul.u32 4, %s19
      %p240 = scmp.lt.s32.totalorder %s239, 11
      %s241 = scalar_select %p240, %s239, 11
      %s242 = smul.addr %s241, 8
      %s243 = scalar_lea.vmem %s0, %s242
      %p244 = pneg %p40
      %p245 = pneg %p37
      %p246 = pneg %p61
      %p247 = pneg %p58
      %p248 = pneg %p82
      %p249 = pneg %p79
      %p250 = pneg %p103
      %p251 = pneg %p100
      %p252 = pneg %p124
      %p253 = pneg %p121
      %p254 = pneg %p150
      %p255 = pneg %p147
      %s256 = smul.u32 4, %s19
      %p257 = scmp.lt.s32.totalorder %s256, 11
      %s258 = scalar_select %p257, %s256, 11
      %s259 = smul.addr %s258, 2
      %s260 = smul.addr %s259, 2
      %s261 = scalar_lea.vmem %s5, %s260
      %p262 = pneg %p171
      %p263 = pneg %p168
      %p264 = pneg %p192
      %p265 = pneg %p189
      %s266 = smul.u32 4, %s19
      %p267 = scmp.lt.s32.totalorder %s266, 11
      %s268 = scalar_select %p267, %s266, 11
      %s269 = smul.addr %s268, 8
      %s270 = scalar_lea.vmem %s0, %s269
      %s271 = smul.u32 4, %s19
      %s272 = smul.u32 4, %s19
      %p273 = scmp.lt.s32.totalorder %s272, 11
      %s274 = scalar_select %p273, %s272, 11
      %s275 = smul.addr %s274, 2
      %s276 = smul.addr %s275, 2
      %s277 = scalar_lea.vmem %s5, %s276
      %s278 = smul.u32 4, %s19
      %p279 = scmp.eq.s32.totalorder %s19, 0
      // Predicated region
      $region41: #{plugin_lstm_rnnt_pre.3} parent=39 // pred_check
        %p280 = pneg %p279
      $region42: #{plugin_lstm_rnnt_pre.3} parent=39 // pred_check_branch
        %282 = sbr.rel (%p280) target = $region44
      $region43: #{plugin_lstm_rnnt_pre.3} parent=39 // pred_region
        %v283 = vld [vmem:[%s2] sm:$0xf]
        %284 = vst [vmem:[%s6] sm:$0xf] %v283
        %v285 = vld [vmem:[%s3] sm:$0xf]
        %286 = vst [vmem:[%s7] sm:$0xf] %v285
      $region44: #{plugin_lstm_rnnt_pre.3} parent=39 // pred_fallthru
        _
      %v287 = vld [vmem:[%s4] sm:$0xff]
      %v288 = vld [vmem:[%s4 + $0x8] sm:$0xff]
      %v289 = vld [vmem:[%s4 + $0x10] sm:$0xff]
      %v290 = vld [vmem:[%s4 + $0x18] sm:$0xff]
      %v291 = vld [vmem:[%s4 + $0x20] sm:$0xff]
      %v292 = vld [vmem:[%s4 + $0x28] sm:$0xff]
      %v293 = vld [vmem:[%s4 + $0x30] sm:$0xff]
      %v294 = vld [vmem:[%s4 + $0x38] sm:$0xff]
      %v295 = vld [vmem:[%s4 + $0x40] sm:$0xff]
      %v296 = vld [vmem:[%s4 + $0x48] sm:$0xff]
      %v297 = vld [vmem:[%s4 + $0x50] sm:$0xff]
      %v298 = vld [vmem:[%s4 + $0x58] sm:$0xff]
      %v299 = vld [vmem:[%s4 + $0x60] sm:$0xff]
      %v300 = vld [vmem:[%s4 + $0x68] sm:$0xff]
      %v301 = vld [vmem:[%s4 + $0x70] sm:$0xff]
      %v302 = vld [vmem:[%s4 + $0x78] sm:$0xff]
      %v303 = vld [vmem:[%s4 + $0x80] sm:$0xff]
      %v304 = vld [vmem:[%s4 + $0x88] sm:$0xff]
      %v305 = vld [vmem:[%s4 + $0x90] sm:$0xff]
      %v306 = vld [vmem:[%s4 + $0x98] sm:$0xff]
      %v307 = vld [vmem:[%s4 + $0xa0] sm:$0xff]
      %v308 = vld [vmem:[%s4 + $0xa8] sm:$0xff]
      %v309 = vld [vmem:[%s4 + $0xb0] sm:$0xff]
      %v310 = vld [vmem:[%s4 + $0xb8] sm:$0xff]
      %v311 = vld [vmem:[%s4 + $0xc0] sm:$0xff]
      %v312 = vld [vmem:[%s4 + $0xc8] sm:$0xff]
      %v313 = vld [vmem:[%s4 + $0xd0] sm:$0xff]
      %v314 = vld [vmem:[%s4 + $0xd8] sm:$0xff]
      %v315 = vld [vmem:[%s4 + $0xe0] sm:$0xff]
      %v316 = vld [vmem:[%s4 + $0xe8] sm:$0xff]
      %v317 = vld [vmem:[%s4 + $0xf0] sm:$0xff]
      %v318 = vld [vmem:[%s4 + $0xf8] sm:$0xff]
      %v319 = vld [vmem:[%s4 + $0x100] sm:$0xff]
      %v320 = vld [vmem:[%s4 + $0x108] sm:$0xff]
      %v321 = vld [vmem:[%s4 + $0x110] sm:$0xff]
      %v322 = vld [vmem:[%s4 + $0x118] sm:$0xff]
      %v323 = vld [vmem:[%s4 + $0x120] sm:$0xff]
      %v324 = vld [vmem:[%s4 + $0x128] sm:$0xff]
      %v325 = vld [vmem:[%s4 + $0x130] sm:$0xff]
      %v326 = vld [vmem:[%s4 + $0x138] sm:$0xff]
      %v327 = vld [vmem:[%s4 + $0x140] sm:$0xff]
      %v328 = vld [vmem:[%s4 + $0x148] sm:$0xff]
      %v329 = vld [vmem:[%s4 + $0x150] sm:$0xff]
      %v330 = vld [vmem:[%s4 + $0x158] sm:$0xff]
      %v331 = vld [vmem:[%s4 + $0x160] sm:$0xff]
      %v332 = vld [vmem:[%s4 + $0x168] sm:$0xff]
      %v333 = vld [vmem:[%s4 + $0x170] sm:$0xff]
      %v334 = vld [vmem:[%s4 + $0x178] sm:$0xff]
      %v335 = vld [vmem:[%s4 + $0x180] sm:$0xff]
      %v336 = vld [vmem:[%s4 + $0x188] sm:$0xff]
      %v337 = vld [vmem:[%s4 + $0x190] sm:$0xff]
      %v338 = vld [vmem:[%s4 + $0x198] sm:$0xff]
      %v339 = vld [vmem:[%s4 + $0x1a0] sm:$0xff]
      %v340 = vld [vmem:[%s4 + $0x1a8] sm:$0xff]
      %v341 = vld [vmem:[%s4 + $0x1b0] sm:$0xff]
      %v342 = vld [vmem:[%s4 + $0x1b8] sm:$0xff]
      %v343 = vld [vmem:[%s4 + $0x1c0] sm:$0xff]
      %v344 = vld [vmem:[%s4 + $0x1c8] sm:$0xff]
      %v345 = vld [vmem:[%s4 + $0x1d0] sm:$0xff]
      %v346 = vld [vmem:[%s4 + $0x1d8] sm:$0xff]
      %v347 = vld [vmem:[%s4 + $0x1e0] sm:$0xff]
      %v348 = vld [vmem:[%s4 + $0x1e8] sm:$0xff]
      %v349 = vld [vmem:[%s4 + $0x1f0] sm:$0xff]
      %v350 = vld [vmem:[%s4 + $0x1f8] sm:$0xff]
      %v351 = vld [vmem:[%s4 + $0x200] sm:$0xff]
      %v352 = vld [vmem:[%s4 + $0x208] sm:$0xff]
      %v353 = vld [vmem:[%s4 + $0x210] sm:$0xff]
      %v354 = vld [vmem:[%s4 + $0x218] sm:$0xff]
      %v355 = vld [vmem:[%s4 + $0x220] sm:$0xff]
      %v356 = vld [vmem:[%s4 + $0x228] sm:$0xff]
      %v357 = vld [vmem:[%s4 + $0x230] sm:$0xff]
      %v358 = vld [vmem:[%s4 + $0x238] sm:$0xff]
      %v359 = vld [vmem:[%s4 + $0x240] sm:$0xff]
      %v360 = vld [vmem:[%s4 + $0x248] sm:$0xff]
      %v361 = vld [vmem:[%s4 + $0x250] sm:$0xff]
      %v362 = vld [vmem:[%s4 + $0x258] sm:$0xff]
      %v363 = vld [vmem:[%s4 + $0x260] sm:$0xff]
      %v364 = vld [vmem:[%s4 + $0x268] sm:$0xff]
      %v365 = vld [vmem:[%s4 + $0x270] sm:$0xff]
      %v366 = vld [vmem:[%s4 + $0x278] sm:$0xff]
      %v367 = vld [vmem:[%s4 + $0x280] sm:$0xff]
      %v368 = vld [vmem:[%s4 + $0x288] sm:$0xff]
      %v369 = vld [vmem:[%s4 + $0x290] sm:$0xff]
      %v370 = vld [vmem:[%s4 + $0x298] sm:$0xff]
      %v371 = vld [vmem:[%s4 + $0x2a0] sm:$0xff]
      %v372 = vld [vmem:[%s4 + $0x2a8] sm:$0xff]
      %v373 = vld [vmem:[%s4 + $0x2b0] sm:$0xff]
      %v374 = vld [vmem:[%s4 + $0x2b8] sm:$0xff]
      %v375 = vld [vmem:[%s4 + $0x2c0] sm:$0xff]
      %v376 = vld [vmem:[%s4 + $0x2c8] sm:$0xff]
      %v377 = vld [vmem:[%s4 + $0x2d0] sm:$0xff]
      %v378 = vld [vmem:[%s4 + $0x2d8] sm:$0xff]
      %v379 = vld [vmem:[%s4 + $0x2e0] sm:$0xff]
      %v380 = vld [vmem:[%s4 + $0x2e8] sm:$0xff]
      %v381 = vld [vmem:[%s4 + $0x2f0] sm:$0xff]
      %v382 = vld [vmem:[%s4 + $0x2f8] sm:$0xff]
      %v383 = vld [vmem:[%s4 + $0x300] sm:$0xff]
      %v384 = vld [vmem:[%s4 + $0x308] sm:$0xff]
      %v385 = vld [vmem:[%s4 + $0x310] sm:$0xff]
      %v386 = vld [vmem:[%s4 + $0x318] sm:$0xff]
      %v387 = vld [vmem:[%s4 + $0x320] sm:$0xff]
      %v388 = vld [vmem:[%s4 + $0x328] sm:$0xff]
      %v389 = vld [vmem:[%s4 + $0x330] sm:$0xff]
      %v390 = vld [vmem:[%s4 + $0x338] sm:$0xff]
      %v391 = vld [vmem:[%s4 + $0x340] sm:$0xff]
      %v392 = vld [vmem:[%s4 + $0x348] sm:$0xff]
      %v393 = vld [vmem:[%s4 + $0x350] sm:$0xff]
      %v394 = vld [vmem:[%s4 + $0x358] sm:$0xff]
      %v395 = vld [vmem:[%s4 + $0x360] sm:$0xff]
      %v396 = vld [vmem:[%s4 + $0x368] sm:$0xff]
      %v397 = vld [vmem:[%s4 + $0x370] sm:$0xff]
      %v398 = vld [vmem:[%s4 + $0x378] sm:$0xff]
      %v399 = vld [vmem:[%s4 + $0x380] sm:$0xff]
      %v400 = vld [vmem:[%s4 + $0x388] sm:$0xff]
      %v401 = vld [vmem:[%s4 + $0x390] sm:$0xff]
      %v402 = vld [vmem:[%s4 + $0x398] sm:$0xff]
      %v403 = vld [vmem:[%s4 + $0x3a0] sm:$0xff]
      %v404 = vld [vmem:[%s4 + $0x3a8] sm:$0xff]
      %v405 = vld [vmem:[%s4 + $0x3b0] sm:$0xff]
      %v406 = vld [vmem:[%s4 + $0x3b8] sm:$0xff]
      %v407 = vld [vmem:[%s4 + $0x3c0] sm:$0xff]
      %v408 = vld [vmem:[%s4 + $0x3c8] sm:$0xff]
      %v409 = vld [vmem:[%s4 + $0x3d0] sm:$0xff]
      %v410 = vld [vmem:[%s4 + $0x3d8] sm:$0xff]
      %v411 = vld [vmem:[%s4 + $0x3e0] sm:$0xff]
      %v412 = vld [vmem:[%s4 + $0x3e8] sm:$0xff]
      %v413 = vld [vmem:[%s4 + $0x3f0] sm:$0xff]
      %v414 = vld [vmem:[%s4 + $0x3f8] sm:$0xff]
      %v415 = vld [vmem:[%s1] sm:$0xff]
      %s416 = smul.u32 %s19, 4
      %v417 = vld [vmem:[%s6] sm:$0xf]
      %v418 = vld [vmem:[%s7] sm:$0xf]
      %v421 = vunpack.c.l.s4 1983009808
      %v422 = vunpack.c.0.s8 %v421
      %v423 = vlaneseq
      %v424 = vshrl.u32 %v423, 7
      %v425 = vsub.s32 %v422, %v424
      %v426 = vrot.slane %v417, %v425
      %v427 = vcombine.high %v426, %v426
      %v430 = vpack.c.bf16 %v426, %v426
      %v431 = vpack.c.bf16 %v427, %v427
      %v432 = vld [vmem:[%s270] sm:$0xff]
      %v433 = vunpack.c.l.bf16 %v432
      %v434 = vunpack.c.h.bf16 %v432
      %v563 = vunpack.c.l.b16 %v287
      %v564 = vunpack.c.h.b16 %v287
      %v565 = vunpack.c.l.b16 %v288
      %v566 = vunpack.c.h.b16 %v288
      %v567 = vunpack.c.l.b16 %v289
      %v568 = vunpack.c.h.b16 %v289
      %v569 = vunpack.c.l.b16 %v290
      %v570 = vunpack.c.h.b16 %v290
      %v571 = vunpack.c.l.b16 %v291
      %v572 = vunpack.c.h.b16 %v291
      %v573 = vunpack.c.l.b16 %v292
      %v574 = vunpack.c.h.b16 %v292
      %v575 = vunpack.c.l.b16 %v293
      %v576 = vunpack.c.h.b16 %v293
      %v577 = vunpack.c.l.b16 %v294
      %v578 = vunpack.c.h.b16 %v294
      %v579 = vunpack.c.l.b16 %v295
      %v580 = vunpack.c.h.b16 %v295
      %v581 = vunpack.c.l.b16 %v296
      %v582 = vunpack.c.h.b16 %v296
      %v583 = vunpack.c.l.b16 %v297
      %v584 = vunpack.c.h.b16 %v297
      %v585 = vunpack.c.l.b16 %v298
      %v586 = vunpack.c.h.b16 %v298
      %v587 = vunpack.c.l.b16 %v299
      %v588 = vunpack.c.h.b16 %v299
      %v589 = vunpack.c.l.b16 %v300
      %v590 = vunpack.c.h.b16 %v300
      %v591 = vunpack.c.l.b16 %v301
      %v592 = vunpack.c.h.b16 %v301
      %v593 = vunpack.c.l.b16 %v302
      %v594 = vunpack.c.h.b16 %v302
      %v595 = vunpack.c.l.b16 %v303
      %v596 = vunpack.c.h.b16 %v303
      %v597 = vunpack.c.l.b16 %v304
      %v598 = vunpack.c.h.b16 %v304
      %v599 = vunpack.c.l.b16 %v305
      %v600 = vunpack.c.h.b16 %v305
      %v601 = vunpack.c.l.b16 %v306
      %v602 = vunpack.c.h.b16 %v306
      %v603 = vunpack.c.l.b16 %v307
      %v604 = vunpack.c.h.b16 %v307
      %v605 = vunpack.c.l.b16 %v308
      %v606 = vunpack.c.h.b16 %v308
      %v607 = vunpack.c.l.b16 %v309
      %v608 = vunpack.c.h.b16 %v309
      %v609 = vunpack.c.l.b16 %v310
      %v610 = vunpack.c.h.b16 %v310
      %v611 = vunpack.c.l.b16 %v311
      %v612 = vunpack.c.h.b16 %v311
      %v613 = vunpack.c.l.b16 %v312
      %v614 = vunpack.c.h.b16 %v312
      %v615 = vunpack.c.l.b16 %v313
      %v616 = vunpack.c.h.b16 %v313
      %v617 = vunpack.c.l.b16 %v314
      %v618 = vunpack.c.h.b16 %v314
      %v619 = vunpack.c.l.b16 %v315
      %v620 = vunpack.c.h.b16 %v315
      %v621 = vunpack.c.l.b16 %v316
      %v622 = vunpack.c.h.b16 %v316
      %v623 = vunpack.c.l.b16 %v317
      %v624 = vunpack.c.h.b16 %v317
      %v625 = vunpack.c.l.b16 %v318
      %v626 = vunpack.c.h.b16 %v318
      %v627 = vunpack.c.l.b16 %v319
      %v628 = vunpack.c.h.b16 %v319
      %v629 = vunpack.c.l.b16 %v320
      %v630 = vunpack.c.h.b16 %v320
      %v631 = vunpack.c.l.b16 %v321
      %v632 = vunpack.c.h.b16 %v321
      %v633 = vunpack.c.l.b16 %v322
      %v634 = vunpack.c.h.b16 %v322
      %v635 = vunpack.c.l.b16 %v323
      %v636 = vunpack.c.h.b16 %v323
      %v637 = vunpack.c.l.b16 %v324
      %v638 = vunpack.c.h.b16 %v324
      %v639 = vunpack.c.l.b16 %v325
      %v640 = vunpack.c.h.b16 %v325
      %v641 = vunpack.c.l.b16 %v326
      %v642 = vunpack.c.h.b16 %v326
      %v643 = vunpack.c.l.b16 %v327
      %v644 = vunpack.c.h.b16 %v327
      %v645 = vunpack.c.l.b16 %v328
      %v646 = vunpack.c.h.b16 %v328
      %v647 = vunpack.c.l.b16 %v329
      %v648 = vunpack.c.h.b16 %v329
      %v649 = vunpack.c.l.b16 %v330
      %v650 = vunpack.c.h.b16 %v330
      %v651 = vunpack.c.l.b16 %v331
      %v652 = vunpack.c.h.b16 %v331
      %v653 = vunpack.c.l.b16 %v332
      %v654 = vunpack.c.h.b16 %v332
      %v655 = vunpack.c.l.b16 %v333
      %v656 = vunpack.c.h.b16 %v333
      %v657 = vunpack.c.l.b16 %v334
      %v658 = vunpack.c.h.b16 %v334
      %v659 = vunpack.c.l.b16 %v335
      %v660 = vunpack.c.h.b16 %v335
      %v661 = vunpack.c.l.b16 %v336
      %v662 = vunpack.c.h.b16 %v336
      %v663 = vunpack.c.l.b16 %v337
      %v664 = vunpack.c.h.b16 %v337
      %v665 = vunpack.c.l.b16 %v338
      %v666 = vunpack.c.h.b16 %v338
      %v667 = vunpack.c.l.b16 %v339
      %v668 = vunpack.c.h.b16 %v339
      %v669 = vunpack.c.l.b16 %v340
      %v670 = vunpack.c.h.b16 %v340
      %v671 = vunpack.c.l.b16 %v341
      %v672 = vunpack.c.h.b16 %v341
      %v673 = vunpack.c.l.b16 %v342
      %v674 = vunpack.c.h.b16 %v342
      %v675 = vunpack.c.l.b16 %v343
      %v676 = vunpack.c.h.b16 %v343
      %v677 = vunpack.c.l.b16 %v344
      %v678 = vunpack.c.h.b16 %v344
      %v679 = vunpack.c.l.b16 %v345
      %v680 = vunpack.c.h.b16 %v345
      %v681 = vunpack.c.l.b16 %v346
      %v682 = vunpack.c.h.b16 %v346
      %v683 = vunpack.c.l.b16 %v347
      %v684 = vunpack.c.h.b16 %v347
      %v685 = vunpack.c.l.b16 %v348
      %v686 = vunpack.c.h.b16 %v348
      %v687 = vunpack.c.l.b16 %v349
      %v688 = vunpack.c.h.b16 %v349
      %v689 = vunpack.c.l.b16 %v350
      %v690 = vunpack.c.h.b16 %v350
      %v691 = vunpack.c.l.b16 %v351
      %v692 = vunpack.c.h.b16 %v351
      %v693 = vunpack.c.l.b16 %v352
      %v694 = vunpack.c.h.b16 %v352
      %v695 = vunpack.c.l.b16 %v353
      %v696 = vunpack.c.h.b16 %v353
      %v697 = vunpack.c.l.b16 %v354
      %v698 = vunpack.c.h.b16 %v354
      %v699 = vunpack.c.l.b16 %v355
      %v700 = vunpack.c.h.b16 %v355
      %v701 = vunpack.c.l.b16 %v356
      %v702 = vunpack.c.h.b16 %v356
      %v703 = vunpack.c.l.b16 %v357
      %v704 = vunpack.c.h.b16 %v357
      %v705 = vunpack.c.l.b16 %v358
      %v706 = vunpack.c.h.b16 %v358
      %v707 = vunpack.c.l.b16 %v359
      %v708 = vunpack.c.h.b16 %v359
      %v709 = vunpack.c.l.b16 %v360
      %v710 = vunpack.c.h.b16 %v360
      %v711 = vunpack.c.l.b16 %v361
      %v712 = vunpack.c.h.b16 %v361
      %v713 = vunpack.c.l.b16 %v362
      %v714 = vunpack.c.h.b16 %v362
      %v715 = vunpack.c.l.b16 %v363
      %v716 = vunpack.c.h.b16 %v363
      %v717 = vunpack.c.l.b16 %v364
      %v718 = vunpack.c.h.b16 %v364
      %v719 = vunpack.c.l.b16 %v365
      %v720 = vunpack.c.h.b16 %v365
      %v721 = vunpack.c.l.b16 %v366
      %v722 = vunpack.c.h.b16 %v366
      %v723 = vunpack.c.l.b16 %v367
      %v724 = vunpack.c.h.b16 %v367
      %v725 = vunpack.c.l.b16 %v368
      %v726 = vunpack.c.h.b16 %v368
      %v727 = vunpack.c.l.b16 %v369
      %v728 = vunpack.c.h.b16 %v369
      %v729 = vunpack.c.l.b16 %v370
      %v730 = vunpack.c.h.b16 %v370
      %v731 = vunpack.c.l.b16 %v371
      %v732 = vunpack.c.h.b16 %v371
      %v733 = vunpack.c.l.b16 %v372
      %v734 = vunpack.c.h.b16 %v372
      %v735 = vunpack.c.l.b16 %v373
      %v736 = vunpack.c.h.b16 %v373
      %v737 = vunpack.c.l.b16 %v374
      %v738 = vunpack.c.h.b16 %v374
      %v739 = vunpack.c.l.b16 %v375
      %v740 = vunpack.c.h.b16 %v375
      %v741 = vunpack.c.l.b16 %v376
      %v742 = vunpack.c.h.b16 %v376
      %v743 = vunpack.c.l.b16 %v377
      %v744 = vunpack.c.h.b16 %v377
      %v745 = vunpack.c.l.b16 %v378
      %v746 = vunpack.c.h.b16 %v378
      %v747 = vunpack.c.l.b16 %v379
      %v748 = vunpack.c.h.b16 %v379
      %v749 = vunpack.c.l.b16 %v380
      %v750 = vunpack.c.h.b16 %v380
      %v751 = vunpack.c.l.b16 %v381
      %v752 = vunpack.c.h.b16 %v381
      %v753 = vunpack.c.l.b16 %v382
      %v754 = vunpack.c.h.b16 %v382
      %v755 = vunpack.c.l.b16 %v383
      %v756 = vunpack.c.h.b16 %v383
      %v757 = vunpack.c.l.b16 %v384
      %v758 = vunpack.c.h.b16 %v384
      %v759 = vunpack.c.l.b16 %v385
      %v760 = vunpack.c.h.b16 %v385
      %v761 = vunpack.c.l.b16 %v386
      %v762 = vunpack.c.h.b16 %v386
      %v763 = vunpack.c.l.b16 %v387
      %v764 = vunpack.c.h.b16 %v387
      %v765 = vunpack.c.l.b16 %v388
      %v766 = vunpack.c.h.b16 %v388
      %v767 = vunpack.c.l.b16 %v389
      %v768 = vunpack.c.h.b16 %v389
      %v769 = vunpack.c.l.b16 %v390
      %v770 = vunpack.c.h.b16 %v390
      %v771 = vunpack.c.l.b16 %v391
      %v772 = vunpack.c.h.b16 %v391
      %v773 = vunpack.c.l.b16 %v392
      %v774 = vunpack.c.h.b16 %v392
      %v775 = vunpack.c.l.b16 %v393
      %v776 = vunpack.c.h.b16 %v393
      %v777 = vunpack.c.l.b16 %v394
      %v778 = vunpack.c.h.b16 %v394
      %v779 = vunpack.c.l.b16 %v395
      %v780 = vunpack.c.h.b16 %v395
      %v781 = vunpack.c.l.b16 %v396
      %v782 = vunpack.c.h.b16 %v396
      %v783 = vunpack.c.l.b16 %v397
      %v784 = vunpack.c.h.b16 %v397
      %v785 = vunpack.c.l.b16 %v398
      %v786 = vunpack.c.h.b16 %v398
      %v787 = vunpack.c.l.b16 %v399
      %v788 = vunpack.c.h.b16 %v399
      %v789 = vunpack.c.l.b16 %v400
      %v790 = vunpack.c.h.b16 %v400
      %v791 = vunpack.c.l.b16 %v401
      %v792 = vunpack.c.h.b16 %v401
      %v793 = vunpack.c.l.b16 %v402
      %v794 = vunpack.c.h.b16 %v402
      %v795 = vunpack.c.l.b16 %v403
      %v796 = vunpack.c.h.b16 %v403
      %v797 = vunpack.c.l.b16 %v404
      %v798 = vunpack.c.h.b16 %v404
      %v799 = vunpack.c.l.b16 %v405
      %v800 = vunpack.c.h.b16 %v405
      %v801 = vunpack.c.l.b16 %v406
      %v802 = vunpack.c.h.b16 %v406
      %v803 = vunpack.c.l.b16 %v407
      %v804 = vunpack.c.h.b16 %v407
      %v805 = vunpack.c.l.b16 %v408
      %v806 = vunpack.c.h.b16 %v408
      %v807 = vunpack.c.l.b16 %v409
      %v808 = vunpack.c.h.b16 %v409
      %v809 = vunpack.c.l.b16 %v410
      %v810 = vunpack.c.h.b16 %v410
      %v811 = vunpack.c.l.b16 %v411
      %v812 = vunpack.c.h.b16 %v411
      %v813 = vunpack.c.l.b16 %v412
      %v814 = vunpack.c.h.b16 %v412
      %v815 = vunpack.c.l.b16 %v413
      %v816 = vunpack.c.h.b16 %v413
      %v817 = vunpack.c.l.b16 %v414
      %v818 = vunpack.c.h.b16 %v414
      %v819 = vpack.c.b16 %v571, %v563
      %v820 = vpack.c.b16 %v572, %v564
      %v821 = vpack.c.b16 %v573, %v565
      %v822 = vpack.c.b16 %v574, %v566
      %v823 = vpack.c.b16 %v575, %v567
      %v824 = vpack.c.b16 %v576, %v568
      %v825 = vpack.c.b16 %v577, %v569
      %v826 = vpack.c.b16 %v578, %v570
      %v827 = vpack.c.b16 %v587, %v579
      %v828 = vpack.c.b16 %v588, %v580
      %v829 = vpack.c.b16 %v589, %v581
      %v830 = vpack.c.b16 %v590, %v582
      %v831 = vpack.c.b16 %v591, %v583
      %v832 = vpack.c.b16 %v592, %v584
      %v833 = vpack.c.b16 %v593, %v585
      %v834 = vpack.c.b16 %v594, %v586
      %v835 = vpack.c.b16 %v603, %v595
      %v836 = vpack.c.b16 %v604, %v596
      %v837 = vpack.c.b16 %v605, %v597
      %v838 = vpack.c.b16 %v606, %v598
      %v839 = vpack.c.b16 %v607, %v599
      %v840 = vpack.c.b16 %v608, %v600
      %v841 = vpack.c.b16 %v609, %v601
      %v842 = vpack.c.b16 %v610, %v602
      %v843 = vpack.c.b16 %v619, %v611
      %v844 = vpack.c.b16 %v620, %v612
      %v845 = vpack.c.b16 %v621, %v613
      %v846 = vpack.c.b16 %v622, %v614
      %v847 = vpack.c.b16 %v623, %v615
      %v848 = vpack.c.b16 %v624, %v616
      %v849 = vpack.c.b16 %v625, %v617
      %v850 = vpack.c.b16 %v626, %v618
      %v851 = vpack.c.b16 %v635, %v627
      %v852 = vpack.c.b16 %v636, %v628
      %v853 = vpack.c.b16 %v637, %v629
      %v854 = vpack.c.b16 %v638, %v630
      %v855 = vpack.c.b16 %v639, %v631
      %v856 = vpack.c.b16 %v640, %v632
      %v857 = vpack.c.b16 %v641, %v633
      %v858 = vpack.c.b16 %v642, %v634
      %v859 = vpack.c.b16 %v651, %v643
      %v860 = vpack.c.b16 %v652, %v644
      %v861 = vpack.c.b16 %v653, %v645
      %v862 = vpack.c.b16 %v654, %v646
      %v863 = vpack.c.b16 %v655, %v647
      %v864 = vpack.c.b16 %v656, %v648
      %v865 = vpack.c.b16 %v657, %v649
      %v866 = vpack.c.b16 %v658, %v650
      %v867 = vpack.c.b16 %v667, %v659
      %v868 = vpack.c.b16 %v668, %v660
      %v869 = vpack.c.b16 %v669, %v661
      %v870 = vpack.c.b16 %v670, %v662
      %v871 = vpack.c.b16 %v671, %v663
      %v872 = vpack.c.b16 %v672, %v664
      %v873 = vpack.c.b16 %v673, %v665
      %v874 = vpack.c.b16 %v674, %v666
      %v875 = vpack.c.b16 %v683, %v675
      %v876 = vpack.c.b16 %v684, %v676
      %v877 = vpack.c.b16 %v685, %v677
      %v878 = vpack.c.b16 %v686, %v678
      %v879 = vpack.c.b16 %v687, %v679
      %v880 = vpack.c.b16 %v688, %v680
      %v881 = vpack.c.b16 %v689, %v681
      %v882 = vpack.c.b16 %v690, %v682
      %v883 = vpack.c.b16 %v699, %v691
      %v884 = vpack.c.b16 %v700, %v692
      %v885 = vpack.c.b16 %v701, %v693
      %v886 = vpack.c.b16 %v702, %v694
      %v887 = vpack.c.b16 %v703, %v695
      %v888 = vpack.c.b16 %v704, %v696
      %v889 = vpack.c.b16 %v705, %v697
      %v890 = vpack.c.b16 %v706, %v698
      %v891 = vpack.c.b16 %v715, %v707
      %v892 = vpack.c.b16 %v716, %v708
      %v893 = vpack.c.b16 %v717, %v709
      %v894 = vpack.c.b16 %v718, %v710
      %v895 = vpack.c.b16 %v719, %v711
      %v896 = vpack.c.b16 %v720, %v712
      %v897 = vpack.c.b16 %v721, %v713
      %v898 = vpack.c.b16 %v722, %v714
      %v899 = vpack.c.b16 %v731, %v723
      %v900 = vpack.c.b16 %v732, %v724
      %v901 = vpack.c.b16 %v733, %v725
      %v902 = vpack.c.b16 %v734, %v726
      %v903 = vpack.c.b16 %v735, %v727
      %v904 = vpack.c.b16 %v736, %v728
      %v905 = vpack.c.b16 %v737, %v729
      %v906 = vpack.c.b16 %v738, %v730
      %v907 = vpack.c.b16 %v747, %v739
      %v908 = vpack.c.b16 %v748, %v740
      %v909 = vpack.c.b16 %v749, %v741
      %v910 = vpack.c.b16 %v750, %v742
      %v911 = vpack.c.b16 %v751, %v743
      %v912 = vpack.c.b16 %v752, %v744
      %v913 = vpack.c.b16 %v753, %v745
      %v914 = vpack.c.b16 %v754, %v746
      %v915 = vpack.c.b16 %v763, %v755
      %v916 = vpack.c.b16 %v764, %v756
      %v917 = vpack.c.b16 %v765, %v757
      %v918 = vpack.c.b16 %v766, %v758
      %v919 = vpack.c.b16 %v767, %v759
      %v920 = vpack.c.b16 %v768, %v760
      %v921 = vpack.c.b16 %v769, %v761
      %v922 = vpack.c.b16 %v770, %v762
      %v923 = vpack.c.b16 %v779, %v771
      %v924 = vpack.c.b16 %v780, %v772
      %v925 = vpack.c.b16 %v781, %v773
      %v926 = vpack.c.b16 %v782, %v774
      %v927 = vpack.c.b16 %v783, %v775
      %v928 = vpack.c.b16 %v784, %v776
      %v929 = vpack.c.b16 %v785, %v777
      %v930 = vpack.c.b16 %v786, %v778
      %v931 = vpack.c.b16 %v795, %v787
      %v932 = vpack.c.b16 %v796, %v788
      %v933 = vpack.c.b16 %v797, %v789
      %v934 = vpack.c.b16 %v798, %v790
      %v935 = vpack.c.b16 %v799, %v791
      %v936 = vpack.c.b16 %v800, %v792
      %v937 = vpack.c.b16 %v801, %v793
      %v938 = vpack.c.b16 %v802, %v794
      %v939 = vpack.c.b16 %v811, %v803
      %v940 = vpack.c.b16 %v812, %v804
      %v941 = vpack.c.b16 %v813, %v805
      %v942 = vpack.c.b16 %v814, %v806
      %v943 = vpack.c.b16 %v815, %v807
      %v944 = vpack.c.b16 %v816, %v808
      %v945 = vpack.c.b16 %v817, %v809
      %v946 = vpack.c.b16 %v818, %v810
      %v1077 = vcombine.high %v433, %v433
      %v1079 = vunpack.c.l.s4 1983009808
      %v1080 = vunpack.c.0.s8 %v1079
      %v1081 = vlaneseq
      %v1082 = vshrl.u32 %v1081, 7
      %v1083 = vsub.s32 %v1080, %v1082
      %v1084 = vrot.slane %v433, %v1083
      %v1086 = vunpack.c.l.s4 1983009808
      %v1087 = vunpack.c.0.s8 %v1086
      %v1088 = vlaneseq
      %v1089 = vshrl.u32 %v1088, 7
      %v1090 = vsub.s32 %v1087, %v1089
      %v1091 = vrot.slane %v1077, %v1090
      %v1092 = vcombine.high %v1084, %v1084
      %v1093 = vcombine.high %v1091, %v1091
      %v1094 = vcombine.high %v434, %v434
      %v1096 = vunpack.c.l.s4 1983009808
      %v1097 = vunpack.c.0.s8 %v1096
      %v1098 = vlaneseq
      %v1099 = vshrl.u32 %v1098, 7
      %v1100 = vsub.s32 %v1097, %v1099
      %v1101 = vrot.slane %v434, %v1100
      %v1103 = vunpack.c.l.s4 1983009808
      %v1104 = vunpack.c.0.s8 %v1103
      %v1105 = vlaneseq
      %v1106 = vshrl.u32 %v1105, 7
      %v1107 = vsub.s32 %v1104, %v1106
      %v1108 = vrot.slane %v1094, %v1107
      %v1109 = vcombine.high %v1101, %v1101
      %v1110 = vcombine.high %v1108, %v1108
      %1119 = vmatprep.subr.bf16.mxu0 %v820
      %1120 = vmatpush1.bf16.msra.mxu0 %v819
      %1121 = vmatprep.subr.bf16.mxu0 %v828
      %1122 = vmatpush1.bf16.msra.mxu0 %v827
      %1123 = vmatprep.subr.bf16.mxu0 %v836
      %1124 = vmatpush1.bf16.msra.mxu0 %v835
      %1125 = vmatprep.subr.bf16.mxu0 %v844
      %1126 = vmatpush1.bf16.msra.mxu0 %v843
      %1127 = vmatprep.subr.bf16.mxu0 %v852
      %1128 = vmatpush1.bf16.msra.mxu0 %v851
      %1129 = vmatprep.subr.bf16.mxu0 %v860
      %1130 = vmatpush1.bf16.msra.mxu0 %v859
      %1131 = vmatprep.subr.bf16.mxu0 %v868
      %1132 = vmatpush1.bf16.msra.mxu0 %v867
      %1133 = vmatprep.subr.bf16.mxu0 %v876
      %1134 = vmatpush1.bf16.msra.mxu0 %v875
      %1135 = vmatprep.subr.bf16.mxu0 %v884
      %1136 = vmatpush1.bf16.msra.mxu0 %v883
      %1137 = vmatprep.subr.bf16.mxu0 %v892
      %1138 = vmatpush1.bf16.msra.mxu0 %v891
      %1139 = vmatprep.subr.bf16.mxu0 %v900
      %1140 = vmatpush1.bf16.msra.mxu0 %v899
      %1141 = vmatprep.subr.bf16.mxu0 %v908
      %1142 = vmatpush1.bf16.msra.mxu0 %v907
      %1143 = vmatprep.subr.bf16.mxu0 %v916
      %1144 = vmatpush1.bf16.msra.mxu0 %v915
      %1145 = vmatprep.subr.bf16.mxu0 %v924
      %1146 = vmatpush1.bf16.msra.mxu0 %v923
      %1147 = vmatprep.subr.bf16.mxu0 %v932
      %1148 = vmatpush1.bf16.msra.mxu0 %v931
      %1149 = vmatprep.subr.bf16.mxu0 %v940
      %1150 = vmatpush1.bf16.msra.mxu0 %v939
      %1151 = vmatprep.mubr.bf16.mxu0 %v431
      %1152 = vmatmul.mubr.bf16.gmra.mrb[0].mxu0 %v430
      %v1153 = vpop.f32.mrb[0].mxu0
      %v1154 = vadd.f32 %v1084, %v1153
      %v1155 = vpop.f32.mrb[0].mxu0
      %v1156 = vadd.f32 %v1092, %v1155
      %v1157 = vpop.f32.mrb[0].mxu0
      %v1158 = vpop.f32.mrb[0].mxu0
      %1159 = vdwg.mxu0
      %1160 = vmatprep.subr.bf16.mxu0 %v822
      %1161 = vmatpush1.bf16.msra.mxu0 %v821
      %1162 = vmatprep.subr.bf16.mxu0 %v830
      %1163 = vmatpush1.bf16.msra.mxu0 %v829
      %1164 = vmatprep.subr.bf16.mxu0 %v838
      %1165 = vmatpush1.bf16.msra.mxu0 %v837
      %1166 = vmatprep.subr.bf16.mxu0 %v846
      %1167 = vmatpush1.bf16.msra.mxu0 %v845
      %1168 = vmatprep.subr.bf16.mxu0 %v854
      %1169 = vmatpush1.bf16.msra.mxu0 %v853
      %1170 = vmatprep.subr.bf16.mxu0 %v862
      %1171 = vmatpush1.bf16.msra.mxu0 %v861
      %1172 = vmatprep.subr.bf16.mxu0 %v870
      %1173 = vmatpush1.bf16.msra.mxu0 %v869
      %1174 = vmatprep.subr.bf16.mxu0 %v878
      %1175 = vmatpush1.bf16.msra.mxu0 %v877
      %1176 = vmatprep.subr.bf16.mxu0 %v886
      %1177 = vmatpush1.bf16.msra.mxu0 %v885
      %1178 = vmatprep.subr.bf16.mxu0 %v894
      %1179 = vmatpush1.bf16.msra.mxu0 %v893
      %1180 = vmatprep.subr.bf16.mxu0 %v902
      %1181 = vmatpush1.bf16.msra.mxu0 %v901
      %1182 = vmatprep.subr.bf16.mxu0 %v910
      %1183 = vmatpush1.bf16.msra.mxu0 %v909
      %1184 = vmatprep.subr.bf16.mxu0 %v918
      %1185 = vmatpush1.bf16.msra.mxu0 %v917
      %1186 = vmatprep.subr.bf16.mxu0 %v926
      %1187 = vmatpush1.bf16.msra.mxu0 %v925
      %1188 = vmatprep.subr.bf16.mxu0 %v934
      %1189 = vmatpush1.bf16.msra.mxu0 %v933
      %1190 = vmatprep.subr.bf16.mxu0 %v942
      %1191 = vmatpush1.bf16.msra.mxu0 %v941
      %1192 = vmatprep.mubr.bf16.mxu0 %v431
      %1193 = vmatmul.mubr.bf16.gmra.mrb[0].mxu0 %v430
      %v1194 = vpop.f32.mrb[0].mxu0
      %v1195 = vadd.f32 %v1091, %v1194
      %v1196 = vpop.f32.mrb[0].mxu0
      %v1197 = vadd.f32 %v1093, %v1196
      %v1198 = vpop.f32.mrb[0].mxu0
      %v1199 = vpop.f32.mrb[0].mxu0
      %1200 = vdwg.mxu0
      %1201 = vmatprep.subr.bf16.mxu0 %v824
      %1202 = vmatpush1.bf16.msra.mxu0 %v823
      %1203 = vmatprep.subr.bf16.mxu0 %v832
      %1204 = vmatpush1.bf16.msra.mxu0 %v831
      %1205 = vmatprep.subr.bf16.mxu0 %v840
      %1206 = vmatpush1.bf16.msra.mxu0 %v839
      %1207 = vmatprep.subr.bf16.mxu0 %v848
      %1208 = vmatpush1.bf16.msra.mxu0 %v847
      %1209 = vmatprep.subr.bf16.mxu0 %v856
      %1210 = vmatpush1.bf16.msra.mxu0 %v855
      %1211 = vmatprep.subr.bf16.mxu0 %v864
      %1212 = vmatpush1.bf16.msra.mxu0 %v863
      %1213 = vmatprep.subr.bf16.mxu0 %v872
      %1214 = vmatpush1.bf16.msra.mxu0 %v871
      %1215 = vmatprep.subr.bf16.mxu0 %v880
      %1216 = vmatpush1.bf16.msra.mxu0 %v879
      %1217 = vmatprep.subr.bf16.mxu0 %v888
      %1218 = vmatpush1.bf16.msra.mxu0 %v887
      %1219 = vmatprep.subr.bf16.mxu0 %v896
      %1220 = vmatpush1.bf16.msra.mxu0 %v895
      %1221 = vmatprep.subr.bf16.mxu0 %v904
      %1222 = vmatpush1.bf16.msra.mxu0 %v903
      %1223 = vmatprep.subr.bf16.mxu0 %v912
      %1224 = vmatpush1.bf16.msra.mxu0 %v911
      %1225 = vmatprep.subr.bf16.mxu0 %v920
      %1226 = vmatpush1.bf16.msra.mxu0 %v919
      %1227 = vmatprep.subr.bf16.mxu0 %v928
      %1228 = vmatpush1.bf16.msra.mxu0 %v927
      %1229 = vmatprep.subr.bf16.mxu0 %v936
      %1230 = vmatpush1.bf16.msra.mxu0 %v935
      %1231 = vmatprep.subr.bf16.mxu0 %v944
      %1232 = vmatpush1.bf16.msra.mxu0 %v943
      %1233 = vmatprep.mubr.bf16.mxu0 %v431
      %1234 = vmatmul.mubr.bf16.gmra.mrb[0].mxu0 %v430
      %v1235 = vpop.f32.mrb[0].mxu0
      %v1236 = vadd.f32 %v1101, %v1235
      %v1237 = vpop.f32.mrb[0].mxu0
      %v1238 = vadd.f32 %v1109, %v1237
      %v1239 = vpop.f32.mrb[0].mxu0
      %v1240 = vpop.f32.mrb[0].mxu0
      %1241 = vdwg.mxu0
      %1242 = vmatprep.subr.bf16.mxu0 %v826
      %1243 = vmatpush1.bf16.msra.mxu0 %v825
      %1244 = vmatprep.subr.bf16.mxu0 %v834
      %1245 = vmatpush1.bf16.msra.mxu0 %v833
      %1246 = vmatprep.subr.bf16.mxu0 %v842
      %1247 = vmatpush1.bf16.msra.mxu0 %v841
      %1248 = vmatprep.subr.bf16.mxu0 %v850
      %1249 = vmatpush1.bf16.msra.mxu0 %v849
      %1250 = vmatprep.subr.bf16.mxu0 %v858
      %1251 = vmatpush1.bf16.msra.mxu0 %v857
      %1252 = vmatprep.subr.bf16.mxu0 %v866
      %1253 = vmatpush1.bf16.msra.mxu0 %v865
      %1254 = vmatprep.subr.bf16.mxu0 %v874
      %1255 = vmatpush1.bf16.msra.mxu0 %v873
      %1256 = vmatprep.subr.bf16.mxu0 %v882
      %1257 = vmatpush1.bf16.msra.mxu0 %v881
      %1258 = vmatprep.subr.bf16.mxu0 %v890
      %1259 = vmatpush1.bf16.msra.mxu0 %v889
      %1260 = vmatprep.subr.bf16.mxu0 %v898
      %1261 = vmatpush1.bf16.msra.mxu0 %v897
      %1262 = vmatprep.subr.bf16.mxu0 %v906
      %1263 = vmatpush1.bf16.msra.mxu0 %v905
      %1264 = vmatprep.subr.bf16.mxu0 %v914
      %1265 = vmatpush1.bf16.msra.mxu0 %v913
      %1266 = vmatprep.subr.bf16.mxu0 %v922
      %1267 = vmatpush1.bf16.msra.mxu0 %v921
      %1268 = vmatprep.subr.bf16.mxu0 %v930
      %1269 = vmatpush1.bf16.msra.mxu0 %v929
      %1270 = vmatprep.subr.bf16.mxu0 %v938
      %1271 = vmatpush1.bf16.msra.mxu0 %v937
      %1272 = vmatprep.subr.bf16.mxu0 %v946
      %1273 = vmatpush1.bf16.msra.mxu0 %v945
      %1274 = vmatprep.mubr.bf16.mxu0 %v431
      %1275 = vmatmul.mubr.bf16.gmra.mrb[0].mxu0 %v430
      %v1276 = vpop.f32.mrb[0].mxu0
      %v1277 = vadd.f32 %v1108, %v1276
      %v1278 = vpop.f32.mrb[0].mxu0
      %v1279 = vadd.f32 %v1110, %v1278
      %v1280 = vpop.f32.mrb[0].mxu0
      %v1281 = vpop.f32.mrb[0].mxu0
      %1282 = vdwg.mxu0
      %v1284 = vlaneseq
      %v1285 = vshrl.u32 %v1284, 7
      %v1286 = vsub.s32 0, %v1285
      %v1287 = vrot.slane %v415, %v1286
      %v1288 = vlaneseq
      %v1289 = vshrl.u32 %v1288, 7
      %v1290 = vsub.s32 1, %v1289
      %v1291 = vrot.slane %v415, %v1290
      %v1292 = vlaneseq
      %v1293 = vshrl.u32 %v1292, 7
      %v1294 = vsub.s32 2, %v1293
      %v1295 = vrot.slane %v415, %v1294
      %v1296 = vlaneseq
      %v1297 = vshrl.u32 %v1296, 7
      %v1298 = vsub.s32 3, %v1297
      %v1299 = vrot.slane %v415, %v1298
      %v1300 = vlaneseq
      %v1301 = vshrl.u32 %v1300, 7
      %v1302 = vsub.s32 4, %v1301
      %v1303 = vrot.slane %v415, %v1302
      %v1304 = vlaneseq
      %v1305 = vshrl.u32 %v1304, 7
      %v1306 = vsub.s32 5, %v1305
      %v1307 = vrot.slane %v415, %v1306
      %v1308 = vlaneseq
      %v1309 = vshrl.u32 %v1308, 7
      %v1310 = vsub.s32 6, %v1309
      %v1311 = vrot.slane %v415, %v1310
      %v1312 = vlaneseq
      %v1313 = vshrl.u32 %v1312, 7
      %v1314 = vsub.s32 7, %v1313
      %v1315 = vrot.slane %v415, %v1314
      %v1324 = vadd.f32 %v1154, %v1287
      %v1325 = vadd.f32 %v1156, %v1291
      %v1326 = vadd.f32 %v1195, %v1295
      %v1327 = vadd.f32 %v1197, %v1299
      %v1328 = vadd.f32 %v1236, %v1303
      %v1329 = vadd.f32 %v1238, %v1307
      %v1330 = vadd.f32 %v1277, %v1311
      %v1331 = vadd.f32 %v1279, %v1315
      %v1332 = vxor.u32 %v1324, 2147483648
      %v1333 = vxor.u32 %v1325, 2147483648
      %v1334 = vxor.u32 %v1326, 2147483648
      %v1335 = vxor.u32 %v1327, 2147483648
      %v1336 = vxor.u32 %v1328, 2147483648
      %v1337 = vxor.u32 %v1329, 2147483648
      %v1338 = vmul.f32 %v1332, 1.442695
      %v1339 = vpow.pop %v1338
      %v1340 = vmul.f32 %v1333, 1.442695
      %v1341 = vpow.pop %v1340
      %v1342 = vmul.f32 %v1334, 1.442695
      %v1343 = vpow.pop %v1342
      %v1344 = vmul.f32 %v1335, 1.442695
      %v1345 = vpow.pop %v1344
      %v1346 = vmul.f32 %v1336, 1.442695
      %v1347 = vpow.pop %v1346
      %v1348 = vmul.f32 %v1337, 1.442695
      %v1349 = vpow.pop %v1348
      %v1350 = vadd.f32 %v1339, 1.0
      %v1351 = vadd.f32 %v1341, 1.0
      %v1352 = vadd.f32 %v1343, 1.0
      %v1353 = vadd.f32 %v1345, 1.0
      %v1354 = vadd.f32 %v1347, 1.0
      %v1355 = vadd.f32 %v1349, 1.0
      %v1356 = vrcp.pop %v1350
      %v1357 = vmul.f32 1.0, %v1356
      %v1358 = vrcp.pop %v1351
      %v1359 = vmul.f32 1.0, %v1358
      %v1360 = vrcp.pop %v1352
      %v1361 = vmul.f32 1.0, %v1360
      %v1362 = vrcp.pop %v1353
      %v1363 = vmul.f32 1.0, %v1362
      %v1364 = vrcp.pop %v1354
      %v1365 = vmul.f32 1.0, %v1364
      %v1366 = vrcp.pop %v1355
      %v1367 = vmul.f32 1.0, %v1366
      %v1368 = vtanh.pop %v1330
      %v1369 = vtanh.pop %v1331
      %v1372 = vunpack.c.l.s4 1983009808
      %v1373 = vunpack.c.0.s8 %v1372
      %v1374 = vlaneseq
      %v1375 = vshrl.u32 %v1374, 7
      %v1376 = vsub.s32 %v1373, %v1375
      %v1377 = vrot.slane %v418, %v1376
      %v1378 = vcombine.high %v1377, %v1377
      %v1381 = vmul.f32 %v1361, %v1377
      %v1382 = vmul.f32 %v1363, %v1378
      %v1383 = vmul.f32 %v1357, %v1368
      %v1384 = vmul.f32 %v1359, %v1369
      %v1385 = vadd.f32 %v1381, %v1383
      %v1386 = vadd.f32 %v1382, %v1384
      %v1387 = vtanh.pop %v1385
      %v1388 = vtanh.pop %v1386
      %v1389 = vmul.f32 %v1365, %v1387
      %v1390 = vmul.f32 %v1367, %v1388
      %v1393 = vcombine.low %v1389, %v1390
      %v1395 = vunpack.c.l.s4 1983009808
      %v1396 = vunpack.c.0.s8 %v1395
      %v1397 = vlaneseq
      %v1398 = vshrl.u32 %v1397, 7
      %v1399 = vsub.s32 %v1396, %v1398
      %v1400 = vrot.slane %v1393, %v1399
      %1402 = vst [vmem:[%s277] sm:$0xf] %v1400
      %p1403 = scmp.lt.s32.totalorder %s416, 11
      %s1404 = scalar_select %p1403, 1, 0
      %v1405 = vstv %s1404
      %vm1406 = vcmp.eq.s32.totalorder %v1405, 1
      %v1407 = vsel %vm1406, %v1389, %v426
      %v1408 = vsel %vm1406, %v1390, %v427
      %v1409 = vsel %vm1406, %v1385, %v1377
      %v1410 = vsel %vm1406, %v1386, %v1378
      %v1411 = vpack.c.bf16 %v1407, %v1407
      %v1412 = vpack.c.bf16 %v1408, %v1408
      %s1413 = scalar_lea.vmem %s270, 8
      %v1414 = vld [vmem:[%s1413] sm:$0xff]
      %v1415 = vunpack.c.l.bf16 %v1414
      %v1416 = vunpack.c.h.bf16 %v1414
      %v1419 = vcombine.high %v1415, %v1415
      %v1421 = vunpack.c.l.s4 1983009808
      %v1422 = vunpack.c.0.s8 %v1421
      %v1423 = vlaneseq
      %v1424 = vshrl.u32 %v1423, 7
      %v1425 = vsub.s32 %v1422, %v1424
      %v1426 = vrot.slane %v1415, %v1425
      %v1428 = vunpack.c.l.s4 1983009808
      %v1429 = vunpack.c.0.s8 %v1428
      %v1430 = vlaneseq
      %v1431 = vshrl.u32 %v1430, 7
      %v1432 = vsub.s32 %v1429, %v1431
      %v1433 = vrot.slane %v1419, %v1432
      %v1434 = vcombine.high %v1426, %v1426
      %v1435 = vcombine.high %v1433, %v1433
      %v1436 = vcombine.high %v1416, %v1416
      %v1438 = vunpack.c.l.s4 1983009808
      %v1439 = vunpack.c.0.s8 %v1438
      %v1440 = vlaneseq
      %v1441 = vshrl.u32 %v1440, 7
      %v1442 = vsub.s32 %v1439, %v1441
      %v1443 = vrot.slane %v1416, %v1442
      %v1445 = vunpack.c.l.s4 1983009808
      %v1446 = vunpack.c.0.s8 %v1445
      %v1447 = vlaneseq
      %v1448 = vshrl.u32 %v1447, 7
      %v1449 = vsub.s32 %v1446, %v1448
      %v1450 = vrot.slane %v1436, %v1449
      %v1451 = vcombine.high %v1443, %v1443
      %v1452 = vcombine.high %v1450, %v1450
      %1461 = vmatprep.subr.bf16.mxu0 %v820
      %1462 = vmatpush1.bf16.msra.mxu0 %v819
      %1463 = vmatprep.subr.bf16.mxu0 %v828
      %1464 = vmatpush1.bf16.msra.mxu0 %v827
      %1465 = vmatprep.subr.bf16.mxu0 %v836
      %1466 = vmatpush1.bf16.msra.mxu0 %v835
      %1467 = vmatprep.subr.bf16.mxu0 %v844
      %1468 = vmatpush1.bf16.msra.mxu0 %v843
      %1469 = vmatprep.subr.bf16.mxu0 %v852
      %1470 = vmatpush1.bf16.msra.mxu0 %v851
      %1471 = vmatprep.subr.bf16.mxu0 %v860
      %1472 = vmatpush1.bf16.msra.mxu0 %v859
      %1473 = vmatprep.subr.bf16.mxu0 %v868
      %1474 = vmatpush1.bf16.msra.mxu0 %v867
      %1475 = vmatprep.subr.bf16.mxu0 %v876
      %1476 = vmatpush1.bf16.msra.mxu0 %v875
      %1477 = vmatprep.subr.bf16.mxu0 %v884
      %1478 = vmatpush1.bf16.msra.mxu0 %v883
      %1479 = vmatprep.subr.bf16.mxu0 %v892
      %1480 = vmatpush1.bf16.msra.mxu0 %v891
      %1481 = vmatprep.subr.bf16.mxu0 %v900
      %1482 = vmatpush1.bf16.msra.mxu0 %v899
      %1483 = vmatprep.subr.bf16.mxu0 %v908
      %1484 = vmatpush1.bf16.msra.mxu0 %v907
      %1485 = vmatprep.subr.bf16.mxu0 %v916
      %1486 = vmatpush1.bf16.msra.mxu0 %v915
      %1487 = vmatprep.subr.bf16.mxu0 %v924
      %1488 = vmatpush1.bf16.msra.mxu0 %v923
      %1489 = vmatprep.subr.bf16.mxu0 %v932
      %1490 = vmatpush1.bf16.msra.mxu0 %v931
      %1491 = vmatprep.subr.bf16.mxu0 %v940
      %1492 = vmatpush1.bf16.msra.mxu0 %v939
      %1493 = vmatprep.mubr.bf16.mxu0 %v1412
      %1494 = vmatmul.mubr.bf16.gmra.mrb[0].mxu0 %v1411
      %v1495 = vpop.f32.mrb[0].mxu0
      %v1496 = vadd.f32 %v1426, %v1495
      %v1497 = vpop.f32.mrb[0].mxu0
      %v1498 = vadd.f32 %v1434, %v1497
      %v1499 = vpop.f32.mrb[0].mxu0
      %v1500 = vpop.f32.mrb[0].mxu0
      %1501 = vdwg.mxu0
      %1502 = vmatprep.subr.bf16.mxu0 %v822
      %1503 = vmatpush1.bf16.msra.mxu0 %v821
      %1504 = vmatprep.subr.bf16.mxu0 %v830
      %1505 = vmatpush1.bf16.msra.mxu0 %v829
      %1506 = vmatprep.subr.bf16.mxu0 %v838
      %1507 = vmatpush1.bf16.msra.mxu0 %v837
      %1508 = vmatprep.subr.bf16.mxu0 %v846
      %1509 = vmatpush1.bf16.msra.mxu0 %v845
      %1510 = vmatprep.subr.bf16.mxu0 %v854
      %1511 = vmatpush1.bf16.msra.mxu0 %v853
      %1512 = vmatprep.subr.bf16.mxu0 %v862
      %1513 = vmatpush1.bf16.msra.mxu0 %v861
      %1514 = vmatprep.subr.bf16.mxu0 %v870
      %1515 = vmatpush1.bf16.msra.mxu0 %v869
      %1516 = vmatprep.subr.bf16.mxu0 %v878
      %1517 = vmatpush1.bf16.msra.mxu0 %v877
      %1518 = vmatprep.subr.bf16.mxu0 %v886
      %1519 = vmatpush1.bf16.msra.mxu0 %v885
      %1520 = vmatprep.subr.bf16.mxu0 %v894
      %1521 = vmatpush1.bf16.msra.mxu0 %v893
      %1522 = vmatprep.subr.bf16.mxu0 %v902
      %1523 = vmatpush1.bf16.msra.mxu0 %v901
      %1524 = vmatprep.subr.bf16.mxu0 %v910
      %1525 = vmatpush1.bf16.msra.mxu0 %v909
      %1526 = vmatprep.subr.bf16.mxu0 %v918
      %1527 = vmatpush1.bf16.msra.mxu0 %v917
      %1528 = vmatprep.subr.bf16.mxu0 %v926
      %1529 = vmatpush1.bf16.msra.mxu0 %v925
      %1530 = vmatprep.subr.bf16.mxu0 %v934
      %1531 = vmatpush1.bf16.msra.mxu0 %v933
      %1532 = vmatprep.subr.bf16.mxu0 %v942
      %1533 = vmatpush1.bf16.msra.mxu0 %v941
      %1534 = vmatprep.mubr.bf16.mxu0 %v1412
      %1535 = vmatmul.mubr.bf16.gmra.mrb[0].mxu0 %v1411
      %v1536 = vpop.f32.mrb[0].mxu0
      %v1537 = vadd.f32 %v1433, %v1536
      %v1538 = vpop.f32.mrb[0].mxu0
      %v1539 = vadd.f32 %v1435, %v1538
      %v1540 = vpop.f32.mrb[0].mxu0
      %v1541 = vpop.f32.mrb[0].mxu0
      %1542 = vdwg.mxu0
      %1543 = vmatprep.subr.bf16.mxu0 %v824
      %1544 = vmatpush1.bf16.msra.mxu0 %v823
      %1545 = vmatprep.subr.bf16.mxu0 %v832
      %1546 = vmatpush1.bf16.msra.mxu0 %v831
      %1547 = vmatprep.subr.bf16.mxu0 %v840
      %1548 = vmatpush1.bf16.msra.mxu0 %v839
      %1549 = vmatprep.subr.bf16.mxu0 %v848
      %1550 = vmatpush1.bf16.msra.mxu0 %v847
      %1551 = vmatprep.subr.bf16.mxu0 %v856
      %1552 = vmatpush1.bf16.msra.mxu0 %v855
      %1553 = vmatprep.subr.bf16.mxu0 %v864
      %1554 = vmatpush1.bf16.msra.mxu0 %v863
      %1555 = vmatprep.subr.bf16.mxu0 %v872
      %1556 = vmatpush1.bf16.msra.mxu0 %v871
      %1557 = vmatprep.subr.bf16.mxu0 %v880
      %1558 = vmatpush1.bf16.msra.mxu0 %v879
      %1559 = vmatprep.subr.bf16.mxu0 %v888
      %1560 = vmatpush1.bf16.msra.mxu0 %v887
      %1561 = vmatprep.subr.bf16.mxu0 %v896
      %1562 = vmatpush1.bf16.msra.mxu0 %v895
      %1563 = vmatprep.subr.bf16.mxu0 %v904
      %1564 = vmatpush1.bf16.msra.mxu0 %v903
      %1565 = vmatprep.subr.bf16.mxu0 %v912
      %1566 = vmatpush1.bf16.msra.mxu0 %v911
      %1567 = vmatprep.subr.bf16.mxu0 %v920
      %1568 = vmatpush1.bf16.msra.mxu0 %v919
      %1569 = vmatprep.subr.bf16.mxu0 %v928
      %1570 = vmatpush1.bf16.msra.mxu0 %v927
      %1571 = vmatprep.subr.bf16.mxu0 %v936
      %1572 = vmatpush1.bf16.msra.mxu0 %v935
      %1573 = vmatprep.subr.bf16.mxu0 %v944
      %1574 = vmatpush1.bf16.msra.mxu0 %v943
      %1575 = vmatprep.mubr.bf16.mxu0 %v1412
      %1576 = vmatmul.mubr.bf16.gmra.mrb[0].mxu0 %v1411
      %v1577 = vpop.f32.mrb[0].mxu0
      %v1578 = vadd.f32 %v1443, %v1577
      %v1579 = vpop.f32.mrb[0].mxu0
      %v1580 = vadd.f32 %v1451, %v1579
      %v1581 = vpop.f32.mrb[0].mxu0
      %v1582 = vpop.f32.mrb[0].mxu0
      %1583 = vdwg.mxu0
      %1584 = vmatprep.subr.bf16.mxu0 %v826
      %1585 = vmatpush1.bf16.msra.mxu0 %v825
      %1586 = vmatprep.subr.bf16.mxu0 %v834
      %1587 = vmatpush1.bf16.msra.mxu0 %v833
      %1588 = vmatprep.subr.bf16.mxu0 %v842
      %1589 = vmatpush1.bf16.msra.mxu0 %v841
      %1590 = vmatprep.subr.bf16.mxu0 %v850
      %1591 = vmatpush1.bf16.msra.mxu0 %v849
      %1592 = vmatprep.subr.bf16.mxu0 %v858
      %1593 = vmatpush1.bf16.msra.mxu0 %v857
      %1594 = vmatprep.subr.bf16.mxu0 %v866
      %1595 = vmatpush1.bf16.msra.mxu0 %v865
      %1596 = vmatprep.subr.bf16.mxu0 %v874
      %1597 = vmatpush1.bf16.msra.mxu0 %v873
      %1598 = vmatprep.subr.bf16.mxu0 %v882
      %1599 = vmatpush1.bf16.msra.mxu0 %v881
      %1600 = vmatprep.subr.bf16.mxu0 %v890
      %1601 = vmatpush1.bf16.msra.mxu0 %v889
      %1602 = vmatprep.subr.bf16.mxu0 %v898
      %1603 = vmatpush1.bf16.msra.mxu0 %v897
      %1604 = vmatprep.subr.bf16.mxu0 %v906
      %1605 = vmatpush1.bf16.msra.mxu0 %v905
      %1606 = vmatprep.subr.bf16.mxu0 %v914
      %1607 = vmatpush1.bf16.msra.mxu0 %v913
      %1608 = vmatprep.subr.bf16.mxu0 %v922
      %1609 = vmatpush1.bf16.msra.mxu0 %v921
      %1610 = vmatprep.subr.bf16.mxu0 %v930
      %1611 = vmatpush1.bf16.msra.mxu0 %v929
      %1612 = vmatprep.subr.bf16.mxu0 %v938
      %1613 = vmatpush1.bf16.msra.mxu0 %v937
      %1614 = vmatprep.subr.bf16.mxu0 %v946
      %1615 = vmatpush1.bf16.msra.mxu0 %v945
      %1616 = vmatprep.mubr.bf16.mxu0 %v1412
      %1617 = vmatmul.mubr.bf16.gmra.mrb[0].mxu0 %v1411
      %v1618 = vpop.f32.mrb[0].mxu0
      %v1619 = vadd.f32 %v1450, %v1618
      %v1620 = vpop.f32.mrb[0].mxu0
      %v1621 = vadd.f32 %v1452, %v1620
      %v1622 = vpop.f32.mrb[0].mxu0
      %v1623 = vpop.f32.mrb[0].mxu0
      %1624 = vdwg.mxu0
      %v1625 = vadd.f32 %v1496, %v1287
      %v1626 = vadd.f32 %v1498, %v1291
      %v1627 = vadd.f32 %v1537, %v1295
      %v1628 = vadd.f32 %v1539, %v1299
      %v1629 = vadd.f32 %v1578, %v1303
      %v1630 = vadd.f32 %v1580, %v1307
      %v1631 = vadd.f32 %v1619, %v1311
      %v1632 = vadd.f32 %v1621, %v1315
      %v1633 = vxor.u32 %v1625, 2147483648
      %v1634 = vxor.u32 %v1626, 2147483648
      %v1635 = vxor.u32 %v1627, 2147483648
      %v1636 = vxor.u32 %v1628, 2147483648
      %v1637 = vxor.u32 %v1629, 2147483648
      %v1638 = vxor.u32 %v1630, 2147483648
      %v1639 = vmul.f32 %v1633, 1.442695
      %v1640 = vpow.pop %v1639
      %v1641 = vmul.f32 %v1634, 1.442695
      %v1642 = vpow.pop %v1641
      %v1643 = vmul.f32 %v1635, 1.442695
      %v1644 = vpow.pop %v1643
      %v1645 = vmul.f32 %v1636, 1.442695
      %v1646 = vpow.pop %v1645
      %v1647 = vmul.f32 %v1637, 1.442695
      %v1648 = vpow.pop %v1647
      %v1649 = vmul.f32 %v1638, 1.442695
      %v1650 = vpow.pop %v1649
      %v1651 = vadd.f32 %v1640, 1.0
      %v1652 = vadd.f32 %v1642, 1.0
      %v1653 = vadd.f32 %v1644, 1.0
      %v1654 = vadd.f32 %v1646, 1.0
      %v1655 = vadd.f32 %v1648, 1.0
      %v1656 = vadd.f32 %v1650, 1.0
      %v1657 = vrcp.pop %v1651
      %v1658 = vmul.f32 1.0, %v1657
      %v1659 = vrcp.pop %v1652
      %v1660 = vmul.f32 1.0, %v1659
      %v1661 = vrcp.pop %v1653
      %v1662 = vmul.f32 1.0, %v1661
      %v1663 = vrcp.pop %v1654
      %v1664 = vmul.f32 1.0, %v1663
      %v1665 = vrcp.pop %v1655
      %v1666 = vmul.f32 1.0, %v1665
      %v1667 = vrcp.pop %v1656
      %v1668 = vmul.f32 1.0, %v1667
      %v1669 = vtanh.pop %v1631
      %v1670 = vtanh.pop %v1632
      %v1671 = vmul.f32 %v1662, %v1409
      %v1672 = vmul.f32 %v1664, %v1410
      %v1673 = vmul.f32 %v1658, %v1669
      %v1674 = vmul.f32 %v1660, %v1670
      %v1675 = vadd.f32 %v1671, %v1673
      %v1676 = vadd.f32 %v1672, %v1674
      %v1677 = vtanh.pop %v1675
      %v1678 = vtanh.pop %v1676
      %v1679 = vmul.f32 %v1666, %v1677
      %v1680 = vmul.f32 %v1668, %v1678
      %v1683 = vcombine.low %v1679, %v1680
      %v1685 = vunpack.c.l.s4 1983009808
      %v1686 = vunpack.c.0.s8 %v1685
      %v1687 = vlaneseq
      %v1688 = vshrl.u32 %v1687, 7
      %v1689 = vsub.s32 %v1686, %v1688
      %v1690 = vrot.slane %v1683, %v1689
      %s1692 = scalar_lea.vmem %s277, 4
      %1693 = vst [vmem:[%s1692] sm:$0xf] %v1690
      %s1694 = sadd.s32 %s416, 1
      %p1695 = scmp.lt.s32.totalorder %s1694, 11
      %s1696 = scalar_select %p1695, 1, 0
      %v1697 = vstv %s1696
      %vm1698 = vcmp.eq.s32.totalorder %v1697, 1
      %v1699 = vsel %vm1698, %v1679, %v1407
      %v1700 = vsel %vm1698, %v1680, %v1408
      %v1701 = vsel %vm1698, %v1675, %v1409
      %v1702 = vsel %vm1698, %v1676, %v1410
      %v1703 = vpack.c.bf16 %v1699, %v1699
      %v1704 = vpack.c.bf16 %v1700, %v1700
      %s1705 = scalar_lea.vmem %s270, 16
      %v1706 = vld [vmem:[%s1705] sm:$0xff]
      %v1707 = vunpack.c.l.bf16 %v1706
      %v1708 = vunpack.c.h.bf16 %v1706
      %v1711 = vcombine.high %v1707, %v1707
      %v1713 = vunpack.c.l.s4 1983009808
      %v1714 = vunpack.c.0.s8 %v1713
      %v1715 = vlaneseq
      %v1716 = vshrl.u32 %v1715, 7
      %v1717 = vsub.s32 %v1714, %v1716
      %v1718 = vrot.slane %v1707, %v1717
      %v1720 = vunpack.c.l.s4 1983009808
      %v1721 = vunpack.c.0.s8 %v1720
      %v1722 = vlaneseq
      %v1723 = vshrl.u32 %v1722, 7
      %v1724 = vsub.s32 %v1721, %v1723
      %v1725 = vrot.slane %v1711, %v1724
      %v1726 = vcombine.high %v1718, %v1718
      %v1727 = vcombine.high %v1725, %v1725
      %v1728 = vcombine.high %v1708, %v1708
      %v1730 = vunpack.c.l.s4 1983009808
      %v1731 = vunpack.c.0.s8 %v1730
      %v1732 = vlaneseq
      %v1733 = vshrl.u32 %v1732, 7
      %v1734 = vsub.s32 %v1731, %v1733
      %v1735 = vrot.slane %v1708, %v1734
      %v1737 = vunpack.c.l.s4 1983009808
      %v1738 = vunpack.c.0.s8 %v1737
      %v1739 = vlaneseq
      %v1740 = vshrl.u32 %v1739, 7
      %v1741 = vsub.s32 %v1738, %v1740
      %v1742 = vrot.slane %v1728, %v1741
      %v1743 = vcombine.high %v1735, %v1735
      %v1744 = vcombine.high %v1742, %v1742
      %1753 = vmatprep.subr.bf16.mxu0 %v820
      %1754 = vmatpush1.bf16.msra.mxu0 %v819
      %1755 = vmatprep.subr.bf16.mxu0 %v828
      %1756 = vmatpush1.bf16.msra.mxu0 %v827
      %1757 = vmatprep.subr.bf16.mxu0 %v836
      %1758 = vmatpush1.bf16.msra.mxu0 %v835
      %1759 = vmatprep.subr.bf16.mxu0 %v844
      %1760 = vmatpush1.bf16.msra.mxu0 %v843
      %1761 = vmatprep.subr.bf16.mxu0 %v852
      %1762 = vmatpush1.bf16.msra.mxu0 %v851
      %1763 = vmatprep.subr.bf16.mxu0 %v860
      %1764 = vmatpush1.bf16.msra.mxu0 %v859
      %1765 = vmatprep.subr.bf16.mxu0 %v868
      %1766 = vmatpush1.bf16.msra.mxu0 %v867
      %1767 = vmatprep.subr.bf16.mxu0 %v876
      %1768 = vmatpush1.bf16.msra.mxu0 %v875
      %1769 = vmatprep.subr.bf16.mxu0 %v884
      %1770 = vmatpush1.bf16.msra.mxu0 %v883
      %1771 = vmatprep.subr.bf16.mxu0 %v892
      %1772 = vmatpush1.bf16.msra.mxu0 %v891
      %1773 = vmatprep.subr.bf16.mxu0 %v900
      %1774 = vmatpush1.bf16.msra.mxu0 %v899
      %1775 = vmatprep.subr.bf16.mxu0 %v908
      %1776 = vmatpush1.bf16.msra.mxu0 %v907
      %1777 = vmatprep.subr.bf16.mxu0 %v916
      %1778 = vmatpush1.bf16.msra.mxu0 %v915
      %1779 = vmatprep.subr.bf16.mxu0 %v924
      %1780 = vmatpush1.bf16.msra.mxu0 %v923
      %1781 = vmatprep.subr.bf16.mxu0 %v932
      %1782 = vmatpush1.bf16.msra.mxu0 %v931
      %1783 = vmatprep.subr.bf16.mxu0 %v940
      %1784 = vmatpush1.bf16.msra.mxu0 %v939
      %1785 = vmatprep.mubr.bf16.mxu0 %v1704
      %1786 = vmatmul.mubr.bf16.gmra.mrb[0].mxu0 %v1703
      %v1787 = vpop.f32.mrb[0].mxu0
      %v1788 = vadd.f32 %v1718, %v1787
      %v1789 = vpop.f32.mrb[0].mxu0
      %v1790 = vadd.f32 %v1726, %v1789
      %v1791 = vpop.f32.mrb[0].mxu0
      %v1792 = vpop.f32.mrb[0].mxu0
      %1793 = vdwg.mxu0
      %1794 = vmatprep.subr.bf16.mxu0 %v822
      %1795 = vmatpush1.bf16.msra.mxu0 %v821
      %1796 = vmatprep.subr.bf16.mxu0 %v830
      %1797 = vmatpush1.bf16.msra.mxu0 %v829
      %1798 = vmatprep.subr.bf16.mxu0 %v838
      %1799 = vmatpush1.bf16.msra.mxu0 %v837
      %1800 = vmatprep.subr.bf16.mxu0 %v846
      %1801 = vmatpush1.bf16.msra.mxu0 %v845
      %1802 = vmatprep.subr.bf16.mxu0 %v854
      %1803 = vmatpush1.bf16.msra.mxu0 %v853
      %1804 = vmatprep.subr.bf16.mxu0 %v862
      %1805 = vmatpush1.bf16.msra.mxu0 %v861
      %1806 = vmatprep.subr.bf16.mxu0 %v870
      %1807 = vmatpush1.bf16.msra.mxu0 %v869
      %1808 = vmatprep.subr.bf16.mxu0 %v878
      %1809 = vmatpush1.bf16.msra.mxu0 %v877
      %1810 = vmatprep.subr.bf16.mxu0 %v886
      %1811 = vmatpush1.bf16.msra.mxu0 %v885
      %1812 = vmatprep.subr.bf16.mxu0 %v894
      %1813 = vmatpush1.bf16.msra.mxu0 %v893
      %1814 = vmatprep.subr.bf16.mxu0 %v902
      %1815 = vmatpush1.bf16.msra.mxu0 %v901
      %1816 = vmatprep.subr.bf16.mxu0 %v910
      %1817 = vmatpush1.bf16.msra.mxu0 %v909
      %1818 = vmatprep.subr.bf16.mxu0 %v918
      %1819 = vmatpush1.bf16.msra.mxu0 %v917
      %1820 = vmatprep.subr.bf16.mxu0 %v926
      %1821 = vmatpush1.bf16.msra.mxu0 %v925
      %1822 = vmatprep.subr.bf16.mxu0 %v934
      %1823 = vmatpush1.bf16.msra.mxu0 %v933
      %1824 = vmatprep.subr.bf16.mxu0 %v942
      %1825 = vmatpush1.bf16.msra.mxu0 %v941
      %1826 = vmatprep.mubr.bf16.mxu0 %v1704
      %1827 = vmatmul.mubr.bf16.gmra.mrb[0].mxu0 %v1703
      %v1828 = vpop.f32.mrb[0].mxu0
      %v1829 = vadd.f32 %v1725, %v1828
      %v1830 = vpop.f32.mrb[0].mxu0
      %v1831 = vadd.f32 %v1727, %v1830
      %v1832 = vpop.f32.mrb[0].mxu0
      %v1833 = vpop.f32.mrb[0].mxu0
      %1834 = vdwg.mxu0
      %1835 = vmatprep.subr.bf16.mxu0 %v824
      %1836 = vmatpush1.bf16.msra.mxu0 %v823
      %1837 = vmatprep.subr.bf16.mxu0 %v832
      %1838 = vmatpush1.bf16.msra.mxu0 %v831
      %1839 = vmatprep.subr.bf16.mxu0 %v840
      %1840 = vmatpush1.bf16.msra.mxu0 %v839
      %1841 = vmatprep.subr.bf16.mxu0 %v848
      %1842 = vmatpush1.bf16.msra.mxu0 %v847
      %1843 = vmatprep.subr.bf16.mxu0 %v856
      %1844 = vmatpush1.bf16.msra.mxu0 %v855
      %1845 = vmatprep.subr.bf16.mxu0 %v864
      %1846 = vmatpush1.bf16.msra.mxu0 %v863
      %1847 = vmatprep.subr.bf16.mxu0 %v872
      %1848 = vmatpush1.bf16.msra.mxu0 %v871
      %1849 = vmatprep.subr.bf16.mxu0 %v880
      %1850 = vmatpush1.bf16.msra.mxu0 %v879
      %1851 = vmatprep.subr.bf16.mxu0 %v888
      %1852 = vmatpush1.bf16.msra.mxu0 %v887
      %1853 = vmatprep.subr.bf16.mxu0 %v896
      %1854 = vmatpush1.bf16.msra.mxu0 %v895
      %1855 = vmatprep.subr.bf16.mxu0 %v904
      %1856 = vmatpush1.bf16.msra.mxu0 %v903
      %1857 = vmatprep.subr.bf16.mxu0 %v912
      %1858 = vmatpush1.bf16.msra.mxu0 %v911
      %1859 = vmatprep.subr.bf16.mxu0 %v920
      %1860 = vmatpush1.bf16.msra.mxu0 %v919
      %1861 = vmatprep.subr.bf16.mxu0 %v928
      %1862 = vmatpush1.bf16.msra.mxu0 %v927
      %1863 = vmatprep.subr.bf16.mxu0 %v936
      %1864 = vmatpush1.bf16.msra.mxu0 %v935
      %1865 = vmatprep.subr.bf16.mxu0 %v944
      %1866 = vmatpush1.bf16.msra.mxu0 %v943
      %1867 = vmatprep.mubr.bf16.mxu0 %v1704
      %1868 = vmatmul.mubr.bf16.gmra.mrb[0].mxu0 %v1703
      %v1869 = vpop.f32.mrb[0].mxu0
      %v1870 = vadd.f32 %v1735, %v1869
      %v1871 = vpop.f32.mrb[0].mxu0
      %v1872 = vadd.f32 %v1743, %v1871
      %v1873 = vpop.f32.mrb[0].mxu0
      %v1874 = vpop.f32.mrb[0].mxu0
      %1875 = vdwg.mxu0
      %1876 = vmatprep.subr.bf16.mxu0 %v826
      %1877 = vmatpush1.bf16.msra.mxu0 %v825
      %1878 = vmatprep.subr.bf16.mxu0 %v834
      %1879 = vmatpush1.bf16.msra.mxu0 %v833
      %1880 = vmatprep.subr.bf16.mxu0 %v842
      %1881 = vmatpush1.bf16.msra.mxu0 %v841
      %1882 = vmatprep.subr.bf16.mxu0 %v850
      %1883 = vmatpush1.bf16.msra.mxu0 %v849
      %1884 = vmatprep.subr.bf16.mxu0 %v858
      %1885 = vmatpush1.bf16.msra.mxu0 %v857
      %1886 = vmatprep.subr.bf16.mxu0 %v866
      %1887 = vmatpush1.bf16.msra.mxu0 %v865
      %1888 = vmatprep.subr.bf16.mxu0 %v874
      %1889 = vmatpush1.bf16.msra.mxu0 %v873
      %1890 = vmatprep.subr.bf16.mxu0 %v882
      %1891 = vmatpush1.bf16.msra.mxu0 %v881
      %1892 = vmatprep.subr.bf16.mxu0 %v890
      %1893 = vmatpush1.bf16.msra.mxu0 %v889
      %1894 = vmatprep.subr.bf16.mxu0 %v898
      %1895 = vmatpush1.bf16.msra.mxu0 %v897
      %1896 = vmatprep.subr.bf16.mxu0 %v906
      %1897 = vmatpush1.bf16.msra.mxu0 %v905
      %1898 = vmatprep.subr.bf16.mxu0 %v914
      %1899 = vmatpush1.bf16.msra.mxu0 %v913
      %1900 = vmatprep.subr.bf16.mxu0 %v922
      %1901 = vmatpush1.bf16.msra.mxu0 %v921
      %1902 = vmatprep.subr.bf16.mxu0 %v930
      %1903 = vmatpush1.bf16.msra.mxu0 %v929
      %1904 = vmatprep.subr.bf16.mxu0 %v938
      %1905 = vmatpush1.bf16.msra.mxu0 %v937
      %1906 = vmatprep.subr.bf16.mxu0 %v946
      %1907 = vmatpush1.bf16.msra.mxu0 %v945
      %1908 = vmatprep.mubr.bf16.mxu0 %v1704
      %1909 = vmatmul.mubr.bf16.gmra.mrb[0].mxu0 %v1703
      %v1910 = vpop.f32.mrb[0].mxu0
      %v1911 = vadd.f32 %v1742, %v1910
      %v1912 = vpop.f32.mrb[0].mxu0
      %v1913 = vadd.f32 %v1744, %v1912
      %v1914 = vpop.f32.mrb[0].mxu0
      %v1915 = vpop.f32.mrb[0].mxu0
      %1916 = vdwg.mxu0
      %v1917 = vadd.f32 %v1788, %v1287
      %v1918 = vadd.f32 %v1790, %v1291
      %v1919 = vadd.f32 %v1829, %v1295
      %v1920 = vadd.f32 %v1831, %v1299
      %v1921 = vadd.f32 %v1870, %v1303
      %v1922 = vadd.f32 %v1872, %v1307
      %v1923 = vadd.f32 %v1911, %v1311
      %v1924 = vadd.f32 %v1913, %v1315
      %v1925 = vxor.u32 %v1917, 2147483648
      %v1926 = vxor.u32 %v1918, 2147483648
      %v1927 = vxor.u32 %v1919, 2147483648
      %v1928 = vxor.u32 %v1920, 2147483648
      %v1929 = vxor.u32 %v1921, 2147483648
      %v1930 = vxor.u32 %v1922, 2147483648
      %v1931 = vmul.f32 %v1925, 1.442695
      %v1932 = vpow.pop %v1931
      %v1933 = vmul.f32 %v1926, 1.442695
      %v1934 = vpow.pop %v1933
      %v1935 = vmul.f32 %v1927, 1.442695
      %v1936 = vpow.pop %v1935
      %v1937 = vmul.f32 %v1928, 1.442695
      %v1938 = vpow.pop %v1937
      %v1939 = vmul.f32 %v1929, 1.442695
      %v1940 = vpow.pop %v1939
      %v1941 = vmul.f32 %v1930, 1.442695
      %v1942 = vpow.pop %v1941
      %v1943 = vadd.f32 %v1932, 1.0
      %v1944 = vadd.f32 %v1934, 1.0
      %v1945 = vadd.f32 %v1936, 1.0
      %v1946 = vadd.f32 %v1938, 1.0
      %v1947 = vadd.f32 %v1940, 1.0
      %v1948 = vadd.f32 %v1942, 1.0
      %v1949 = vrcp.pop %v1943
      %v1950 = vmul.f32 1.0, %v1949
      %v1951 = vrcp.pop %v1944
      %v1952 = vmul.f32 1.0, %v1951
      %v1953 = vrcp.pop %v1945
      %v1954 = vmul.f32 1.0, %v1953
      %v1955 = vrcp.pop %v1946
      %v1956 = vmul.f32 1.0, %v1955
      %v1957 = vrcp.pop %v1947
      %v1958 = vmul.f32 1.0, %v1957
      %v1959 = vrcp.pop %v1948
      %v1960 = vmul.f32 1.0, %v1959
      %v1961 = vtanh.pop %v1923
      %v1962 = vtanh.pop %v1924
      %v1963 = vmul.f32 %v1954, %v1701
      %v1964 = vmul.f32 %v1956, %v1702
      %v1965 = vmul.f32 %v1950, %v1961
      %v1966 = vmul.f32 %v1952, %v1962
      %v1967 = vadd.f32 %v1963, %v1965
      %v1968 = vadd.f32 %v1964, %v1966
      %v1969 = vtanh.pop %v1967
      %v1970 = vtanh.pop %v1968
      %v1971 = vmul.f32 %v1958, %v1969
      %v1972 = vmul.f32 %v1960, %v1970
      %v1975 = vcombine.low %v1971, %v1972
      %v1977 = vunpack.c.l.s4 1983009808
      %v1978 = vunpack.c.0.s8 %v1977
      %v1979 = vlaneseq
      %v1980 = vshrl.u32 %v1979, 7
      %v1981 = vsub.s32 %v1978, %v1980
      %v1982 = vrot.slane %v1975, %v1981
      %s1984 = scalar_lea.vmem %s277, 8
      %1985 = vst [vmem:[%s1984] sm:$0xf] %v1982
      %s1986 = sadd.s32 %s416, 2
      %p1987 = scmp.lt.s32.totalorder %s1986, 11
      %s1988 = scalar_select %p1987, 1, 0
      %v1989 = vstv %s1988
      %vm1990 = vcmp.eq.s32.totalorder %v1989, 1
      %v1991 = vsel %vm1990, %v1971, %v1699
      %v1992 = vsel %vm1990, %v1972, %v1700
      %v1993 = vsel %vm1990, %v1967, %v1701
      %v1994 = vsel %vm1990, %v1968, %v1702
      %v1995 = vpack.c.bf16 %v1991, %v1991
      %v1996 = vpack.c.bf16 %v1992, %v1992
      %s1997 = scalar_lea.vmem %s270, 24
      %v1998 = vld [vmem:[%s1997] sm:$0xff]
      %v1999 = vunpack.c.l.bf16 %v1998
      %v2000 = vunpack.c.h.bf16 %v1998
      %v2003 = vcombine.high %v1999, %v1999
      %v2005 = vunpack.c.l.s4 1983009808
      %v2006 = vunpack.c.0.s8 %v2005
      %v2007 = vlaneseq
      %v2008 = vshrl.u32 %v2007, 7
      %v2009 = vsub.s32 %v2006, %v2008
      %v2010 = vrot.slane %v1999, %v2009
      %v2012 = vunpack.c.l.s4 1983009808
      %v2013 = vunpack.c.0.s8 %v2012
      %v2014 = vlaneseq
      %v2015 = vshrl.u32 %v2014, 7
      %v2016 = vsub.s32 %v2013, %v2015
      %v2017 = vrot.slane %v2003, %v2016
      %v2018 = vcombine.high %v2010, %v2010
      %v2019 = vcombine.high %v2017, %v2017
      %v2020 = vcombine.high %v2000, %v2000
      %v2022 = vunpack.c.l.s4 1983009808
      %v2023 = vunpack.c.0.s8 %v2022
      %v2024 = vlaneseq
      %v2025 = vshrl.u32 %v2024, 7
      %v2026 = vsub.s32 %v2023, %v2025
      %v2027 = vrot.slane %v2000, %v2026
      %v2029 = vunpack.c.l.s4 1983009808
      %v2030 = vunpack.c.0.s8 %v2029
      %v2031 = vlaneseq
      %v2032 = vshrl.u32 %v2031, 7
      %v2033 = vsub.s32 %v2030, %v2032
      %v2034 = vrot.slane %v2020, %v2033
      %v2035 = vcombine.high %v2027, %v2027
      %v2036 = vcombine.high %v2034, %v2034
      %2045 = vmatprep.subr.bf16.mxu0 %v820
      %2046 = vmatpush1.bf16.msra.mxu0 %v819
      %2047 = vmatprep.subr.bf16.mxu0 %v828
      %2048 = vmatpush1.bf16.msra.mxu0 %v827
      %2049 = vmatprep.subr.bf16.mxu0 %v836
      %2050 = vmatpush1.bf16.msra.mxu0 %v835
      %2051 = vmatprep.subr.bf16.mxu0 %v844
      %2052 = vmatpush1.bf16.msra.mxu0 %v843
      %2053 = vmatprep.subr.bf16.mxu0 %v852
      %2054 = vmatpush1.bf16.msra.mxu0 %v851
      %2055 = vmatprep.subr.bf16.mxu0 %v860
      %2056 = vmatpush1.bf16.msra.mxu0 %v859
      %2057 = vmatprep.subr.bf16.mxu0 %v868
      %2058 = vmatpush1.bf16.msra.mxu0 %v867
      %2059 = vmatprep.subr.bf16.mxu0 %v876
      %2060 = vmatpush1.bf16.msra.mxu0 %v875
      %2061 = vmatprep.subr.bf16.mxu0 %v884
      %2062 = vmatpush1.bf16.msra.mxu0 %v883
      %2063 = vmatprep.subr.bf16.mxu0 %v892
      %2064 = vmatpush1.bf16.msra.mxu0 %v891
      %2065 = vmatprep.subr.bf16.mxu0 %v900
      %2066 = vmatpush1.bf16.msra.mxu0 %v899
      %2067 = vmatprep.subr.bf16.mxu0 %v908
      %2068 = vmatpush1.bf16.msra.mxu0 %v907
      %2069 = vmatprep.subr.bf16.mxu0 %v916
      %2070 = vmatpush1.bf16.msra.mxu0 %v915
      %2071 = vmatprep.subr.bf16.mxu0 %v924
      %2072 = vmatpush1.bf16.msra.mxu0 %v923
      %2073 = vmatprep.subr.bf16.mxu0 %v932
      %2074 = vmatpush1.bf16.msra.mxu0 %v931
      %2075 = vmatprep.subr.bf16.mxu0 %v940
      %2076 = vmatpush1.bf16.msra.mxu0 %v939
      %2077 = vmatprep.mubr.bf16.mxu0 %v1996
      %2078 = vmatmul.mubr.bf16.gmra.mrb[0].mxu0 %v1995
      %v2079 = vpop.f32.mrb[0].mxu0
      %v2080 = vadd.f32 %v2010, %v2079
      %v2081 = vpop.f32.mrb[0].mxu0
      %v2082 = vadd.f32 %v2018, %v2081
      %v2083 = vpop.f32.mrb[0].mxu0
      %v2084 = vpop.f32.mrb[0].mxu0
      %2085 = vdwg.mxu0
      %2086 = vmatprep.subr.bf16.mxu0 %v822
      %2087 = vmatpush1.bf16.msra.mxu0 %v821
      %2088 = vmatprep.subr.bf16.mxu0 %v830
      %2089 = vmatpush1.bf16.msra.mxu0 %v829
      %2090 = vmatprep.subr.bf16.mxu0 %v838
      %2091 = vmatpush1.bf16.msra.mxu0 %v837
      %2092 = vmatprep.subr.bf16.mxu0 %v846
      %2093 = vmatpush1.bf16.msra.mxu0 %v845
      %2094 = vmatprep.subr.bf16.mxu0 %v854
      %2095 = vmatpush1.bf16.msra.mxu0 %v853
      %2096 = vmatprep.subr.bf16.mxu0 %v862
      %2097 = vmatpush1.bf16.msra.mxu0 %v861
      %2098 = vmatprep.subr.bf16.mxu0 %v870
      %2099 = vmatpush1.bf16.msra.mxu0 %v869
      %2100 = vmatprep.subr.bf16.mxu0 %v878
      %2101 = vmatpush1.bf16.msra.mxu0 %v877
      %2102 = vmatprep.subr.bf16.mxu0 %v886
      %2103 = vmatpush1.bf16.msra.mxu0 %v885
      %2104 = vmatprep.subr.bf16.mxu0 %v894
      %2105 = vmatpush1.bf16.msra.mxu0 %v893
      %2106 = vmatprep.subr.bf16.mxu0 %v902
      %2107 = vmatpush1.bf16.msra.mxu0 %v901
      %2108 = vmatprep.subr.bf16.mxu0 %v910
      %2109 = vmatpush1.bf16.msra.mxu0 %v909
      %2110 = vmatprep.subr.bf16.mxu0 %v918
      %2111 = vmatpush1.bf16.msra.mxu0 %v917
      %2112 = vmatprep.subr.bf16.mxu0 %v926
      %2113 = vmatpush1.bf16.msra.mxu0 %v925
      %2114 = vmatprep.subr.bf16.mxu0 %v934
      %2115 = vmatpush1.bf16.msra.mxu0 %v933
      %2116 = vmatprep.subr.bf16.mxu0 %v942
      %2117 = vmatpush1.bf16.msra.mxu0 %v941
      %2118 = vmatprep.mubr.bf16.mxu0 %v1996
      %2119 = vmatmul.mubr.bf16.gmra.mrb[0].mxu0 %v1995
      %v2120 = vpop.f32.mrb[0].mxu0
      %v2121 = vadd.f32 %v2017, %v2120
      %v2122 = vpop.f32.mrb[0].mxu0
      %v2123 = vadd.f32 %v2019, %v2122
      %v2124 = vpop.f32.mrb[0].mxu0
      %v2125 = vpop.f32.mrb[0].mxu0
      %2126 = vdwg.mxu0
      %2127 = vmatprep.subr.bf16.mxu0 %v824
      %2128 = vmatpush1.bf16.msra.mxu0 %v823
      %2129 = vmatprep.subr.bf16.mxu0 %v832
      %2130 = vmatpush1.bf16.msra.mxu0 %v831
      %2131 = vmatprep.subr.bf16.mxu0 %v840
      %2132 = vmatpush1.bf16.msra.mxu0 %v839
      %2133 = vmatprep.subr.bf16.mxu0 %v848
      %2134 = vmatpush1.bf16.msra.mxu0 %v847
      %2135 = vmatprep.subr.bf16.mxu0 %v856
      %2136 = vmatpush1.bf16.msra.mxu0 %v855
      %2137 = vmatprep.subr.bf16.mxu0 %v864
      %2138 = vmatpush1.bf16.msra.mxu0 %v863
      %2139 = vmatprep.subr.bf16.mxu0 %v872
      %2140 = vmatpush1.bf16.msra.mxu0 %v871
      %2141 = vmatprep.subr.bf16.mxu0 %v880
      %2142 = vmatpush1.bf16.msra.mxu0 %v879
      %2143 = vmatprep.subr.bf16.mxu0 %v888
      %2144 = vmatpush1.bf16.msra.mxu0 %v887
      %2145 = vmatprep.subr.bf16.mxu0 %v896
      %2146 = vmatpush1.bf16.msra.mxu0 %v895
      %2147 = vmatprep.subr.bf16.mxu0 %v904
      %2148 = vmatpush1.bf16.msra.mxu0 %v903
      %2149 = vmatprep.subr.bf16.mxu0 %v912
      %2150 = vmatpush1.bf16.msra.mxu0 %v911
      %2151 = vmatprep.subr.bf16.mxu0 %v920
      %2152 = vmatpush1.bf16.msra.mxu0 %v919
      %2153 = vmatprep.subr.bf16.mxu0 %v928
      %2154 = vmatpush1.bf16.msra.mxu0 %v927
      %2155 = vmatprep.subr.bf16.mxu0 %v936
      %2156 = vmatpush1.bf16.msra.mxu0 %v935
      %2157 = vmatprep.subr.bf16.mxu0 %v944
      %2158 = vmatpush1.bf16.msra.mxu0 %v943
      %2159 = vmatprep.mubr.bf16.mxu0 %v1996
      %2160 = vmatmul.mubr.bf16.gmra.mrb[0].mxu0 %v1995
      %v2161 = vpop.f32.mrb[0].mxu0
      %v2162 = vadd.f32 %v2027, %v2161
      %v2163 = vpop.f32.mrb[0].mxu0
      %v2164 = vadd.f32 %v2035, %v2163
      %v2165 = vpop.f32.mrb[0].mxu0
      %v2166 = vpop.f32.mrb[0].mxu0
      %2167 = vdwg.mxu0
      %2168 = vmatprep.subr.bf16.mxu0 %v826
      %2169 = vmatpush1.bf16.msra.mxu0 %v825
      %2170 = vmatprep.subr.bf16.mxu0 %v834
      %2171 = vmatpush1.bf16.msra.mxu0 %v833
      %2172 = vmatprep.subr.bf16.mxu0 %v842
      %2173 = vmatpush1.bf16.msra.mxu0 %v841
      %2174 = vmatprep.subr.bf16.mxu0 %v850
      %2175 = vmatpush1.bf16.msra.mxu0 %v849
      %2176 = vmatprep.subr.bf16.mxu0 %v858
      %2177 = vmatpush1.bf16.msra.mxu0 %v857
      %2178 = vmatprep.subr.bf16.mxu0 %v866
      %2179 = vmatpush1.bf16.msra.mxu0 %v865
      %2180 = vmatprep.subr.bf16.mxu0 %v874
      %2181 = vmatpush1.bf16.msra.mxu0 %v873
      %2182 = vmatprep.subr.bf16.mxu0 %v882
      %2183 = vmatpush1.bf16.msra.mxu0 %v881
      %2184 = vmatprep.subr.bf16.mxu0 %v890
      %2185 = vmatpush1.bf16.msra.mxu0 %v889
      %2186 = vmatprep.subr.bf16.mxu0 %v898
      %2187 = vmatpush1.bf16.msra.mxu0 %v897
      %2188 = vmatprep.subr.bf16.mxu0 %v906
      %2189 = vmatpush1.bf16.msra.mxu0 %v905
      %2190 = vmatprep.subr.bf16.mxu0 %v914
      %2191 = vmatpush1.bf16.msra.mxu0 %v913
      %2192 = vmatprep.subr.bf16.mxu0 %v922
      %2193 = vmatpush1.bf16.msra.mxu0 %v921
      %2194 = vmatprep.subr.bf16.mxu0 %v930
      %2195 = vmatpush1.bf16.msra.mxu0 %v929
      %2196 = vmatprep.subr.bf16.mxu0 %v938
      %2197 = vmatpush1.bf16.msra.mxu0 %v937
      %2198 = vmatprep.subr.bf16.mxu0 %v946
      %2199 = vmatpush1.bf16.msra.mxu0 %v945
      %2200 = vmatprep.mubr.bf16.mxu0 %v1996
      %2201 = vmatmul.mubr.bf16.gmra.mrb[0].mxu0 %v1995
      %v2202 = vpop.f32.mrb[0].mxu0
      %v2203 = vadd.f32 %v2034, %v2202
      %v2204 = vpop.f32.mrb[0].mxu0
      %v2205 = vadd.f32 %v2036, %v2204
      %v2206 = vpop.f32.mrb[0].mxu0
      %v2207 = vpop.f32.mrb[0].mxu0
      %2208 = vdwg.mxu0
      %v2209 = vadd.f32 %v2080, %v1287
      %v2210 = vadd.f32 %v2082, %v1291
      %v2211 = vadd.f32 %v2121, %v1295
      %v2212 = vadd.f32 %v2123, %v1299
      %v2213 = vadd.f32 %v2162, %v1303
      %v2214 = vadd.f32 %v2164, %v1307
      %v2215 = vadd.f32 %v2203, %v1311
      %v2216 = vadd.f32 %v2205, %v1315
      %v2217 = vxor.u32 %v2209, 2147483648
      %v2218 = vxor.u32 %v2210, 2147483648
      %v2219 = vxor.u32 %v2211, 2147483648
      %v2220 = vxor.u32 %v2212, 2147483648
      %v2221 = vxor.u32 %v2213, 2147483648
      %v2222 = vxor.u32 %v2214, 2147483648
      %v2223 = vmul.f32 %v2217, 1.442695
      %v2224 = vpow.pop %v2223
      %v2225 = vmul.f32 %v2218, 1.442695
      %v2226 = vpow.pop %v2225
      %v2227 = vmul.f32 %v2219, 1.442695
      %v2228 = vpow.pop %v2227
      %v2229 = vmul.f32 %v2220, 1.442695
      %v2230 = vpow.pop %v2229
      %v2231 = vmul.f32 %v2221, 1.442695
      %v2232 = vpow.pop %v2231
      %v2233 = vmul.f32 %v2222, 1.442695
      %v2234 = vpow.pop %v2233
      %v2235 = vadd.f32 %v2224, 1.0
      %v2236 = vadd.f32 %v2226, 1.0
      %v2237 = vadd.f32 %v2228, 1.0
      %v2238 = vadd.f32 %v2230, 1.0
      %v2239 = vadd.f32 %v2232, 1.0
      %v2240 = vadd.f32 %v2234, 1.0
      %v2241 = vrcp.pop %v2235
      %v2242 = vmul.f32 1.0, %v2241
      %v2243 = vrcp.pop %v2236
      %v2244 = vmul.f32 1.0, %v2243
      %v2245 = vrcp.pop %v2237
      %v2246 = vmul.f32 1.0, %v2245
      %v2247 = vrcp.pop %v2238
      %v2248 = vmul.f32 1.0, %v2247
      %v2249 = vrcp.pop %v2239
      %v2250 = vmul.f32 1.0, %v2249
      %v2251 = vrcp.pop %v2240
      %v2252 = vmul.f32 1.0, %v2251
      %v2253 = vtanh.pop %v2215
      %v2254 = vtanh.pop %v2216
      %v2255 = vmul.f32 %v2246, %v1993
      %v2256 = vmul.f32 %v2248, %v1994
      %v2257 = vmul.f32 %v2242, %v2253
      %v2258 = vmul.f32 %v2244, %v2254
      %v2259 = vadd.f32 %v2255, %v2257
      %v2260 = vadd.f32 %v2256, %v2258
      %v2261 = vtanh.pop %v2259
      %v2262 = vtanh.pop %v2260
      %v2263 = vmul.f32 %v2250, %v2261
      %v2264 = vmul.f32 %v2252, %v2262
      %v2267 = vcombine.low %v2263, %v2264
      %v2269 = vunpack.c.l.s4 1983009808
      %v2270 = vunpack.c.0.s8 %v2269
      %v2271 = vlaneseq
      %v2272 = vshrl.u32 %v2271, 7
      %v2273 = vsub.s32 %v2270, %v2272
      %v2274 = vrot.slane %v2267, %v2273
      %s2276 = scalar_lea.vmem %s277, 12
      %2277 = vst [vmem:[%s2276] sm:$0xf] %v2274
      %s2278 = sadd.s32 %s416, 3
      %p2279 = scmp.lt.s32.totalorder %s2278, 11
      %s2280 = scalar_select %p2279, 1, 0
      %v2281 = vstv %s2280
      %vm2282 = vcmp.eq.s32.totalorder %v2281, 1
      %v2283 = vsel %vm2282, %v2263, %v1991
      %v2284 = vsel %vm2282, %v2264, %v1992
      %v2285 = vsel %vm2282, %v2259, %v1993
      %v2286 = vsel %vm2282, %v2260, %v1994
      %v2289 = vcombine.low %v2283, %v2284
      %v2291 = vunpack.c.l.s4 1983009808
      %v2292 = vunpack.c.0.s8 %v2291
      %v2293 = vlaneseq
      %v2294 = vshrl.u32 %v2293, 7
      %v2295 = vsub.s32 %v2292, %v2294
      %v2296 = vrot.slane %v2289, %v2295
      %2298 = vst [vmem:[%s6] sm:$0xf] %v2296
      %v2301 = vcombine.low %v2285, %v2286
      %v2303 = vunpack.c.l.s4 1983009808
      %v2304 = vunpack.c.0.s8 %v2303
      %v2305 = vlaneseq
      %v2306 = vshrl.u32 %v2305, 7
      %v2307 = vsub.s32 %v2304, %v2306
      %v2308 = vrot.slane %v2301, %v2307
      %2310 = vst [vmem:[%s7] sm:$0xf] %v2308
      %s2311 = smul.u32 4, %s19
      %p2312 = scmp.lt.s32.totalorder %s2311, 11
      %s2313 = scalar_select %p2312, %s2311, 11
      %s2314 = smul.addr %s2313, 2
      %s2315 = smul.addr %s2314, 2
      %s2316 = scalar_lea.vmem %s5, %s2315
      // Predicated region
      $region45: #{plugin_lstm_rnnt_pre.3} parent=39 // pred_check
        %p2317 = pneg %p147
      $region46: #{plugin_lstm_rnnt_pre.3} parent=39 // pred_check_branch
        %2319 = sbr.rel (%p2317) target = $region48
      $region47: #{plugin_lstm_rnnt_pre.3} parent=39 // pred_region
        %s2320 = smul.u32 4, %s19
      $region48: #{plugin_lstm_rnnt_pre.3} parent=39 // pred_fallthru
        _
      // Predicated region
      $region49: #{plugin_lstm_rnnt_pre.3} parent=39 // pred_check
        %p2321 = pneg %p168
      $region50: #{plugin_lstm_rnnt_pre.3} parent=39 // pred_check_branch
        %2323 = sbr.rel (%p2321) target = $region52
      $region51: #{plugin_lstm_rnnt_pre.3} parent=39 // pred_region
        _
      $region52: #{plugin_lstm_rnnt_pre.3} parent=39 // pred_fallthru
        _
      // Predicated region
      $region53: #{plugin_lstm_rnnt_pre.3} parent=39 // pred_check
        %p2324 = pneg %p189
      $region54: #{plugin_lstm_rnnt_pre.3} parent=39 // pred_check_branch
        %2326 = sbr.rel (%p2324) target = $region56
      $region55: #{plugin_lstm_rnnt_pre.3} parent=39 // pred_region
        _
      $region56: #{plugin_lstm_rnnt_pre.3} parent=39 // pred_fallthru
        _
      // Predicated region
      $region57: #{plugin_lstm_rnnt_pre.3} parent=39 // pred_check
        %p2327 = pneg %p168
      $region58: #{plugin_lstm_rnnt_pre.3} parent=39 // pred_check_branch
        %2329 = sbr.rel (%p2327) target = $region60
      $region59: #{plugin_lstm_rnnt_pre.3} parent=39 // pred_region
        _
      $region60: #{plugin_lstm_rnnt_pre.3} parent=39 // pred_fallthru
        _
      // Predicated region
      $region61: #{plugin_lstm_rnnt_pre.3} parent=39 // pred_check
        %p2330 = pneg %p189
      $region62: #{plugin_lstm_rnnt_pre.3} parent=39 // pred_check_branch
        %2332 = sbr.rel (%p2330) target = $region64
      $region63: #{plugin_lstm_rnnt_pre.3} parent=39 // pred_region
        _
      $region64: #{plugin_lstm_rnnt_pre.3} parent=39 // pred_fallthru
        _
    $region40: #{plugin_lstm_rnnt_pre.3} parent=5 // pred_fallthru
      _
    %p2333 = scmp.le.s32.totalorder 2, %s14
    // Predicated region
    $region65: #{plugin_lstm_rnnt_pre.3} parent=5 // pred_check
      %p2334 = pneg %p2333
    $region66: #{plugin_lstm_rnnt_pre.3} parent=5 // pred_check_branch
      %2336 = sbr.rel (%p2334) target = $region68
    $region67: #{plugin_lstm_rnnt_pre.3} parent=5 // pred_region
      %s2337 = ssub.s32 %s14, 2
      // Predicated region
      $region69: #{plugin_lstm_rnnt_pre.3} parent=67 // pred_check
        %p2338 = pneg %p153
      $region70: #{plugin_lstm_rnnt_pre.3} parent=67 // pred_check_branch
        %2340 = sbr.rel (%p2338) target = $region72
      $region71: #{plugin_lstm_rnnt_pre.3} parent=67 // pred_region
        %s2341 = smul.u32 4, %s20
        %p2342 = scmp.lt.s32.totalorder %s2341, 11
        %s2343 = scalar_select %p2342, %s2341, 11
        %s2344 = smul.addr %s2343, 2
        %s2345 = smul.addr %s2344, 2
        %s2346 = scalar_lea.vmem %s5, %s2345
      $region72: #{plugin_lstm_rnnt_pre.3} parent=67 // pred_fallthru
        _
    $region68: #{plugin_lstm_rnnt_pre.3} parent=5 // pred_fallthru
      _
  $region6: #{plugin_lstm_rnnt_pre.3} parent=0 // loop_footer
    %s18 = sadd.s32 1, %s14
  $region7: #{plugin_lstm_rnnt_pre.3} parent=0 // loop_footer_branch
    %13 = sbr.rel target = $region3
  $region8: #{plugin_lstm_rnnt_pre.3} parent=0 // loop_exit
    _

// kernel: plugin_lstm_rnnt_pre.2
$region0: #{plugin_lstm_rnnt_pre.2}
  #allocation0 [shape = 'u32[]', space=smem, size = 0x4, offset = 0x4, fixed_abs, tag = 'smem constant byte address 0x4 - core index']
  #allocation1 [shape = 'u32[144,128]{1,0:T(1,128)}', space=vmem, size = 0x12000, scoped, tag = 'internal scratch']
  %s0 = inlined_call_operand.vmem [shape: bf16[12,2,1024], index: 0, kind: input, shape index: {}]
  %s1 = inlined_call_operand.vmem [shape: f32[1,1024], index: 1, kind: input, shape index: {}]
  %s2 = inlined_call_operand.vmem [shape: f32[2,256], index: 2, kind: input, shape index: {}]
  %s3 = inlined_call_operand.vmem [shape: f32[2,256], index: 3, kind: input, shape index: {}]
  %s4 = inlined_call_operand.vmem [shape: bf16[256,1024], index: 4, kind: input, shape index: {}]
  %s5 = inlined_call_operand.vmem [shape: bf16[12,2,256], index: 5, kind: output, shape index: {0}]
  %s6 = inlined_call_operand.vmem [shape: f32[2,256], index: 6, kind: output, shape index: {1}]
  %s7 = inlined_call_operand.vmem [shape: f32[2,256], index: 7, kind: output, shape index: {2}]
  %8 = xla_tuple %s5, %s6, %s7
  %s9 = sld [smem:[#allocation0]]
  $region73: #{plugin_lstm_rnnt_pre.2} parent=0
    _
  %s11 = ssub.s32 1, %s9
  %s12 = scalar_select 0, %s11, %s9
  loop: start=0, step=1, limit=5
  $region2: #{plugin_lstm_rnnt_pre.2} parent=0 // loop_pre_header
    _
  $region3: #{plugin_lstm_rnnt_pre.2} parent=0 // loop_header
    %s14 = sphi 0, %s18
    %p15 = scmp.ge.s32.totalorder %s14, 5
    %s24 = sphi 0, %s26
    %s27 = sphi 0, %s24
    %s28 = sphi 0, %s27
    %s44 = sphi 0, %s28
    %s48 = sphi 0, %s48
    %s50 = sphi 0, %s48
    %s51 = sphi 0, %s50
    %s65 = sphi 0, %s51
    %s69 = sphi 0, %s69
    %s71 = sphi 0, %s69
    %s72 = sphi 0, %s71
    %s86 = sphi 0, %s72
    %s90 = sphi 0, %s90
    %s92 = sphi 0, %s90
    %s93 = sphi 0, %s92
    %s107 = sphi 0, %s93
    %s111 = sphi 0, %s111
    %s113 = sphi 0, %s111
    %s114 = sphi 0, %s113
    %s128 = sphi 0, %s114
    %s134 = sphi 0, %s136
    %s137 = sphi 0, %s134
    %s138 = sphi 0, %s137
    %s154 = sphi 0, %s138
    %s158 = sphi 0, %s158
    %s160 = sphi 0, %s158
    %s161 = sphi 0, %s160
    %s175 = sphi 0, %s161
    %s179 = sphi 0, %s179
    %s181 = sphi 0, %s179
    %s182 = sphi 0, %s181
    %s196 = sphi 0, %s182
  $region4: #{plugin_lstm_rnnt_pre.2} parent=0 // loop_header_branch
    %17 = sbr.rel (%p15) target = $region8
  $region5: #{plugin_lstm_rnnt_pre.2} parent=0 // loop_body
    %s19 = ssub.s32 %s14, 1
    %s20 = ssub.s32 %s14, 2
    %s21 = sadd.s32 %s14, 1
    %s22 = ssub.s32 %s14, %s21
    %p23 = scmp.eq.s32.totalorder %s22, 0
    %s25 = sadd.s32 %s24, 1
    %s26 = scalar_select %p23, %s24, %s25
    %p29 = pneg %p23
    %p30 = scmp.eq.s32.totalorder %s14, 2
    %p31 = por %p29, %p30
    %p32 = scmp.ne.s32.totalorder %s24, %s27
    %p33 = scmp.eq.s32.totalorder %s14, 0
    %p34 = por %p32, %p33
    %p35 = scmp.ne.s32.totalorder %s24, %s27
    %p36 = scmp.eq.s32.totalorder %s19, 2
    %p37 = por %p35, %p36
    %p38 = scmp.ne.s32.totalorder %s27, %s28
    %p39 = scmp.eq.s32.totalorder %s19, 0
    %p40 = por %p38, %p39
    %p41 = scmp.ne.s32.totalorder %s27, %s28
    %p42 = scmp.eq.s32.totalorder %s20, 2
    %p43 = por %p41, %p42
    %p45 = scmp.ne.s32.totalorder %s28, %s44
    %p46 = scmp.eq.s32.totalorder %s20, 0
    %p47 = por %p45, %p46
    %s49 = sadd.s32 %s48, 1
    %p52 = scmp.eq.s32.totalorder %s14, 2
    %p53 = scmp.ne.s32.totalorder %s48, %s50
    %p54 = scmp.eq.s32.totalorder %s14, 0
    %p55 = por %p53, %p54
    %p56 = scmp.ne.s32.totalorder %s48, %s50
    %p57 = scmp.eq.s32.totalorder %s19, 2
    %p58 = por %p56, %p57
    %p59 = scmp.ne.s32.totalorder %s50, %s51
    %p60 = scmp.eq.s32.totalorder %s19, 0
    %p61 = por %p59, %p60
    %p62 = scmp.ne.s32.totalorder %s50, %s51
    %p63 = scmp.eq.s32.totalorder %s20, 2
    %p64 = por %p62, %p63
    %p66 = scmp.ne.s32.totalorder %s51, %s65
    %p67 = scmp.eq.s32.totalorder %s20, 0
    %p68 = por %p66, %p67
    %s70 = sadd.s32 %s69, 1
    %p73 = scmp.eq.s32.totalorder %s14, 2
    %p74 = scmp.ne.s32.totalorder %s69, %s71
    %p75 = scmp.eq.s32.totalorder %s14, 0
    %p76 = por %p74, %p75
    %p77 = scmp.ne.s32.totalorder %s69, %s71
    %p78 = scmp.eq.s32.totalorder %s19, 2
    %p79 = por %p77, %p78
    %p80 = scmp.ne.s32.totalorder %s71, %s72
    %p81 = scmp.eq.s32.totalorder %s19, 0
    %p82 = por %p80, %p81
    %p83 = scmp.ne.s32.totalorder %s71, %s72
    %p84 = scmp.eq.s32.totalorder %s20, 2
    %p85 = por %p83, %p84
    %p87 = scmp.ne.s32.totalorder %s72, %s86
    %p88 = scmp.eq.s32.totalorder %s20, 0
    %p89 = por %p87, %p88
    %s91 = sadd.s32 %s90, 1
    %p94 = scmp.eq.s32.totalorder %s14, 2
    %p95 = scmp.ne.s32.totalorder %s90, %s92
    %p96 = scmp.eq.s32.totalorder %s14, 0
    %p97 = por %p95, %p96
    %p98 = scmp.ne.s32.totalorder %s90, %s92
    %p99 = scmp.eq.s32.totalorder %s19, 2
    %p100 = por %p98, %p99
    %p101 = scmp.ne.s32.totalorder %s92, %s93
    %p102 = scmp.eq.s32.totalorder %s19, 0
    %p103 = por %p101, %p102
    %p104 = scmp.ne.s32.totalorder %s92, %s93
    %p105 = scmp.eq.s32.totalorder %s20, 2
    %p106 = por %p104, %p105
    %p108 = scmp.ne.s32.totalorder %s93, %s107
    %p109 = scmp.eq.s32.totalorder %s20, 0
    %p110 = por %p108, %p109
    %s112 = sadd.s32 %s111, 1
    %p115 = scmp.eq.s32.totalorder %s14, 2
    %p116 = scmp.ne.s32.totalorder %s111, %s113
    %p117 = scmp.eq.s32.totalorder %s14, 0
    %p118 = por %p116, %p117
    %p119 = scmp.ne.s32.totalorder %s111, %s113
    %p120 = scmp.eq.s32.totalorder %s19, 2
    %p121 = por %p119, %p120
    %p122 = scmp.ne.s32.totalorder %s113, %s114
    %p123 = scmp.eq.s32.totalorder %s19, 0
    %p124 = por %p122, %p123
    %p125 = scmp.ne.s32.totalorder %s113, %s114
    %p126 = scmp.eq.s32.totalorder %s20, 2
    %p127 = por %p125, %p126
    %p129 = scmp.ne.s32.totalorder %s114, %s128
    %p130 = scmp.eq.s32.totalorder %s20, 0
    %p131 = por %p129, %p130
    %s132 = ssub.s32 %s14, %s21
    %p133 = scmp.eq.s32.totalorder %s132, 0
    %s135 = sadd.s32 %s134, 1
    %s136 = scalar_select %p133, %s134, %s135
    %p139 = pneg %p133
    %p140 = scmp.eq.s32.totalorder %s14, 2
    %p141 = por %p139, %p140
    %p142 = scmp.ne.s32.totalorder %s134, %s137
    %p143 = scmp.eq.s32.totalorder %s14, 0
    %p144 = por %p142, %p143
    %p145 = scmp.ne.s32.totalorder %s134, %s137
    %p146 = scmp.eq.s32.totalorder %s19, 2
    %p147 = por %p145, %p146
    %p148 = scmp.ne.s32.totalorder %s137, %s138
    %p149 = scmp.eq.s32.totalorder %s19, 0
    %p150 = por %p148, %p149
    %p151 = scmp.ne.s32.totalorder %s137, %s138
    %p152 = scmp.eq.s32.totalorder %s20, 2
    %p153 = por %p151, %p152
    %p155 = scmp.ne.s32.totalorder %s138, %s154
    %p156 = scmp.eq.s32.totalorder %s20, 0
    %p157 = por %p155, %p156
    %s159 = sadd.s32 %s158, 1
    %p162 = scmp.eq.s32.totalorder %s14, 2
    %p163 = scmp.ne.s32.totalorder %s158, %s160
    %p164 = scmp.eq.s32.totalorder %s14, 0
    %p165 = por %p163, %p164
    %p166 = scmp.ne.s32.totalorder %s158, %s160
    %p167 = scmp.eq.s32.totalorder %s19, 2
    %p168 = por %p166, %p167
    %p169 = scmp.ne.s32.totalorder %s160, %s161
    %p170 = scmp.eq.s32.totalorder %s19, 0
    %p171 = por %p169, %p170
    %p172 = scmp.ne.s32.totalorder %s160, %s161
    %p173 = scmp.eq.s32.totalorder %s20, 2
    %p174 = por %p172, %p173
    %p176 = scmp.ne.s32.totalorder %s161, %s175
    %p177 = scmp.eq.s32.totalorder %s20, 0
    %p178 = por %p176, %p177
    %s180 = sadd.s32 %s179, 1
    %p183 = scmp.eq.s32.totalorder %s14, 2
    %p184 = scmp.ne.s32.totalorder %s179, %s181
    %p185 = scmp.eq.s32.totalorder %s14, 0
    %p186 = por %p184, %p185
    %p187 = scmp.ne.s32.totalorder %s179, %s181
    %p188 = scmp.eq.s32.totalorder %s19, 2
    %p189 = por %p187, %p188
    %p190 = scmp.ne.s32.totalorder %s181, %s182
    %p191 = scmp.eq.s32.totalorder %s19, 0
    %p192 = por %p190, %p191
    %p193 = scmp.ne.s32.totalorder %s181, %s182
    %p194 = scmp.eq.s32.totalorder %s20, 2
    %p195 = por %p193, %p194
    %p197 = scmp.ne.s32.totalorder %s182, %s196
    %p198 = scmp.eq.s32.totalorder %s20, 0
    %p199 = por %p197, %p198
    %p200 = scmp.le.s32.totalorder 1, %s14
    %p201 = scmp.lt.s32.totalorder %s14, 4
    %p202 = pnand %p200, %p201
    %p203 = pneg %p202
    // Predicated region
    $region9: #{plugin_lstm_rnnt_pre.2} parent=5 // pred_check
      _
    $region10: #{plugin_lstm_rnnt_pre.2} parent=5 // pred_check_branch
      %205 = sbr.rel (%p202) target = $region12
    $region11: #{plugin_lstm_rnnt_pre.2} parent=5 // pred_region
      %s206 = ssub.s32 %s14, 1
      // Predicated region
      $region13: #{plugin_lstm_rnnt_pre.2} parent=11 // pred_check
        %p207 = pneg %p61
      $region14: #{plugin_lstm_rnnt_pre.2} parent=11 // pred_check_branch
        %209 = sbr.rel (%p207) target = $region16
      $region15: #{plugin_lstm_rnnt_pre.2} parent=11 // pred_region
        _
      $region16: #{plugin_lstm_rnnt_pre.2} parent=11 // pred_fallthru
        _
      // Predicated region
      $region17: #{plugin_lstm_rnnt_pre.2} parent=11 // pred_check
        %p210 = pneg %p82
      $region18: #{plugin_lstm_rnnt_pre.2} parent=11 // pred_check_branch
        %212 = sbr.rel (%p210) target = $region20
      $region19: #{plugin_lstm_rnnt_pre.2} parent=11 // pred_region
        _
      $region20: #{plugin_lstm_rnnt_pre.2} parent=11 // pred_fallthru
        _
      // Predicated region
      $region21: #{plugin_lstm_rnnt_pre.2} parent=11 // pred_check
        %p213 = pneg %p103
      $region22: #{plugin_lstm_rnnt_pre.2} parent=11 // pred_check_branch
        %215 = sbr.rel (%p213) target = $region24
      $region23: #{plugin_lstm_rnnt_pre.2} parent=11 // pred_region
        _
      $region24: #{plugin_lstm_rnnt_pre.2} parent=11 // pred_fallthru
        _
      // Predicated region
      $region25: #{plugin_lstm_rnnt_pre.2} parent=11 // pred_check
        %p216 = pneg %p124
      $region26: #{plugin_lstm_rnnt_pre.2} parent=11 // pred_check_branch
        %218 = sbr.rel (%p216) target = $region28
      $region27: #{plugin_lstm_rnnt_pre.2} parent=11 // pred_region
        _
      $region28: #{plugin_lstm_rnnt_pre.2} parent=11 // pred_fallthru
        _
    $region12: #{plugin_lstm_rnnt_pre.2} parent=5 // pred_fallthru
      _
    %p219 = scmp.lt.s32.totalorder %s14, 3
    // Predicated region
    $region29: #{plugin_lstm_rnnt_pre.2} parent=5 // pred_check
      %p220 = pneg %p219
    $region30: #{plugin_lstm_rnnt_pre.2} parent=5 // pred_check_branch
      %222 = sbr.rel (%p220) target = $region32
    $region31: #{plugin_lstm_rnnt_pre.2} parent=5 // pred_region
      // Predicated region
      $region33: #{plugin_lstm_rnnt_pre.2} parent=31 // pred_check
        %p223 = pneg %p34
      $region34: #{plugin_lstm_rnnt_pre.2} parent=31 // pred_check_branch
        %225 = sbr.rel (%p223) target = $region36
      $region35: #{plugin_lstm_rnnt_pre.2} parent=31 // pred_region
        %s226 = smul.u32 4, %s14
        %p227 = scmp.lt.s32.totalorder %s226, 11
        %s228 = scalar_select %p227, %s226, 11
        %s229 = smul.addr %s228, 8
        %s230 = scalar_lea.vmem %s0, %s229
        %s231 = smul.u32 4, %s14
      $region36: #{plugin_lstm_rnnt_pre.2} parent=31 // pred_fallthru
        _
    $region32: #{plugin_lstm_rnnt_pre.2} parent=5 // pred_fallthru
      _
    %p232 = scmp.le.s32.totalorder 1, %s14
    %p233 = scmp.lt.s32.totalorder %s14, 4
    %p234 = pnand %p232, %p233
    %p235 = pneg %p234
    // Predicated region
    $region37: #{plugin_lstm_rnnt_pre.2} parent=5 // pred_check
      _
    $region38: #{plugin_lstm_rnnt_pre.2} parent=5 // pred_check_branch
      %237 = sbr.rel (%p234) target = $region40
    $region39: #{plugin_lstm_rnnt_pre.2} parent=5 // pred_region
      %s238 = ssub.s32 %s14, 1
      %s239 = smul.u32 4, %s19
      %p240 = scmp.lt.s32.totalorder %s239, 11
      %s241 = scalar_select %p240, %s239, 11
      %s242 = smul.addr %s241, 8
      %s243 = scalar_lea.vmem %s0, %s242
      %p244 = pneg %p40
      %p245 = pneg %p37
      %p246 = pneg %p61
      %p247 = pneg %p58
      %p248 = pneg %p82
      %p249 = pneg %p79
      %p250 = pneg %p103
      %p251 = pneg %p100
      %p252 = pneg %p124
      %p253 = pneg %p121
      %p254 = pneg %p150
      %p255 = pneg %p147
      %s256 = smul.u32 4, %s19
      %p257 = scmp.lt.s32.totalorder %s256, 11
      %s258 = scalar_select %p257, %s256, 11
      %s259 = smul.addr %s258, 2
      %s260 = scalar_lea.vmem %s5, %s259
      %p261 = pneg %p171
      %p262 = pneg %p168
      %p263 = pneg %p192
      %p264 = pneg %p189
      %s265 = smul.u32 4, %s19
      %p266 = scmp.lt.s32.totalorder %s265, 11
      %s267 = scalar_select %p266, %s265, 11
      %s268 = smul.addr %s267, 8
      %s269 = scalar_lea.vmem %s0, %s268
      %s270 = smul.u32 4, %s19
      %s271 = smul.u32 4, %s19
      %p272 = scmp.lt.s32.totalorder %s271, 11
      %s273 = scalar_select %p272, %s271, 11
      %s274 = smul.addr %s273, 2
      %s275 = scalar_lea.vmem %s5, %s274
      %s276 = smul.u32 4, %s19
      %p277 = scmp.eq.s32.totalorder %s19, 0
      // Predicated region
      $region41: #{plugin_lstm_rnnt_pre.2} parent=39 // pred_check
        %p278 = pneg %p277
      $region42: #{plugin_lstm_rnnt_pre.2} parent=39 // pred_check_branch
        %280 = sbr.rel (%p278) target = $region44
      $region43: #{plugin_lstm_rnnt_pre.2} parent=39 // pred_region
        %v281 = vld [vmem:[%s2] sm:$0xf]
        %282 = vst [vmem:[%s6] sm:$0xf] %v281
        %v283 = vld [vmem:[%s3] sm:$0xf]
        %284 = vst [vmem:[%s7] sm:$0xf] %v283
      $region44: #{plugin_lstm_rnnt_pre.2} parent=39 // pred_fallthru
        _
      %v285 = vld [vmem:[%s4] sm:$0xff]
      %v286 = vld [vmem:[%s4 + $0x8] sm:$0xff]
      %v287 = vld [vmem:[%s4 + $0x10] sm:$0xff]
      %v288 = vld [vmem:[%s4 + $0x18] sm:$0xff]
      %v289 = vld [vmem:[%s4 + $0x20] sm:$0xff]
      %v290 = vld [vmem:[%s4 + $0x28] sm:$0xff]
      %v291 = vld [vmem:[%s4 + $0x30] sm:$0xff]
      %v292 = vld [vmem:[%s4 + $0x38] sm:$0xff]
      %v293 = vld [vmem:[%s4 + $0x40] sm:$0xff]
      %v294 = vld [vmem:[%s4 + $0x48] sm:$0xff]
      %v295 = vld [vmem:[%s4 + $0x50] sm:$0xff]
      %v296 = vld [vmem:[%s4 + $0x58] sm:$0xff]
      %v297 = vld [vmem:[%s4 + $0x60] sm:$0xff]
      %v298 = vld [vmem:[%s4 + $0x68] sm:$0xff]
      %v299 = vld [vmem:[%s4 + $0x70] sm:$0xff]
      %v300 = vld [vmem:[%s4 + $0x78] sm:$0xff]
      %v301 = vld [vmem:[%s4 + $0x80] sm:$0xff]
      %v302 = vld [vmem:[%s4 + $0x88] sm:$0xff]
      %v303 = vld [vmem:[%s4 + $0x90] sm:$0xff]
      %v304 = vld [vmem:[%s4 + $0x98] sm:$0xff]
      %v305 = vld [vmem:[%s4 + $0xa0] sm:$0xff]
      %v306 = vld [vmem:[%s4 + $0xa8] sm:$0xff]
      %v307 = vld [vmem:[%s4 + $0xb0] sm:$0xff]
      %v308 = vld [vmem:[%s4 + $0xb8] sm:$0xff]
      %v309 = vld [vmem:[%s4 + $0xc0] sm:$0xff]
      %v310 = vld [vmem:[%s4 + $0xc8] sm:$0xff]
      %v311 = vld [vmem:[%s4 + $0xd0] sm:$0xff]
      %v312 = vld [vmem:[%s4 + $0xd8] sm:$0xff]
      %v313 = vld [vmem:[%s4 + $0xe0] sm:$0xff]
      %v314 = vld [vmem:[%s4 + $0xe8] sm:$0xff]
      %v315 = vld [vmem:[%s4 + $0xf0] sm:$0xff]
      %v316 = vld [vmem:[%s4 + $0xf8] sm:$0xff]
      %v317 = vld [vmem:[%s4 + $0x100] sm:$0xff]
      %v318 = vld [vmem:[%s4 + $0x108] sm:$0xff]
      %v319 = vld [vmem:[%s4 + $0x110] sm:$0xff]
      %v320 = vld [vmem:[%s4 + $0x118] sm:$0xff]
      %v321 = vld [vmem:[%s4 + $0x120] sm:$0xff]
      %v322 = vld [vmem:[%s4 + $0x128] sm:$0xff]
      %v323 = vld [vmem:[%s4 + $0x130] sm:$0xff]
      %v324 = vld [vmem:[%s4 + $0x138] sm:$0xff]
      %v325 = vld [vmem:[%s4 + $0x140] sm:$0xff]
      %v326 = vld [vmem:[%s4 + $0x148] sm:$0xff]
      %v327 = vld [vmem:[%s4 + $0x150] sm:$0xff]
      %v328 = vld [vmem:[%s4 + $0x158] sm:$0xff]
      %v329 = vld [vmem:[%s4 + $0x160] sm:$0xff]
      %v330 = vld [vmem:[%s4 + $0x168] sm:$0xff]
      %v331 = vld [vmem:[%s4 + $0x170] sm:$0xff]
      %v332 = vld [vmem:[%s4 + $0x178] sm:$0xff]
      %v333 = vld [vmem:[%s4 + $0x180] sm:$0xff]
      %v334 = vld [vmem:[%s4 + $0x188] sm:$0xff]
      %v335 = vld [vmem:[%s4 + $0x190] sm:$0xff]
      %v336 = vld [vmem:[%s4 + $0x198] sm:$0xff]
      %v337 = vld [vmem:[%s4 + $0x1a0] sm:$0xff]
      %v338 = vld [vmem:[%s4 + $0x1a8] sm:$0xff]
      %v339 = vld [vmem:[%s4 + $0x1b0] sm:$0xff]
      %v340 = vld [vmem:[%s4 + $0x1b8] sm:$0xff]
      %v341 = vld [vmem:[%s4 + $0x1c0] sm:$0xff]
      %v342 = vld [vmem:[%s4 + $0x1c8] sm:$0xff]
      %v343 = vld [vmem:[%s4 + $0x1d0] sm:$0xff]
      %v344 = vld [vmem:[%s4 + $0x1d8] sm:$0xff]
      %v345 = vld [vmem:[%s4 + $0x1e0] sm:$0xff]
      %v346 = vld [vmem:[%s4 + $0x1e8] sm:$0xff]
      %v347 = vld [vmem:[%s4 + $0x1f0] sm:$0xff]
      %v348 = vld [vmem:[%s4 + $0x1f8] sm:$0xff]
      %v349 = vld [vmem:[%s4 + $0x200] sm:$0xff]
      %v350 = vld [vmem:[%s4 + $0x208] sm:$0xff]
      %v351 = vld [vmem:[%s4 + $0x210] sm:$0xff]
      %v352 = vld [vmem:[%s4 + $0x218] sm:$0xff]
      %v353 = vld [vmem:[%s4 + $0x220] sm:$0xff]
      %v354 = vld [vmem:[%s4 + $0x228] sm:$0xff]
      %v355 = vld [vmem:[%s4 + $0x230] sm:$0xff]
      %v356 = vld [vmem:[%s4 + $0x238] sm:$0xff]
      %v357 = vld [vmem:[%s4 + $0x240] sm:$0xff]
      %v358 = vld [vmem:[%s4 + $0x248] sm:$0xff]
      %v359 = vld [vmem:[%s4 + $0x250] sm:$0xff]
      %v360 = vld [vmem:[%s4 + $0x258] sm:$0xff]
      %v361 = vld [vmem:[%s4 + $0x260] sm:$0xff]
      %v362 = vld [vmem:[%s4 + $0x268] sm:$0xff]
      %v363 = vld [vmem:[%s4 + $0x270] sm:$0xff]
      %v364 = vld [vmem:[%s4 + $0x278] sm:$0xff]
      %v365 = vld [vmem:[%s4 + $0x280] sm:$0xff]
      %v366 = vld [vmem:[%s4 + $0x288] sm:$0xff]
      %v367 = vld [vmem:[%s4 + $0x290] sm:$0xff]
      %v368 = vld [vmem:[%s4 + $0x298] sm:$0xff]
      %v369 = vld [vmem:[%s4 + $0x2a0] sm:$0xff]
      %v370 = vld [vmem:[%s4 + $0x2a8] sm:$0xff]
      %v371 = vld [vmem:[%s4 + $0x2b0] sm:$0xff]
      %v372 = vld [vmem:[%s4 + $0x2b8] sm:$0xff]
      %v373 = vld [vmem:[%s4 + $0x2c0] sm:$0xff]
      %v374 = vld [vmem:[%s4 + $0x2c8] sm:$0xff]
      %v375 = vld [vmem:[%s4 + $0x2d0] sm:$0xff]
      %v376 = vld [vmem:[%s4 + $0x2d8] sm:$0xff]
      %v377 = vld [vmem:[%s4 + $0x2e0] sm:$0xff]
      %v378 = vld [vmem:[%s4 + $0x2e8] sm:$0xff]
      %v379 = vld [vmem:[%s4 + $0x2f0] sm:$0xff]
      %v380 = vld [vmem:[%s4 + $0x2f8] sm:$0xff]
      %v381 = vld [vmem:[%s4 + $0x300] sm:$0xff]
      %v382 = vld [vmem:[%s4 + $0x308] sm:$0xff]
      %v383 = vld [vmem:[%s4 + $0x310] sm:$0xff]
      %v384 = vld [vmem:[%s4 + $0x318] sm:$0xff]
      %v385 = vld [vmem:[%s4 + $0x320] sm:$0xff]
      %v386 = vld [vmem:[%s4 + $0x328] sm:$0xff]
      %v387 = vld [vmem:[%s4 + $0x330] sm:$0xff]
      %v388 = vld [vmem:[%s4 + $0x338] sm:$0xff]
      %v389 = vld [vmem:[%s4 + $0x340] sm:$0xff]
      %v390 = vld [vmem:[%s4 + $0x348] sm:$0xff]
      %v391 = vld [vmem:[%s4 + $0x350] sm:$0xff]
      %v392 = vld [vmem:[%s4 + $0x358] sm:$0xff]
      %v393 = vld [vmem:[%s4 + $0x360] sm:$0xff]
      %v394 = vld [vmem:[%s4 + $0x368] sm:$0xff]
      %v395 = vld [vmem:[%s4 + $0x370] sm:$0xff]
      %v396 = vld [vmem:[%s4 + $0x378] sm:$0xff]
      %v397 = vld [vmem:[%s4 + $0x380] sm:$0xff]
      %v398 = vld [vmem:[%s4 + $0x388] sm:$0xff]
      %v399 = vld [vmem:[%s4 + $0x390] sm:$0xff]
      %v400 = vld [vmem:[%s4 + $0x398] sm:$0xff]
      %v401 = vld [vmem:[%s4 + $0x3a0] sm:$0xff]
      %v402 = vld [vmem:[%s4 + $0x3a8] sm:$0xff]
      %v403 = vld [vmem:[%s4 + $0x3b0] sm:$0xff]
      %v404 = vld [vmem:[%s4 + $0x3b8] sm:$0xff]
      %v405 = vld [vmem:[%s4 + $0x3c0] sm:$0xff]
      %v406 = vld [vmem:[%s4 + $0x3c8] sm:$0xff]
      %v407 = vld [vmem:[%s4 + $0x3d0] sm:$0xff]
      %v408 = vld [vmem:[%s4 + $0x3d8] sm:$0xff]
      %v409 = vld [vmem:[%s4 + $0x3e0] sm:$0xff]
      %v410 = vld [vmem:[%s4 + $0x3e8] sm:$0xff]
      %v411 = vld [vmem:[%s4 + $0x3f0] sm:$0xff]
      %v412 = vld [vmem:[%s4 + $0x3f8] sm:$0xff]
      %v413 = vld [vmem:[%s1] sm:$0xff]
      %s414 = smul.u32 %s19, 4
      %v415 = vld [vmem:[%s6] sm:$0xf]
      %v416 = vld [vmem:[%s7] sm:$0xf]
      %v419 = vunpack.c.l.s4 1983009808
      %v420 = vunpack.c.0.s8 %v419
      %v421 = vlaneseq
      %v422 = vshrl.u32 %v421, 7
      %v423 = vsub.s32 %v420, %v422
      %v424 = vrot.slane %v415, %v423
      %v425 = vcombine.high %v424, %v424
      %v428 = vpack.c.bf16 %v424, %v424
      %v429 = vpack.c.bf16 %v425, %v425
      %v430 = vld [vmem:[%s269] sm:$0xff]
      %v431 = vunpack.c.l.bf16 %v430
      %v432 = vunpack.c.h.bf16 %v430
      %v561 = vunpack.c.l.b16 %v285
      %v562 = vunpack.c.h.b16 %v285
      %v563 = vunpack.c.l.b16 %v286
      %v564 = vunpack.c.h.b16 %v286
      %v565 = vunpack.c.l.b16 %v287
      %v566 = vunpack.c.h.b16 %v287
      %v567 = vunpack.c.l.b16 %v288
      %v568 = vunpack.c.h.b16 %v288
      %v569 = vunpack.c.l.b16 %v289
      %v570 = vunpack.c.h.b16 %v289
      %v571 = vunpack.c.l.b16 %v290
      %v572 = vunpack.c.h.b16 %v290
      %v573 = vunpack.c.l.b16 %v291
      %v574 = vunpack.c.h.b16 %v291
      %v575 = vunpack.c.l.b16 %v292
      %v576 = vunpack.c.h.b16 %v292
      %v577 = vunpack.c.l.b16 %v293
      %v578 = vunpack.c.h.b16 %v293
      %v579 = vunpack.c.l.b16 %v294
      %v580 = vunpack.c.h.b16 %v294
      %v581 = vunpack.c.l.b16 %v295
      %v582 = vunpack.c.h.b16 %v295
      %v583 = vunpack.c.l.b16 %v296
      %v584 = vunpack.c.h.b16 %v296
      %v585 = vunpack.c.l.b16 %v297
      %v586 = vunpack.c.h.b16 %v297
      %v587 = vunpack.c.l.b16 %v298
      %v588 = vunpack.c.h.b16 %v298
      %v589 = vunpack.c.l.b16 %v299
      %v590 = vunpack.c.h.b16 %v299
      %v591 = vunpack.c.l.b16 %v300
      %v592 = vunpack.c.h.b16 %v300
      %v593 = vunpack.c.l.b16 %v301
      %v594 = vunpack.c.h.b16 %v301
      %v595 = vunpack.c.l.b16 %v302
      %v596 = vunpack.c.h.b16 %v302
      %v597 = vunpack.c.l.b16 %v303
      %v598 = vunpack.c.h.b16 %v303
      %v599 = vunpack.c.l.b16 %v304
      %v600 = vunpack.c.h.b16 %v304
      %v601 = vunpack.c.l.b16 %v305
      %v602 = vunpack.c.h.b16 %v305
      %v603 = vunpack.c.l.b16 %v306
      %v604 = vunpack.c.h.b16 %v306
      %v605 = vunpack.c.l.b16 %v307
      %v606 = vunpack.c.h.b16 %v307
      %v607 = vunpack.c.l.b16 %v308
      %v608 = vunpack.c.h.b16 %v308
      %v609 = vunpack.c.l.b16 %v309
      %v610 = vunpack.c.h.b16 %v309
      %v611 = vunpack.c.l.b16 %v310
      %v612 = vunpack.c.h.b16 %v310
      %v613 = vunpack.c.l.b16 %v311
      %v614 = vunpack.c.h.b16 %v311
      %v615 = vunpack.c.l.b16 %v312
      %v616 = vunpack.c.h.b16 %v312
      %v617 = vunpack.c.l.b16 %v313
      %v618 = vunpack.c.h.b16 %v313
      %v619 = vunpack.c.l.b16 %v314
      %v620 = vunpack.c.h.b16 %v314
      %v621 = vunpack.c.l.b16 %v315
      %v622 = vunpack.c.h.b16 %v315
      %v623 = vunpack.c.l.b16 %v316
      %v624 = vunpack.c.h.b16 %v316
      %v625 = vunpack.c.l.b16 %v317
      %v626 = vunpack.c.h.b16 %v317
      %v627 = vunpack.c.l.b16 %v318
      %v628 = vunpack.c.h.b16 %v318
      %v629 = vunpack.c.l.b16 %v319
      %v630 = vunpack.c.h.b16 %v319
      %v631 = vunpack.c.l.b16 %v320
      %v632 = vunpack.c.h.b16 %v320
      %v633 = vunpack.c.l.b16 %v321
      %v634 = vunpack.c.h.b16 %v321
      %v635 = vunpack.c.l.b16 %v322
      %v636 = vunpack.c.h.b16 %v322
      %v637 = vunpack.c.l.b16 %v323
      %v638 = vunpack.c.h.b16 %v323
      %v639 = vunpack.c.l.b16 %v324
      %v640 = vunpack.c.h.b16 %v324
      %v641 = vunpack.c.l.b16 %v325
      %v642 = vunpack.c.h.b16 %v325
      %v643 = vunpack.c.l.b16 %v326
      %v644 = vunpack.c.h.b16 %v326
      %v645 = vunpack.c.l.b16 %v327
      %v646 = vunpack.c.h.b16 %v327
      %v647 = vunpack.c.l.b16 %v328
      %v648 = vunpack.c.h.b16 %v328
      %v649 = vunpack.c.l.b16 %v329
      %v650 = vunpack.c.h.b16 %v329
      %v651 = vunpack.c.l.b16 %v330
      %v652 = vunpack.c.h.b16 %v330
      %v653 = vunpack.c.l.b16 %v331
      %v654 = vunpack.c.h.b16 %v331
      %v655 = vunpack.c.l.b16 %v332
      %v656 = vunpack.c.h.b16 %v332
      %v657 = vunpack.c.l.b16 %v333
      %v658 = vunpack.c.h.b16 %v333
      %v659 = vunpack.c.l.b16 %v334
      %v660 = vunpack.c.h.b16 %v334
      %v661 = vunpack.c.l.b16 %v335
      %v662 = vunpack.c.h.b16 %v335
      %v663 = vunpack.c.l.b16 %v336
      %v664 = vunpack.c.h.b16 %v336
      %v665 = vunpack.c.l.b16 %v337
      %v666 = vunpack.c.h.b16 %v337
      %v667 = vunpack.c.l.b16 %v338
      %v668 = vunpack.c.h.b16 %v338
      %v669 = vunpack.c.l.b16 %v339
      %v670 = vunpack.c.h.b16 %v339
      %v671 = vunpack.c.l.b16 %v340
      %v672 = vunpack.c.h.b16 %v340
      %v673 = vunpack.c.l.b16 %v341
      %v674 = vunpack.c.h.b16 %v341
      %v675 = vunpack.c.l.b16 %v342
      %v676 = vunpack.c.h.b16 %v342
      %v677 = vunpack.c.l.b16 %v343
      %v678 = vunpack.c.h.b16 %v343
      %v679 = vunpack.c.l.b16 %v344
      %v680 = vunpack.c.h.b16 %v344
      %v681 = vunpack.c.l.b16 %v345
      %v682 = vunpack.c.h.b16 %v345
      %v683 = vunpack.c.l.b16 %v346
      %v684 = vunpack.c.h.b16 %v346
      %v685 = vunpack.c.l.b16 %v347
      %v686 = vunpack.c.h.b16 %v347
      %v687 = vunpack.c.l.b16 %v348
      %v688 = vunpack.c.h.b16 %v348
      %v689 = vunpack.c.l.b16 %v349
      %v690 = vunpack.c.h.b16 %v349
      %v691 = vunpack.c.l.b16 %v350
      %v692 = vunpack.c.h.b16 %v350
      %v693 = vunpack.c.l.b16 %v351
      %v694 = vunpack.c.h.b16 %v351
      %v695 = vunpack.c.l.b16 %v352
      %v696 = vunpack.c.h.b16 %v352
      %v697 = vunpack.c.l.b16 %v353
      %v698 = vunpack.c.h.b16 %v353
      %v699 = vunpack.c.l.b16 %v354
      %v700 = vunpack.c.h.b16 %v354
      %v701 = vunpack.c.l.b16 %v355
      %v702 = vunpack.c.h.b16 %v355
      %v703 = vunpack.c.l.b16 %v356
      %v704 = vunpack.c.h.b16 %v356
      %v705 = vunpack.c.l.b16 %v357
      %v706 = vunpack.c.h.b16 %v357
      %v707 = vunpack.c.l.b16 %v358
      %v708 = vunpack.c.h.b16 %v358
      %v709 = vunpack.c.l.b16 %v359
      %v710 = vunpack.c.h.b16 %v359
      %v711 = vunpack.c.l.b16 %v360
      %v712 = vunpack.c.h.b16 %v360
      %v713 = vunpack.c.l.b16 %v361
      %v714 = vunpack.c.h.b16 %v361
      %v715 = vunpack.c.l.b16 %v362
      %v716 = vunpack.c.h.b16 %v362
      %v717 = vunpack.c.l.b16 %v363
      %v718 = vunpack.c.h.b16 %v363
      %v719 = vunpack.c.l.b16 %v364
      %v720 = vunpack.c.h.b16 %v364
      %v721 = vunpack.c.l.b16 %v365
      %v722 = vunpack.c.h.b16 %v365
      %v723 = vunpack.c.l.b16 %v366
      %v724 = vunpack.c.h.b16 %v366
      %v725 = vunpack.c.l.b16 %v367
      %v726 = vunpack.c.h.b16 %v367
      %v727 = vunpack.c.l.b16 %v368
      %v728 = vunpack.c.h.b16 %v368
      %v729 = vunpack.c.l.b16 %v369
      %v730 = vunpack.c.h.b16 %v369
      %v731 = vunpack.c.l.b16 %v370
      %v732 = vunpack.c.h.b16 %v370
      %v733 = vunpack.c.l.b16 %v371
      %v734 = vunpack.c.h.b16 %v371
      %v735 = vunpack.c.l.b16 %v372
      %v736 = vunpack.c.h.b16 %v372
      %v737 = vunpack.c.l.b16 %v373
      %v738 = vunpack.c.h.b16 %v373
      %v739 = vunpack.c.l.b16 %v374
      %v740 = vunpack.c.h.b16 %v374
      %v741 = vunpack.c.l.b16 %v375
      %v742 = vunpack.c.h.b16 %v375
      %v743 = vunpack.c.l.b16 %v376
      %v744 = vunpack.c.h.b16 %v376
      %v745 = vunpack.c.l.b16 %v377
      %v746 = vunpack.c.h.b16 %v377
      %v747 = vunpack.c.l.b16 %v378
      %v748 = vunpack.c.h.b16 %v378
      %v749 = vunpack.c.l.b16 %v379
      %v750 = vunpack.c.h.b16 %v379
      %v751 = vunpack.c.l.b16 %v380
      %v752 = vunpack.c.h.b16 %v380
      %v753 = vunpack.c.l.b16 %v381
      %v754 = vunpack.c.h.b16 %v381
      %v755 = vunpack.c.l.b16 %v382
      %v756 = vunpack.c.h.b16 %v382
      %v757 = vunpack.c.l.b16 %v383
      %v758 = vunpack.c.h.b16 %v383
      %v759 = vunpack.c.l.b16 %v384
      %v760 = vunpack.c.h.b16 %v384
      %v761 = vunpack.c.l.b16 %v385
      %v762 = vunpack.c.h.b16 %v385
      %v763 = vunpack.c.l.b16 %v386
      %v764 = vunpack.c.h.b16 %v386
      %v765 = vunpack.c.l.b16 %v387
      %v766 = vunpack.c.h.b16 %v387
      %v767 = vunpack.c.l.b16 %v388
      %v768 = vunpack.c.h.b16 %v388
      %v769 = vunpack.c.l.b16 %v389
      %v770 = vunpack.c.h.b16 %v389
      %v771 = vunpack.c.l.b16 %v390
      %v772 = vunpack.c.h.b16 %v390
      %v773 = vunpack.c.l.b16 %v391
      %v774 = vunpack.c.h.b16 %v391
      %v775 = vunpack.c.l.b16 %v392
      %v776 = vunpack.c.h.b16 %v392
      %v777 = vunpack.c.l.b16 %v393
      %v778 = vunpack.c.h.b16 %v393
      %v779 = vunpack.c.l.b16 %v394
      %v780 = vunpack.c.h.b16 %v394
      %v781 = vunpack.c.l.b16 %v395
      %v782 = vunpack.c.h.b16 %v395
      %v783 = vunpack.c.l.b16 %v396
      %v784 = vunpack.c.h.b16 %v396
      %v785 = vunpack.c.l.b16 %v397
      %v786 = vunpack.c.h.b16 %v397
      %v787 = vunpack.c.l.b16 %v398
      %v788 = vunpack.c.h.b16 %v398
      %v789 = vunpack.c.l.b16 %v399
      %v790 = vunpack.c.h.b16 %v399
      %v791 = vunpack.c.l.b16 %v400
      %v792 = vunpack.c.h.b16 %v400
      %v793 = vunpack.c.l.b16 %v401
      %v794 = vunpack.c.h.b16 %v401
      %v795 = vunpack.c.l.b16 %v402
      %v796 = vunpack.c.h.b16 %v402
      %v797 = vunpack.c.l.b16 %v403
      %v798 = vunpack.c.h.b16 %v403
      %v799 = vunpack.c.l.b16 %v404
      %v800 = vunpack.c.h.b16 %v404
      %v801 = vunpack.c.l.b16 %v405
      %v802 = vunpack.c.h.b16 %v405
      %v803 = vunpack.c.l.b16 %v406
      %v804 = vunpack.c.h.b16 %v406
      %v805 = vunpack.c.l.b16 %v407
      %v806 = vunpack.c.h.b16 %v407
      %v807 = vunpack.c.l.b16 %v408
      %v808 = vunpack.c.h.b16 %v408
      %v809 = vunpack.c.l.b16 %v409
      %v810 = vunpack.c.h.b16 %v409
      %v811 = vunpack.c.l.b16 %v410
      %v812 = vunpack.c.h.b16 %v410
      %v813 = vunpack.c.l.b16 %v411
      %v814 = vunpack.c.h.b16 %v411
      %v815 = vunpack.c.l.b16 %v412
      %v816 = vunpack.c.h.b16 %v412
      %v817 = vpack.c.b16 %v569, %v561
      %v818 = vpack.c.b16 %v570, %v562
      %v819 = vpack.c.b16 %v571, %v563
      %v820 = vpack.c.b16 %v572, %v564
      %v821 = vpack.c.b16 %v573, %v565
      %v822 = vpack.c.b16 %v574, %v566
      %v823 = vpack.c.b16 %v575, %v567
      %v824 = vpack.c.b16 %v576, %v568
      %v825 = vpack.c.b16 %v585, %v577
      %v826 = vpack.c.b16 %v586, %v578
      %v827 = vpack.c.b16 %v587, %v579
      %v828 = vpack.c.b16 %v588, %v580
      %v829 = vpack.c.b16 %v589, %v581
      %v830 = vpack.c.b16 %v590, %v582
      %v831 = vpack.c.b16 %v591, %v583
      %v832 = vpack.c.b16 %v592, %v584
      %v833 = vpack.c.b16 %v601, %v593
      %v834 = vpack.c.b16 %v602, %v594
      %v835 = vpack.c.b16 %v603, %v595
      %v836 = vpack.c.b16 %v604, %v596
      %v837 = vpack.c.b16 %v605, %v597
      %v838 = vpack.c.b16 %v606, %v598
      %v839 = vpack.c.b16 %v607, %v599
      %v840 = vpack.c.b16 %v608, %v600
      %v841 = vpack.c.b16 %v617, %v609
      %v842 = vpack.c.b16 %v618, %v610
      %v843 = vpack.c.b16 %v619, %v611
      %v844 = vpack.c.b16 %v620, %v612
      %v845 = vpack.c.b16 %v621, %v613
      %v846 = vpack.c.b16 %v622, %v614
      %v847 = vpack.c.b16 %v623, %v615
      %v848 = vpack.c.b16 %v624, %v616
      %v849 = vpack.c.b16 %v633, %v625
      %v850 = vpack.c.b16 %v634, %v626
      %v851 = vpack.c.b16 %v635, %v627
      %v852 = vpack.c.b16 %v636, %v628
      %v853 = vpack.c.b16 %v637, %v629
      %v854 = vpack.c.b16 %v638, %v630
      %v855 = vpack.c.b16 %v639, %v631
      %v856 = vpack.c.b16 %v640, %v632
      %v857 = vpack.c.b16 %v649, %v641
      %v858 = vpack.c.b16 %v650, %v642
      %v859 = vpack.c.b16 %v651, %v643
      %v860 = vpack.c.b16 %v652, %v644
      %v861 = vpack.c.b16 %v653, %v645
      %v862 = vpack.c.b16 %v654, %v646
      %v863 = vpack.c.b16 %v655, %v647
      %v864 = vpack.c.b16 %v656, %v648
      %v865 = vpack.c.b16 %v665, %v657
      %v866 = vpack.c.b16 %v666, %v658
      %v867 = vpack.c.b16 %v667, %v659
      %v868 = vpack.c.b16 %v668, %v660
      %v869 = vpack.c.b16 %v669, %v661
      %v870 = vpack.c.b16 %v670, %v662
      %v871 = vpack.c.b16 %v671, %v663
      %v872 = vpack.c.b16 %v672, %v664
      %v873 = vpack.c.b16 %v681, %v673
      %v874 = vpack.c.b16 %v682, %v674
      %v875 = vpack.c.b16 %v683, %v675
      %v876 = vpack.c.b16 %v684, %v676
      %v877 = vpack.c.b16 %v685, %v677
      %v878 = vpack.c.b16 %v686, %v678
      %v879 = vpack.c.b16 %v687, %v679
      %v880 = vpack.c.b16 %v688, %v680
      %v881 = vpack.c.b16 %v697, %v689
      %v882 = vpack.c.b16 %v698, %v690
      %v883 = vpack.c.b16 %v699, %v691
      %v884 = vpack.c.b16 %v700, %v692
      %v885 = vpack.c.b16 %v701, %v693
      %v886 = vpack.c.b16 %v702, %v694
      %v887 = vpack.c.b16 %v703, %v695
      %v888 = vpack.c.b16 %v704, %v696
      %v889 = vpack.c.b16 %v713, %v705
      %v890 = vpack.c.b16 %v714, %v706
      %v891 = vpack.c.b16 %v715, %v707
      %v892 = vpack.c.b16 %v716, %v708
      %v893 = vpack.c.b16 %v717, %v709
      %v894 = vpack.c.b16 %v718, %v710
      %v895 = vpack.c.b16 %v719, %v711
      %v896 = vpack.c.b16 %v720, %v712
      %v897 = vpack.c.b16 %v729, %v721
      %v898 = vpack.c.b16 %v730, %v722
      %v899 = vpack.c.b16 %v731, %v723
      %v900 = vpack.c.b16 %v732, %v724
      %v901 = vpack.c.b16 %v733, %v725
      %v902 = vpack.c.b16 %v734, %v726
      %v903 = vpack.c.b16 %v735, %v727
      %v904 = vpack.c.b16 %v736, %v728
      %v905 = vpack.c.b16 %v745, %v737
      %v906 = vpack.c.b16 %v746, %v738
      %v907 = vpack.c.b16 %v747, %v739
      %v908 = vpack.c.b16 %v748, %v740
      %v909 = vpack.c.b16 %v749, %v741
      %v910 = vpack.c.b16 %v750, %v742
      %v911 = vpack.c.b16 %v751, %v743
      %v912 = vpack.c.b16 %v752, %v744
      %v913 = vpack.c.b16 %v761, %v753
      %v914 = vpack.c.b16 %v762, %v754
      %v915 = vpack.c.b16 %v763, %v755
      %v916 = vpack.c.b16 %v764, %v756
      %v917 = vpack.c.b16 %v765, %v757
      %v918 = vpack.c.b16 %v766, %v758
      %v919 = vpack.c.b16 %v767, %v759
      %v920 = vpack.c.b16 %v768, %v760
      %v921 = vpack.c.b16 %v777, %v769
      %v922 = vpack.c.b16 %v778, %v770
      %v923 = vpack.c.b16 %v779, %v771
      %v924 = vpack.c.b16 %v780, %v772
      %v925 = vpack.c.b16 %v781, %v773
      %v926 = vpack.c.b16 %v782, %v774
      %v927 = vpack.c.b16 %v783, %v775
      %v928 = vpack.c.b16 %v784, %v776
      %v929 = vpack.c.b16 %v793, %v785
      %v930 = vpack.c.b16 %v794, %v786
      %v931 = vpack.c.b16 %v795, %v787
      %v932 = vpack.c.b16 %v796, %v788
      %v933 = vpack.c.b16 %v797, %v789
      %v934 = vpack.c.b16 %v798, %v790
      %v935 = vpack.c.b16 %v799, %v791
      %v936 = vpack.c.b16 %v800, %v792
      %v937 = vpack.c.b16 %v809, %v801
      %v938 = vpack.c.b16 %v810, %v802
      %v939 = vpack.c.b16 %v811, %v803
      %v940 = vpack.c.b16 %v812, %v804
      %v941 = vpack.c.b16 %v813, %v805
      %v942 = vpack.c.b16 %v814, %v806
      %v943 = vpack.c.b16 %v815, %v807
      %v944 = vpack.c.b16 %v816, %v808
      %v1075 = vcombine.high %v431, %v431
      %v1077 = vunpack.c.l.s4 1983009808
      %v1078 = vunpack.c.0.s8 %v1077
      %v1079 = vlaneseq
      %v1080 = vshrl.u32 %v1079, 7
      %v1081 = vsub.s32 %v1078, %v1080
      %v1082 = vrot.slane %v431, %v1081
      %v1084 = vunpack.c.l.s4 1983009808
      %v1085 = vunpack.c.0.s8 %v1084
      %v1086 = vlaneseq
      %v1087 = vshrl.u32 %v1086, 7
      %v1088 = vsub.s32 %v1085, %v1087
      %v1089 = vrot.slane %v1075, %v1088
      %v1090 = vcombine.high %v1082, %v1082
      %v1091 = vcombine.high %v1089, %v1089
      %v1092 = vcombine.high %v432, %v432
      %v1094 = vunpack.c.l.s4 1983009808
      %v1095 = vunpack.c.0.s8 %v1094
      %v1096 = vlaneseq
      %v1097 = vshrl.u32 %v1096, 7
      %v1098 = vsub.s32 %v1095, %v1097
      %v1099 = vrot.slane %v432, %v1098
      %v1101 = vunpack.c.l.s4 1983009808
      %v1102 = vunpack.c.0.s8 %v1101
      %v1103 = vlaneseq
      %v1104 = vshrl.u32 %v1103, 7
      %v1105 = vsub.s32 %v1102, %v1104
      %v1106 = vrot.slane %v1092, %v1105
      %v1107 = vcombine.high %v1099, %v1099
      %v1108 = vcombine.high %v1106, %v1106
      %1117 = vmatprep.subr.bf16.mxu0 %v818
      %1118 = vmatpush1.bf16.msra.mxu0 %v817
      %1119 = vmatprep.subr.bf16.mxu0 %v826
      %1120 = vmatpush1.bf16.msra.mxu0 %v825
      %1121 = vmatprep.subr.bf16.mxu0 %v834
      %1122 = vmatpush1.bf16.msra.mxu0 %v833
      %1123 = vmatprep.subr.bf16.mxu0 %v842
      %1124 = vmatpush1.bf16.msra.mxu0 %v841
      %1125 = vmatprep.subr.bf16.mxu0 %v850
      %1126 = vmatpush1.bf16.msra.mxu0 %v849
      %1127 = vmatprep.subr.bf16.mxu0 %v858
      %1128 = vmatpush1.bf16.msra.mxu0 %v857
      %1129 = vmatprep.subr.bf16.mxu0 %v866
      %1130 = vmatpush1.bf16.msra.mxu0 %v865
      %1131 = vmatprep.subr.bf16.mxu0 %v874
      %1132 = vmatpush1.bf16.msra.mxu0 %v873
      %1133 = vmatprep.subr.bf16.mxu0 %v882
      %1134 = vmatpush1.bf16.msra.mxu0 %v881
      %1135 = vmatprep.subr.bf16.mxu0 %v890
      %1136 = vmatpush1.bf16.msra.mxu0 %v889
      %1137 = vmatprep.subr.bf16.mxu0 %v898
      %1138 = vmatpush1.bf16.msra.mxu0 %v897
      %1139 = vmatprep.subr.bf16.mxu0 %v906
      %1140 = vmatpush1.bf16.msra.mxu0 %v905
      %1141 = vmatprep.subr.bf16.mxu0 %v914
      %1142 = vmatpush1.bf16.msra.mxu0 %v913
      %1143 = vmatprep.subr.bf16.mxu0 %v922
      %1144 = vmatpush1.bf16.msra.mxu0 %v921
      %1145 = vmatprep.subr.bf16.mxu0 %v930
      %1146 = vmatpush1.bf16.msra.mxu0 %v929
      %1147 = vmatprep.subr.bf16.mxu0 %v938
      %1148 = vmatpush1.bf16.msra.mxu0 %v937
      %1149 = vmatprep.mubr.bf16.mxu0 %v429
      %1150 = vmatmul.mubr.bf16.gmra.mrb[0].mxu0 %v428
      %v1151 = vpop.f32.mrb[0].mxu0
      %v1152 = vadd.f32 %v1082, %v1151
      %v1153 = vpop.f32.mrb[0].mxu0
      %v1154 = vadd.f32 %v1090, %v1153
      %v1155 = vpop.f32.mrb[0].mxu0
      %v1156 = vpop.f32.mrb[0].mxu0
      %1157 = vdwg.mxu0
      %1158 = vmatprep.subr.bf16.mxu0 %v820
      %1159 = vmatpush1.bf16.msra.mxu0 %v819
      %1160 = vmatprep.subr.bf16.mxu0 %v828
      %1161 = vmatpush1.bf16.msra.mxu0 %v827
      %1162 = vmatprep.subr.bf16.mxu0 %v836
      %1163 = vmatpush1.bf16.msra.mxu0 %v835
      %1164 = vmatprep.subr.bf16.mxu0 %v844
      %1165 = vmatpush1.bf16.msra.mxu0 %v843
      %1166 = vmatprep.subr.bf16.mxu0 %v852
      %1167 = vmatpush1.bf16.msra.mxu0 %v851
      %1168 = vmatprep.subr.bf16.mxu0 %v860
      %1169 = vmatpush1.bf16.msra.mxu0 %v859
      %1170 = vmatprep.subr.bf16.mxu0 %v868
      %1171 = vmatpush1.bf16.msra.mxu0 %v867
      %1172 = vmatprep.subr.bf16.mxu0 %v876
      %1173 = vmatpush1.bf16.msra.mxu0 %v875
      %1174 = vmatprep.subr.bf16.mxu0 %v884
      %1175 = vmatpush1.bf16.msra.mxu0 %v883
      %1176 = vmatprep.subr.bf16.mxu0 %v892
      %1177 = vmatpush1.bf16.msra.mxu0 %v891
      %1178 = vmatprep.subr.bf16.mxu0 %v900
      %1179 = vmatpush1.bf16.msra.mxu0 %v899
      %1180 = vmatprep.subr.bf16.mxu0 %v908
      %1181 = vmatpush1.bf16.msra.mxu0 %v907
      %1182 = vmatprep.subr.bf16.mxu0 %v916
      %1183 = vmatpush1.bf16.msra.mxu0 %v915
      %1184 = vmatprep.subr.bf16.mxu0 %v924
      %1185 = vmatpush1.bf16.msra.mxu0 %v923
      %1186 = vmatprep.subr.bf16.mxu0 %v932
      %1187 = vmatpush1.bf16.msra.mxu0 %v931
      %1188 = vmatprep.subr.bf16.mxu0 %v940
      %1189 = vmatpush1.bf16.msra.mxu0 %v939
      %1190 = vmatprep.mubr.bf16.mxu0 %v429
      %1191 = vmatmul.mubr.bf16.gmra.mrb[0].mxu0 %v428
      %v1192 = vpop.f32.mrb[0].mxu0
      %v1193 = vadd.f32 %v1089, %v1192
      %v1194 = vpop.f32.mrb[0].mxu0
      %v1195 = vadd.f32 %v1091, %v1194
      %v1196 = vpop.f32.mrb[0].mxu0
      %v1197 = vpop.f32.mrb[0].mxu0
      %1198 = vdwg.mxu0
      %1199 = vmatprep.subr.bf16.mxu0 %v822
      %1200 = vmatpush1.bf16.msra.mxu0 %v821
      %1201 = vmatprep.subr.bf16.mxu0 %v830
      %1202 = vmatpush1.bf16.msra.mxu0 %v829
      %1203 = vmatprep.subr.bf16.mxu0 %v838
      %1204 = vmatpush1.bf16.msra.mxu0 %v837
      %1205 = vmatprep.subr.bf16.mxu0 %v846
      %1206 = vmatpush1.bf16.msra.mxu0 %v845
      %1207 = vmatprep.subr.bf16.mxu0 %v854
      %1208 = vmatpush1.bf16.msra.mxu0 %v853
      %1209 = vmatprep.subr.bf16.mxu0 %v862
      %1210 = vmatpush1.bf16.msra.mxu0 %v861
      %1211 = vmatprep.subr.bf16.mxu0 %v870
      %1212 = vmatpush1.bf16.msra.mxu0 %v869
      %1213 = vmatprep.subr.bf16.mxu0 %v878
      %1214 = vmatpush1.bf16.msra.mxu0 %v877
      %1215 = vmatprep.subr.bf16.mxu0 %v886
      %1216 = vmatpush1.bf16.msra.mxu0 %v885
      %1217 = vmatprep.subr.bf16.mxu0 %v894
      %1218 = vmatpush1.bf16.msra.mxu0 %v893
      %1219 = vmatprep.subr.bf16.mxu0 %v902
      %1220 = vmatpush1.bf16.msra.mxu0 %v901
      %1221 = vmatprep.subr.bf16.mxu0 %v910
      %1222 = vmatpush1.bf16.msra.mxu0 %v909
      %1223 = vmatprep.subr.bf16.mxu0 %v918
      %1224 = vmatpush1.bf16.msra.mxu0 %v917
      %1225 = vmatprep.subr.bf16.mxu0 %v926
      %1226 = vmatpush1.bf16.msra.mxu0 %v925
      %1227 = vmatprep.subr.bf16.mxu0 %v934
      %1228 = vmatpush1.bf16.msra.mxu0 %v933
      %1229 = vmatprep.subr.bf16.mxu0 %v942
      %1230 = vmatpush1.bf16.msra.mxu0 %v941
      %1231 = vmatprep.mubr.bf16.mxu0 %v429
      %1232 = vmatmul.mubr.bf16.gmra.mrb[0].mxu0 %v428
      %v1233 = vpop.f32.mrb[0].mxu0
      %v1234 = vadd.f32 %v1099, %v1233
      %v1235 = vpop.f32.mrb[0].mxu0
      %v1236 = vadd.f32 %v1107, %v1235
      %v1237 = vpop.f32.mrb[0].mxu0
      %v1238 = vpop.f32.mrb[0].mxu0
      %1239 = vdwg.mxu0
      %1240 = vmatprep.subr.bf16.mxu0 %v824
      %1241 = vmatpush1.bf16.msra.mxu0 %v823
      %1242 = vmatprep.subr.bf16.mxu0 %v832
      %1243 = vmatpush1.bf16.msra.mxu0 %v831
      %1244 = vmatprep.subr.bf16.mxu0 %v840
      %1245 = vmatpush1.bf16.msra.mxu0 %v839
      %1246 = vmatprep.subr.bf16.mxu0 %v848
      %1247 = vmatpush1.bf16.msra.mxu0 %v847
      %1248 = vmatprep.subr.bf16.mxu0 %v856
      %1249 = vmatpush1.bf16.msra.mxu0 %v855
      %1250 = vmatprep.subr.bf16.mxu0 %v864
      %1251 = vmatpush1.bf16.msra.mxu0 %v863
      %1252 = vmatprep.subr.bf16.mxu0 %v872
      %1253 = vmatpush1.bf16.msra.mxu0 %v871
      %1254 = vmatprep.subr.bf16.mxu0 %v880
      %1255 = vmatpush1.bf16.msra.mxu0 %v879
      %1256 = vmatprep.subr.bf16.mxu0 %v888
      %1257 = vmatpush1.bf16.msra.mxu0 %v887
      %1258 = vmatprep.subr.bf16.mxu0 %v896
      %1259 = vmatpush1.bf16.msra.mxu0 %v895
      %1260 = vmatprep.subr.bf16.mxu0 %v904
      %1261 = vmatpush1.bf16.msra.mxu0 %v903
      %1262 = vmatprep.subr.bf16.mxu0 %v912
      %1263 = vmatpush1.bf16.msra.mxu0 %v911
      %1264 = vmatprep.subr.bf16.mxu0 %v920
      %1265 = vmatpush1.bf16.msra.mxu0 %v919
      %1266 = vmatprep.subr.bf16.mxu0 %v928
      %1267 = vmatpush1.bf16.msra.mxu0 %v927
      %1268 = vmatprep.subr.bf16.mxu0 %v936
      %1269 = vmatpush1.bf16.msra.mxu0 %v935
      %1270 = vmatprep.subr.bf16.mxu0 %v944
      %1271 = vmatpush1.bf16.msra.mxu0 %v943
      %1272 = vmatprep.mubr.bf16.mxu0 %v429
      %1273 = vmatmul.mubr.bf16.gmra.mrb[0].mxu0 %v428
      %v1274 = vpop.f32.mrb[0].mxu0
      %v1275 = vadd.f32 %v1106, %v1274
      %v1276 = vpop.f32.mrb[0].mxu0
      %v1277 = vadd.f32 %v1108, %v1276
      %v1278 = vpop.f32.mrb[0].mxu0
      %v1279 = vpop.f32.mrb[0].mxu0
      %1280 = vdwg.mxu0
      %v1282 = vlaneseq
      %v1283 = vshrl.u32 %v1282, 7
      %v1284 = vsub.s32 0, %v1283
      %v1285 = vrot.slane %v413, %v1284
      %v1286 = vlaneseq
      %v1287 = vshrl.u32 %v1286, 7
      %v1288 = vsub.s32 1, %v1287
      %v1289 = vrot.slane %v413, %v1288
      %v1290 = vlaneseq
      %v1291 = vshrl.u32 %v1290, 7
      %v1292 = vsub.s32 2, %v1291
      %v1293 = vrot.slane %v413, %v1292
      %v1294 = vlaneseq
      %v1295 = vshrl.u32 %v1294, 7
      %v1296 = vsub.s32 3, %v1295
      %v1297 = vrot.slane %v413, %v1296
      %v1298 = vlaneseq
      %v1299 = vshrl.u32 %v1298, 7
      %v1300 = vsub.s32 4, %v1299
      %v1301 = vrot.slane %v413, %v1300
      %v1302 = vlaneseq
      %v1303 = vshrl.u32 %v1302, 7
      %v1304 = vsub.s32 5, %v1303
      %v1305 = vrot.slane %v413, %v1304
      %v1306 = vlaneseq
      %v1307 = vshrl.u32 %v1306, 7
      %v1308 = vsub.s32 6, %v1307
      %v1309 = vrot.slane %v413, %v1308
      %v1310 = vlaneseq
      %v1311 = vshrl.u32 %v1310, 7
      %v1312 = vsub.s32 7, %v1311
      %v1313 = vrot.slane %v413, %v1312
      %v1322 = vadd.f32 %v1152, %v1285
      %v1323 = vadd.f32 %v1154, %v1289
      %v1324 = vadd.f32 %v1193, %v1293
      %v1325 = vadd.f32 %v1195, %v1297
      %v1326 = vadd.f32 %v1234, %v1301
      %v1327 = vadd.f32 %v1236, %v1305
      %v1328 = vadd.f32 %v1275, %v1309
      %v1329 = vadd.f32 %v1277, %v1313
      %v1330 = vxor.u32 %v1322, 2147483648
      %v1331 = vxor.u32 %v1323, 2147483648
      %v1332 = vxor.u32 %v1324, 2147483648
      %v1333 = vxor.u32 %v1325, 2147483648
      %v1334 = vxor.u32 %v1326, 2147483648
      %v1335 = vxor.u32 %v1327, 2147483648
      %v1336 = vmul.f32 %v1330, 1.442695
      %v1337 = vpow.pop %v1336
      %v1338 = vmul.f32 %v1331, 1.442695
      %v1339 = vpow.pop %v1338
      %v1340 = vmul.f32 %v1332, 1.442695
      %v1341 = vpow.pop %v1340
      %v1342 = vmul.f32 %v1333, 1.442695
      %v1343 = vpow.pop %v1342
      %v1344 = vmul.f32 %v1334, 1.442695
      %v1345 = vpow.pop %v1344
      %v1346 = vmul.f32 %v1335, 1.442695
      %v1347 = vpow.pop %v1346
      %v1348 = vadd.f32 %v1337, 1.0
      %v1349 = vadd.f32 %v1339, 1.0
      %v1350 = vadd.f32 %v1341, 1.0
      %v1351 = vadd.f32 %v1343, 1.0
      %v1352 = vadd.f32 %v1345, 1.0
      %v1353 = vadd.f32 %v1347, 1.0
      %v1354 = vrcp.pop %v1348
      %v1355 = vmul.f32 1.0, %v1354
      %v1356 = vrcp.pop %v1349
      %v1357 = vmul.f32 1.0, %v1356
      %v1358 = vrcp.pop %v1350
      %v1359 = vmul.f32 1.0, %v1358
      %v1360 = vrcp.pop %v1351
      %v1361 = vmul.f32 1.0, %v1360
      %v1362 = vrcp.pop %v1352
      %v1363 = vmul.f32 1.0, %v1362
      %v1364 = vrcp.pop %v1353
      %v1365 = vmul.f32 1.0, %v1364
      %v1366 = vtanh.pop %v1328
      %v1367 = vtanh.pop %v1329
      %v1370 = vunpack.c.l.s4 1983009808
      %v1371 = vunpack.c.0.s8 %v1370
      %v1372 = vlaneseq
      %v1373 = vshrl.u32 %v1372, 7
      %v1374 = vsub.s32 %v1371, %v1373
      %v1375 = vrot.slane %v416, %v1374
      %v1376 = vcombine.high %v1375, %v1375
      %v1379 = vmul.f32 %v1359, %v1375
      %v1380 = vmul.f32 %v1361, %v1376
      %v1381 = vmul.f32 %v1355, %v1366
      %v1382 = vmul.f32 %v1357, %v1367
      %v1383 = vadd.f32 %v1379, %v1381
      %v1384 = vadd.f32 %v1380, %v1382
      %v1385 = vtanh.pop %v1383
      %v1386 = vtanh.pop %v1384
      %v1387 = vmul.f32 %v1363, %v1385
      %v1388 = vmul.f32 %v1365, %v1386
      %v1389 = vpack.c.bf16 %v1387, %v1387
      %v1390 = vpack.c.bf16 %v1388, %v1388
      %v1393 = vcombine.low %v1389, %v1390
      %v1395 = vunpack.c.l.s4 1966171168
      %v1396 = vunpack.c.0.s8 %v1395
      %v1397 = vlaneseq
      %v1398 = vshrl.u32 %v1397, 7
      %v1399 = vsub.s32 %v1396, %v1398
      %v1400 = vrot.slane %v1393, %v1399
      %v1402 = vunpack.c.l.s4 1966171168
      %v1403 = vunpack.c.0.s8 %v1402
      %v1404 = vlaneseq
      %v1405 = vshrl.u32 %v1404, 7
      %v1406 = vsub.s32 %v1403, %v1405
      %v1407 = vrot.slane %v1400, %v1406
      %1409 = vst [vmem:[%s275] sm:$0x3] %v1407
      %p1410 = scmp.lt.s32.totalorder %s414, 11
      %s1411 = scalar_select %p1410, 1, 0
      %v1412 = vstv %s1411
      %vm1413 = vcmp.eq.s32.totalorder %v1412, 1
      %v1414 = vsel %vm1413, %v1387, %v424
      %v1415 = vsel %vm1413, %v1388, %v425
      %v1416 = vsel %vm1413, %v1383, %v1375
      %v1417 = vsel %vm1413, %v1384, %v1376
      %v1418 = vpack.c.bf16 %v1414, %v1414
      %v1419 = vpack.c.bf16 %v1415, %v1415
      %s1420 = scalar_lea.vmem %s269, 8
      %v1421 = vld [vmem:[%s1420] sm:$0xff]
      %v1422 = vunpack.c.l.bf16 %v1421
      %v1423 = vunpack.c.h.bf16 %v1421
      %v1426 = vcombine.high %v1422, %v1422
      %v1428 = vunpack.c.l.s4 1983009808
      %v1429 = vunpack.c.0.s8 %v1428
      %v1430 = vlaneseq
      %v1431 = vshrl.u32 %v1430, 7
      %v1432 = vsub.s32 %v1429, %v1431
      %v1433 = vrot.slane %v1422, %v1432
      %v1435 = vunpack.c.l.s4 1983009808
      %v1436 = vunpack.c.0.s8 %v1435
      %v1437 = vlaneseq
      %v1438 = vshrl.u32 %v1437, 7
      %v1439 = vsub.s32 %v1436, %v1438
      %v1440 = vrot.slane %v1426, %v1439
      %v1441 = vcombine.high %v1433, %v1433
      %v1442 = vcombine.high %v1440, %v1440
      %v1443 = vcombine.high %v1423, %v1423
      %v1445 = vunpack.c.l.s4 1983009808
      %v1446 = vunpack.c.0.s8 %v1445
      %v1447 = vlaneseq
      %v1448 = vshrl.u32 %v1447, 7
      %v1449 = vsub.s32 %v1446, %v1448
      %v1450 = vrot.slane %v1423, %v1449
      %v1452 = vunpack.c.l.s4 1983009808
      %v1453 = vunpack.c.0.s8 %v1452
      %v1454 = vlaneseq
      %v1455 = vshrl.u32 %v1454, 7
      %v1456 = vsub.s32 %v1453, %v1455
      %v1457 = vrot.slane %v1443, %v1456
      %v1458 = vcombine.high %v1450, %v1450
      %v1459 = vcombine.high %v1457, %v1457
      %1468 = vmatprep.subr.bf16.mxu0 %v818
      %1469 = vmatpush1.bf16.msra.mxu0 %v817
      %1470 = vmatprep.subr.bf16.mxu0 %v826
      %1471 = vmatpush1.bf16.msra.mxu0 %v825
      %1472 = vmatprep.subr.bf16.mxu0 %v834
      %1473 = vmatpush1.bf16.msra.mxu0 %v833
      %1474 = vmatprep.subr.bf16.mxu0 %v842
      %1475 = vmatpush1.bf16.msra.mxu0 %v841
      %1476 = vmatprep.subr.bf16.mxu0 %v850
      %1477 = vmatpush1.bf16.msra.mxu0 %v849
      %1478 = vmatprep.subr.bf16.mxu0 %v858
      %1479 = vmatpush1.bf16.msra.mxu0 %v857
      %1480 = vmatprep.subr.bf16.mxu0 %v866
      %1481 = vmatpush1.bf16.msra.mxu0 %v865
      %1482 = vmatprep.subr.bf16.mxu0 %v874
      %1483 = vmatpush1.bf16.msra.mxu0 %v873
      %1484 = vmatprep.subr.bf16.mxu0 %v882
      %1485 = vmatpush1.bf16.msra.mxu0 %v881
      %1486 = vmatprep.subr.bf16.mxu0 %v890
      %1487 = vmatpush1.bf16.msra.mxu0 %v889
      %1488 = vmatprep.subr.bf16.mxu0 %v898
      %1489 = vmatpush1.bf16.msra.mxu0 %v897
      %1490 = vmatprep.subr.bf16.mxu0 %v906
      %1491 = vmatpush1.bf16.msra.mxu0 %v905
      %1492 = vmatprep.subr.bf16.mxu0 %v914
      %1493 = vmatpush1.bf16.msra.mxu0 %v913
      %1494 = vmatprep.subr.bf16.mxu0 %v922
      %1495 = vmatpush1.bf16.msra.mxu0 %v921
      %1496 = vmatprep.subr.bf16.mxu0 %v930
      %1497 = vmatpush1.bf16.msra.mxu0 %v929
      %1498 = vmatprep.subr.bf16.mxu0 %v938
      %1499 = vmatpush1.bf16.msra.mxu0 %v937
      %1500 = vmatprep.mubr.bf16.mxu0 %v1419
      %1501 = vmatmul.mubr.bf16.gmra.mrb[0].mxu0 %v1418
      %v1502 = vpop.f32.mrb[0].mxu0
      %v1503 = vadd.f32 %v1433, %v1502
      %v1504 = vpop.f32.mrb[0].mxu0
      %v1505 = vadd.f32 %v1441, %v1504
      %v1506 = vpop.f32.mrb[0].mxu0
      %v1507 = vpop.f32.mrb[0].mxu0
      %1508 = vdwg.mxu0
      %1509 = vmatprep.subr.bf16.mxu0 %v820
      %1510 = vmatpush1.bf16.msra.mxu0 %v819
      %1511 = vmatprep.subr.bf16.mxu0 %v828
      %1512 = vmatpush1.bf16.msra.mxu0 %v827
      %1513 = vmatprep.subr.bf16.mxu0 %v836
      %1514 = vmatpush1.bf16.msra.mxu0 %v835
      %1515 = vmatprep.subr.bf16.mxu0 %v844
      %1516 = vmatpush1.bf16.msra.mxu0 %v843
      %1517 = vmatprep.subr.bf16.mxu0 %v852
      %1518 = vmatpush1.bf16.msra.mxu0 %v851
      %1519 = vmatprep.subr.bf16.mxu0 %v860
      %1520 = vmatpush1.bf16.msra.mxu0 %v859
      %1521 = vmatprep.subr.bf16.mxu0 %v868
      %1522 = vmatpush1.bf16.msra.mxu0 %v867
      %1523 = vmatprep.subr.bf16.mxu0 %v876
      %1524 = vmatpush1.bf16.msra.mxu0 %v875
      %1525 = vmatprep.subr.bf16.mxu0 %v884
      %1526 = vmatpush1.bf16.msra.mxu0 %v883
      %1527 = vmatprep.subr.bf16.mxu0 %v892
      %1528 = vmatpush1.bf16.msra.mxu0 %v891
      %1529 = vmatprep.subr.bf16.mxu0 %v900
      %1530 = vmatpush1.bf16.msra.mxu0 %v899
      %1531 = vmatprep.subr.bf16.mxu0 %v908
      %1532 = vmatpush1.bf16.msra.mxu0 %v907
      %1533 = vmatprep.subr.bf16.mxu0 %v916
      %1534 = vmatpush1.bf16.msra.mxu0 %v915
      %1535 = vmatprep.subr.bf16.mxu0 %v924
      %1536 = vmatpush1.bf16.msra.mxu0 %v923
      %1537 = vmatprep.subr.bf16.mxu0 %v932
      %1538 = vmatpush1.bf16.msra.mxu0 %v931
      %1539 = vmatprep.subr.bf16.mxu0 %v940
      %1540 = vmatpush1.bf16.msra.mxu0 %v939
      %1541 = vmatprep.mubr.bf16.mxu0 %v1419
      %1542 = vmatmul.mubr.bf16.gmra.mrb[0].mxu0 %v1418
      %v1543 = vpop.f32.mrb[0].mxu0
      %v1544 = vadd.f32 %v1440, %v1543
      %v1545 = vpop.f32.mrb[0].mxu0
      %v1546 = vadd.f32 %v1442, %v1545
      %v1547 = vpop.f32.mrb[0].mxu0
      %v1548 = vpop.f32.mrb[0].mxu0
      %1549 = vdwg.mxu0
      %1550 = vmatprep.subr.bf16.mxu0 %v822
      %1551 = vmatpush1.bf16.msra.mxu0 %v821
      %1552 = vmatprep.subr.bf16.mxu0 %v830
      %1553 = vmatpush1.bf16.msra.mxu0 %v829
      %1554 = vmatprep.subr.bf16.mxu0 %v838
      %1555 = vmatpush1.bf16.msra.mxu0 %v837
      %1556 = vmatprep.subr.bf16.mxu0 %v846
      %1557 = vmatpush1.bf16.msra.mxu0 %v845
      %1558 = vmatprep.subr.bf16.mxu0 %v854
      %1559 = vmatpush1.bf16.msra.mxu0 %v853
      %1560 = vmatprep.subr.bf16.mxu0 %v862
      %1561 = vmatpush1.bf16.msra.mxu0 %v861
      %1562 = vmatprep.subr.bf16.mxu0 %v870
      %1563 = vmatpush1.bf16.msra.mxu0 %v869
      %1564 = vmatprep.subr.bf16.mxu0 %v878
      %1565 = vmatpush1.bf16.msra.mxu0 %v877
      %1566 = vmatprep.subr.bf16.mxu0 %v886
      %1567 = vmatpush1.bf16.msra.mxu0 %v885
      %1568 = vmatprep.subr.bf16.mxu0 %v894
      %1569 = vmatpush1.bf16.msra.mxu0 %v893
      %1570 = vmatprep.subr.bf16.mxu0 %v902
      %1571 = vmatpush1.bf16.msra.mxu0 %v901
      %1572 = vmatprep.subr.bf16.mxu0 %v910
      %1573 = vmatpush1.bf16.msra.mxu0 %v909
      %1574 = vmatprep.subr.bf16.mxu0 %v918
      %1575 = vmatpush1.bf16.msra.mxu0 %v917
      %1576 = vmatprep.subr.bf16.mxu0 %v926
      %1577 = vmatpush1.bf16.msra.mxu0 %v925
      %1578 = vmatprep.subr.bf16.mxu0 %v934
      %1579 = vmatpush1.bf16.msra.mxu0 %v933
      %1580 = vmatprep.subr.bf16.mxu0 %v942
      %1581 = vmatpush1.bf16.msra.mxu0 %v941
      %1582 = vmatprep.mubr.bf16.mxu0 %v1419
      %1583 = vmatmul.mubr.bf16.gmra.mrb[0].mxu0 %v1418
      %v1584 = vpop.f32.mrb[0].mxu0
      %v1585 = vadd.f32 %v1450, %v1584
      %v1586 = vpop.f32.mrb[0].mxu0
      %v1587 = vadd.f32 %v1458, %v1586
      %v1588 = vpop.f32.mrb[0].mxu0
      %v1589 = vpop.f32.mrb[0].mxu0
      %1590 = vdwg.mxu0
      %1591 = vmatprep.subr.bf16.mxu0 %v824
      %1592 = vmatpush1.bf16.msra.mxu0 %v823
      %1593 = vmatprep.subr.bf16.mxu0 %v832
      %1594 = vmatpush1.bf16.msra.mxu0 %v831
      %1595 = vmatprep.subr.bf16.mxu0 %v840
      %1596 = vmatpush1.bf16.msra.mxu0 %v839
      %1597 = vmatprep.subr.bf16.mxu0 %v848
      %1598 = vmatpush1.bf16.msra.mxu0 %v847
      %1599 = vmatprep.subr.bf16.mxu0 %v856
      %1600 = vmatpush1.bf16.msra.mxu0 %v855
      %1601 = vmatprep.subr.bf16.mxu0 %v864
      %1602 = vmatpush1.bf16.msra.mxu0 %v863
      %1603 = vmatprep.subr.bf16.mxu0 %v872
      %1604 = vmatpush1.bf16.msra.mxu0 %v871
      %1605 = vmatprep.subr.bf16.mxu0 %v880
      %1606 = vmatpush1.bf16.msra.mxu0 %v879
      %1607 = vmatprep.subr.bf16.mxu0 %v888
      %1608 = vmatpush1.bf16.msra.mxu0 %v887
      %1609 = vmatprep.subr.bf16.mxu0 %v896
      %1610 = vmatpush1.bf16.msra.mxu0 %v895
      %1611 = vmatprep.subr.bf16.mxu0 %v904
      %1612 = vmatpush1.bf16.msra.mxu0 %v903
      %1613 = vmatprep.subr.bf16.mxu0 %v912
      %1614 = vmatpush1.bf16.msra.mxu0 %v911
      %1615 = vmatprep.subr.bf16.mxu0 %v920
      %1616 = vmatpush1.bf16.msra.mxu0 %v919
      %1617 = vmatprep.subr.bf16.mxu0 %v928
      %1618 = vmatpush1.bf16.msra.mxu0 %v927
      %1619 = vmatprep.subr.bf16.mxu0 %v936
      %1620 = vmatpush1.bf16.msra.mxu0 %v935
      %1621 = vmatprep.subr.bf16.mxu0 %v944
      %1622 = vmatpush1.bf16.msra.mxu0 %v943
      %1623 = vmatprep.mubr.bf16.mxu0 %v1419
      %1624 = vmatmul.mubr.bf16.gmra.mrb[0].mxu0 %v1418
      %v1625 = vpop.f32.mrb[0].mxu0
      %v1626 = vadd.f32 %v1457, %v1625
      %v1627 = vpop.f32.mrb[0].mxu0
      %v1628 = vadd.f32 %v1459, %v1627
      %v1629 = vpop.f32.mrb[0].mxu0
      %v1630 = vpop.f32.mrb[0].mxu0
      %1631 = vdwg.mxu0
      %v1632 = vadd.f32 %v1503, %v1285
      %v1633 = vadd.f32 %v1505, %v1289
      %v1634 = vadd.f32 %v1544, %v1293
      %v1635 = vadd.f32 %v1546, %v1297
      %v1636 = vadd.f32 %v1585, %v1301
      %v1637 = vadd.f32 %v1587, %v1305
      %v1638 = vadd.f32 %v1626, %v1309
      %v1639 = vadd.f32 %v1628, %v1313
      %v1640 = vxor.u32 %v1632, 2147483648
      %v1641 = vxor.u32 %v1633, 2147483648
      %v1642 = vxor.u32 %v1634, 2147483648
      %v1643 = vxor.u32 %v1635, 2147483648
      %v1644 = vxor.u32 %v1636, 2147483648
      %v1645 = vxor.u32 %v1637, 2147483648
      %v1646 = vmul.f32 %v1640, 1.442695
      %v1647 = vpow.pop %v1646
      %v1648 = vmul.f32 %v1641, 1.442695
      %v1649 = vpow.pop %v1648
      %v1650 = vmul.f32 %v1642, 1.442695
      %v1651 = vpow.pop %v1650
      %v1652 = vmul.f32 %v1643, 1.442695
      %v1653 = vpow.pop %v1652
      %v1654 = vmul.f32 %v1644, 1.442695
      %v1655 = vpow.pop %v1654
      %v1656 = vmul.f32 %v1645, 1.442695
      %v1657 = vpow.pop %v1656
      %v1658 = vadd.f32 %v1647, 1.0
      %v1659 = vadd.f32 %v1649, 1.0
      %v1660 = vadd.f32 %v1651, 1.0
      %v1661 = vadd.f32 %v1653, 1.0
      %v1662 = vadd.f32 %v1655, 1.0
      %v1663 = vadd.f32 %v1657, 1.0
      %v1664 = vrcp.pop %v1658
      %v1665 = vmul.f32 1.0, %v1664
      %v1666 = vrcp.pop %v1659
      %v1667 = vmul.f32 1.0, %v1666
      %v1668 = vrcp.pop %v1660
      %v1669 = vmul.f32 1.0, %v1668
      %v1670 = vrcp.pop %v1661
      %v1671 = vmul.f32 1.0, %v1670
      %v1672 = vrcp.pop %v1662
      %v1673 = vmul.f32 1.0, %v1672
      %v1674 = vrcp.pop %v1663
      %v1675 = vmul.f32 1.0, %v1674
      %v1676 = vtanh.pop %v1638
      %v1677 = vtanh.pop %v1639
      %v1678 = vmul.f32 %v1669, %v1416
      %v1679 = vmul.f32 %v1671, %v1417
      %v1680 = vmul.f32 %v1665, %v1676
      %v1681 = vmul.f32 %v1667, %v1677
      %v1682 = vadd.f32 %v1678, %v1680
      %v1683 = vadd.f32 %v1679, %v1681
      %v1684 = vtanh.pop %v1682
      %v1685 = vtanh.pop %v1683
      %v1686 = vmul.f32 %v1673, %v1684
      %v1687 = vmul.f32 %v1675, %v1685
      %v1688 = vpack.c.bf16 %v1686, %v1686
      %v1689 = vpack.c.bf16 %v1687, %v1687
      %v1692 = vcombine.low %v1688, %v1689
      %v1694 = vunpack.c.l.s4 1966171168
      %v1695 = vunpack.c.0.s8 %v1694
      %v1696 = vlaneseq
      %v1697 = vshrl.u32 %v1696, 7
      %v1698 = vsub.s32 %v1695, %v1697
      %v1699 = vrot.slane %v1692, %v1698
      %v1701 = vunpack.c.l.s4 1966171168
      %v1702 = vunpack.c.0.s8 %v1701
      %v1703 = vlaneseq
      %v1704 = vshrl.u32 %v1703, 7
      %v1705 = vsub.s32 %v1702, %v1704
      %v1706 = vrot.slane %v1699, %v1705
      %s1708 = scalar_lea.vmem %s275, 2
      %1709 = vst [vmem:[%s1708] sm:$0x3] %v1706
      %s1710 = sadd.s32 %s414, 1
      %p1711 = scmp.lt.s32.totalorder %s1710, 11
      %s1712 = scalar_select %p1711, 1, 0
      %v1713 = vstv %s1712
      %vm1714 = vcmp.eq.s32.totalorder %v1713, 1
      %v1715 = vsel %vm1714, %v1686, %v1414
      %v1716 = vsel %vm1714, %v1687, %v1415
      %v1717 = vsel %vm1714, %v1682, %v1416
      %v1718 = vsel %vm1714, %v1683, %v1417
      %v1719 = vpack.c.bf16 %v1715, %v1715
      %v1720 = vpack.c.bf16 %v1716, %v1716
      %s1721 = scalar_lea.vmem %s269, 16
      %v1722 = vld [vmem:[%s1721] sm:$0xff]
      %v1723 = vunpack.c.l.bf16 %v1722
      %v1724 = vunpack.c.h.bf16 %v1722
      %v1727 = vcombine.high %v1723, %v1723
      %v1729 = vunpack.c.l.s4 1983009808
      %v1730 = vunpack.c.0.s8 %v1729
      %v1731 = vlaneseq
      %v1732 = vshrl.u32 %v1731, 7
      %v1733 = vsub.s32 %v1730, %v1732
      %v1734 = vrot.slane %v1723, %v1733
      %v1736 = vunpack.c.l.s4 1983009808
      %v1737 = vunpack.c.0.s8 %v1736
      %v1738 = vlaneseq
      %v1739 = vshrl.u32 %v1738, 7
      %v1740 = vsub.s32 %v1737, %v1739
      %v1741 = vrot.slane %v1727, %v1740
      %v1742 = vcombine.high %v1734, %v1734
      %v1743 = vcombine.high %v1741, %v1741
      %v1744 = vcombine.high %v1724, %v1724
      %v1746 = vunpack.c.l.s4 1983009808
      %v1747 = vunpack.c.0.s8 %v1746
      %v1748 = vlaneseq
      %v1749 = vshrl.u32 %v1748, 7
      %v1750 = vsub.s32 %v1747, %v1749
      %v1751 = vrot.slane %v1724, %v1750
      %v1753 = vunpack.c.l.s4 1983009808
      %v1754 = vunpack.c.0.s8 %v1753
      %v1755 = vlaneseq
      %v1756 = vshrl.u32 %v1755, 7
      %v1757 = vsub.s32 %v1754, %v1756
      %v1758 = vrot.slane %v1744, %v1757
      %v1759 = vcombine.high %v1751, %v1751
      %v1760 = vcombine.high %v1758, %v1758
      %1769 = vmatprep.subr.bf16.mxu0 %v818
      %1770 = vmatpush1.bf16.msra.mxu0 %v817
      %1771 = vmatprep.subr.bf16.mxu0 %v826
      %1772 = vmatpush1.bf16.msra.mxu0 %v825
      %1773 = vmatprep.subr.bf16.mxu0 %v834
      %1774 = vmatpush1.bf16.msra.mxu0 %v833
      %1775 = vmatprep.subr.bf16.mxu0 %v842
      %1776 = vmatpush1.bf16.msra.mxu0 %v841
      %1777 = vmatprep.subr.bf16.mxu0 %v850
      %1778 = vmatpush1.bf16.msra.mxu0 %v849
      %1779 = vmatprep.subr.bf16.mxu0 %v858
      %1780 = vmatpush1.bf16.msra.mxu0 %v857
      %1781 = vmatprep.subr.bf16.mxu0 %v866
      %1782 = vmatpush1.bf16.msra.mxu0 %v865
      %1783 = vmatprep.subr.bf16.mxu0 %v874
      %1784 = vmatpush1.bf16.msra.mxu0 %v873
      %1785 = vmatprep.subr.bf16.mxu0 %v882
      %1786 = vmatpush1.bf16.msra.mxu0 %v881
      %1787 = vmatprep.subr.bf16.mxu0 %v890
      %1788 = vmatpush1.bf16.msra.mxu0 %v889
      %1789 = vmatprep.subr.bf16.mxu0 %v898
      %1790 = vmatpush1.bf16.msra.mxu0 %v897
      %1791 = vmatprep.subr.bf16.mxu0 %v906
      %1792 = vmatpush1.bf16.msra.mxu0 %v905
      %1793 = vmatprep.subr.bf16.mxu0 %v914
      %1794 = vmatpush1.bf16.msra.mxu0 %v913
      %1795 = vmatprep.subr.bf16.mxu0 %v922
      %1796 = vmatpush1.bf16.msra.mxu0 %v921
      %1797 = vmatprep.subr.bf16.mxu0 %v930
      %1798 = vmatpush1.bf16.msra.mxu0 %v929
      %1799 = vmatprep.subr.bf16.mxu0 %v938
      %1800 = vmatpush1.bf16.msra.mxu0 %v937
      %1801 = vmatprep.mubr.bf16.mxu0 %v1720
      %1802 = vmatmul.mubr.bf16.gmra.mrb[0].mxu0 %v1719
      %v1803 = vpop.f32.mrb[0].mxu0
      %v1804 = vadd.f32 %v1734, %v1803
      %v1805 = vpop.f32.mrb[0].mxu0
      %v1806 = vadd.f32 %v1742, %v1805
      %v1807 = vpop.f32.mrb[0].mxu0
      %v1808 = vpop.f32.mrb[0].mxu0
      %1809 = vdwg.mxu0
      %1810 = vmatprep.subr.bf16.mxu0 %v820
      %1811 = vmatpush1.bf16.msra.mxu0 %v819
      %1812 = vmatprep.subr.bf16.mxu0 %v828
      %1813 = vmatpush1.bf16.msra.mxu0 %v827
      %1814 = vmatprep.subr.bf16.mxu0 %v836
      %1815 = vmatpush1.bf16.msra.mxu0 %v835
      %1816 = vmatprep.subr.bf16.mxu0 %v844
      %1817 = vmatpush1.bf16.msra.mxu0 %v843
      %1818 = vmatprep.subr.bf16.mxu0 %v852
      %1819 = vmatpush1.bf16.msra.mxu0 %v851
      %1820 = vmatprep.subr.bf16.mxu0 %v860
      %1821 = vmatpush1.bf16.msra.mxu0 %v859
      %1822 = vmatprep.subr.bf16.mxu0 %v868
      %1823 = vmatpush1.bf16.msra.mxu0 %v867
      %1824 = vmatprep.subr.bf16.mxu0 %v876
      %1825 = vmatpush1.bf16.msra.mxu0 %v875
      %1826 = vmatprep.subr.bf16.mxu0 %v884
      %1827 = vmatpush1.bf16.msra.mxu0 %v883
      %1828 = vmatprep.subr.bf16.mxu0 %v892
      %1829 = vmatpush1.bf16.msra.mxu0 %v891
      %1830 = vmatprep.subr.bf16.mxu0 %v900
      %1831 = vmatpush1.bf16.msra.mxu0 %v899
      %1832 = vmatprep.subr.bf16.mxu0 %v908
      %1833 = vmatpush1.bf16.msra.mxu0 %v907
      %1834 = vmatprep.subr.bf16.mxu0 %v916
      %1835 = vmatpush1.bf16.msra.mxu0 %v915
      %1836 = vmatprep.subr.bf16.mxu0 %v924
      %1837 = vmatpush1.bf16.msra.mxu0 %v923
      %1838 = vmatprep.subr.bf16.mxu0 %v932
      %1839 = vmatpush1.bf16.msra.mxu0 %v931
      %1840 = vmatprep.subr.bf16.mxu0 %v940
      %1841 = vmatpush1.bf16.msra.mxu0 %v939
      %1842 = vmatprep.mubr.bf16.mxu0 %v1720
      %1843 = vmatmul.mubr.bf16.gmra.mrb[0].mxu0 %v1719
      %v1844 = vpop.f32.mrb[0].mxu0
      %v1845 = vadd.f32 %v1741, %v1844
      %v1846 = vpop.f32.mrb[0].mxu0
      %v1847 = vadd.f32 %v1743, %v1846
      %v1848 = vpop.f32.mrb[0].mxu0
      %v1849 = vpop.f32.mrb[0].mxu0
      %1850 = vdwg.mxu0
      %1851 = vmatprep.subr.bf16.mxu0 %v822
      %1852 = vmatpush1.bf16.msra.mxu0 %v821
      %1853 = vmatprep.subr.bf16.mxu0 %v830
      %1854 = vmatpush1.bf16.msra.mxu0 %v829
      %1855 = vmatprep.subr.bf16.mxu0 %v838
      %1856 = vmatpush1.bf16.msra.mxu0 %v837
      %1857 = vmatprep.subr.bf16.mxu0 %v846
      %1858 = vmatpush1.bf16.msra.mxu0 %v845
      %1859 = vmatprep.subr.bf16.mxu0 %v854
      %1860 = vmatpush1.bf16.msra.mxu0 %v853
      %1861 = vmatprep.subr.bf16.mxu0 %v862
      %1862 = vmatpush1.bf16.msra.mxu0 %v861
      %1863 = vmatprep.subr.bf16.mxu0 %v870
      %1864 = vmatpush1.bf16.msra.mxu0 %v869
      %1865 = vmatprep.subr.bf16.mxu0 %v878
      %1866 = vmatpush1.bf16.msra.mxu0 %v877
      %1867 = vmatprep.subr.bf16.mxu0 %v886
      %1868 = vmatpush1.bf16.msra.mxu0 %v885
      %1869 = vmatprep.subr.bf16.mxu0 %v894
      %1870 = vmatpush1.bf16.msra.mxu0 %v893
      %1871 = vmatprep.subr.bf16.mxu0 %v902
      %1872 = vmatpush1.bf16.msra.mxu0 %v901
      %1873 = vmatprep.subr.bf16.mxu0 %v910
      %1874 = vmatpush1.bf16.msra.mxu0 %v909
      %1875 = vmatprep.subr.bf16.mxu0 %v918
      %1876 = vmatpush1.bf16.msra.mxu0 %v917
      %1877 = vmatprep.subr.bf16.mxu0 %v926
      %1878 = vmatpush1.bf16.msra.mxu0 %v925
      %1879 = vmatprep.subr.bf16.mxu0 %v934
      %1880 = vmatpush1.bf16.msra.mxu0 %v933
      %1881 = vmatprep.subr.bf16.mxu0 %v942
      %1882 = vmatpush1.bf16.msra.mxu0 %v941
      %1883 = vmatprep.mubr.bf16.mxu0 %v1720
      %1884 = vmatmul.mubr.bf16.gmra.mrb[0].mxu0 %v1719
      %v1885 = vpop.f32.mrb[0].mxu0
      %v1886 = vadd.f32 %v1751, %v1885
      %v1887 = vpop.f32.mrb[0].mxu0
      %v1888 = vadd.f32 %v1759, %v1887
      %v1889 = vpop.f32.mrb[0].mxu0
      %v1890 = vpop.f32.mrb[0].mxu0
      %1891 = vdwg.mxu0
      %1892 = vmatprep.subr.bf16.mxu0 %v824
      %1893 = vmatpush1.bf16.msra.mxu0 %v823
      %1894 = vmatprep.subr.bf16.mxu0 %v832
      %1895 = vmatpush1.bf16.msra.mxu0 %v831
      %1896 = vmatprep.subr.bf16.mxu0 %v840
      %1897 = vmatpush1.bf16.msra.mxu0 %v839
      %1898 = vmatprep.subr.bf16.mxu0 %v848
      %1899 = vmatpush1.bf16.msra.mxu0 %v847
      %1900 = vmatprep.subr.bf16.mxu0 %v856
      %1901 = vmatpush1.bf16.msra.mxu0 %v855
      %1902 = vmatprep.subr.bf16.mxu0 %v864
      %1903 = vmatpush1.bf16.msra.mxu0 %v863
      %1904 = vmatprep.subr.bf16.mxu0 %v872
      %1905 = vmatpush1.bf16.msra.mxu0 %v871
      %1906 = vmatprep.subr.bf16.mxu0 %v880
      %1907 = vmatpush1.bf16.msra.mxu0 %v879
      %1908 = vmatprep.subr.bf16.mxu0 %v888
      %1909 = vmatpush1.bf16.msra.mxu0 %v887
      %1910 = vmatprep.subr.bf16.mxu0 %v896
      %1911 = vmatpush1.bf16.msra.mxu0 %v895
      %1912 = vmatprep.subr.bf16.mxu0 %v904
      %1913 = vmatpush1.bf16.msra.mxu0 %v903
      %1914 = vmatprep.subr.bf16.mxu0 %v912
      %1915 = vmatpush1.bf16.msra.mxu0 %v911
      %1916 = vmatprep.subr.bf16.mxu0 %v920
      %1917 = vmatpush1.bf16.msra.mxu0 %v919
      %1918 = vmatprep.subr.bf16.mxu0 %v928
      %1919 = vmatpush1.bf16.msra.mxu0 %v927
      %1920 = vmatprep.subr.bf16.mxu0 %v936
      %1921 = vmatpush1.bf16.msra.mxu0 %v935
      %1922 = vmatprep.subr.bf16.mxu0 %v944
      %1923 = vmatpush1.bf16.msra.mxu0 %v943
      %1924 = vmatprep.mubr.bf16.mxu0 %v1720
      %1925 = vmatmul.mubr.bf16.gmra.mrb[0].mxu0 %v1719
      %v1926 = vpop.f32.mrb[0].mxu0
      %v1927 = vadd.f32 %v1758, %v1926
      %v1928 = vpop.f32.mrb[0].mxu0
      %v1929 = vadd.f32 %v1760, %v1928
      %v1930 = vpop.f32.mrb[0].mxu0
      %v1931 = vpop.f32.mrb[0].mxu0
      %1932 = vdwg.mxu0
      %v1933 = vadd.f32 %v1804, %v1285
      %v1934 = vadd.f32 %v1806, %v1289
      %v1935 = vadd.f32 %v1845, %v1293
      %v1936 = vadd.f32 %v1847, %v1297
      %v1937 = vadd.f32 %v1886, %v1301
      %v1938 = vadd.f32 %v1888, %v1305
      %v1939 = vadd.f32 %v1927, %v1309
      %v1940 = vadd.f32 %v1929, %v1313
      %v1941 = vxor.u32 %v1933, 2147483648
      %v1942 = vxor.u32 %v1934, 2147483648
      %v1943 = vxor.u32 %v1935, 2147483648
      %v1944 = vxor.u32 %v1936, 2147483648
      %v1945 = vxor.u32 %v1937, 2147483648
      %v1946 = vxor.u32 %v1938, 2147483648
      %v1947 = vmul.f32 %v1941, 1.442695
      %v1948 = vpow.pop %v1947
      %v1949 = vmul.f32 %v1942, 1.442695
      %v1950 = vpow.pop %v1949
      %v1951 = vmul.f32 %v1943, 1.442695
      %v1952 = vpow.pop %v1951
      %v1953 = vmul.f32 %v1944, 1.442695
      %v1954 = vpow.pop %v1953
      %v1955 = vmul.f32 %v1945, 1.442695
      %v1956 = vpow.pop %v1955
      %v1957 = vmul.f32 %v1946, 1.442695
      %v1958 = vpow.pop %v1957
      %v1959 = vadd.f32 %v1948, 1.0
      %v1960 = vadd.f32 %v1950, 1.0
      %v1961 = vadd.f32 %v1952, 1.0
      %v1962 = vadd.f32 %v1954, 1.0
      %v1963 = vadd.f32 %v1956, 1.0
      %v1964 = vadd.f32 %v1958, 1.0
      %v1965 = vrcp.pop %v1959
      %v1966 = vmul.f32 1.0, %v1965
      %v1967 = vrcp.pop %v1960
      %v1968 = vmul.f32 1.0, %v1967
      %v1969 = vrcp.pop %v1961
      %v1970 = vmul.f32 1.0, %v1969
      %v1971 = vrcp.pop %v1962
      %v1972 = vmul.f32 1.0, %v1971
      %v1973 = vrcp.pop %v1963
      %v1974 = vmul.f32 1.0, %v1973
      %v1975 = vrcp.pop %v1964
      %v1976 = vmul.f32 1.0, %v1975
      %v1977 = vtanh.pop %v1939
      %v1978 = vtanh.pop %v1940
      %v1979 = vmul.f32 %v1970, %v1717
      %v1980 = vmul.f32 %v1972, %v1718
      %v1981 = vmul.f32 %v1966, %v1977
      %v1982 = vmul.f32 %v1968, %v1978
      %v1983 = vadd.f32 %v1979, %v1981
      %v1984 = vadd.f32 %v1980, %v1982
      %v1985 = vtanh.pop %v1983
      %v1986 = vtanh.pop %v1984
      %v1987 = vmul.f32 %v1974, %v1985
      %v1988 = vmul.f32 %v1976, %v1986
      %v1989 = vpack.c.bf16 %v1987, %v1987
      %v1990 = vpack.c.bf16 %v1988, %v1988
      %v1993 = vcombine.low %v1989, %v1990
      %v1995 = vunpack.c.l.s4 1966171168
      %v1996 = vunpack.c.0.s8 %v1995
      %v1997 = vlaneseq
      %v1998 = vshrl.u32 %v1997, 7
      %v1999 = vsub.s32 %v1996, %v1998
      %v2000 = vrot.slane %v1993, %v1999
      %v2002 = vunpack.c.l.s4 1966171168
      %v2003 = vunpack.c.0.s8 %v2002
      %v2004 = vlaneseq
      %v2005 = vshrl.u32 %v2004, 7
      %v2006 = vsub.s32 %v2003, %v2005
      %v2007 = vrot.slane %v2000, %v2006
      %s2009 = scalar_lea.vmem %s275, 4
      %2010 = vst [vmem:[%s2009] sm:$0x3] %v2007
      %s2011 = sadd.s32 %s414, 2
      %p2012 = scmp.lt.s32.totalorder %s2011, 11
      %s2013 = scalar_select %p2012, 1, 0
      %v2014 = vstv %s2013
      %vm2015 = vcmp.eq.s32.totalorder %v2014, 1
      %v2016 = vsel %vm2015, %v1987, %v1715
      %v2017 = vsel %vm2015, %v1988, %v1716
      %v2018 = vsel %vm2015, %v1983, %v1717
      %v2019 = vsel %vm2015, %v1984, %v1718
      %v2020 = vpack.c.bf16 %v2016, %v2016
      %v2021 = vpack.c.bf16 %v2017, %v2017
      %s2022 = scalar_lea.vmem %s269, 24
      %v2023 = vld [vmem:[%s2022] sm:$0xff]
      %v2024 = vunpack.c.l.bf16 %v2023
      %v2025 = vunpack.c.h.bf16 %v2023
      %v2028 = vcombine.high %v2024, %v2024
      %v2030 = vunpack.c.l.s4 1983009808
      %v2031 = vunpack.c.0.s8 %v2030
      %v2032 = vlaneseq
      %v2033 = vshrl.u32 %v2032, 7
      %v2034 = vsub.s32 %v2031, %v2033
      %v2035 = vrot.slane %v2024, %v2034
      %v2037 = vunpack.c.l.s4 1983009808
      %v2038 = vunpack.c.0.s8 %v2037
      %v2039 = vlaneseq
      %v2040 = vshrl.u32 %v2039, 7
      %v2041 = vsub.s32 %v2038, %v2040
      %v2042 = vrot.slane %v2028, %v2041
      %v2043 = vcombine.high %v2035, %v2035
      %v2044 = vcombine.high %v2042, %v2042
      %v2045 = vcombine.high %v2025, %v2025
      %v2047 = vunpack.c.l.s4 1983009808
      %v2048 = vunpack.c.0.s8 %v2047
      %v2049 = vlaneseq
      %v2050 = vshrl.u32 %v2049, 7
      %v2051 = vsub.s32 %v2048, %v2050
      %v2052 = vrot.slane %v2025, %v2051
      %v2054 = vunpack.c.l.s4 1983009808
      %v2055 = vunpack.c.0.s8 %v2054
      %v2056 = vlaneseq
      %v2057 = vshrl.u32 %v2056, 7
      %v2058 = vsub.s32 %v2055, %v2057
      %v2059 = vrot.slane %v2045, %v2058
      %v2060 = vcombine.high %v2052, %v2052
      %v2061 = vcombine.high %v2059, %v2059
      %2070 = vmatprep.subr.bf16.mxu0 %v818
      %2071 = vmatpush1.bf16.msra.mxu0 %v817
      %2072 = vmatprep.subr.bf16.mxu0 %v826
      %2073 = vmatpush1.bf16.msra.mxu0 %v825
      %2074 = vmatprep.subr.bf16.mxu0 %v834
      %2075 = vmatpush1.bf16.msra.mxu0 %v833
      %2076 = vmatprep.subr.bf16.mxu0 %v842
      %2077 = vmatpush1.bf16.msra.mxu0 %v841
      %2078 = vmatprep.subr.bf16.mxu0 %v850
      %2079 = vmatpush1.bf16.msra.mxu0 %v849
      %2080 = vmatprep.subr.bf16.mxu0 %v858
      %2081 = vmatpush1.bf16.msra.mxu0 %v857
      %2082 = vmatprep.subr.bf16.mxu0 %v866
      %2083 = vmatpush1.bf16.msra.mxu0 %v865
      %2084 = vmatprep.subr.bf16.mxu0 %v874
      %2085 = vmatpush1.bf16.msra.mxu0 %v873
      %2086 = vmatprep.subr.bf16.mxu0 %v882
      %2087 = vmatpush1.bf16.msra.mxu0 %v881
      %2088 = vmatprep.subr.bf16.mxu0 %v890
      %2089 = vmatpush1.bf16.msra.mxu0 %v889
      %2090 = vmatprep.subr.bf16.mxu0 %v898
      %2091 = vmatpush1.bf16.msra.mxu0 %v897
      %2092 = vmatprep.subr.bf16.mxu0 %v906
      %2093 = vmatpush1.bf16.msra.mxu0 %v905
      %2094 = vmatprep.subr.bf16.mxu0 %v914
      %2095 = vmatpush1.bf16.msra.mxu0 %v913
      %2096 = vmatprep.subr.bf16.mxu0 %v922
      %2097 = vmatpush1.bf16.msra.mxu0 %v921
      %2098 = vmatprep.subr.bf16.mxu0 %v930
      %2099 = vmatpush1.bf16.msra.mxu0 %v929
      %2100 = vmatprep.subr.bf16.mxu0 %v938
      %2101 = vmatpush1.bf16.msra.mxu0 %v937
      %2102 = vmatprep.mubr.bf16.mxu0 %v2021
      %2103 = vmatmul.mubr.bf16.gmra.mrb[0].mxu0 %v2020
      %v2104 = vpop.f32.mrb[0].mxu0
      %v2105 = vadd.f32 %v2035, %v2104
      %v2106 = vpop.f32.mrb[0].mxu0
      %v2107 = vadd.f32 %v2043, %v2106
      %v2108 = vpop.f32.mrb[0].mxu0
      %v2109 = vpop.f32.mrb[0].mxu0
      %2110 = vdwg.mxu0
      %2111 = vmatprep.subr.bf16.mxu0 %v820
      %2112 = vmatpush1.bf16.msra.mxu0 %v819
      %2113 = vmatprep.subr.bf16.mxu0 %v828
      %2114 = vmatpush1.bf16.msra.mxu0 %v827
      %2115 = vmatprep.subr.bf16.mxu0 %v836
      %2116 = vmatpush1.bf16.msra.mxu0 %v835
      %2117 = vmatprep.subr.bf16.mxu0 %v844
      %2118 = vmatpush1.bf16.msra.mxu0 %v843
      %2119 = vmatprep.subr.bf16.mxu0 %v852
      %2120 = vmatpush1.bf16.msra.mxu0 %v851
      %2121 = vmatprep.subr.bf16.mxu0 %v860
      %2122 = vmatpush1.bf16.msra.mxu0 %v859
      %2123 = vmatprep.subr.bf16.mxu0 %v868
      %2124 = vmatpush1.bf16.msra.mxu0 %v867
      %2125 = vmatprep.subr.bf16.mxu0 %v876
      %2126 = vmatpush1.bf16.msra.mxu0 %v875
      %2127 = vmatprep.subr.bf16.mxu0 %v884
      %2128 = vmatpush1.bf16.msra.mxu0 %v883
      %2129 = vmatprep.subr.bf16.mxu0 %v892
      %2130 = vmatpush1.bf16.msra.mxu0 %v891
      %2131 = vmatprep.subr.bf16.mxu0 %v900
      %2132 = vmatpush1.bf16.msra.mxu0 %v899
      %2133 = vmatprep.subr.bf16.mxu0 %v908
      %2134 = vmatpush1.bf16.msra.mxu0 %v907
      %2135 = vmatprep.subr.bf16.mxu0 %v916
      %2136 = vmatpush1.bf16.msra.mxu0 %v915
      %2137 = vmatprep.subr.bf16.mxu0 %v924
      %2138 = vmatpush1.bf16.msra.mxu0 %v923
      %2139 = vmatprep.subr.bf16.mxu0 %v932
      %2140 = vmatpush1.bf16.msra.mxu0 %v931
      %2141 = vmatprep.subr.bf16.mxu0 %v940
      %2142 = vmatpush1.bf16.msra.mxu0 %v939
      %2143 = vmatprep.mubr.bf16.mxu0 %v2021
      %2144 = vmatmul.mubr.bf16.gmra.mrb[0].mxu0 %v2020
      %v2145 = vpop.f32.mrb[0].mxu0
      %v2146 = vadd.f32 %v2042, %v2145
      %v2147 = vpop.f32.mrb[0].mxu0
      %v2148 = vadd.f32 %v2044, %v2147
      %v2149 = vpop.f32.mrb[0].mxu0
      %v2150 = vpop.f32.mrb[0].mxu0
      %2151 = vdwg.mxu0
      %2152 = vmatprep.subr.bf16.mxu0 %v822
      %2153 = vmatpush1.bf16.msra.mxu0 %v821
      %2154 = vmatprep.subr.bf16.mxu0 %v830
      %2155 = vmatpush1.bf16.msra.mxu0 %v829
      %2156 = vmatprep.subr.bf16.mxu0 %v838
      %2157 = vmatpush1.bf16.msra.mxu0 %v837
      %2158 = vmatprep.subr.bf16.mxu0 %v846
      %2159 = vmatpush1.bf16.msra.mxu0 %v845
      %2160 = vmatprep.subr.bf16.mxu0 %v854
      %2161 = vmatpush1.bf16.msra.mxu0 %v853
      %2162 = vmatprep.subr.bf16.mxu0 %v862
      %2163 = vmatpush1.bf16.msra.mxu0 %v861
      %2164 = vmatprep.subr.bf16.mxu0 %v870
      %2165 = vmatpush1.bf16.msra.mxu0 %v869
      %2166 = vmatprep.subr.bf16.mxu0 %v878
      %2167 = vmatpush1.bf16.msra.mxu0 %v877
      %2168 = vmatprep.subr.bf16.mxu0 %v886
      %2169 = vmatpush1.bf16.msra.mxu0 %v885
      %2170 = vmatprep.subr.bf16.mxu0 %v894
      %2171 = vmatpush1.bf16.msra.mxu0 %v893
      %2172 = vmatprep.subr.bf16.mxu0 %v902
      %2173 = vmatpush1.bf16.msra.mxu0 %v901
      %2174 = vmatprep.subr.bf16.mxu0 %v910
      %2175 = vmatpush1.bf16.msra.mxu0 %v909
      %2176 = vmatprep.subr.bf16.mxu0 %v918
      %2177 = vmatpush1.bf16.msra.mxu0 %v917
      %2178 = vmatprep.subr.bf16.mxu0 %v926
      %2179 = vmatpush1.bf16.msra.mxu0 %v925
      %2180 = vmatprep.subr.bf16.mxu0 %v934
      %2181 = vmatpush1.bf16.msra.mxu0 %v933
      %2182 = vmatprep.subr.bf16.mxu0 %v942
      %2183 = vmatpush1.bf16.msra.mxu0 %v941
      %2184 = vmatprep.mubr.bf16.mxu0 %v2021
      %2185 = vmatmul.mubr.bf16.gmra.mrb[0].mxu0 %v2020
      %v2186 = vpop.f32.mrb[0].mxu0
      %v2187 = vadd.f32 %v2052, %v2186
      %v2188 = vpop.f32.mrb[0].mxu0
      %v2189 = vadd.f32 %v2060, %v2188
      %v2190 = vpop.f32.mrb[0].mxu0
      %v2191 = vpop.f32.mrb[0].mxu0
      %2192 = vdwg.mxu0
      %2193 = vmatprep.subr.bf16.mxu0 %v824
      %2194 = vmatpush1.bf16.msra.mxu0 %v823
      %2195 = vmatprep.subr.bf16.mxu0 %v832
      %2196 = vmatpush1.bf16.msra.mxu0 %v831
      %2197 = vmatprep.subr.bf16.mxu0 %v840
      %2198 = vmatpush1.bf16.msra.mxu0 %v839
      %2199 = vmatprep.subr.bf16.mxu0 %v848
      %2200 = vmatpush1.bf16.msra.mxu0 %v847
      %2201 = vmatprep.subr.bf16.mxu0 %v856
      %2202 = vmatpush1.bf16.msra.mxu0 %v855
      %2203 = vmatprep.subr.bf16.mxu0 %v864
      %2204 = vmatpush1.bf16.msra.mxu0 %v863
      %2205 = vmatprep.subr.bf16.mxu0 %v872
      %2206 = vmatpush1.bf16.msra.mxu0 %v871
      %2207 = vmatprep.subr.bf16.mxu0 %v880
      %2208 = vmatpush1.bf16.msra.mxu0 %v879
      %2209 = vmatprep.subr.bf16.mxu0 %v888
      %2210 = vmatpush1.bf16.msra.mxu0 %v887
      %2211 = vmatprep.subr.bf16.mxu0 %v896
      %2212 = vmatpush1.bf16.msra.mxu0 %v895
      %2213 = vmatprep.subr.bf16.mxu0 %v904
      %2214 = vmatpush1.bf16.msra.mxu0 %v903
      %2215 = vmatprep.subr.bf16.mxu0 %v912
      %2216 = vmatpush1.bf16.msra.mxu0 %v911
      %2217 = vmatprep.subr.bf16.mxu0 %v920
      %2218 = vmatpush1.bf16.msra.mxu0 %v919
      %2219 = vmatprep.subr.bf16.mxu0 %v928
      %2220 = vmatpush1.bf16.msra.mxu0 %v927
      %2221 = vmatprep.subr.bf16.mxu0 %v936
      %2222 = vmatpush1.bf16.msra.mxu0 %v935
      %2223 = vmatprep.subr.bf16.mxu0 %v944
      %2224 = vmatpush1.bf16.msra.mxu0 %v943
      %2225 = vmatprep.mubr.bf16.mxu0 %v2021
      %2226 = vmatmul.mubr.bf16.gmra.mrb[0].mxu0 %v2020
      %v2227 = vpop.f32.mrb[0].mxu0
      %v2228 = vadd.f32 %v2059, %v2227
      %v2229 = vpop.f32.mrb[0].mxu0
      %v2230 = vadd.f32 %v2061, %v2229
      %v2231 = vpop.f32.mrb[0].mxu0
      %v2232 = vpop.f32.mrb[0].mxu0
      %2233 = vdwg.mxu0
      %v2234 = vadd.f32 %v2105, %v1285
      %v2235 = vadd.f32 %v2107, %v1289
      %v2236 = vadd.f32 %v2146, %v1293
      %v2237 = vadd.f32 %v2148, %v1297
      %v2238 = vadd.f32 %v2187, %v1301
      %v2239 = vadd.f32 %v2189, %v1305
      %v2240 = vadd.f32 %v2228, %v1309
      %v2241 = vadd.f32 %v2230, %v1313
      %v2242 = vxor.u32 %v2234, 2147483648
      %v2243 = vxor.u32 %v2235, 2147483648
      %v2244 = vxor.u32 %v2236, 2147483648
      %v2245 = vxor.u32 %v2237, 2147483648
      %v2246 = vxor.u32 %v2238, 2147483648
      %v2247 = vxor.u32 %v2239, 2147483648
      %v2248 = vmul.f32 %v2242, 1.442695
      %v2249 = vpow.pop %v2248
      %v2250 = vmul.f32 %v2243, 1.442695
      %v2251 = vpow.pop %v2250
      %v2252 = vmul.f32 %v2244, 1.442695
      %v2253 = vpow.pop %v2252
      %v2254 = vmul.f32 %v2245, 1.442695
      %v2255 = vpow.pop %v2254
      %v2256 = vmul.f32 %v2246, 1.442695
      %v2257 = vpow.pop %v2256
      %v2258 = vmul.f32 %v2247, 1.442695
      %v2259 = vpow.pop %v2258
      %v2260 = vadd.f32 %v2249, 1.0
      %v2261 = vadd.f32 %v2251, 1.0
      %v2262 = vadd.f32 %v2253, 1.0
      %v2263 = vadd.f32 %v2255, 1.0
      %v2264 = vadd.f32 %v2257, 1.0
      %v2265 = vadd.f32 %v2259, 1.0
      %v2266 = vrcp.pop %v2260
      %v2267 = vmul.f32 1.0, %v2266
      %v2268 = vrcp.pop %v2261
      %v2269 = vmul.f32 1.0, %v2268
      %v2270 = vrcp.pop %v2262
      %v2271 = vmul.f32 1.0, %v2270
      %v2272 = vrcp.pop %v2263
      %v2273 = vmul.f32 1.0, %v2272
      %v2274 = vrcp.pop %v2264
      %v2275 = vmul.f32 1.0, %v2274
      %v2276 = vrcp.pop %v2265
      %v2277 = vmul.f32 1.0, %v2276
      %v2278 = vtanh.pop %v2240
      %v2279 = vtanh.pop %v2241
      %v2280 = vmul.f32 %v2271, %v2018
      %v2281 = vmul.f32 %v2273, %v2019
      %v2282 = vmul.f32 %v2267, %v2278
      %v2283 = vmul.f32 %v2269, %v2279
      %v2284 = vadd.f32 %v2280, %v2282
      %v2285 = vadd.f32 %v2281, %v2283
      %v2286 = vtanh.pop %v2284
      %v2287 = vtanh.pop %v2285
      %v2288 = vmul.f32 %v2275, %v2286
      %v2289 = vmul.f32 %v2277, %v2287
      %v2290 = vpack.c.bf16 %v2288, %v2288
      %v2291 = vpack.c.bf16 %v2289, %v2289
      %v2294 = vcombine.low %v2290, %v2291
      %v2296 = vunpack.c.l.s4 1966171168
      %v2297 = vunpack.c.0.s8 %v2296
      %v2298 = vlaneseq
      %v2299 = vshrl.u32 %v2298, 7
      %v2300 = vsub.s32 %v2297, %v2299
      %v2301 = vrot.slane %v2294, %v2300
      %v2303 = vunpack.c.l.s4 1966171168
      %v2304 = vunpack.c.0.s8 %v2303
      %v2305 = vlaneseq
      %v2306 = vshrl.u32 %v2305, 7
      %v2307 = vsub.s32 %v2304, %v2306
      %v2308 = vrot.slane %v2301, %v2307
      %s2310 = scalar_lea.vmem %s275, 6
      %2311 = vst [vmem:[%s2310] sm:$0x3] %v2308
      %s2312 = sadd.s32 %s414, 3
      %p2313 = scmp.lt.s32.totalorder %s2312, 11
      %s2314 = scalar_select %p2313, 1, 0
      %v2315 = vstv %s2314
      %vm2316 = vcmp.eq.s32.totalorder %v2315, 1
      %v2317 = vsel %vm2316, %v2288, %v2016
      %v2318 = vsel %vm2316, %v2289, %v2017
      %v2319 = vsel %vm2316, %v2284, %v2018
      %v2320 = vsel %vm2316, %v2285, %v2019
      %v2323 = vcombine.low %v2317, %v2318
      %v2325 = vunpack.c.l.s4 1983009808
      %v2326 = vunpack.c.0.s8 %v2325
      %v2327 = vlaneseq
      %v2328 = vshrl.u32 %v2327, 7
      %v2329 = vsub.s32 %v2326, %v2328
      %v2330 = vrot.slane %v2323, %v2329
      %2332 = vst [vmem:[%s6] sm:$0xf] %v2330
      %v2335 = vcombine.low %v2319, %v2320
      %v2337 = vunpack.c.l.s4 1983009808
      %v2338 = vunpack.c.0.s8 %v2337
      %v2339 = vlaneseq
      %v2340 = vshrl.u32 %v2339, 7
      %v2341 = vsub.s32 %v2338, %v2340
      %v2342 = vrot.slane %v2335, %v2341
      %2344 = vst [vmem:[%s7] sm:$0xf] %v2342
      %s2345 = smul.u32 4, %s19
      %p2346 = scmp.lt.s32.totalorder %s2345, 11
      %s2347 = scalar_select %p2346, %s2345, 11
      %s2348 = smul.addr %s2347, 2
      %s2349 = scalar_lea.vmem %s5, %s2348
      // Predicated region
      $region45: #{plugin_lstm_rnnt_pre.2} parent=39 // pred_check
        %p2350 = pneg %p147
      $region46: #{plugin_lstm_rnnt_pre.2} parent=39 // pred_check_branch
        %2352 = sbr.rel (%p2350) target = $region48
      $region47: #{plugin_lstm_rnnt_pre.2} parent=39 // pred_region
        %s2353 = smul.u32 4, %s19
      $region48: #{plugin_lstm_rnnt_pre.2} parent=39 // pred_fallthru
        _
      // Predicated region
      $region49: #{plugin_lstm_rnnt_pre.2} parent=39 // pred_check
        %p2354 = pneg %p168
      $region50: #{plugin_lstm_rnnt_pre.2} parent=39 // pred_check_branch
        %2356 = sbr.rel (%p2354) target = $region52
      $region51: #{plugin_lstm_rnnt_pre.2} parent=39 // pred_region
        _
      $region52: #{plugin_lstm_rnnt_pre.2} parent=39 // pred_fallthru
        _
      // Predicated region
      $region53: #{plugin_lstm_rnnt_pre.2} parent=39 // pred_check
        %p2357 = pneg %p189
      $region54: #{plugin_lstm_rnnt_pre.2} parent=39 // pred_check_branch
        %2359 = sbr.rel (%p2357) target = $region56
      $region55: #{plugin_lstm_rnnt_pre.2} parent=39 // pred_region
        _
      $region56: #{plugin_lstm_rnnt_pre.2} parent=39 // pred_fallthru
        _
      // Predicated region
      $region57: #{plugin_lstm_rnnt_pre.2} parent=39 // pred_check
        %p2360 = pneg %p168
      $region58: #{plugin_lstm_rnnt_pre.2} parent=39 // pred_check_branch
        %2362 = sbr.rel (%p2360) target = $region60
      $region59: #{plugin_lstm_rnnt_pre.2} parent=39 // pred_region
        _
      $region60: #{plugin_lstm_rnnt_pre.2} parent=39 // pred_fallthru
        _
      // Predicated region
      $region61: #{plugin_lstm_rnnt_pre.2} parent=39 // pred_check
        %p2363 = pneg %p189
      $region62: #{plugin_lstm_rnnt_pre.2} parent=39 // pred_check_branch
        %2365 = sbr.rel (%p2363) target = $region64
      $region63: #{plugin_lstm_rnnt_pre.2} parent=39 // pred_region
        _
      $region64: #{plugin_lstm_rnnt_pre.2} parent=39 // pred_fallthru
        _
    $region40: #{plugin_lstm_rnnt_pre.2} parent=5 // pred_fallthru
      _
    %p2366 = scmp.le.s32.totalorder 2, %s14
    // Predicated region
    $region65: #{plugin_lstm_rnnt_pre.2} parent=5 // pred_check
      %p2367 = pneg %p2366
    $region66: #{plugin_lstm_rnnt_pre.2} parent=5 // pred_check_branch
      %2369 = sbr.rel (%p2367) target = $region68
    $region67: #{plugin_lstm_rnnt_pre.2} parent=5 // pred_region
      %s2370 = ssub.s32 %s14, 2
      // Predicated region
      $region69: #{plugin_lstm_rnnt_pre.2} parent=67 // pred_check
        %p2371 = pneg %p153
      $region70: #{plugin_lstm_rnnt_pre.2} parent=67 // pred_check_branch
        %2373 = sbr.rel (%p2371) target = $region72
      $region71: #{plugin_lstm_rnnt_pre.2} parent=67 // pred_region
        %s2374 = smul.u32 4, %s20
        %p2375 = scmp.lt.s32.totalorder %s2374, 11
        %s2376 = scalar_select %p2375, %s2374, 11
        %s2377 = smul.addr %s2376, 2
        %s2378 = scalar_lea.vmem %s5, %s2377
      $region72: #{plugin_lstm_rnnt_pre.2} parent=67 // pred_fallthru
        _
    $region68: #{plugin_lstm_rnnt_pre.2} parent=5 // pred_fallthru
      _
  $region6: #{plugin_lstm_rnnt_pre.2} parent=0 // loop_footer
    %s18 = sadd.s32 1, %s14
  $region7: #{plugin_lstm_rnnt_pre.2} parent=0 // loop_footer_branch
    %13 = sbr.rel target = $region3
  $region8: #{plugin_lstm_rnnt_pre.2} parent=0 // loop_exit
    _

// kernel: plugin_lstm_rnnt_pre.3
$region0: #{plugin_lstm_rnnt_pre.3}
  #allocation0 [shape = 'u32[]', space=smem, size = 0x4, offset = 0x4, fixed_abs, tag = 'smem constant byte address 0x4 - core index']
  #allocation1 [shape = 'u32[144,128]{1,0:T(1,128)}', space=vmem, size = 0x12000, scoped, tag = 'internal scratch']
  %s0 = inlined_call_operand.vmem [shape: bf16[12,2,1024], index: 0, kind: input, shape index: {}]
  %s1 = inlined_call_operand.vmem [shape: f32[1,1024], index: 1, kind: input, shape index: {}]
  %s2 = inlined_call_operand.vmem [shape: f32[2,256], index: 2, kind: input, shape index: {}]
  %s3 = inlined_call_operand.vmem [shape: f32[2,256], index: 3, kind: input, shape index: {}]
  %s4 = inlined_call_operand.vmem [shape: bf16[256,1024], index: 4, kind: input, shape index: {}]
  %s5 = inlined_call_operand.vmem [shape: f32[12,2,256], index: 5, kind: output, shape index: {0}]
  %s6 = inlined_call_operand.vmem [shape: f32[2,256], index: 6, kind: output, shape index: {1}]
  %s7 = inlined_call_operand.vmem [shape: f32[2,256], index: 7, kind: output, shape index: {2}]
  %8 = xla_tuple %s5, %s6, %s7
  %s9 = sld [smem:[#allocation0]]
  $region73: #{plugin_lstm_rnnt_pre.3} parent=0
    _
  %s11 = ssub.s32 1, %s9
  %s12 = scalar_select 0, %s11, %s9
  loop: start=0, step=1, limit=5
  $region2: #{plugin_lstm_rnnt_pre.3} parent=0 // loop_pre_header
    _
  $region3: #{plugin_lstm_rnnt_pre.3} parent=0 // loop_header
    %s14 = sphi 0, %s18
    %p15 = scmp.ge.s32.totalorder %s14, 5
    %s24 = sphi 0, %s26
    %s27 = sphi 0, %s24
    %s28 = sphi 0, %s27
    %s44 = sphi 0, %s28
    %s48 = sphi 0, %s48
    %s50 = sphi 0, %s48
    %s51 = sphi 0, %s50
    %s65 = sphi 0, %s51
    %s69 = sphi 0, %s69
    %s71 = sphi 0, %s69
    %s72 = sphi 0, %s71
    %s86 = sphi 0, %s72
    %s90 = sphi 0, %s90
    %s92 = sphi 0, %s90
    %s93 = sphi 0, %s92
    %s107 = sphi 0, %s93
    %s111 = sphi 0, %s111
    %s113 = sphi 0, %s111
    %s114 = sphi 0, %s113
    %s128 = sphi 0, %s114
    %s134 = sphi 0, %s136
    %s137 = sphi 0, %s134
    %s138 = sphi 0, %s137
    %s154 = sphi 0, %s138
    %s158 = sphi 0, %s158
    %s160 = sphi 0, %s158
    %s161 = sphi 0, %s160
    %s175 = sphi 0, %s161
    %s179 = sphi 0, %s179
    %s181 = sphi 0, %s179
    %s182 = sphi 0, %s181
    %s196 = sphi 0, %s182
  $region4: #{plugin_lstm_rnnt_pre.3} parent=0 // loop_header_branch
    %17 = sbr.rel (%p15) target = $region8
  $region5: #{plugin_lstm_rnnt_pre.3} parent=0 // loop_body
    %s19 = ssub.s32 %s14, 1
    %s20 = ssub.s32 %s14, 2
    %s21 = sadd.s32 %s14, 1
    %s22 = ssub.s32 %s14, %s21
    %p23 = scmp.eq.s32.totalorder %s22, 0
    %s25 = sadd.s32 %s24, 1
    %s26 = scalar_select %p23, %s24, %s25
    %p29 = pneg %p23
    %p30 = scmp.eq.s32.totalorder %s14, 2
    %p31 = por %p29, %p30
    %p32 = scmp.ne.s32.totalorder %s24, %s27
    %p33 = scmp.eq.s32.totalorder %s14, 0
    %p34 = por %p32, %p33
    %p35 = scmp.ne.s32.totalorder %s24, %s27
    %p36 = scmp.eq.s32.totalorder %s19, 2
    %p37 = por %p35, %p36
    %p38 = scmp.ne.s32.totalorder %s27, %s28
    %p39 = scmp.eq.s32.totalorder %s19, 0
    %p40 = por %p38, %p39
    %p41 = scmp.ne.s32.totalorder %s27, %s28
    %p42 = scmp.eq.s32.totalorder %s20, 2
    %p43 = por %p41, %p42
    %p45 = scmp.ne.s32.totalorder %s28, %s44
    %p46 = scmp.eq.s32.totalorder %s20, 0
    %p47 = por %p45, %p46
    %s49 = sadd.s32 %s48, 1
    %p52 = scmp.eq.s32.totalorder %s14, 2
    %p53 = scmp.ne.s32.totalorder %s48, %s50
    %p54 = scmp.eq.s32.totalorder %s14, 0
    %p55 = por %p53, %p54
    %p56 = scmp.ne.s32.totalorder %s48, %s50
    %p57 = scmp.eq.s32.totalorder %s19, 2
    %p58 = por %p56, %p57
    %p59 = scmp.ne.s32.totalorder %s50, %s51
    %p60 = scmp.eq.s32.totalorder %s19, 0
    %p61 = por %p59, %p60
    %p62 = scmp.ne.s32.totalorder %s50, %s51
    %p63 = scmp.eq.s32.totalorder %s20, 2
    %p64 = por %p62, %p63
    %p66 = scmp.ne.s32.totalorder %s51, %s65
    %p67 = scmp.eq.s32.totalorder %s20, 0
    %p68 = por %p66, %p67
    %s70 = sadd.s32 %s69, 1
    %p73 = scmp.eq.s32.totalorder %s14, 2
    %p74 = scmp.ne.s32.totalorder %s69, %s71
    %p75 = scmp.eq.s32.totalorder %s14, 0
    %p76 = por %p74, %p75
    %p77 = scmp.ne.s32.totalorder %s69, %s71
    %p78 = scmp.eq.s32.totalorder %s19, 2
    %p79 = por %p77, %p78
    %p80 = scmp.ne.s32.totalorder %s71, %s72
    %p81 = scmp.eq.s32.totalorder %s19, 0
    %p82 = por %p80, %p81
    %p83 = scmp.ne.s32.totalorder %s71, %s72
    %p84 = scmp.eq.s32.totalorder %s20, 2
    %p85 = por %p83, %p84
    %p87 = scmp.ne.s32.totalorder %s72, %s86
    %p88 = scmp.eq.s32.totalorder %s20, 0
    %p89 = por %p87, %p88
    %s91 = sadd.s32 %s90, 1
    %p94 = scmp.eq.s32.totalorder %s14, 2
    %p95 = scmp.ne.s32.totalorder %s90, %s92
    %p96 = scmp.eq.s32.totalorder %s14, 0
    %p97 = por %p95, %p96
    %p98 = scmp.ne.s32.totalorder %s90, %s92
    %p99 = scmp.eq.s32.totalorder %s19, 2
    %p100 = por %p98, %p99
    %p101 = scmp.ne.s32.totalorder %s92, %s93
    %p102 = scmp.eq.s32.totalorder %s19, 0
    %p103 = por %p101, %p102
    %p104 = scmp.ne.s32.totalorder %s92, %s93
    %p105 = scmp.eq.s32.totalorder %s20, 2
    %p106 = por %p104, %p105
    %p108 = scmp.ne.s32.totalorder %s93, %s107
    %p109 = scmp.eq.s32.totalorder %s20, 0
    %p110 = por %p108, %p109
    %s112 = sadd.s32 %s111, 1
    %p115 = scmp.eq.s32.totalorder %s14, 2
    %p116 = scmp.ne.s32.totalorder %s111, %s113
    %p117 = scmp.eq.s32.totalorder %s14, 0
    %p118 = por %p116, %p117
    %p119 = scmp.ne.s32.totalorder %s111, %s113
    %p120 = scmp.eq.s32.totalorder %s19, 2
    %p121 = por %p119, %p120
    %p122 = scmp.ne.s32.totalorder %s113, %s114
    %p123 = scmp.eq.s32.totalorder %s19, 0
    %p124 = por %p122, %p123
    %p125 = scmp.ne.s32.totalorder %s113, %s114
    %p126 = scmp.eq.s32.totalorder %s20, 2
    %p127 = por %p125, %p126
    %p129 = scmp.ne.s32.totalorder %s114, %s128
    %p130 = scmp.eq.s32.totalorder %s20, 0
    %p131 = por %p129, %p130
    %s132 = ssub.s32 %s14, %s21
    %p133 = scmp.eq.s32.totalorder %s132, 0
    %s135 = sadd.s32 %s134, 1
    %s136 = scalar_select %p133, %s134, %s135
    %p139 = pneg %p133
    %p140 = scmp.eq.s32.totalorder %s14, 2
    %p141 = por %p139, %p140
    %p142 = scmp.ne.s32.totalorder %s134, %s137
    %p143 = scmp.eq.s32.totalorder %s14, 0
    %p144 = por %p142, %p143
    %p145 = scmp.ne.s32.totalorder %s134, %s137
    %p146 = scmp.eq.s32.totalorder %s19, 2
    %p147 = por %p145, %p146
    %p148 = scmp.ne.s32.totalorder %s137, %s138
    %p149 = scmp.eq.s32.totalorder %s19, 0
    %p150 = por %p148, %p149
    %p151 = scmp.ne.s32.totalorder %s137, %s138
    %p152 = scmp.eq.s32.totalorder %s20, 2
    %p153 = por %p151, %p152
    %p155 = scmp.ne.s32.totalorder %s138, %s154
    %p156 = scmp.eq.s32.totalorder %s20, 0
    %p157 = por %p155, %p156
    %s159 = sadd.s32 %s158, 1
    %p162 = scmp.eq.s32.totalorder %s14, 2
    %p163 = scmp.ne.s32.totalorder %s158, %s160
    %p164 = scmp.eq.s32.totalorder %s14, 0
    %p165 = por %p163, %p164
    %p166 = scmp.ne.s32.totalorder %s158, %s160
    %p167 = scmp.eq.s32.totalorder %s19, 2
    %p168 = por %p166, %p167
    %p169 = scmp.ne.s32.totalorder %s160, %s161
    %p170 = scmp.eq.s32.totalorder %s19, 0
    %p171 = por %p169, %p170
    %p172 = scmp.ne.s32.totalorder %s160, %s161
    %p173 = scmp.eq.s32.totalorder %s20, 2
    %p174 = por %p172, %p173
    %p176 = scmp.ne.s32.totalorder %s161, %s175
    %p177 = scmp.eq.s32.totalorder %s20, 0
    %p178 = por %p176, %p177
    %s180 = sadd.s32 %s179, 1
    %p183 = scmp.eq.s32.totalorder %s14, 2
    %p184 = scmp.ne.s32.totalorder %s179, %s181
    %p185 = scmp.eq.s32.totalorder %s14, 0
    %p186 = por %p184, %p185
    %p187 = scmp.ne.s32.totalorder %s179, %s181
    %p188 = scmp.eq.s32.totalorder %s19, 2
    %p189 = por %p187, %p188
    %p190 = scmp.ne.s32.totalorder %s181, %s182
    %p191 = scmp.eq.s32.totalorder %s19, 0
    %p192 = por %p190, %p191
    %p193 = scmp.ne.s32.totalorder %s181, %s182
    %p194 = scmp.eq.s32.totalorder %s20, 2
    %p195 = por %p193, %p194
    %p197 = scmp.ne.s32.totalorder %s182, %s196
    %p198 = scmp.eq.s32.totalorder %s20, 0
    %p199 = por %p197, %p198
    %p200 = scmp.le.s32.totalorder 1, %s14
    %p201 = scmp.lt.s32.totalorder %s14, 4
    %p202 = pnand %p200, %p201
    %p203 = pneg %p202
    // Predicated region
    $region9: #{plugin_lstm_rnnt_pre.3} parent=5 // pred_check
      _
    $region10: #{plugin_lstm_rnnt_pre.3} parent=5 // pred_check_branch
      %205 = sbr.rel (%p202) target = $region12
    $region11: #{plugin_lstm_rnnt_pre.3} parent=5 // pred_region
      %s206 = ssub.s32 %s14, 1
      // Predicated region
      $region13: #{plugin_lstm_rnnt_pre.3} parent=11 // pred_check
        %p207 = pneg %p61
      $region14: #{plugin_lstm_rnnt_pre.3} parent=11 // pred_check_branch
        %209 = sbr.rel (%p207) target = $region16
      $region15: #{plugin_lstm_rnnt_pre.3} parent=11 // pred_region
        _
      $region16: #{plugin_lstm_rnnt_pre.3} parent=11 // pred_fallthru
        _
      // Predicated region
      $region17: #{plugin_lstm_rnnt_pre.3} parent=11 // pred_check
        %p210 = pneg %p82
      $region18: #{plugin_lstm_rnnt_pre.3} parent=11 // pred_check_branch
        %212 = sbr.rel (%p210) target = $region20
      $region19: #{plugin_lstm_rnnt_pre.3} parent=11 // pred_region
        _
      $region20: #{plugin_lstm_rnnt_pre.3} parent=11 // pred_fallthru
        _
      // Predicated region
      $region21: #{plugin_lstm_rnnt_pre.3} parent=11 // pred_check
        %p213 = pneg %p103
      $region22: #{plugin_lstm_rnnt_pre.3} parent=11 // pred_check_branch
        %215 = sbr.rel (%p213) target = $region24
      $region23: #{plugin_lstm_rnnt_pre.3} parent=11 // pred_region
        _
      $region24: #{plugin_lstm_rnnt_pre.3} parent=11 // pred_fallthru
        _
      // Predicated region
      $region25: #{plugin_lstm_rnnt_pre.3} parent=11 // pred_check
        %p216 = pneg %p124
      $region26: #{plugin_lstm_rnnt_pre.3} parent=11 // pred_check_branch
        %218 = sbr.rel (%p216) target = $region28
      $region27: #{plugin_lstm_rnnt_pre.3} parent=11 // pred_region
        _
      $region28: #{plugin_lstm_rnnt_pre.3} parent=11 // pred_fallthru
        _
    $region12: #{plugin_lstm_rnnt_pre.3} parent=5 // pred_fallthru
      _
    %p219 = scmp.lt.s32.totalorder %s14, 3
    // Predicated region
    $region29: #{plugin_lstm_rnnt_pre.3} parent=5 // pred_check
      %p220 = pneg %p219
    $region30: #{plugin_lstm_rnnt_pre.3} parent=5 // pred_check_branch
      %222 = sbr.rel (%p220) target = $region32
    $region31: #{plugin_lstm_rnnt_pre.3} parent=5 // pred_region
      // Predicated region
      $region33: #{plugin_lstm_rnnt_pre.3} parent=31 // pred_check
        %p223 = pneg %p34
      $region34: #{plugin_lstm_rnnt_pre.3} parent=31 // pred_check_branch
        %225 = sbr.rel (%p223) target = $region36
      $region35: #{plugin_lstm_rnnt_pre.3} parent=31 // pred_region
        %s226 = smul.u32 4, %s14
        %p227 = scmp.lt.s32.totalorder %s226, 11
        %s228 = scalar_select %p227, %s226, 11
        %s229 = smul.addr %s228, 8
        %s230 = scalar_lea.vmem %s0, %s229
        %s231 = smul.u32 4, %s14
      $region36: #{plugin_lstm_rnnt_pre.3} parent=31 // pred_fallthru
        _
    $region32: #{plugin_lstm_rnnt_pre.3} parent=5 // pred_fallthru
      _
    %p232 = scmp.le.s32.totalorder 1, %s14
    %p233 = scmp.lt.s32.totalorder %s14, 4
    %p234 = pnand %p232, %p233
    %p235 = pneg %p234
    // Predicated region
    $region37: #{plugin_lstm_rnnt_pre.3} parent=5 // pred_check
      _
    $region38: #{plugin_lstm_rnnt_pre.3} parent=5 // pred_check_branch
      %237 = sbr.rel (%p234) target = $region40
    $region39: #{plugin_lstm_rnnt_pre.3} parent=5 // pred_region
      %s238 = ssub.s32 %s14, 1
      %s239 = smul.u32 4, %s19
      %p240 = scmp.lt.s32.totalorder %s239, 11
      %s241 = scalar_select %p240, %s239, 11
      %s242 = smul.addr %s241, 8
      %s243 = scalar_lea.vmem %s0, %s242
      %p244 = pneg %p40
      %p245 = pneg %p37
      %p246 = pneg %p61
      %p247 = pneg %p58
      %p248 = pneg %p82
      %p249 = pneg %p79
      %p250 = pneg %p103
      %p251 = pneg %p100
      %p252 = pneg %p124
      %p253 = pneg %p121
      %p254 = pneg %p150
      %p255 = pneg %p147
      %s256 = smul.u32 4, %s19
      %p257 = scmp.lt.s32.totalorder %s256, 11
      %s258 = scalar_select %p257, %s256, 11
      %s259 = smul.addr %s258, 2
      %s260 = smul.addr %s259, 2
      %s261 = scalar_lea.vmem %s5, %s260
      %p262 = pneg %p171
      %p263 = pneg %p168
      %p264 = pneg %p192
      %p265 = pneg %p189
      %s266 = smul.u32 4, %s19
      %p267 = scmp.lt.s32.totalorder %s266, 11
      %s268 = scalar_select %p267, %s266, 11
      %s269 = smul.addr %s268, 8
      %s270 = scalar_lea.vmem %s0, %s269
      %s271 = smul.u32 4, %s19
      %s272 = smul.u32 4, %s19
      %p273 = scmp.lt.s32.totalorder %s272, 11
      %s274 = scalar_select %p273, %s272, 11
      %s275 = smul.addr %s274, 2
      %s276 = smul.addr %s275, 2
      %s277 = scalar_lea.vmem %s5, %s276
      %s278 = smul.u32 4, %s19
      %p279 = scmp.eq.s32.totalorder %s19, 0
      // Predicated region
      $region41: #{plugin_lstm_rnnt_pre.3} parent=39 // pred_check
        %p280 = pneg %p279
      $region42: #{plugin_lstm_rnnt_pre.3} parent=39 // pred_check_branch
        %282 = sbr.rel (%p280) target = $region44
      $region43: #{plugin_lstm_rnnt_pre.3} parent=39 // pred_region
        %v283 = vld [vmem:[%s2] sm:$0xf]
        %284 = vst [vmem:[%s6] sm:$0xf] %v283
        %v285 = vld [vmem:[%s3] sm:$0xf]
        %286 = vst [vmem:[%s7] sm:$0xf] %v285
      $region44: #{plugin_lstm_rnnt_pre.3} parent=39 // pred_fallthru
        _
      %v287 = vld [vmem:[%s4] sm:$0xff]
      %v288 = vld [vmem:[%s4 + $0x8] sm:$0xff]
      %v289 = vld [vmem:[%s4 + $0x10] sm:$0xff]
      %v290 = vld [vmem:[%s4 + $0x18] sm:$0xff]
      %v291 = vld [vmem:[%s4 + $0x20] sm:$0xff]
      %v292 = vld [vmem:[%s4 + $0x28] sm:$0xff]
      %v293 = vld [vmem:[%s4 + $0x30] sm:$0xff]
      %v294 = vld [vmem:[%s4 + $0x38] sm:$0xff]
      %v295 = vld [vmem:[%s4 + $0x40] sm:$0xff]
      %v296 = vld [vmem:[%s4 + $0x48] sm:$0xff]
      %v297 = vld [vmem:[%s4 + $0x50] sm:$0xff]
      %v298 = vld [vmem:[%s4 + $0x58] sm:$0xff]
      %v299 = vld [vmem:[%s4 + $0x60] sm:$0xff]
      %v300 = vld [vmem:[%s4 + $0x68] sm:$0xff]
      %v301 = vld [vmem:[%s4 + $0x70] sm:$0xff]
      %v302 = vld [vmem:[%s4 + $0x78] sm:$0xff]
      %v303 = vld [vmem:[%s4 + $0x80] sm:$0xff]
      %v304 = vld [vmem:[%s4 + $0x88] sm:$0xff]
      %v305 = vld [vmem:[%s4 + $0x90] sm:$0xff]
      %v306 = vld [vmem:[%s4 + $0x98] sm:$0xff]
      %v307 = vld [vmem:[%s4 + $0xa0] sm:$0xff]
      %v308 = vld [vmem:[%s4 + $0xa8] sm:$0xff]
      %v309 = vld [vmem:[%s4 + $0xb0] sm:$0xff]
      %v310 = vld [vmem:[%s4 + $0xb8] sm:$0xff]
      %v311 = vld [vmem:[%s4 + $0xc0] sm:$0xff]
      %v312 = vld [vmem:[%s4 + $0xc8] sm:$0xff]
      %v313 = vld [vmem:[%s4 + $0xd0] sm:$0xff]
      %v314 = vld [vmem:[%s4 + $0xd8] sm:$0xff]
      %v315 = vld [vmem:[%s4 + $0xe0] sm:$0xff]
      %v316 = vld [vmem:[%s4 + $0xe8] sm:$0xff]
      %v317 = vld [vmem:[%s4 + $0xf0] sm:$0xff]
      %v318 = vld [vmem:[%s4 + $0xf8] sm:$0xff]
      %v319 = vld [vmem:[%s4 + $0x100] sm:$0xff]
      %v320 = vld [vmem:[%s4 + $0x108] sm:$0xff]
      %v321 = vld [vmem:[%s4 + $0x110] sm:$0xff]
      %v322 = vld [vmem:[%s4 + $0x118] sm:$0xff]
      %v323 = vld [vmem:[%s4 + $0x120] sm:$0xff]
      %v324 = vld [vmem:[%s4 + $0x128] sm:$0xff]
      %v325 = vld [vmem:[%s4 + $0x130] sm:$0xff]
      %v326 = vld [vmem:[%s4 + $0x138] sm:$0xff]
      %v327 = vld [vmem:[%s4 + $0x140] sm:$0xff]
      %v328 = vld [vmem:[%s4 + $0x148] sm:$0xff]
      %v329 = vld [vmem:[%s4 + $0x150] sm:$0xff]
      %v330 = vld [vmem:[%s4 + $0x158] sm:$0xff]
      %v331 = vld [vmem:[%s4 + $0x160] sm:$0xff]
      %v332 = vld [vmem:[%s4 + $0x168] sm:$0xff]
      %v333 = vld [vmem:[%s4 + $0x170] sm:$0xff]
      %v334 = vld [vmem:[%s4 + $0x178] sm:$0xff]
      %v335 = vld [vmem:[%s4 + $0x180] sm:$0xff]
      %v336 = vld [vmem:[%s4 + $0x188] sm:$0xff]
      %v337 = vld [vmem:[%s4 + $0x190] sm:$0xff]
      %v338 = vld [vmem:[%s4 + $0x198] sm:$0xff]
      %v339 = vld [vmem:[%s4 + $0x1a0] sm:$0xff]
      %v340 = vld [vmem:[%s4 + $0x1a8] sm:$0xff]
      %v341 = vld [vmem:[%s4 + $0x1b0] sm:$0xff]
      %v342 = vld [vmem:[%s4 + $0x1b8] sm:$0xff]
      %v343 = vld [vmem:[%s4 + $0x1c0] sm:$0xff]
      %v344 = vld [vmem:[%s4 + $0x1c8] sm:$0xff]
      %v345 = vld [vmem:[%s4 + $0x1d0] sm:$0xff]
      %v346 = vld [vmem:[%s4 + $0x1d8] sm:$0xff]
      %v347 = vld [vmem:[%s4 + $0x1e0] sm:$0xff]
      %v348 = vld [vmem:[%s4 + $0x1e8] sm:$0xff]
      %v349 = vld [vmem:[%s4 + $0x1f0] sm:$0xff]
      %v350 = vld [vmem:[%s4 + $0x1f8] sm:$0xff]
      %v351 = vld [vmem:[%s4 + $0x200] sm:$0xff]
      %v352 = vld [vmem:[%s4 + $0x208] sm:$0xff]
      %v353 = vld [vmem:[%s4 + $0x210] sm:$0xff]
      %v354 = vld [vmem:[%s4 + $0x218] sm:$0xff]
      %v355 = vld [vmem:[%s4 + $0x220] sm:$0xff]
      %v356 = vld [vmem:[%s4 + $0x228] sm:$0xff]
      %v357 = vld [vmem:[%s4 + $0x230] sm:$0xff]
      %v358 = vld [vmem:[%s4 + $0x238] sm:$0xff]
      %v359 = vld [vmem:[%s4 + $0x240] sm:$0xff]
      %v360 = vld [vmem:[%s4 + $0x248] sm:$0xff]
      %v361 = vld [vmem:[%s4 + $0x250] sm:$0xff]
      %v362 = vld [vmem:[%s4 + $0x258] sm:$0xff]
      %v363 = vld [vmem:[%s4 + $0x260] sm:$0xff]
      %v364 = vld [vmem:[%s4 + $0x268] sm:$0xff]
      %v365 = vld [vmem:[%s4 + $0x270] sm:$0xff]
      %v366 = vld [vmem:[%s4 + $0x278] sm:$0xff]
      %v367 = vld [vmem:[%s4 + $0x280] sm:$0xff]
      %v368 = vld [vmem:[%s4 + $0x288] sm:$0xff]
      %v369 = vld [vmem:[%s4 + $0x290] sm:$0xff]
      %v370 = vld [vmem:[%s4 + $0x298] sm:$0xff]
      %v371 = vld [vmem:[%s4 + $0x2a0] sm:$0xff]
      %v372 = vld [vmem:[%s4 + $0x2a8] sm:$0xff]
      %v373 = vld [vmem:[%s4 + $0x2b0] sm:$0xff]
      %v374 = vld [vmem:[%s4 + $0x2b8] sm:$0xff]
      %v375 = vld [vmem:[%s4 + $0x2c0] sm:$0xff]
      %v376 = vld [vmem:[%s4 + $0x2c8] sm:$0xff]
      %v377 = vld [vmem:[%s4 + $0x2d0] sm:$0xff]
      %v378 = vld [vmem:[%s4 + $0x2d8] sm:$0xff]
      %v379 = vld [vmem:[%s4 + $0x2e0] sm:$0xff]
      %v380 = vld [vmem:[%s4 + $0x2e8] sm:$0xff]
      %v381 = vld [vmem:[%s4 + $0x2f0] sm:$0xff]
      %v382 = vld [vmem:[%s4 + $0x2f8] sm:$0xff]
      %v383 = vld [vmem:[%s4 + $0x300] sm:$0xff]
      %v384 = vld [vmem:[%s4 + $0x308] sm:$0xff]
      %v385 = vld [vmem:[%s4 + $0x310] sm:$0xff]
      %v386 = vld [vmem:[%s4 + $0x318] sm:$0xff]
      %v387 = vld [vmem:[%s4 + $0x320] sm:$0xff]
      %v388 = vld [vmem:[%s4 + $0x328] sm:$0xff]
      %v389 = vld [vmem:[%s4 + $0x330] sm:$0xff]
      %v390 = vld [vmem:[%s4 + $0x338] sm:$0xff]
      %v391 = vld [vmem:[%s4 + $0x340] sm:$0xff]
      %v392 = vld [vmem:[%s4 + $0x348] sm:$0xff]
      %v393 = vld [vmem:[%s4 + $0x350] sm:$0xff]
      %v394 = vld [vmem:[%s4 + $0x358] sm:$0xff]
      %v395 = vld [vmem:[%s4 + $0x360] sm:$0xff]
      %v396 = vld [vmem:[%s4 + $0x368] sm:$0xff]
      %v397 = vld [vmem:[%s4 + $0x370] sm:$0xff]
      %v398 = vld [vmem:[%s4 + $0x378] sm:$0xff]
      %v399 = vld [vmem:[%s4 + $0x380] sm:$0xff]
      %v400 = vld [vmem:[%s4 + $0x388] sm:$0xff]
      %v401 = vld [vmem:[%s4 + $0x390] sm:$0xff]
      %v402 = vld [vmem:[%s4 + $0x398] sm:$0xff]
      %v403 = vld [vmem:[%s4 + $0x3a0] sm:$0xff]
      %v404 = vld [vmem:[%s4 + $0x3a8] sm:$0xff]
      %v405 = vld [vmem:[%s4 + $0x3b0] sm:$0xff]
      %v406 = vld [vmem:[%s4 + $0x3b8] sm:$0xff]
      %v407 = vld [vmem:[%s4 + $0x3c0] sm:$0xff]
      %v408 = vld [vmem:[%s4 + $0x3c8] sm:$0xff]
      %v409 = vld [vmem:[%s4 + $0x3d0] sm:$0xff]
      %v410 = vld [vmem:[%s4 + $0x3d8] sm:$0xff]
      %v411 = vld [vmem:[%s4 + $0x3e0] sm:$0xff]
      %v412 = vld [vmem:[%s4 + $0x3e8] sm:$0xff]
      %v413 = vld [vmem:[%s4 + $0x3f0] sm:$0xff]
      %v414 = vld [vmem:[%s4 + $0x3f8] sm:$0xff]
      %v415 = vld [vmem:[%s1] sm:$0xff]
      %s416 = smul.u32 %s19, 4
      %v417 = vld [vmem:[%s6] sm:$0xf]
      %v418 = vld [vmem:[%s7] sm:$0xf]
      %v421 = vunpack.c.l.s4 1983009808
      %v422 = vunpack.c.0.s8 %v421
      %v423 = vlaneseq
      %v424 = vshrl.u32 %v423, 7
      %v425 = vsub.s32 %v422, %v424
      %v426 = vrot.slane %v417, %v425
      %v427 = vcombine.high %v426, %v426
      %v430 = vpack.c.bf16 %v426, %v426
      %v431 = vpack.c.bf16 %v427, %v427
      %v432 = vld [vmem:[%s270] sm:$0xff]
      %v433 = vunpack.c.l.bf16 %v432
      %v434 = vunpack.c.h.bf16 %v432
      %v563 = vunpack.c.l.b16 %v287
      %v564 = vunpack.c.h.b16 %v287
      %v565 = vunpack.c.l.b16 %v288
      %v566 = vunpack.c.h.b16 %v288
      %v567 = vunpack.c.l.b16 %v289
      %v568 = vunpack.c.h.b16 %v289
      %v569 = vunpack.c.l.b16 %v290
      %v570 = vunpack.c.h.b16 %v290
      %v571 = vunpack.c.l.b16 %v291
      %v572 = vunpack.c.h.b16 %v291
      %v573 = vunpack.c.l.b16 %v292
      %v574 = vunpack.c.h.b16 %v292
      %v575 = vunpack.c.l.b16 %v293
      %v576 = vunpack.c.h.b16 %v293
      %v577 = vunpack.c.l.b16 %v294
      %v578 = vunpack.c.h.b16 %v294
      %v579 = vunpack.c.l.b16 %v295
      %v580 = vunpack.c.h.b16 %v295
      %v581 = vunpack.c.l.b16 %v296
      %v582 = vunpack.c.h.b16 %v296
      %v583 = vunpack.c.l.b16 %v297
      %v584 = vunpack.c.h.b16 %v297
      %v585 = vunpack.c.l.b16 %v298
      %v586 = vunpack.c.h.b16 %v298
      %v587 = vunpack.c.l.b16 %v299
      %v588 = vunpack.c.h.b16 %v299
      %v589 = vunpack.c.l.b16 %v300
      %v590 = vunpack.c.h.b16 %v300
      %v591 = vunpack.c.l.b16 %v301
      %v592 = vunpack.c.h.b16 %v301
      %v593 = vunpack.c.l.b16 %v302
      %v594 = vunpack.c.h.b16 %v302
      %v595 = vunpack.c.l.b16 %v303
      %v596 = vunpack.c.h.b16 %v303
      %v597 = vunpack.c.l.b16 %v304
      %v598 = vunpack.c.h.b16 %v304
      %v599 = vunpack.c.l.b16 %v305
      %v600 = vunpack.c.h.b16 %v305
      %v601 = vunpack.c.l.b16 %v306
      %v602 = vunpack.c.h.b16 %v306
      %v603 = vunpack.c.l.b16 %v307
      %v604 = vunpack.c.h.b16 %v307
      %v605 = vunpack.c.l.b16 %v308
      %v606 = vunpack.c.h.b16 %v308
      %v607 = vunpack.c.l.b16 %v309
      %v608 = vunpack.c.h.b16 %v309
      %v609 = vunpack.c.l.b16 %v310
      %v610 = vunpack.c.h.b16 %v310
      %v611 = vunpack.c.l.b16 %v311
      %v612 = vunpack.c.h.b16 %v311
      %v613 = vunpack.c.l.b16 %v312
      %v614 = vunpack.c.h.b16 %v312
      %v615 = vunpack.c.l.b16 %v313
      %v616 = vunpack.c.h.b16 %v313
      %v617 = vunpack.c.l.b16 %v314
      %v618 = vunpack.c.h.b16 %v314
      %v619 = vunpack.c.l.b16 %v315
      %v620 = vunpack.c.h.b16 %v315
      %v621 = vunpack.c.l.b16 %v316
      %v622 = vunpack.c.h.b16 %v316
      %v623 = vunpack.c.l.b16 %v317
      %v624 = vunpack.c.h.b16 %v317
      %v625 = vunpack.c.l.b16 %v318
      %v626 = vunpack.c.h.b16 %v318
      %v627 = vunpack.c.l.b16 %v319
      %v628 = vunpack.c.h.b16 %v319
      %v629 = vunpack.c.l.b16 %v320
      %v630 = vunpack.c.h.b16 %v320
      %v631 = vunpack.c.l.b16 %v321
      %v632 = vunpack.c.h.b16 %v321
      %v633 = vunpack.c.l.b16 %v322
      %v634 = vunpack.c.h.b16 %v322
      %v635 = vunpack.c.l.b16 %v323
      %v636 = vunpack.c.h.b16 %v323
      %v637 = vunpack.c.l.b16 %v324
      %v638 = vunpack.c.h.b16 %v324
      %v639 = vunpack.c.l.b16 %v325
      %v640 = vunpack.c.h.b16 %v325
      %v641 = vunpack.c.l.b16 %v326
      %v642 = vunpack.c.h.b16 %v326
      %v643 = vunpack.c.l.b16 %v327
      %v644 = vunpack.c.h.b16 %v327
      %v645 = vunpack.c.l.b16 %v328
      %v646 = vunpack.c.h.b16 %v328
      %v647 = vunpack.c.l.b16 %v329
      %v648 = vunpack.c.h.b16 %v329
      %v649 = vunpack.c.l.b16 %v330
      %v650 = vunpack.c.h.b16 %v330
      %v651 = vunpack.c.l.b16 %v331
      %v652 = vunpack.c.h.b16 %v331
      %v653 = vunpack.c.l.b16 %v332
      %v654 = vunpack.c.h.b16 %v332
      %v655 = vunpack.c.l.b16 %v333
      %v656 = vunpack.c.h.b16 %v333
      %v657 = vunpack.c.l.b16 %v334
      %v658 = vunpack.c.h.b16 %v334
      %v659 = vunpack.c.l.b16 %v335
      %v660 = vunpack.c.h.b16 %v335
      %v661 = vunpack.c.l.b16 %v336
      %v662 = vunpack.c.h.b16 %v336
      %v663 = vunpack.c.l.b16 %v337
      %v664 = vunpack.c.h.b16 %v337
      %v665 = vunpack.c.l.b16 %v338
      %v666 = vunpack.c.h.b16 %v338
      %v667 = vunpack.c.l.b16 %v339
      %v668 = vunpack.c.h.b16 %v339
      %v669 = vunpack.c.l.b16 %v340
      %v670 = vunpack.c.h.b16 %v340
      %v671 = vunpack.c.l.b16 %v341
      %v672 = vunpack.c.h.b16 %v341
      %v673 = vunpack.c.l.b16 %v342
      %v674 = vunpack.c.h.b16 %v342
      %v675 = vunpack.c.l.b16 %v343
      %v676 = vunpack.c.h.b16 %v343
      %v677 = vunpack.c.l.b16 %v344
      %v678 = vunpack.c.h.b16 %v344
      %v679 = vunpack.c.l.b16 %v345
      %v680 = vunpack.c.h.b16 %v345
      %v681 = vunpack.c.l.b16 %v346
      %v682 = vunpack.c.h.b16 %v346
      %v683 = vunpack.c.l.b16 %v347
      %v684 = vunpack.c.h.b16 %v347
      %v685 = vunpack.c.l.b16 %v348
      %v686 = vunpack.c.h.b16 %v348
      %v687 = vunpack.c.l.b16 %v349
      %v688 = vunpack.c.h.b16 %v349
      %v689 = vunpack.c.l.b16 %v350
      %v690 = vunpack.c.h.b16 %v350
      %v691 = vunpack.c.l.b16 %v351
      %v692 = vunpack.c.h.b16 %v351
      %v693 = vunpack.c.l.b16 %v352
      %v694 = vunpack.c.h.b16 %v352
      %v695 = vunpack.c.l.b16 %v353
      %v696 = vunpack.c.h.b16 %v353
      %v697 = vunpack.c.l.b16 %v354
      %v698 = vunpack.c.h.b16 %v354
      %v699 = vunpack.c.l.b16 %v355
      %v700 = vunpack.c.h.b16 %v355
      %v701 = vunpack.c.l.b16 %v356
      %v702 = vunpack.c.h.b16 %v356
      %v703 = vunpack.c.l.b16 %v357
      %v704 = vunpack.c.h.b16 %v357
      %v705 = vunpack.c.l.b16 %v358
      %v706 = vunpack.c.h.b16 %v358
      %v707 = vunpack.c.l.b16 %v359
      %v708 = vunpack.c.h.b16 %v359
      %v709 = vunpack.c.l.b16 %v360
      %v710 = vunpack.c.h.b16 %v360
      %v711 = vunpack.c.l.b16 %v361
      %v712 = vunpack.c.h.b16 %v361
      %v713 = vunpack.c.l.b16 %v362
      %v714 = vunpack.c.h.b16 %v362
      %v715 = vunpack.c.l.b16 %v363
      %v716 = vunpack.c.h.b16 %v363
      %v717 = vunpack.c.l.b16 %v364
      %v718 = vunpack.c.h.b16 %v364
      %v719 = vunpack.c.l.b16 %v365
      %v720 = vunpack.c.h.b16 %v365
      %v721 = vunpack.c.l.b16 %v366
      %v722 = vunpack.c.h.b16 %v366
      %v723 = vunpack.c.l.b16 %v367
      %v724 = vunpack.c.h.b16 %v367
      %v725 = vunpack.c.l.b16 %v368
      %v726 = vunpack.c.h.b16 %v368
      %v727 = vunpack.c.l.b16 %v369
      %v728 = vunpack.c.h.b16 %v369
      %v729 = vunpack.c.l.b16 %v370
      %v730 = vunpack.c.h.b16 %v370
      %v731 = vunpack.c.l.b16 %v371
      %v732 = vunpack.c.h.b16 %v371
      %v733 = vunpack.c.l.b16 %v372
      %v734 = vunpack.c.h.b16 %v372
      %v735 = vunpack.c.l.b16 %v373
      %v736 = vunpack.c.h.b16 %v373
      %v737 = vunpack.c.l.b16 %v374
      %v738 = vunpack.c.h.b16 %v374
      %v739 = vunpack.c.l.b16 %v375
      %v740 = vunpack.c.h.b16 %v375
      %v741 = vunpack.c.l.b16 %v376
      %v742 = vunpack.c.h.b16 %v376
      %v743 = vunpack.c.l.b16 %v377
      %v744 = vunpack.c.h.b16 %v377
      %v745 = vunpack.c.l.b16 %v378
      %v746 = vunpack.c.h.b16 %v378
      %v747 = vunpack.c.l.b16 %v379
      %v748 = vunpack.c.h.b16 %v379
      %v749 = vunpack.c.l.b16 %v380
      %v750 = vunpack.c.h.b16 %v380
      %v751 = vunpack.c.l.b16 %v381
      %v752 = vunpack.c.h.b16 %v381
      %v753 = vunpack.c.l.b16 %v382
      %v754 = vunpack.c.h.b16 %v382
      %v755 = vunpack.c.l.b16 %v383
      %v756 = vunpack.c.h.b16 %v383
      %v757 = vunpack.c.l.b16 %v384
      %v758 = vunpack.c.h.b16 %v384
      %v759 = vunpack.c.l.b16 %v385
      %v760 = vunpack.c.h.b16 %v385
      %v761 = vunpack.c.l.b16 %v386
      %v762 = vunpack.c.h.b16 %v386
      %v763 = vunpack.c.l.b16 %v387
      %v764 = vunpack.c.h.b16 %v387
      %v765 = vunpack.c.l.b16 %v388
      %v766 = vunpack.c.h.b16 %v388
      %v767 = vunpack.c.l.b16 %v389
      %v768 = vunpack.c.h.b16 %v389
      %v769 = vunpack.c.l.b16 %v390
      %v770 = vunpack.c.h.b16 %v390
      %v771 = vunpack.c.l.b16 %v391
      %v772 = vunpack.c.h.b16 %v391
      %v773 = vunpack.c.l.b16 %v392
      %v774 = vunpack.c.h.b16 %v392
      %v775 = vunpack.c.l.b16 %v393
      %v776 = vunpack.c.h.b16 %v393
      %v777 = vunpack.c.l.b16 %v394
      %v778 = vunpack.c.h.b16 %v394
      %v779 = vunpack.c.l.b16 %v395
      %v780 = vunpack.c.h.b16 %v395
      %v781 = vunpack.c.l.b16 %v396
      %v782 = vunpack.c.h.b16 %v396
      %v783 = vunpack.c.l.b16 %v397
      %v784 = vunpack.c.h.b16 %v397
      %v785 = vunpack.c.l.b16 %v398
      %v786 = vunpack.c.h.b16 %v398
      %v787 = vunpack.c.l.b16 %v399
      %v788 = vunpack.c.h.b16 %v399
      %v789 = vunpack.c.l.b16 %v400
      %v790 = vunpack.c.h.b16 %v400
      %v791 = vunpack.c.l.b16 %v401
      %v792 = vunpack.c.h.b16 %v401
      %v793 = vunpack.c.l.b16 %v402
      %v794 = vunpack.c.h.b16 %v402
      %v795 = vunpack.c.l.b16 %v403
      %v796 = vunpack.c.h.b16 %v403
      %v797 = vunpack.c.l.b16 %v404
      %v798 = vunpack.c.h.b16 %v404
      %v799 = vunpack.c.l.b16 %v405
      %v800 = vunpack.c.h.b16 %v405
      %v801 = vunpack.c.l.b16 %v406
      %v802 = vunpack.c.h.b16 %v406
      %v803 = vunpack.c.l.b16 %v407
      %v804 = vunpack.c.h.b16 %v407
      %v805 = vunpack.c.l.b16 %v408
      %v806 = vunpack.c.h.b16 %v408
      %v807 = vunpack.c.l.b16 %v409
      %v808 = vunpack.c.h.b16 %v409
      %v809 = vunpack.c.l.b16 %v410
      %v810 = vunpack.c.h.b16 %v410
      %v811 = vunpack.c.l.b16 %v411
      %v812 = vunpack.c.h.b16 %v411
      %v813 = vunpack.c.l.b16 %v412
      %v814 = vunpack.c.h.b16 %v412
      %v815 = vunpack.c.l.b16 %v413
      %v816 = vunpack.c.h.b16 %v413
      %v817 = vunpack.c.l.b16 %v414
      %v818 = vunpack.c.h.b16 %v414
      %v819 = vpack.c.b16 %v571, %v563
      %v820 = vpack.c.b16 %v572, %v564
      %v821 = vpack.c.b16 %v573, %v565
      %v822 = vpack.c.b16 %v574, %v566
      %v823 = vpack.c.b16 %v575, %v567
      %v824 = vpack.c.b16 %v576, %v568
      %v825 = vpack.c.b16 %v577, %v569
      %v826 = vpack.c.b16 %v578, %v570
      %v827 = vpack.c.b16 %v587, %v579
      %v828 = vpack.c.b16 %v588, %v580
      %v829 = vpack.c.b16 %v589, %v581
      %v830 = vpack.c.b16 %v590, %v582
      %v831 = vpack.c.b16 %v591, %v583
      %v832 = vpack.c.b16 %v592, %v584
      %v833 = vpack.c.b16 %v593, %v585
      %v834 = vpack.c.b16 %v594, %v586
      %v835 = vpack.c.b16 %v603, %v595
      %v836 = vpack.c.b16 %v604, %v596
      %v837 = vpack.c.b16 %v605, %v597
      %v838 = vpack.c.b16 %v606, %v598
      %v839 = vpack.c.b16 %v607, %v599
      %v840 = vpack.c.b16 %v608, %v600
      %v841 = vpack.c.b16 %v609, %v601
      %v842 = vpack.c.b16 %v610, %v602
      %v843 = vpack.c.b16 %v619, %v611
      %v844 = vpack.c.b16 %v620, %v612
      %v845 = vpack.c.b16 %v621, %v613
      %v846 = vpack.c.b16 %v622, %v614
      %v847 = vpack.c.b16 %v623, %v615
      %v848 = vpack.c.b16 %v624, %v616
      %v849 = vpack.c.b16 %v625, %v617
      %v850 = vpack.c.b16 %v626, %v618
      %v851 = vpack.c.b16 %v635, %v627
      %v852 = vpack.c.b16 %v636, %v628
      %v853 = vpack.c.b16 %v637, %v629
      %v854 = vpack.c.b16 %v638, %v630
      %v855 = vpack.c.b16 %v639, %v631
      %v856 = vpack.c.b16 %v640, %v632
      %v857 = vpack.c.b16 %v641, %v633
      %v858 = vpack.c.b16 %v642, %v634
      %v859 = vpack.c.b16 %v651, %v643
      %v860 = vpack.c.b16 %v652, %v644
      %v861 = vpack.c.b16 %v653, %v645
      %v862 = vpack.c.b16 %v654, %v646
      %v863 = vpack.c.b16 %v655, %v647
      %v864 = vpack.c.b16 %v656, %v648
      %v865 = vpack.c.b16 %v657, %v649
      %v866 = vpack.c.b16 %v658, %v650
      %v867 = vpack.c.b16 %v667, %v659
      %v868 = vpack.c.b16 %v668, %v660
      %v869 = vpack.c.b16 %v669, %v661
      %v870 = vpack.c.b16 %v670, %v662
      %v871 = vpack.c.b16 %v671, %v663
      %v872 = vpack.c.b16 %v672, %v664
      %v873 = vpack.c.b16 %v673, %v665
      %v874 = vpack.c.b16 %v674, %v666
      %v875 = vpack.c.b16 %v683, %v675
      %v876 = vpack.c.b16 %v684, %v676
      %v877 = vpack.c.b16 %v685, %v677
      %v878 = vpack.c.b16 %v686, %v678
      %v879 = vpack.c.b16 %v687, %v679
      %v880 = vpack.c.b16 %v688, %v680
      %v881 = vpack.c.b16 %v689, %v681
      %v882 = vpack.c.b16 %v690, %v682
      %v883 = vpack.c.b16 %v699, %v691
      %v884 = vpack.c.b16 %v700, %v692
      %v885 = vpack.c.b16 %v701, %v693
      %v886 = vpack.c.b16 %v702, %v694
      %v887 = vpack.c.b16 %v703, %v695
      %v888 = vpack.c.b16 %v704, %v696
      %v889 = vpack.c.b16 %v705, %v697
      %v890 = vpack.c.b16 %v706, %v698
      %v891 = vpack.c.b16 %v715, %v707
      %v892 = vpack.c.b16 %v716, %v708
      %v893 = vpack.c.b16 %v717, %v709
      %v894 = vpack.c.b16 %v718, %v710
      %v895 = vpack.c.b16 %v719, %v711
      %v896 = vpack.c.b16 %v720, %v712
      %v897 = vpack.c.b16 %v721, %v713
      %v898 = vpack.c.b16 %v722, %v714
      %v899 = vpack.c.b16 %v731, %v723
      %v900 = vpack.c.b16 %v732, %v724
      %v901 = vpack.c.b16 %v733, %v725
      %v902 = vpack.c.b16 %v734, %v726
      %v903 = vpack.c.b16 %v735, %v727
      %v904 = vpack.c.b16 %v736, %v728
      %v905 = vpack.c.b16 %v737, %v729
      %v906 = vpack.c.b16 %v738, %v730
      %v907 = vpack.c.b16 %v747, %v739
      %v908 = vpack.c.b16 %v748, %v740
      %v909 = vpack.c.b16 %v749, %v741
      %v910 = vpack.c.b16 %v750, %v742
      %v911 = vpack.c.b16 %v751, %v743
      %v912 = vpack.c.b16 %v752, %v744
      %v913 = vpack.c.b16 %v753, %v745
      %v914 = vpack.c.b16 %v754, %v746
      %v915 = vpack.c.b16 %v763, %v755
      %v916 = vpack.c.b16 %v764, %v756
      %v917 = vpack.c.b16 %v765, %v757
      %v918 = vpack.c.b16 %v766, %v758
      %v919 = vpack.c.b16 %v767, %v759
      %v920 = vpack.c.b16 %v768, %v760
      %v921 = vpack.c.b16 %v769, %v761
      %v922 = vpack.c.b16 %v770, %v762
      %v923 = vpack.c.b16 %v779, %v771
      %v924 = vpack.c.b16 %v780, %v772
      %v925 = vpack.c.b16 %v781, %v773
      %v926 = vpack.c.b16 %v782, %v774
      %v927 = vpack.c.b16 %v783, %v775
      %v928 = vpack.c.b16 %v784, %v776
      %v929 = vpack.c.b16 %v785, %v777
      %v930 = vpack.c.b16 %v786, %v778
      %v931 = vpack.c.b16 %v795, %v787
      %v932 = vpack.c.b16 %v796, %v788
      %v933 = vpack.c.b16 %v797, %v789
      %v934 = vpack.c.b16 %v798, %v790
      %v935 = vpack.c.b16 %v799, %v791
      %v936 = vpack.c.b16 %v800, %v792
      %v937 = vpack.c.b16 %v801, %v793
      %v938 = vpack.c.b16 %v802, %v794
      %v939 = vpack.c.b16 %v811, %v803
      %v940 = vpack.c.b16 %v812, %v804
      %v941 = vpack.c.b16 %v813, %v805
      %v942 = vpack.c.b16 %v814, %v806
      %v943 = vpack.c.b16 %v815, %v807
      %v944 = vpack.c.b16 %v816, %v808
      %v945 = vpack.c.b16 %v817, %v809
      %v946 = vpack.c.b16 %v818, %v810
      %v1077 = vcombine.high %v433, %v433
      %v1079 = vunpack.c.l.s4 1983009808
      %v1080 = vunpack.c.0.s8 %v1079
      %v1081 = vlaneseq
      %v1082 = vshrl.u32 %v1081, 7
      %v1083 = vsub.s32 %v1080, %v1082
      %v1084 = vrot.slane %v433, %v1083
      %v1086 = vunpack.c.l.s4 1983009808
      %v1087 = vunpack.c.0.s8 %v1086
      %v1088 = vlaneseq
      %v1089 = vshrl.u32 %v1088, 7
      %v1090 = vsub.s32 %v1087, %v1089
      %v1091 = vrot.slane %v1077, %v1090
      %v1092 = vcombine.high %v1084, %v1084
      %v1093 = vcombine.high %v1091, %v1091
      %v1094 = vcombine.high %v434, %v434
      %v1096 = vunpack.c.l.s4 1983009808
      %v1097 = vunpack.c.0.s8 %v1096
      %v1098 = vlaneseq
      %v1099 = vshrl.u32 %v1098, 7
      %v1100 = vsub.s32 %v1097, %v1099
      %v1101 = vrot.slane %v434, %v1100
      %v1103 = vunpack.c.l.s4 1983009808
      %v1104 = vunpack.c.0.s8 %v1103
      %v1105 = vlaneseq
      %v1106 = vshrl.u32 %v1105, 7
      %v1107 = vsub.s32 %v1104, %v1106
      %v1108 = vrot.slane %v1094, %v1107
      %v1109 = vcombine.high %v1101, %v1101
      %v1110 = vcombine.high %v1108, %v1108
      %1119 = vmatprep.subr.bf16.mxu0 %v820
      %1120 = vmatpush1.bf16.msra.mxu0 %v819
      %1121 = vmatprep.subr.bf16.mxu0 %v828
      %1122 = vmatpush1.bf16.msra.mxu0 %v827
      %1123 = vmatprep.subr.bf16.mxu0 %v836
      %1124 = vmatpush1.bf16.msra.mxu0 %v835
      %1125 = vmatprep.subr.bf16.mxu0 %v844
      %1126 = vmatpush1.bf16.msra.mxu0 %v843
      %1127 = vmatprep.subr.bf16.mxu0 %v852
      %1128 = vmatpush1.bf16.msra.mxu0 %v851
      %1129 = vmatprep.subr.bf16.mxu0 %v860
      %1130 = vmatpush1.bf16.msra.mxu0 %v859
      %1131 = vmatprep.subr.bf16.mxu0 %v868
      %1132 = vmatpush1.bf16.msra.mxu0 %v867
      %1133 = vmatprep.subr.bf16.mxu0 %v876
      %1134 = vmatpush1.bf16.msra.mxu0 %v875
      %1135 = vmatprep.subr.bf16.mxu0 %v884
      %1136 = vmatpush1.bf16.msra.mxu0 %v883
      %1137 = vmatprep.subr.bf16.mxu0 %v892
      %1138 = vmatpush1.bf16.msra.mxu0 %v891
      %1139 = vmatprep.subr.bf16.mxu0 %v900
      %1140 = vmatpush1.bf16.msra.mxu0 %v899
      %1141 = vmatprep.subr.bf16.mxu0 %v908
      %1142 = vmatpush1.bf16.msra.mxu0 %v907
      %1143 = vmatprep.subr.bf16.mxu0 %v916
      %1144 = vmatpush1.bf16.msra.mxu0 %v915
      %1145 = vmatprep.subr.bf16.mxu0 %v924
      %1146 = vmatpush1.bf16.msra.mxu0 %v923
      %1147 = vmatprep.subr.bf16.mxu0 %v932
      %1148 = vmatpush1.bf16.msra.mxu0 %v931
      %1149 = vmatprep.subr.bf16.mxu0 %v940
      %1150 = vmatpush1.bf16.msra.mxu0 %v939
      %1151 = vmatprep.mubr.bf16.mxu0 %v431
      %1152 = vmatmul.mubr.bf16.gmra.mrb[0].mxu0 %v430
      %v1153 = vpop.f32.mrb[0].mxu0
      %v1154 = vadd.f32 %v1084, %v1153
      %v1155 = vpop.f32.mrb[0].mxu0
      %v1156 = vadd.f32 %v1092, %v1155
      %v1157 = vpop.f32.mrb[0].mxu0
      %v1158 = vpop.f32.mrb[0].mxu0
      %1159 = vdwg.mxu0
      %1160 = vmatprep.subr.bf16.mxu0 %v822
      %1161 = vmatpush1.bf16.msra.mxu0 %v821
      %1162 = vmatprep.subr.bf16.mxu0 %v830
      %1163 = vmatpush1.bf16.msra.mxu0 %v829
      %1164 = vmatprep.subr.bf16.mxu0 %v838
      %1165 = vmatpush1.bf16.msra.mxu0 %v837
      %1166 = vmatprep.subr.bf16.mxu0 %v846
      %1167 = vmatpush1.bf16.msra.mxu0 %v845
      %1168 = vmatprep.subr.bf16.mxu0 %v854
      %1169 = vmatpush1.bf16.msra.mxu0 %v853
      %1170 = vmatprep.subr.bf16.mxu0 %v862
      %1171 = vmatpush1.bf16.msra.mxu0 %v861
      %1172 = vmatprep.subr.bf16.mxu0 %v870
      %1173 = vmatpush1.bf16.msra.mxu0 %v869
      %1174 = vmatprep.subr.bf16.mxu0 %v878
      %1175 = vmatpush1.bf16.msra.mxu0 %v877
      %1176 = vmatprep.subr.bf16.mxu0 %v886
      %1177 = vmatpush1.bf16.msra.mxu0 %v885
      %1178 = vmatprep.subr.bf16.mxu0 %v894
      %1179 = vmatpush1.bf16.msra.mxu0 %v893
      %1180 = vmatprep.subr.bf16.mxu0 %v902
      %1181 = vmatpush1.bf16.msra.mxu0 %v901
      %1182 = vmatprep.subr.bf16.mxu0 %v910
      %1183 = vmatpush1.bf16.msra.mxu0 %v909
      %1184 = vmatprep.subr.bf16.mxu0 %v918
      %1185 = vmatpush1.bf16.msra.mxu0 %v917
      %1186 = vmatprep.subr.bf16.mxu0 %v926
      %1187 = vmatpush1.bf16.msra.mxu0 %v925
      %1188 = vmatprep.subr.bf16.mxu0 %v934
      %1189 = vmatpush1.bf16.msra.mxu0 %v933
      %1190 = vmatprep.subr.bf16.mxu0 %v942
      %1191 = vmatpush1.bf16.msra.mxu0 %v941
      %1192 = vmatprep.mubr.bf16.mxu0 %v431
      %1193 = vmatmul.mubr.bf16.gmra.mrb[0].mxu0 %v430
      %v1194 = vpop.f32.mrb[0].mxu0
      %v1195 = vadd.f32 %v1091, %v1194
      %v1196 = vpop.f32.mrb[0].mxu0
      %v1197 = vadd.f32 %v1093, %v1196
      %v1198 = vpop.f32.mrb[0].mxu0
      %v1199 = vpop.f32.mrb[0].mxu0
      %1200 = vdwg.mxu0
      %1201 = vmatprep.subr.bf16.mxu0 %v824
      %1202 = vmatpush1.bf16.msra.mxu0 %v823
      %1203 = vmatprep.subr.bf16.mxu0 %v832
      %1204 = vmatpush1.bf16.msra.mxu0 %v831
      %1205 = vmatprep.subr.bf16.mxu0 %v840
      %1206 = vmatpush1.bf16.msra.mxu0 %v839
      %1207 = vmatprep.subr.bf16.mxu0 %v848
      %1208 = vmatpush1.bf16.msra.mxu0 %v847
      %1209 = vmatprep.subr.bf16.mxu0 %v856
      %1210 = vmatpush1.bf16.msra.mxu0 %v855
      %1211 = vmatprep.subr.bf16.mxu0 %v864
      %1212 = vmatpush1.bf16.msra.mxu0 %v863
      %1213 = vmatprep.subr.bf16.mxu0 %v872
      %1214 = vmatpush1.bf16.msra.mxu0 %v871
      %1215 = vmatprep.subr.bf16.mxu0 %v880
      %1216 = vmatpush1.bf16.msra.mxu0 %v879
      %1217 = vmatprep.subr.bf16.mxu0 %v888
      %1218 = vmatpush1.bf16.msra.mxu0 %v887
      %1219 = vmatprep.subr.bf16.mxu0 %v896
      %1220 = vmatpush1.bf16.msra.mxu0 %v895
      %1221 = vmatprep.subr.bf16.mxu0 %v904
      %1222 = vmatpush1.bf16.msra.mxu0 %v903
      %1223 = vmatprep.subr.bf16.mxu0 %v912
      %1224 = vmatpush1.bf16.msra.mxu0 %v911
      %1225 = vmatprep.subr.bf16.mxu0 %v920
      %1226 = vmatpush1.bf16.msra.mxu0 %v919
      %1227 = vmatprep.subr.bf16.mxu0 %v928
      %1228 = vmatpush1.bf16.msra.mxu0 %v927
      %1229 = vmatprep.subr.bf16.mxu0 %v936
      %1230 = vmatpush1.bf16.msra.mxu0 %v935
      %1231 = vmatprep.subr.bf16.mxu0 %v944
      %1232 = vmatpush1.bf16.msra.mxu0 %v943
      %1233 = vmatprep.mubr.bf16.mxu0 %v431
      %1234 = vmatmul.mubr.bf16.gmra.mrb[0].mxu0 %v430
      %v1235 = vpop.f32.mrb[0].mxu0
      %v1236 = vadd.f32 %v1101, %v1235
      %v1237 = vpop.f32.mrb[0].mxu0
      %v1238 = vadd.f32 %v1109, %v1237
      %v1239 = vpop.f32.mrb[0].mxu0
      %v1240 = vpop.f32.mrb[0].mxu0
      %1241 = vdwg.mxu0
      %1242 = vmatprep.subr.bf16.mxu0 %v826
      %1243 = vmatpush1.bf16.msra.mxu0 %v825
      %1244 = vmatprep.subr.bf16.mxu0 %v834
      %1245 = vmatpush1.bf16.msra.mxu0 %v833
      %1246 = vmatprep.subr.bf16.mxu0 %v842
      %1247 = vmatpush1.bf16.msra.mxu0 %v841
      %1248 = vmatprep.subr.bf16.mxu0 %v850
      %1249 = vmatpush1.bf16.msra.mxu0 %v849
      %1250 = vmatprep.subr.bf16.mxu0 %v858
      %1251 = vmatpush1.bf16.msra.mxu0 %v857
      %1252 = vmatprep.subr.bf16.mxu0 %v866
      %1253 = vmatpush1.bf16.msra.mxu0 %v865
      %1254 = vmatprep.subr.bf16.mxu0 %v874
      %1255 = vmatpush1.bf16.msra.mxu0 %v873
      %1256 = vmatprep.subr.bf16.mxu0 %v882
      %1257 = vmatpush1.bf16.msra.mxu0 %v881
      %1258 = vmatprep.subr.bf16.mxu0 %v890
      %1259 = vmatpush1.bf16.msra.mxu0 %v889
      %1260 = vmatprep.subr.bf16.mxu0 %v898
      %1261 = vmatpush1.bf16.msra.mxu0 %v897
      %1262 = vmatprep.subr.bf16.mxu0 %v906
      %1263 = vmatpush1.bf16.msra.mxu0 %v905
      %1264 = vmatprep.subr.bf16.mxu0 %v914
      %1265 = vmatpush1.bf16.msra.mxu0 %v913
      %1266 = vmatprep.subr.bf16.mxu0 %v922
      %1267 = vmatpush1.bf16.msra.mxu0 %v921
      %1268 = vmatprep.subr.bf16.mxu0 %v930
      %1269 = vmatpush1.bf16.msra.mxu0 %v929
      %1270 = vmatprep.subr.bf16.mxu0 %v938
      %1271 = vmatpush1.bf16.msra.mxu0 %v937
      %1272 = vmatprep.subr.bf16.mxu0 %v946
      %1273 = vmatpush1.bf16.msra.mxu0 %v945
      %1274 = vmatprep.mubr.bf16.mxu0 %v431
      %1275 = vmatmul.mubr.bf16.gmra.mrb[0].mxu0 %v430
      %v1276 = vpop.f32.mrb[0].mxu0
      %v1277 = vadd.f32 %v1108, %v1276
      %v1278 = vpop.f32.mrb[0].mxu0
      %v1279 = vadd.f32 %v1110, %v1278
      %v1280 = vpop.f32.mrb[0].mxu0
      %v1281 = vpop.f32.mrb[0].mxu0
      %1282 = vdwg.mxu0
      %v1284 = vlaneseq
      %v1285 = vshrl.u32 %v1284, 7
      %v1286 = vsub.s32 0, %v1285
      %v1287 = vrot.slane %v415, %v1286
      %v1288 = vlaneseq
      %v1289 = vshrl.u32 %v1288, 7
      %v1290 = vsub.s32 1, %v1289
      %v1291 = vrot.slane %v415, %v1290
      %v1292 = vlaneseq
      %v1293 = vshrl.u32 %v1292, 7
      %v1294 = vsub.s32 2, %v1293
      %v1295 = vrot.slane %v415, %v1294
      %v1296 = vlaneseq
      %v1297 = vshrl.u32 %v1296, 7
      %v1298 = vsub.s32 3, %v1297
      %v1299 = vrot.slane %v415, %v1298
      %v1300 = vlaneseq
      %v1301 = vshrl.u32 %v1300, 7
      %v1302 = vsub.s32 4, %v1301
      %v1303 = vrot.slane %v415, %v1302
      %v1304 = vlaneseq
      %v1305 = vshrl.u32 %v1304, 7
      %v1306 = vsub.s32 5, %v1305
      %v1307 = vrot.slane %v415, %v1306
      %v1308 = vlaneseq
      %v1309 = vshrl.u32 %v1308, 7
      %v1310 = vsub.s32 6, %v1309
      %v1311 = vrot.slane %v415, %v1310
      %v1312 = vlaneseq
      %v1313 = vshrl.u32 %v1312, 7
      %v1314 = vsub.s32 7, %v1313
      %v1315 = vrot.slane %v415, %v1314
      %v1324 = vadd.f32 %v1154, %v1287
      %v1325 = vadd.f32 %v1156, %v1291
      %v1326 = vadd.f32 %v1195, %v1295
      %v1327 = vadd.f32 %v1197, %v1299
      %v1328 = vadd.f32 %v1236, %v1303
      %v1329 = vadd.f32 %v1238, %v1307
      %v1330 = vadd.f32 %v1277, %v1311
      %v1331 = vadd.f32 %v1279, %v1315
      %v1332 = vxor.u32 %v1324, 2147483648
      %v1333 = vxor.u32 %v1325, 2147483648
      %v1334 = vxor.u32 %v1326, 2147483648
      %v1335 = vxor.u32 %v1327, 2147483648
      %v1336 = vxor.u32 %v1328, 2147483648
      %v1337 = vxor.u32 %v1329, 2147483648
      %v1338 = vmul.f32 %v1332, 1.442695
      %v1339 = vpow.pop %v1338
      %v1340 = vmul.f32 %v1333, 1.442695
      %v1341 = vpow.pop %v1340
      %v1342 = vmul.f32 %v1334, 1.442695
      %v1343 = vpow.pop %v1342
      %v1344 = vmul.f32 %v1335, 1.442695
      %v1345 = vpow.pop %v1344
      %v1346 = vmul.f32 %v1336, 1.442695
      %v1347 = vpow.pop %v1346
      %v1348 = vmul.f32 %v1337, 1.442695
      %v1349 = vpow.pop %v1348
      %v1350 = vadd.f32 %v1339, 1.0
      %v1351 = vadd.f32 %v1341, 1.0
      %v1352 = vadd.f32 %v1343, 1.0
      %v1353 = vadd.f32 %v1345, 1.0
      %v1354 = vadd.f32 %v1347, 1.0
      %v1355 = vadd.f32 %v1349, 1.0
      %v1356 = vrcp.pop %v1350
      %v1357 = vmul.f32 1.0, %v1356
      %v1358 = vrcp.pop %v1351
      %v1359 = vmul.f32 1.0, %v1358
      %v1360 = vrcp.pop %v1352
      %v1361 = vmul.f32 1.0, %v1360
      %v1362 = vrcp.pop %v1353
      %v1363 = vmul.f32 1.0, %v1362
      %v1364 = vrcp.pop %v1354
      %v1365 = vmul.f32 1.0, %v1364
      %v1366 = vrcp.pop %v1355
      %v1367 = vmul.f32 1.0, %v1366
      %v1368 = vtanh.pop %v1330
      %v1369 = vtanh.pop %v1331
      %v1372 = vunpack.c.l.s4 1983009808
      %v1373 = vunpack.c.0.s8 %v1372
      %v1374 = vlaneseq
      %v1375 = vshrl.u32 %v1374, 7
      %v1376 = vsub.s32 %v1373, %v1375
      %v1377 = vrot.slane %v418, %v1376
      %v1378 = vcombine.high %v1377, %v1377
      %v1381 = vmul.f32 %v1361, %v1377
      %v1382 = vmul.f32 %v1363, %v1378
      %v1383 = vmul.f32 %v1357, %v1368
      %v1384 = vmul.f32 %v1359, %v1369
      %v1385 = vadd.f32 %v1381, %v1383
      %v1386 = vadd.f32 %v1382, %v1384
      %v1387 = vtanh.pop %v1385
      %v1388 = vtanh.pop %v1386
      %v1389 = vmul.f32 %v1365, %v1387
      %v1390 = vmul.f32 %v1367, %v1388
      %v1393 = vcombine.low %v1389, %v1390
      %v1395 = vunpack.c.l.s4 1983009808
      %v1396 = vunpack.c.0.s8 %v1395
      %v1397 = vlaneseq
      %v1398 = vshrl.u32 %v1397, 7
      %v1399 = vsub.s32 %v1396, %v1398
      %v1400 = vrot.slane %v1393, %v1399
      %1402 = vst [vmem:[%s277] sm:$0xf] %v1400
      %p1403 = scmp.lt.s32.totalorder %s416, 11
      %s1404 = scalar_select %p1403, 1, 0
      %v1405 = vstv %s1404
      %vm1406 = vcmp.eq.s32.totalorder %v1405, 1
      %v1407 = vsel %vm1406, %v1389, %v426
      %v1408 = vsel %vm1406, %v1390, %v427
      %v1409 = vsel %vm1406, %v1385, %v1377
      %v1410 = vsel %vm1406, %v1386, %v1378
      %v1411 = vpack.c.bf16 %v1407, %v1407
      %v1412 = vpack.c.bf16 %v1408, %v1408
      %s1413 = scalar_lea.vmem %s270, 8
      %v1414 = vld [vmem:[%s1413] sm:$0xff]
      %v1415 = vunpack.c.l.bf16 %v1414
      %v1416 = vunpack.c.h.bf16 %v1414
      %v1419 = vcombine.high %v1415, %v1415
      %v1421 = vunpack.c.l.s4 1983009808
      %v1422 = vunpack.c.0.s8 %v1421
      %v1423 = vlaneseq
      %v1424 = vshrl.u32 %v1423, 7
      %v1425 = vsub.s32 %v1422, %v1424
      %v1426 = vrot.slane %v1415, %v1425
      %v1428 = vunpack.c.l.s4 1983009808
      %v1429 = vunpack.c.0.s8 %v1428
      %v1430 = vlaneseq
      %v1431 = vshrl.u32 %v1430, 7
      %v1432 = vsub.s32 %v1429, %v1431
      %v1433 = vrot.slane %v1419, %v1432
      %v1434 = vcombine.high %v1426, %v1426
      %v1435 = vcombine.high %v1433, %v1433
      %v1436 = vcombine.high %v1416, %v1416
      %v1438 = vunpack.c.l.s4 1983009808
      %v1439 = vunpack.c.0.s8 %v1438
      %v1440 = vlaneseq
      %v1441 = vshrl.u32 %v1440, 7
      %v1442 = vsub.s32 %v1439, %v1441
      %v1443 = vrot.slane %v1416, %v1442
      %v1445 = vunpack.c.l.s4 1983009808
      %v1446 = vunpack.c.0.s8 %v1445
      %v1447 = vlaneseq
      %v1448 = vshrl.u32 %v1447, 7
      %v1449 = vsub.s32 %v1446, %v1448
      %v1450 = vrot.slane %v1436, %v1449
      %v1451 = vcombine.high %v1443, %v1443
      %v1452 = vcombine.high %v1450, %v1450
      %1461 = vmatprep.subr.bf16.mxu0 %v820
      %1462 = vmatpush1.bf16.msra.mxu0 %v819
      %1463 = vmatprep.subr.bf16.mxu0 %v828
      %1464 = vmatpush1.bf16.msra.mxu0 %v827
      %1465 = vmatprep.subr.bf16.mxu0 %v836
      %1466 = vmatpush1.bf16.msra.mxu0 %v835
      %1467 = vmatprep.subr.bf16.mxu0 %v844
      %1468 = vmatpush1.bf16.msra.mxu0 %v843
      %1469 = vmatprep.subr.bf16.mxu0 %v852
      %1470 = vmatpush1.bf16.msra.mxu0 %v851
      %1471 = vmatprep.subr.bf16.mxu0 %v860
      %1472 = vmatpush1.bf16.msra.mxu0 %v859
      %1473 = vmatprep.subr.bf16.mxu0 %v868
      %1474 = vmatpush1.bf16.msra.mxu0 %v867
      %1475 = vmatprep.subr.bf16.mxu0 %v876
      %1476 = vmatpush1.bf16.msra.mxu0 %v875
      %1477 = vmatprep.subr.bf16.mxu0 %v884
      %1478 = vmatpush1.bf16.msra.mxu0 %v883
      %1479 = vmatprep.subr.bf16.mxu0 %v892
      %1480 = vmatpush1.bf16.msra.mxu0 %v891
      %1481 = vmatprep.subr.bf16.mxu0 %v900
      %1482 = vmatpush1.bf16.msra.mxu0 %v899
      %1483 = vmatprep.subr.bf16.mxu0 %v908
      %1484 = vmatpush1.bf16.msra.mxu0 %v907
      %1485 = vmatprep.subr.bf16.mxu0 %v916
      %1486 = vmatpush1.bf16.msra.mxu0 %v915
      %1487 = vmatprep.subr.bf16.mxu0 %v924
      %1488 = vmatpush1.bf16.msra.mxu0 %v923
      %1489 = vmatprep.subr.bf16.mxu0 %v932
      %1490 = vmatpush1.bf16.msra.mxu0 %v931
      %1491 = vmatprep.subr.bf16.mxu0 %v940
      %1492 = vmatpush1.bf16.msra.mxu0 %v939
      %1493 = vmatprep.mubr.bf16.mxu0 %v1412
      %1494 = vmatmul.mubr.bf16.gmra.mrb[0].mxu0 %v1411
      %v1495 = vpop.f32.mrb[0].mxu0
      %v1496 = vadd.f32 %v1426, %v1495
      %v1497 = vpop.f32.mrb[0].mxu0
      %v1498 = vadd.f32 %v1434, %v1497
      %v1499 = vpop.f32.mrb[0].mxu0
      %v1500 = vpop.f32.mrb[0].mxu0
      %1501 = vdwg.mxu0
      %1502 = vmatprep.subr.bf16.mxu0 %v822
      %1503 = vmatpush1.bf16.msra.mxu0 %v821
      %1504 = vmatprep.subr.bf16.mxu0 %v830
      %1505 = vmatpush1.bf16.msra.mxu0 %v829
      %1506 = vmatprep.subr.bf16.mxu0 %v838
      %1507 = vmatpush1.bf16.msra.mxu0 %v837
      %1508 = vmatprep.subr.bf16.mxu0 %v846
      %1509 = vmatpush1.bf16.msra.mxu0 %v845
      %1510 = vmatprep.subr.bf16.mxu0 %v854
      %1511 = vmatpush1.bf16.msra.mxu0 %v853
      %1512 = vmatprep.subr.bf16.mxu0 %v862
      %1513 = vmatpush1.bf16.msra.mxu0 %v861
      %1514 = vmatprep.subr.bf16.mxu0 %v870
      %1515 = vmatpush1.bf16.msra.mxu0 %v869
      %1516 = vmatprep.subr.bf16.mxu0 %v878
      %1517 = vmatpush1.bf16.msra.mxu0 %v877
      %1518 = vmatprep.subr.bf16.mxu0 %v886
      %1519 = vmatpush1.bf16.msra.mxu0 %v885
      %1520 = vmatprep.subr.bf16.mxu0 %v894
      %1521 = vmatpush1.bf16.msra.mxu0 %v893
      %1522 = vmatprep.subr.bf16.mxu0 %v902
      %1523 = vmatpush1.bf16.msra.mxu0 %v901
      %1524 = vmatprep.subr.bf16.mxu0 %v910
      %1525 = vmatpush1.bf16.msra.mxu0 %v909
      %1526 = vmatprep.subr.bf16.mxu0 %v918
      %1527 = vmatpush1.bf16.msra.mxu0 %v917
      %1528 = vmatprep.subr.bf16.mxu0 %v926
      %1529 = vmatpush1.bf16.msra.mxu0 %v925
      %1530 = vmatprep.subr.bf16.mxu0 %v934
      %1531 = vmatpush1.bf16.msra.mxu0 %v933
      %1532 = vmatprep.subr.bf16.mxu0 %v942
      %1533 = vmatpush1.bf16.msra.mxu0 %v941
      %1534 = vmatprep.mubr.bf16.mxu0 %v1412
      %1535 = vmatmul.mubr.bf16.gmra.mrb[0].mxu0 %v1411
      %v1536 = vpop.f32.mrb[0].mxu0
      %v1537 = vadd.f32 %v1433, %v1536
      %v1538 = vpop.f32.mrb[0].mxu0
      %v1539 = vadd.f32 %v1435, %v1538
      %v1540 = vpop.f32.mrb[0].mxu0
      %v1541 = vpop.f32.mrb[0].mxu0
      %1542 = vdwg.mxu0
      %1543 = vmatprep.subr.bf16.mxu0 %v824
      %1544 = vmatpush1.bf16.msra.mxu0 %v823
      %1545 = vmatprep.subr.bf16.mxu0 %v832
      %1546 = vmatpush1.bf16.msra.mxu0 %v831
      %1547 = vmatprep.subr.bf16.mxu0 %v840
      %1548 = vmatpush1.bf16.msra.mxu0 %v839
      %1549 = vmatprep.subr.bf16.mxu0 %v848
      %1550 = vmatpush1.bf16.msra.mxu0 %v847
      %1551 = vmatprep.subr.bf16.mxu0 %v856
      %1552 = vmatpush1.bf16.msra.mxu0 %v855
      %1553 = vmatprep.subr.bf16.mxu0 %v864
      %1554 = vmatpush1.bf16.msra.mxu0 %v863
      %1555 = vmatprep.subr.bf16.mxu0 %v872
      %1556 = vmatpush1.bf16.msra.mxu0 %v871
      %1557 = vmatprep.subr.bf16.mxu0 %v880
      %1558 = vmatpush1.bf16.msra.mxu0 %v879
      %1559 = vmatprep.subr.bf16.mxu0 %v888
      %1560 = vmatpush1.bf16.msra.mxu0 %v887
      %1561 = vmatprep.subr.bf16.mxu0 %v896
      %1562 = vmatpush1.bf16.msra.mxu0 %v895
      %1563 = vmatprep.subr.bf16.mxu0 %v904
      %1564 = vmatpush1.bf16.msra.mxu0 %v903
      %1565 = vmatprep.subr.bf16.mxu0 %v912
      %1566 = vmatpush1.bf16.msra.mxu0 %v911
      %1567 = vmatprep.subr.bf16.mxu0 %v920
      %1568 = vmatpush1.bf16.msra.mxu0 %v919
      %1569 = vmatprep.subr.bf16.mxu0 %v928
      %1570 = vmatpush1.bf16.msra.mxu0 %v927
      %1571 = vmatprep.subr.bf16.mxu0 %v936
      %1572 = vmatpush1.bf16.msra.mxu0 %v935
      %1573 = vmatprep.subr.bf16.mxu0 %v944
      %1574 = vmatpush1.bf16.msra.mxu0 %v943
      %1575 = vmatprep.mubr.bf16.mxu0 %v1412
      %1576 = vmatmul.mubr.bf16.gmra.mrb[0].mxu0 %v1411
      %v1577 = vpop.f32.mrb[0].mxu0
      %v1578 = vadd.f32 %v1443, %v1577
      %v1579 = vpop.f32.mrb[0].mxu0
      %v1580 = vadd.f32 %v1451, %v1579
      %v1581 = vpop.f32.mrb[0].mxu0
      %v1582 = vpop.f32.mrb[0].mxu0
      %1583 = vdwg.mxu0
      %1584 = vmatprep.subr.bf16.mxu0 %v826
      %1585 = vmatpush1.bf16.msra.mxu0 %v825
      %1586 = vmatprep.subr.bf16.mxu0 %v834
      %1587 = vmatpush1.bf16.msra.mxu0 %v833
      %1588 = vmatprep.subr.bf16.mxu0 %v842
      %1589 = vmatpush1.bf16.msra.mxu0 %v841
      %1590 = vmatprep.subr.bf16.mxu0 %v850
      %1591 = vmatpush1.bf16.msra.mxu0 %v849
      %1592 = vmatprep.subr.bf16.mxu0 %v858
      %1593 = vmatpush1.bf16.msra.mxu0 %v857
      %1594 = vmatprep.subr.bf16.mxu0 %v866
      %1595 = vmatpush1.bf16.msra.mxu0 %v865
      %1596 = vmatprep.subr.bf16.mxu0 %v874
      %1597 = vmatpush1.bf16.msra.mxu0 %v873
      %1598 = vmatprep.subr.bf16.mxu0 %v882
      %1599 = vmatpush1.bf16.msra.mxu0 %v881
      %1600 = vmatprep.subr.bf16.mxu0 %v890
      %1601 = vmatpush1.bf16.msra.mxu0 %v889
      %1602 = vmatprep.subr.bf16.mxu0 %v898
      %1603 = vmatpush1.bf16.msra.mxu0 %v897
      %1604 = vmatprep.subr.bf16.mxu0 %v906
      %1605 = vmatpush1.bf16.msra.mxu0 %v905
      %1606 = vmatprep.subr.bf16.mxu0 %v914
      %1607 = vmatpush1.bf16.msra.mxu0 %v913
      %1608 = vmatprep.subr.bf16.mxu0 %v922
      %1609 = vmatpush1.bf16.msra.mxu0 %v921
      %1610 = vmatprep.subr.bf16.mxu0 %v930
      %1611 = vmatpush1.bf16.msra.mxu0 %v929
      %1612 = vmatprep.subr.bf16.mxu0 %v938
      %1613 = vmatpush1.bf16.msra.mxu0 %v937
      %1614 = vmatprep.subr.bf16.mxu0 %v946
      %1615 = vmatpush1.bf16.msra.mxu0 %v945
      %1616 = vmatprep.mubr.bf16.mxu0 %v1412
      %1617 = vmatmul.mubr.bf16.gmra.mrb[0].mxu0 %v1411
      %v1618 = vpop.f32.mrb[0].mxu0
      %v1619 = vadd.f32 %v1450, %v1618
      %v1620 = vpop.f32.mrb[0].mxu0
      %v1621 = vadd.f32 %v1452, %v1620
      %v1622 = vpop.f32.mrb[0].mxu0
      %v1623 = vpop.f32.mrb[0].mxu0
      %1624 = vdwg.mxu0
      %v1625 = vadd.f32 %v1496, %v1287
      %v1626 = vadd.f32 %v1498, %v1291
      %v1627 = vadd.f32 %v1537, %v1295
      %v1628 = vadd.f32 %v1539, %v1299
      %v1629 = vadd.f32 %v1578, %v1303
      %v1630 = vadd.f32 %v1580, %v1307
      %v1631 = vadd.f32 %v1619, %v1311
      %v1632 = vadd.f32 %v1621, %v1315
      %v1633 = vxor.u32 %v1625, 2147483648
      %v1634 = vxor.u32 %v1626, 2147483648
      %v1635 = vxor.u32 %v1627, 2147483648
      %v1636 = vxor.u32 %v1628, 2147483648
      %v1637 = vxor.u32 %v1629, 2147483648
      %v1638 = vxor.u32 %v1630, 2147483648
      %v1639 = vmul.f32 %v1633, 1.442695
      %v1640 = vpow.pop %v1639
      %v1641 = vmul.f32 %v1634, 1.442695
      %v1642 = vpow.pop %v1641
      %v1643 = vmul.f32 %v1635, 1.442695
      %v1644 = vpow.pop %v1643
      %v1645 = vmul.f32 %v1636, 1.442695
      %v1646 = vpow.pop %v1645
      %v1647 = vmul.f32 %v1637, 1.442695
      %v1648 = vpow.pop %v1647
      %v1649 = vmul.f32 %v1638, 1.442695
      %v1650 = vpow.pop %v1649
      %v1651 = vadd.f32 %v1640, 1.0
      %v1652 = vadd.f32 %v1642, 1.0
      %v1653 = vadd.f32 %v1644, 1.0
      %v1654 = vadd.f32 %v1646, 1.0
      %v1655 = vadd.f32 %v1648, 1.0
      %v1656 = vadd.f32 %v1650, 1.0
      %v1657 = vrcp.pop %v1651
      %v1658 = vmul.f32 1.0, %v1657
      %v1659 = vrcp.pop %v1652
      %v1660 = vmul.f32 1.0, %v1659
      %v1661 = vrcp.pop %v1653
      %v1662 = vmul.f32 1.0, %v1661
      %v1663 = vrcp.pop %v1654
      %v1664 = vmul.f32 1.0, %v1663
      %v1665 = vrcp.pop %v1655
      %v1666 = vmul.f32 1.0, %v1665
      %v1667 = vrcp.pop %v1656
      %v1668 = vmul.f32 1.0, %v1667
      %v1669 = vtanh.pop %v1631
      %v1670 = vtanh.pop %v1632
      %v1671 = vmul.f32 %v1662, %v1409
      %v1672 = vmul.f32 %v1664, %v1410
      %v1673 = vmul.f32 %v1658, %v1669
      %v1674 = vmul.f32 %v1660, %v1670
      %v1675 = vadd.f32 %v1671, %v1673
      %v1676 = vadd.f32 %v1672, %v1674
      %v1677 = vtanh.pop %v1675
      %v1678 = vtanh.pop %v1676
      %v1679 = vmul.f32 %v1666, %v1677
      %v1680 = vmul.f32 %v1668, %v1678
      %v1683 = vcombine.low %v1679, %v1680
      %v1685 = vunpack.c.l.s4 1983009808
      %v1686 = vunpack.c.0.s8 %v1685
      %v1687 = vlaneseq
      %v1688 = vshrl.u32 %v1687, 7
      %v1689 = vsub.s32 %v1686, %v1688
      %v1690 = vrot.slane %v1683, %v1689
      %s1692 = scalar_lea.vmem %s277, 4
      %1693 = vst [vmem:[%s1692] sm:$0xf] %v1690
      %s1694 = sadd.s32 %s416, 1
      %p1695 = scmp.lt.s32.totalorder %s1694, 11
      %s1696 = scalar_select %p1695, 1, 0
      %v1697 = vstv %s1696
      %vm1698 = vcmp.eq.s32.totalorder %v1697, 1
      %v1699 = vsel %vm1698, %v1679, %v1407
      %v1700 = vsel %vm1698, %v1680, %v1408
      %v1701 = vsel %vm1698, %v1675, %v1409
      %v1702 = vsel %vm1698, %v1676, %v1410
      %v1703 = vpack.c.bf16 %v1699, %v1699
      %v1704 = vpack.c.bf16 %v1700, %v1700
      %s1705 = scalar_lea.vmem %s270, 16
      %v1706 = vld [vmem:[%s1705] sm:$0xff]
      %v1707 = vunpack.c.l.bf16 %v1706
      %v1708 = vunpack.c.h.bf16 %v1706
      %v1711 = vcombine.high %v1707, %v1707
      %v1713 = vunpack.c.l.s4 1983009808
      %v1714 = vunpack.c.0.s8 %v1713
      %v1715 = vlaneseq
      %v1716 = vshrl.u32 %v1715, 7
      %v1717 = vsub.s32 %v1714, %v1716
      %v1718 = vrot.slane %v1707, %v1717
      %v1720 = vunpack.c.l.s4 1983009808
      %v1721 = vunpack.c.0.s8 %v1720
      %v1722 = vlaneseq
      %v1723 = vshrl.u32 %v1722, 7
      %v1724 = vsub.s32 %v1721, %v1723
      %v1725 = vrot.slane %v1711, %v1724
      %v1726 = vcombine.high %v1718, %v1718
      %v1727 = vcombine.high %v1725, %v1725
      %v1728 = vcombine.high %v1708, %v1708
      %v1730 = vunpack.c.l.s4 1983009808
      %v1731 = vunpack.c.0.s8 %v1730
      %v1732 = vlaneseq
      %v1733 = vshrl.u32 %v1732, 7
      %v1734 = vsub.s32 %v1731, %v1733
      %v1735 = vrot.slane %v1708, %v1734
      %v1737 = vunpack.c.l.s4 1983009808
      %v1738 = vunpack.c.0.s8 %v1737
      %v1739 = vlaneseq
      %v1740 = vshrl.u32 %v1739, 7
      %v1741 = vsub.s32 %v1738, %v1740
      %v1742 = vrot.slane %v1728, %v1741
      %v1743 = vcombine.high %v1735, %v1735
      %v1744 = vcombine.high %v1742, %v1742
      %1753 = vmatprep.subr.bf16.mxu0 %v820
      %1754 = vmatpush1.bf16.msra.mxu0 %v819
      %1755 = vmatprep.subr.bf16.mxu0 %v828
      %1756 = vmatpush1.bf16.msra.mxu0 %v827
      %1757 = vmatprep.subr.bf16.mxu0 %v836
      %1758 = vmatpush1.bf16.msra.mxu0 %v835
      %1759 = vmatprep.subr.bf16.mxu0 %v844
      %1760 = vmatpush1.bf16.msra.mxu0 %v843
      %1761 = vmatprep.subr.bf16.mxu0 %v852
      %1762 = vmatpush1.bf16.msra.mxu0 %v851
      %1763 = vmatprep.subr.bf16.mxu0 %v860
      %1764 = vmatpush1.bf16.msra.mxu0 %v859
      %1765 = vmatprep.subr.bf16.mxu0 %v868
      %1766 = vmatpush1.bf16.msra.mxu0 %v867
      %1767 = vmatprep.subr.bf16.mxu0 %v876
      %1768 = vmatpush1.bf16.msra.mxu0 %v875
      %1769 = vmatprep.subr.bf16.mxu0 %v884
      %1770 = vmatpush1.bf16.msra.mxu0 %v883
      %1771 = vmatprep.subr.bf16.mxu0 %v892
      %1772 = vmatpush1.bf16.msra.mxu0 %v891
      %1773 = vmatprep.subr.bf16.mxu0 %v900
      %1774 = vmatpush1.bf16.msra.mxu0 %v899
      %1775 = vmatprep.subr.bf16.mxu0 %v908
      %1776 = vmatpush1.bf16.msra.mxu0 %v907
      %1777 = vmatprep.subr.bf16.mxu0 %v916
      %1778 = vmatpush1.bf16.msra.mxu0 %v915
      %1779 = vmatprep.subr.bf16.mxu0 %v924
      %1780 = vmatpush1.bf16.msra.mxu0 %v923
      %1781 = vmatprep.subr.bf16.mxu0 %v932
      %1782 = vmatpush1.bf16.msra.mxu0 %v931
      %1783 = vmatprep.subr.bf16.mxu0 %v940
      %1784 = vmatpush1.bf16.msra.mxu0 %v939
      %1785 = vmatprep.mubr.bf16.mxu0 %v1704
      %1786 = vmatmul.mubr.bf16.gmra.mrb[0].mxu0 %v1703
      %v1787 = vpop.f32.mrb[0].mxu0
      %v1788 = vadd.f32 %v1718, %v1787
      %v1789 = vpop.f32.mrb[0].mxu0
      %v1790 = vadd.f32 %v1726, %v1789
      %v1791 = vpop.f32.mrb[0].mxu0
      %v1792 = vpop.f32.mrb[0].mxu0
      %1793 = vdwg.mxu0
      %1794 = vmatprep.subr.bf16.mxu0 %v822
      %1795 = vmatpush1.bf16.msra.mxu0 %v821
      %1796 = vmatprep.subr.bf16.mxu0 %v830
      %1797 = vmatpush1.bf16.msra.mxu0 %v829
      %1798 = vmatprep.subr.bf16.mxu0 %v838
      %1799 = vmatpush1.bf16.msra.mxu0 %v837
      %1800 = vmatprep.subr.bf16.mxu0 %v846
      %1801 = vmatpush1.bf16.msra.mxu0 %v845
      %1802 = vmatprep.subr.bf16.mxu0 %v854
      %1803 = vmatpush1.bf16.msra.mxu0 %v853
      %1804 = vmatprep.subr.bf16.mxu0 %v862
      %1805 = vmatpush1.bf16.msra.mxu0 %v861
      %1806 = vmatprep.subr.bf16.mxu0 %v870
      %1807 = vmatpush1.bf16.msra.mxu0 %v869
      %1808 = vmatprep.subr.bf16.mxu0 %v878
      %1809 = vmatpush1.bf16.msra.mxu0 %v877
      %1810 = vmatprep.subr.bf16.mxu0 %v886
      %1811 = vmatpush1.bf16.msra.mxu0 %v885
      %1812 = vmatprep.subr.bf16.mxu0 %v894
      %1813 = vmatpush1.bf16.msra.mxu0 %v893
      %1814 = vmatprep.subr.bf16.mxu0 %v902
      %1815 = vmatpush1.bf16.msra.mxu0 %v901
      %1816 = vmatprep.subr.bf16.mxu0 %v910
      %1817 = vmatpush1.bf16.msra.mxu0 %v909
      %1818 = vmatprep.subr.bf16.mxu0 %v918
      %1819 = vmatpush1.bf16.msra.mxu0 %v917
      %1820 = vmatprep.subr.bf16.mxu0 %v926
      %1821 = vmatpush1.bf16.msra.mxu0 %v925
      %1822 = vmatprep.subr.bf16.mxu0 %v934
      %1823 = vmatpush1.bf16.msra.mxu0 %v933
      %1824 = vmatprep.subr.bf16.mxu0 %v942
      %1825 = vmatpush1.bf16.msra.mxu0 %v941
      %1826 = vmatprep.mubr.bf16.mxu0 %v1704
      %1827 = vmatmul.mubr.bf16.gmra.mrb[0].mxu0 %v1703
      %v1828 = vpop.f32.mrb[0].mxu0
      %v1829 = vadd.f32 %v1725, %v1828
      %v1830 = vpop.f32.mrb[0].mxu0
      %v1831 = vadd.f32 %v1727, %v1830
      %v1832 = vpop.f32.mrb[0].mxu0
      %v1833 = vpop.f32.mrb[0].mxu0
      %1834 = vdwg.mxu0
      %1835 = vmatprep.subr.bf16.mxu0 %v824
      %1836 = vmatpush1.bf16.msra.mxu0 %v823
      %1837 = vmatprep.subr.bf16.mxu0 %v832
      %1838 = vmatpush1.bf16.msra.mxu0 %v831
      %1839 = vmatprep.subr.bf16.mxu0 %v840
      %1840 = vmatpush1.bf16.msra.mxu0 %v839
      %1841 = vmatprep.subr.bf16.mxu0 %v848
      %1842 = vmatpush1.bf16.msra.mxu0 %v847
      %1843 = vmatprep.subr.bf16.mxu0 %v856
      %1844 = vmatpush1.bf16.msra.mxu0 %v855
      %1845 = vmatprep.subr.bf16.mxu0 %v864
      %1846 = vmatpush1.bf16.msra.mxu0 %v863
      %1847 = vmatprep.subr.bf16.mxu0 %v872
      %1848 = vmatpush1.bf16.msra.mxu0 %v871
      %1849 = vmatprep.subr.bf16.mxu0 %v880
      %1850 = vmatpush1.bf16.msra.mxu0 %v879
      %1851 = vmatprep.subr.bf16.mxu0 %v888
      %1852 = vmatpush1.bf16.msra.mxu0 %v887
      %1853 = vmatprep.subr.bf16.mxu0 %v896
      %1854 = vmatpush1.bf16.msra.mxu0 %v895
      %1855 = vmatprep.subr.bf16.mxu0 %v904
      %1856 = vmatpush1.bf16.msra.mxu0 %v903
      %1857 = vmatprep.subr.bf16.mxu0 %v912
      %1858 = vmatpush1.bf16.msra.mxu0 %v911
      %1859 = vmatprep.subr.bf16.mxu0 %v920
      %1860 = vmatpush1.bf16.msra.mxu0 %v919
      %1861 = vmatprep.subr.bf16.mxu0 %v928
      %1862 = vmatpush1.bf16.msra.mxu0 %v927
      %1863 = vmatprep.subr.bf16.mxu0 %v936
      %1864 = vmatpush1.bf16.msra.mxu0 %v935
      %1865 = vmatprep.subr.bf16.mxu0 %v944
      %1866 = vmatpush1.bf16.msra.mxu0 %v943
      %1867 = vmatprep.mubr.bf16.mxu0 %v1704
      %1868 = vmatmul.mubr.bf16.gmra.mrb[0].mxu0 %v1703
      %v1869 = vpop.f32.mrb[0].mxu0
      %v1870 = vadd.f32 %v1735, %v1869
      %v1871 = vpop.f32.mrb[0].mxu0
      %v1872 = vadd.f32 %v1743, %v1871
      %v1873 = vpop.f32.mrb[0].mxu0
      %v1874 = vpop.f32.mrb[0].mxu0
      %1875 = vdwg.mxu0
      %1876 = vmatprep.subr.bf16.mxu0 %v826
      %1877 = vmatpush1.bf16.msra.mxu0 %v825
      %1878 = vmatprep.subr.bf16.mxu0 %v834
      %1879 = vmatpush1.bf16.msra.mxu0 %v833
      %1880 = vmatprep.subr.bf16.mxu0 %v842
      %1881 = vmatpush1.bf16.msra.mxu0 %v841
      %1882 = vmatprep.subr.bf16.mxu0 %v850
      %1883 = vmatpush1.bf16.msra.mxu0 %v849
      %1884 = vmatprep.subr.bf16.mxu0 %v858
      %1885 = vmatpush1.bf16.msra.mxu0 %v857
      %1886 = vmatprep.subr.bf16.mxu0 %v866
      %1887 = vmatpush1.bf16.msra.mxu0 %v865
      %1888 = vmatprep.subr.bf16.mxu0 %v874
      %1889 = vmatpush1.bf16.msra.mxu0 %v873
      %1890 = vmatprep.subr.bf16.mxu0 %v882
      %1891 = vmatpush1.bf16.msra.mxu0 %v881
      %1892 = vmatprep.subr.bf16.mxu0 %v890
      %1893 = vmatpush1.bf16.msra.mxu0 %v889
      %1894 = vmatprep.subr.bf16.mxu0 %v898
      %1895 = vmatpush1.bf16.msra.mxu0 %v897
      %1896 = vmatprep.subr.bf16.mxu0 %v906
      %1897 = vmatpush1.bf16.msra.mxu0 %v905
      %1898 = vmatprep.subr.bf16.mxu0 %v914
      %1899 = vmatpush1.bf16.msra.mxu0 %v913
      %1900 = vmatprep.subr.bf16.mxu0 %v922
      %1901 = vmatpush1.bf16.msra.mxu0 %v921
      %1902 = vmatprep.subr.bf16.mxu0 %v930
      %1903 = vmatpush1.bf16.msra.mxu0 %v929
      %1904 = vmatprep.subr.bf16.mxu0 %v938
      %1905 = vmatpush1.bf16.msra.mxu0 %v937
      %1906 = vmatprep.subr.bf16.mxu0 %v946
      %1907 = vmatpush1.bf16.msra.mxu0 %v945
      %1908 = vmatprep.mubr.bf16.mxu0 %v1704
      %1909 = vmatmul.mubr.bf16.gmra.mrb[0].mxu0 %v1703
      %v1910 = vpop.f32.mrb[0].mxu0
      %v1911 = vadd.f32 %v1742, %v1910
      %v1912 = vpop.f32.mrb[0].mxu0
      %v1913 = vadd.f32 %v1744, %v1912
      %v1914 = vpop.f32.mrb[0].mxu0
      %v1915 = vpop.f32.mrb[0].mxu0
      %1916 = vdwg.mxu0
      %v1917 = vadd.f32 %v1788, %v1287
      %v1918 = vadd.f32 %v1790, %v1291
      %v1919 = vadd.f32 %v1829, %v1295
      %v1920 = vadd.f32 %v1831, %v1299
      %v1921 = vadd.f32 %v1870, %v1303
      %v1922 = vadd.f32 %v1872, %v1307
      %v1923 = vadd.f32 %v1911, %v1311
      %v1924 = vadd.f32 %v1913, %v1315
      %v1925 = vxor.u32 %v1917, 2147483648
      %v1926 = vxor.u32 %v1918, 2147483648
      %v1927 = vxor.u32 %v1919, 2147483648
      %v1928 = vxor.u32 %v1920, 2147483648
      %v1929 = vxor.u32 %v1921, 2147483648
      %v1930 = vxor.u32 %v1922, 2147483648
      %v1931 = vmul.f32 %v1925, 1.442695
      %v1932 = vpow.pop %v1931
      %v1933 = vmul.f32 %v1926, 1.442695
      %v1934 = vpow.pop %v1933
      %v1935 = vmul.f32 %v1927, 1.442695
      %v1936 = vpow.pop %v1935
      %v1937 = vmul.f32 %v1928, 1.442695
      %v1938 = vpow.pop %v1937
      %v1939 = vmul.f32 %v1929, 1.442695
      %v1940 = vpow.pop %v1939
      %v1941 = vmul.f32 %v1930, 1.442695
      %v1942 = vpow.pop %v1941
      %v1943 = vadd.f32 %v1932, 1.0
      %v1944 = vadd.f32 %v1934, 1.0
      %v1945 = vadd.f32 %v1936, 1.0
      %v1946 = vadd.f32 %v1938, 1.0
      %v1947 = vadd.f32 %v1940, 1.0
      %v1948 = vadd.f32 %v1942, 1.0
      %v1949 = vrcp.pop %v1943
      %v1950 = vmul.f32 1.0, %v1949
      %v1951 = vrcp.pop %v1944
      %v1952 = vmul.f32 1.0, %v1951
      %v1953 = vrcp.pop %v1945
      %v1954 = vmul.f32 1.0, %v1953
      %v1955 = vrcp.pop %v1946
      %v1956 = vmul.f32 1.0, %v1955
      %v1957 = vrcp.pop %v1947
      %v1958 = vmul.f32 1.0, %v1957
      %v1959 = vrcp.pop %v1948
      %v1960 = vmul.f32 1.0, %v1959
      %v1961 = vtanh.pop %v1923
      %v1962 = vtanh.pop %v1924
      %v1963 = vmul.f32 %v1954, %v1701
      %v1964 = vmul.f32 %v1956, %v1702
      %v1965 = vmul.f32 %v1950, %v1961
      %v1966 = vmul.f32 %v1952, %v1962
      %v1967 = vadd.f32 %v1963, %v1965
      %v1968 = vadd.f32 %v1964, %v1966
      %v1969 = vtanh.pop %v1967
      %v1970 = vtanh.pop %v1968
      %v1971 = vmul.f32 %v1958, %v1969
      %v1972 = vmul.f32 %v1960, %v1970
      %v1975 = vcombine.low %v1971, %v1972
      %v1977 = vunpack.c.l.s4 1983009808
      %v1978 = vunpack.c.0.s8 %v1977
      %v1979 = vlaneseq
      %v1980 = vshrl.u32 %v1979, 7
      %v1981 = vsub.s32 %v1978, %v1980
      %v1982 = vrot.slane %v1975, %v1981
      %s1984 = scalar_lea.vmem %s277, 8
      %1985 = vst [vmem:[%s1984] sm:$0xf] %v1982
      %s1986 = sadd.s32 %s416, 2
      %p1987 = scmp.lt.s32.totalorder %s1986, 11
      %s1988 = scalar_select %p1987, 1, 0
      %v1989 = vstv %s1988
      %vm1990 = vcmp.eq.s32.totalorder %v1989, 1
      %v1991 = vsel %vm1990, %v1971, %v1699
      %v1992 = vsel %vm1990, %v1972, %v1700
      %v1993 = vsel %vm1990, %v1967, %v1701
      %v1994 = vsel %vm1990, %v1968, %v1702
      %v1995 = vpack.c.bf16 %v1991, %v1991
      %v1996 = vpack.c.bf16 %v1992, %v1992
      %s1997 = scalar_lea.vmem %s270, 24
      %v1998 = vld [vmem:[%s1997] sm:$0xff]
      %v1999 = vunpack.c.l.bf16 %v1998
      %v2000 = vunpack.c.h.bf16 %v1998
      %v2003 = vcombine.high %v1999, %v1999
      %v2005 = vunpack.c.l.s4 1983009808
      %v2006 = vunpack.c.0.s8 %v2005
      %v2007 = vlaneseq
      %v2008 = vshrl.u32 %v2007, 7
      %v2009 = vsub.s32 %v2006, %v2008
      %v2010 = vrot.slane %v1999, %v2009
      %v2012 = vunpack.c.l.s4 1983009808
      %v2013 = vunpack.c.0.s8 %v2012
      %v2014 = vlaneseq
      %v2015 = vshrl.u32 %v2014, 7
      %v2016 = vsub.s32 %v2013, %v2015
      %v2017 = vrot.slane %v2003, %v2016
      %v2018 = vcombine.high %v2010, %v2010
      %v2019 = vcombine.high %v2017, %v2017
      %v2020 = vcombine.high %v2000, %v2000
      %v2022 = vunpack.c.l.s4 1983009808
      %v2023 = vunpack.c.0.s8 %v2022
      %v2024 = vlaneseq
      %v2025 = vshrl.u32 %v2024, 7
      %v2026 = vsub.s32 %v2023, %v2025
      %v2027 = vrot.slane %v2000, %v2026
      %v2029 = vunpack.c.l.s4 1983009808
      %v2030 = vunpack.c.0.s8 %v2029
      %v2031 = vlaneseq
      %v2032 = vshrl.u32 %v2031, 7
      %v2033 = vsub.s32 %v2030, %v2032
      %v2034 = vrot.slane %v2020, %v2033
      %v2035 = vcombine.high %v2027, %v2027
      %v2036 = vcombine.high %v2034, %v2034
      %2045 = vmatprep.subr.bf16.mxu0 %v820
      %2046 = vmatpush1.bf16.msra.mxu0 %v819
      %2047 = vmatprep.subr.bf16.mxu0 %v828
      %2048 = vmatpush1.bf16.msra.mxu0 %v827
      %2049 = vmatprep.subr.bf16.mxu0 %v836
      %2050 = vmatpush1.bf16.msra.mxu0 %v835
      %2051 = vmatprep.subr.bf16.mxu0 %v844
      %2052 = vmatpush1.bf16.msra.mxu0 %v843
      %2053 = vmatprep.subr.bf16.mxu0 %v852
      %2054 = vmatpush1.bf16.msra.mxu0 %v851
      %2055 = vmatprep.subr.bf16.mxu0 %v860
      %2056 = vmatpush1.bf16.msra.mxu0 %v859
      %2057 = vmatprep.subr.bf16.mxu0 %v868
      %2058 = vmatpush1.bf16.msra.mxu0 %v867
      %2059 = vmatprep.subr.bf16.mxu0 %v876
      %2060 = vmatpush1.bf16.msra.mxu0 %v875
      %2061 = vmatprep.subr.bf16.mxu0 %v884
      %2062 = vmatpush1.bf16.msra.mxu0 %v883
      %2063 = vmatprep.subr.bf16.mxu0 %v892
      %2064 = vmatpush1.bf16.msra.mxu0 %v891
      %2065 = vmatprep.subr.bf16.mxu0 %v900
      %2066 = vmatpush1.bf16.msra.mxu0 %v899
      %2067 = vmatprep.subr.bf16.mxu0 %v908
      %2068 = vmatpush1.bf16.msra.mxu0 %v907
      %2069 = vmatprep.subr.bf16.mxu0 %v916
      %2070 = vmatpush1.bf16.msra.mxu0 %v915
      %2071 = vmatprep.subr.bf16.mxu0 %v924
      %2072 = vmatpush1.bf16.msra.mxu0 %v923
      %2073 = vmatprep.subr.bf16.mxu0 %v932
      %2074 = vmatpush1.bf16.msra.mxu0 %v931
      %2075 = vmatprep.subr.bf16.mxu0 %v940
      %2076 = vmatpush1.bf16.msra.mxu0 %v939
      %2077 = vmatprep.mubr.bf16.mxu0 %v1996
      %2078 = vmatmul.mubr.bf16.gmra.mrb[0].mxu0 %v1995
      %v2079 = vpop.f32.mrb[0].mxu0
      %v2080 = vadd.f32 %v2010, %v2079
      %v2081 = vpop.f32.mrb[0].mxu0
      %v2082 = vadd.f32 %v2018, %v2081
      %v2083 = vpop.f32.mrb[0].mxu0
      %v2084 = vpop.f32.mrb[0].mxu0
      %2085 = vdwg.mxu0
      %2086 = vmatprep.subr.bf16.mxu0 %v822
      %2087 = vmatpush1.bf16.msra.mxu0 %v821
      %2088 = vmatprep.subr.bf16.mxu0 %v830
      %2089 = vmatpush1.bf16.msra.mxu0 %v829
      %2090 = vmatprep.subr.bf16.mxu0 %v838
      %2091 = vmatpush1.bf16.msra.mxu0 %v837
      %2092 = vmatprep.subr.bf16.mxu0 %v846
      %2093 = vmatpush1.bf16.msra.mxu0 %v845
      %2094 = vmatprep.subr.bf16.mxu0 %v854
      %2095 = vmatpush1.bf16.msra.mxu0 %v853
      %2096 = vmatprep.subr.bf16.mxu0 %v862
      %2097 = vmatpush1.bf16.msra.mxu0 %v861
      %2098 = vmatprep.subr.bf16.mxu0 %v870
      %2099 = vmatpush1.bf16.msra.mxu0 %v869
      %2100 = vmatprep.subr.bf16.mxu0 %v878
      %2101 = vmatpush1.bf16.msra.mxu0 %v877
      %2102 = vmatprep.subr.bf16.mxu0 %v886
      %2103 = vmatpush1.bf16.msra.mxu0 %v885
      %2104 = vmatprep.subr.bf16.mxu0 %v894
      %2105 = vmatpush1.bf16.msra.mxu0 %v893
      %2106 = vmatprep.subr.bf16.mxu0 %v902
      %2107 = vmatpush1.bf16.msra.mxu0 %v901
      %2108 = vmatprep.subr.bf16.mxu0 %v910
      %2109 = vmatpush1.bf16.msra.mxu0 %v909
      %2110 = vmatprep.subr.bf16.mxu0 %v918
      %2111 = vmatpush1.bf16.msra.mxu0 %v917
      %2112 = vmatprep.subr.bf16.mxu0 %v926
      %2113 = vmatpush1.bf16.msra.mxu0 %v925
      %2114 = vmatprep.subr.bf16.mxu0 %v934
      %2115 = vmatpush1.bf16.msra.mxu0 %v933
      %2116 = vmatprep.subr.bf16.mxu0 %v942
      %2117 = vmatpush1.bf16.msra.mxu0 %v941
      %2118 = vmatprep.mubr.bf16.mxu0 %v1996
      %2119 = vmatmul.mubr.bf16.gmra.mrb[0].mxu0 %v1995
      %v2120 = vpop.f32.mrb[0].mxu0
      %v2121 = vadd.f32 %v2017, %v2120
      %v2122 = vpop.f32.mrb[0].mxu0
      %v2123 = vadd.f32 %v2019, %v2122
      %v2124 = vpop.f32.mrb[0].mxu0
      %v2125 = vpop.f32.mrb[0].mxu0
      %2126 = vdwg.mxu0
      %2127 = vmatprep.subr.bf16.mxu0 %v824
      %2128 = vmatpush1.bf16.msra.mxu0 %v823
      %2129 = vmatprep.subr.bf16.mxu0 %v832
      %2130 = vmatpush1.bf16.msra.mxu0 %v831
      %2131 = vmatprep.subr.bf16.mxu0 %v840
      %2132 = vmatpush1.bf16.msra.mxu0 %v839
      %2133 = vmatprep.subr.bf16.mxu0 %v848
      %2134 = vmatpush1.bf16.msra.mxu0 %v847
      %2135 = vmatprep.subr.bf16.mxu0 %v856
      %2136 = vmatpush1.bf16.msra.mxu0 %v855
      %2137 = vmatprep.subr.bf16.mxu0 %v864
      %2138 = vmatpush1.bf16.msra.mxu0 %v863
      %2139 = vmatprep.subr.bf16.mxu0 %v872
      %2140 = vmatpush1.bf16.msra.mxu0 %v871
      %2141 = vmatprep.subr.bf16.mxu0 %v880
      %2142 = vmatpush1.bf16.msra.mxu0 %v879
      %2143 = vmatprep.subr.bf16.mxu0 %v888
      %2144 = vmatpush1.bf16.msra.mxu0 %v887
      %2145 = vmatprep.subr.bf16.mxu0 %v896
      %2146 = vmatpush1.bf16.msra.mxu0 %v895
      %2147 = vmatprep.subr.bf16.mxu0 %v904
      %2148 = vmatpush1.bf16.msra.mxu0 %v903
      %2149 = vmatprep.subr.bf16.mxu0 %v912
      %2150 = vmatpush1.bf16.msra.mxu0 %v911
      %2151 = vmatprep.subr.bf16.mxu0 %v920
      %2152 = vmatpush1.bf16.msra.mxu0 %v919
      %2153 = vmatprep.subr.bf16.mxu0 %v928
      %2154 = vmatpush1.bf16.msra.mxu0 %v927
      %2155 = vmatprep.subr.bf16.mxu0 %v936
      %2156 = vmatpush1.bf16.msra.mxu0 %v935
      %2157 = vmatprep.subr.bf16.mxu0 %v944
      %2158 = vmatpush1.bf16.msra.mxu0 %v943
      %2159 = vmatprep.mubr.bf16.mxu0 %v1996
      %2160 = vmatmul.mubr.bf16.gmra.mrb[0].mxu0 %v1995
      %v2161 = vpop.f32.mrb[0].mxu0
      %v2162 = vadd.f32 %v2027, %v2161
      %v2163 = vpop.f32.mrb[0].mxu0
      %v2164 = vadd.f32 %v2035, %v2163
      %v2165 = vpop.f32.mrb[0].mxu0
      %v2166 = vpop.f32.mrb[0].mxu0
      %2167 = vdwg.mxu0
      %2168 = vmatprep.subr.bf16.mxu0 %v826
      %2169 = vmatpush1.bf16.msra.mxu0 %v825
      %2170 = vmatprep.subr.bf16.mxu0 %v834
      %2171 = vmatpush1.bf16.msra.mxu0 %v833
      %2172 = vmatprep.subr.bf16.mxu0 %v842
      %2173 = vmatpush1.bf16.msra.mxu0 %v841
      %2174 = vmatprep.subr.bf16.mxu0 %v850
      %2175 = vmatpush1.bf16.msra.mxu0 %v849
      %2176 = vmatprep.subr.bf16.mxu0 %v858
      %2177 = vmatpush1.bf16.msra.mxu0 %v857
      %2178 = vmatprep.subr.bf16.mxu0 %v866
      %2179 = vmatpush1.bf16.msra.mxu0 %v865
      %2180 = vmatprep.subr.bf16.mxu0 %v874
      %2181 = vmatpush1.bf16.msra.mxu0 %v873
      %2182 = vmatprep.subr.bf16.mxu0 %v882
      %2183 = vmatpush1.bf16.msra.mxu0 %v881
      %2184 = vmatprep.subr.bf16.mxu0 %v890
      %2185 = vmatpush1.bf16.msra.mxu0 %v889
      %2186 = vmatprep.subr.bf16.mxu0 %v898
      %2187 = vmatpush1.bf16.msra.mxu0 %v897
      %2188 = vmatprep.subr.bf16.mxu0 %v906
      %2189 = vmatpush1.bf16.msra.mxu0 %v905
      %2190 = vmatprep.subr.bf16.mxu0 %v914
      %2191 = vmatpush1.bf16.msra.mxu0 %v913
      %2192 = vmatprep.subr.bf16.mxu0 %v922
      %2193 = vmatpush1.bf16.msra.mxu0 %v921
      %2194 = vmatprep.subr.bf16.mxu0 %v930
      %2195 = vmatpush1.bf16.msra.mxu0 %v929
      %2196 = vmatprep.subr.bf16.mxu0 %v938
      %2197 = vmatpush1.bf16.msra.mxu0 %v937
      %2198 = vmatprep.subr.bf16.mxu0 %v946
      %2199 = vmatpush1.bf16.msra.mxu0 %v945
      %2200 = vmatprep.mubr.bf16.mxu0 %v1996
      %2201 = vmatmul.mubr.bf16.gmra.mrb[0].mxu0 %v1995
      %v2202 = vpop.f32.mrb[0].mxu0
      %v2203 = vadd.f32 %v2034, %v2202
      %v2204 = vpop.f32.mrb[0].mxu0
      %v2205 = vadd.f32 %v2036, %v2204
      %v2206 = vpop.f32.mrb[0].mxu0
      %v2207 = vpop.f32.mrb[0].mxu0
      %2208 = vdwg.mxu0
      %v2209 = vadd.f32 %v2080, %v1287
      %v2210 = vadd.f32 %v2082, %v1291
      %v2211 = vadd.f32 %v2121, %v1295
      %v2212 = vadd.f32 %v2123, %v1299
      %v2213 = vadd.f32 %v2162, %v1303
      %v2214 = vadd.f32 %v2164, %v1307
      %v2215 = vadd.f32 %v2203, %v1311
      %v2216 = vadd.f32 %v2205, %v1315
      %v2217 = vxor.u32 %v2209, 2147483648
      %v2218 = vxor.u32 %v2210, 2147483648
      %v2219 = vxor.u32 %v2211, 2147483648
      %v2220 = vxor.u32 %v2212, 2147483648
      %v2221 = vxor.u32 %v2213, 2147483648
      %v2222 = vxor.u32 %v2214, 2147483648
      %v2223 = vmul.f32 %v2217, 1.442695
      %v2224 = vpow.pop %v2223
      %v2225 = vmul.f32 %v2218, 1.442695
      %v2226 = vpow.pop %v2225
      %v2227 = vmul.f32 %v2219, 1.442695
      %v2228 = vpow.pop %v2227
      %v2229 = vmul.f32 %v2220, 1.442695
      %v2230 = vpow.pop %v2229
      %v2231 = vmul.f32 %v2221, 1.442695
      %v2232 = vpow.pop %v2231
      %v2233 = vmul.f32 %v2222, 1.442695
      %v2234 = vpow.pop %v2233
      %v2235 = vadd.f32 %v2224, 1.0
      %v2236 = vadd.f32 %v2226, 1.0
      %v2237 = vadd.f32 %v2228, 1.0
      %v2238 = vadd.f32 %v2230, 1.0
      %v2239 = vadd.f32 %v2232, 1.0
      %v2240 = vadd.f32 %v2234, 1.0
      %v2241 = vrcp.pop %v2235
      %v2242 = vmul.f32 1.0, %v2241
      %v2243 = vrcp.pop %v2236
      %v2244 = vmul.f32 1.0, %v2243
      %v2245 = vrcp.pop %v2237
      %v2246 = vmul.f32 1.0, %v2245
      %v2247 = vrcp.pop %v2238
      %v2248 = vmul.f32 1.0, %v2247
      %v2249 = vrcp.pop %v2239
      %v2250 = vmul.f32 1.0, %v2249
      %v2251 = vrcp.pop %v2240
      %v2252 = vmul.f32 1.0, %v2251
      %v2253 = vtanh.pop %v2215
      %v2254 = vtanh.pop %v2216
      %v2255 = vmul.f32 %v2246, %v1993
      %v2256 = vmul.f32 %v2248, %v1994
      %v2257 = vmul.f32 %v2242, %v2253
      %v2258 = vmul.f32 %v2244, %v2254
      %v2259 = vadd.f32 %v2255, %v2257
      %v2260 = vadd.f32 %v2256, %v2258
      %v2261 = vtanh.pop %v2259
      %v2262 = vtanh.pop %v2260
      %v2263 = vmul.f32 %v2250, %v2261
      %v2264 = vmul.f32 %v2252, %v2262
      %v2267 = vcombine.low %v2263, %v2264
      %v2269 = vunpack.c.l.s4 1983009808
      %v2270 = vunpack.c.0.s8 %v2269
      %v2271 = vlaneseq
      %v2272 = vshrl.u32 %v2271, 7
      %v2273 = vsub.s32 %v2270, %v2272
      %v2274 = vrot.slane %v2267, %v2273
      %s2276 = scalar_lea.vmem %s277, 12
      %2277 = vst [vmem:[%s2276] sm:$0xf] %v2274
      %s2278 = sadd.s32 %s416, 3
      %p2279 = scmp.lt.s32.totalorder %s2278, 11
      %s2280 = scalar_select %p2279, 1, 0
      %v2281 = vstv %s2280
      %vm2282 = vcmp.eq.s32.totalorder %v2281, 1
      %v2283 = vsel %vm2282, %v2263, %v1991
      %v2284 = vsel %vm2282, %v2264, %v1992
      %v2285 = vsel %vm2282, %v2259, %v1993
      %v2286 = vsel %vm2282, %v2260, %v1994
      %v2289 = vcombine.low %v2283, %v2284
      %v2291 = vunpack.c.l.s4 1983009808
      %v2292 = vunpack.c.0.s8 %v2291
      %v2293 = vlaneseq
      %v2294 = vshrl.u32 %v2293, 7
      %v2295 = vsub.s32 %v2292, %v2294
      %v2296 = vrot.slane %v2289, %v2295
      %2298 = vst [vmem:[%s6] sm:$0xf] %v2296
      %v2301 = vcombine.low %v2285, %v2286
      %v2303 = vunpack.c.l.s4 1983009808
      %v2304 = vunpack.c.0.s8 %v2303
      %v2305 = vlaneseq
      %v2306 = vshrl.u32 %v2305, 7
      %v2307 = vsub.s32 %v2304, %v2306
      %v2308 = vrot.slane %v2301, %v2307
      %2310 = vst [vmem:[%s7] sm:$0xf] %v2308
      %s2311 = smul.u32 4, %s19
      %p2312 = scmp.lt.s32.totalorder %s2311, 11
      %s2313 = scalar_select %p2312, %s2311, 11
      %s2314 = smul.addr %s2313, 2
      %s2315 = smul.addr %s2314, 2
      %s2316 = scalar_lea.vmem %s5, %s2315
      // Predicated region
      $region45: #{plugin_lstm_rnnt_pre.3} parent=39 // pred_check
        %p2317 = pneg %p147
      $region46: #{plugin_lstm_rnnt_pre.3} parent=39 // pred_check_branch
        %2319 = sbr.rel (%p2317) target = $region48
      $region47: #{plugin_lstm_rnnt_pre.3} parent=39 // pred_region
        %s2320 = smul.u32 4, %s19
      $region48: #{plugin_lstm_rnnt_pre.3} parent=39 // pred_fallthru
        _
      // Predicated region
      $region49: #{plugin_lstm_rnnt_pre.3} parent=39 // pred_check
        %p2321 = pneg %p168
      $region50: #{plugin_lstm_rnnt_pre.3} parent=39 // pred_check_branch
        %2323 = sbr.rel (%p2321) target = $region52
      $region51: #{plugin_lstm_rnnt_pre.3} parent=39 // pred_region
        _
      $region52: #{plugin_lstm_rnnt_pre.3} parent=39 // pred_fallthru
        _
      // Predicated region
      $region53: #{plugin_lstm_rnnt_pre.3} parent=39 // pred_check
        %p2324 = pneg %p189
      $region54: #{plugin_lstm_rnnt_pre.3} parent=39 // pred_check_branch
        %2326 = sbr.rel (%p2324) target = $region56
      $region55: #{plugin_lstm_rnnt_pre.3} parent=39 // pred_region
        _
      $region56: #{plugin_lstm_rnnt_pre.3} parent=39 // pred_fallthru
        _
      // Predicated region
      $region57: #{plugin_lstm_rnnt_pre.3} parent=39 // pred_check
        %p2327 = pneg %p168
      $region58: #{plugin_lstm_rnnt_pre.3} parent=39 // pred_check_branch
        %2329 = sbr.rel (%p2327) target = $region60
      $region59: #{plugin_lstm_rnnt_pre.3} parent=39 // pred_region
        _
      $region60: #{plugin_lstm_rnnt_pre.3} parent=39 // pred_fallthru
        _
      // Predicated region
      $region61: #{plugin_lstm_rnnt_pre.3} parent=39 // pred_check
        %p2330 = pneg %p189
      $region62: #{plugin_lstm_rnnt_pre.3} parent=39 // pred_check_branch
        %2332 = sbr.rel (%p2330) target = $region64
      $region63: #{plugin_lstm_rnnt_pre.3} parent=39 // pred_region
        _
      $region64: #{plugin_lstm_rnnt_pre.3} parent=39 // pred_fallthru
        _
    $region40: #{plugin_lstm_rnnt_pre.3} parent=5 // pred_fallthru
      _
    %p2333 = scmp.le.s32.totalorder 2, %s14
    // Predicated region
    $region65: #{plugin_lstm_rnnt_pre.3} parent=5 // pred_check
      %p2334 = pneg %p2333
    $region66: #{plugin_lstm_rnnt_pre.3} parent=5 // pred_check_branch
      %2336 = sbr.rel (%p2334) target = $region68
    $region67: #{plugin_lstm_rnnt_pre.3} parent=5 // pred_region
      %s2337 = ssub.s32 %s14, 2
      // Predicated region
      $region69: #{plugin_lstm_rnnt_pre.3} parent=67 // pred_check
        %p2338 = pneg %p153
      $region70: #{plugin_lstm_rnnt_pre.3} parent=67 // pred_check_branch
        %2340 = sbr.rel (%p2338) target = $region72
      $region71: #{plugin_lstm_rnnt_pre.3} parent=67 // pred_region
        %s2341 = smul.u32 4, %s20
        %p2342 = scmp.lt.s32.totalorder %s2341, 11
        %s2343 = scalar_select %p2342, %s2341, 11
        %s2344 = smul.addr %s2343, 2
        %s2345 = smul.addr %s2344, 2
        %s2346 = scalar_lea.vmem %s5, %s2345
      $region72: #{plugin_lstm_rnnt_pre.3} parent=67 // pred_fallthru
        _
    $region68: #{plugin_lstm_rnnt_pre.3} parent=5 // pred_fallthru
      _
  $region6: #{plugin_lstm_rnnt_pre.3} parent=0 // loop_footer
    %s18 = sadd.s32 1, %s14
  $region7: #{plugin_lstm_rnnt_pre.3} parent=0 // loop_footer_branch
    %13 = sbr.rel target = $region3
  $region8: #{plugin_lstm_rnnt_pre.3} parent=0 // loop_exit
    _

</llo_original>
